<compile_context>
chip_gen: v7x
topology: tpu7x:2x2x1
jax: 0.10.0
libtpu: 0.0.40
codegen_flags: <defaults>
</compile_context>

<pallas_src>
import jax
import jax.numpy as jnp
from jax import lax
from jax.experimental import pallas as pl
from jax.experimental.pallas import tpu as pltpu

LANE = 128


def _round_up(x, m):
    return (x + m - 1) // m * m


def _nbytes(a):
    return a.size * a.dtype.itemsize


# ------------------------------ Pallas kernel ------------------------------- #

def _make_kernel(Bblk, L, C1, Ep, Fp, OUTp, K1, n_res, Lf):
    """Builds the fused kernel for one batch block of Bblk samples."""
    M0 = Bblk * L            # flat rows (all samples stacked, stride L)
    M1 = M0 - (K1 - 1)       # flat extent after the trunk 'valid' conv
    NP = K1 // 2             # number of full tap pairs
    has_last = (K1 % 2) == 1
    f32 = jnp.float32
    bf16 = jnp.bfloat16

    def kernel(xcol_ref, w1_ref, bp_ref, twp_ref, twl_ref, tb_ref,
               rw_ref, rb_ref, ow_ref, ob_ref, out_ref,
               h_scr, xa_scr, xb_scr):
        # ---- stage 1: 'same' conv as ONE big-M matmul over the whole block ----
        x2d = xcol_ref[...].reshape(M0, C1)                              # bf16
        h = jnp.dot(x2d, w1_ref[...], preferred_element_type=f32)        # (M0, Ep)
        h = h.reshape(Bblk, L, Ep) + bp_ref[...][None]                   # bias + pos
        h_scr[...] = jnp.maximum(h, 0.0).reshape(M0, Ep)

        # ---- trunk first conv: pair-stacked taps (K = 2*Ep), value accumulation
        def pair_lhs(k):
            return jnp.concatenate(
                [h_scr[pl.ds(k, M1), :], h_scr[pl.ds(k + 1, M1), :]],
                axis=-1).astype(bf16)                                    # (M1, 2*Ep)

        acc = None
        for p in range(NP):
            t = jnp.dot(pair_lhs(2 * p), twp_ref[p],
                        preferred_element_type=f32)                      # (M1, Fp)
            acc = t if acc is None else acc + t
        if has_last:
            t = jnp.dot(h_scr[pl.ds(K1 - 1, M1), :].astype(bf16), twl_ref[...],
                        preferred_element_type=f32)
            acc = t if acc is None else acc + t
        xa_scr[pl.ds(0, M1), :] = jnp.maximum(acc + tb_ref[...], 0.0)    # single store

        # ---- dilated residual blocks: 3 taps fused into one K=3*Fp matmul,
        #      ping-pong between two VMEM scratch buffers (no in-place hazard).
        bufs = (xa_scr, xb_scr)
        cur = M1
        for i in range(n_res):
            d = 2 ** i
            new = cur - 2 * d
            src = bufs[i % 2]
            dst = bufs[(i + 1) % 2]
            center = src[pl.ds(d, new), :]                               # f32 (new, Fp)
            lhs = jnp.concatenate(
                [src[pl.ds(0, new), :], center, src[pl.ds(2 * d, new), :]],
                axis=-1).astype(bf16)                                    # (new, 3*Fp)
            y = jnp.dot(lhs, rw_ref[i], preferred_element_type=f32)
            y = jnp.maximum(y + rb_ref[i], 0.0)
            dst[pl.ds(0, new), :] = center + y                           # crop + add
            cur = new

        # ---- per-sample mean over valid length (1/Lf folded into ow) + linear
        xf = bufs[n_res % 2][...].reshape(Bblk, L, Fp)
        s = jnp.sum(xf[:, 0:Lf, :], axis=1)                              # (Bblk, Fp)
        out = jnp.dot(s, ow_ref[...], preferred_element_type=f32) + ob_ref[...]
        out_ref[...] = out.reshape(Bblk, 1, OUTp)

    return kernel


# --------------------------------- wrapper ----------------------------------- #

def model_forward(x, params):
    """x: (B, seq_len, 4) float32.  Returns (B, output_size)."""
    B, L, Cin = x.shape
    E, _, K0 = params["iconv_w"].shape
    F_, _, K1 = params["trunk_iconv_w"].shape
    n_res = len(params["trunk_rconv_w"])
    OUT = params["out_w"].shape[0]
    assert K1 >= 2 and n_res >= 1

    Ep = _round_up(E, LANE)
    Fp = _round_up(F_, LANE)
    OUTp = _round_up(OUT, LANE)
    C1 = K0 * Cin

    dil_sum = sum(2 ** i for i in range(n_res))
    Lf = L - (K1 - 1) - 2 * dil_sum          # valid length going into the mean
    assert Lf > 0

    # Batch blocking: amortize grid overhead; keep the grid length >= 2 (v7x 2 TCs).
    Bblk = max(1, min(8, -(-B // 2)))
    Bpad = _round_up(B, Bblk)
    G = Bpad // Bblk
    M0 = Bblk * L
    M1 = M0 - (K1 - 1)
    NP = K1 // 2

    f32, bf16 = jnp.float32, jnp.bfloat16
    x = x.astype(f32)

    # ---- stage-1 'same' conv folded into one matmul: im2col of the 4-ch input.
    # TODO(synk): at very large L the im2col could be built inside the kernel; with
    # only 4 input channels the extra HBM traffic here is negligible.
    left = (K0 - 1) // 2
    right = (K0 - 1) - left
    xpad = jnp.pad(x, ((0, 0), (left, right), (0, 0)))
    xcol = jnp.concatenate([xpad[:, k:k + L, :] for k in range(K0)], axis=-1)  # (B, L, C1)
    if Bpad > B:
        xcol = jnp.pad(xcol, ((0, Bpad - B), (0, 0), (0, 0)))
    xcol = xcol.astype(bf16)

    w1 = jnp.transpose(params["iconv_w"], (2, 1, 0)).reshape(C1, E)            # (C1, E)
    w1 = jnp.pad(w1, ((0, 0), (0, Ep - E))).astype(bf16)

    # Positional projection + iconv bias (batch independent), kept f32.
    p = params["pos_emb"] @ params["pos_proj_w"].T + params["pos_proj_b"]       # (L, E)
    bp = jnp.pad(p + params["iconv_b"][None, :], ((0, 0), (0, Ep - E))).astype(f32)

    # Trunk first-conv taps, paired along the contraction dim (K = 2*Ep).
    tw = jnp.transpose(params["trunk_iconv_w"], (2, 1, 0))                      # (K1, E, F)
    tw = jnp.pad(tw, ((0, 0), (0, Ep - E), (0, Fp - F_)))
    twp = tw[:2 * NP].reshape(NP, 2 * Ep, Fp).astype(bf16)
    twl = (tw[K1 - 1] if K1 % 2 == 1 else jnp.zeros((Ep, Fp), f32)).astype(bf16)
    tb = jnp.pad(params["trunk_iconv_b"][None, :], ((0, 0), (0, Fp - F_))).astype(f32)

    # Residual taps, 3 taps stacked along the contraction dim (K = 3*Fp).
    rw = jnp.stack([jnp.transpose(w, (2, 1, 0)) for w in params["trunk_rconv_w"]])
    rw = jnp.pad(rw, ((0, 0), (0, 0), (0, Fp - F_), (0, Fp - F_)))
    rw = rw.reshape(n_res, 3 * Fp, Fp).astype(bf16)
    rb = jnp.stack([jnp.pad(b[None, :], ((0, 0), (0, Fp - F_)))
                    for b in params["trunk_rconv_b"]]).astype(f32)              # (n_res,1,Fp)

    # Output layer: fold 1/Lf (length mean) into the weights; keep padded lanes 0.
    ow = (jnp.pad(params["out_w"].T, ((0, Fp - F_), (0, OUTp - OUT))) / Lf).astype(f32)
    ob = jnp.pad(params["out_b"][None, :], ((0, 0), (0, OUTp - OUT))).astype(f32)

    # ---- cost estimate
    flops = 2 * G * M0 * C1 * Ep + 2 * G * M1 * K1 * Ep * Fp
    cur = M1
    for i in range(n_res):
        cur -= 2 * (2 ** i)
        flops += 2 * G * cur * 3 * Fp * Fp
    flops += 2 * G * (Bblk * Lf * Fp + Bblk * Fp * OUTp)
    inputs = (xcol, w1, bp, twp, twl, tb, rw, rb, ow, ob)
    bytes_accessed = sum(_nbytes(a) for a in inputs) + Bpad * OUTp * 4
    cost = pl.CostEstimate(flops=int(flops), transcendentals=0,
                           bytes_accessed=int(bytes_accessed))

    # ---- per-generation VMEM budget (query the chip; fall back to v7x's 64 MiB)
    weight_bytes = sum(_nbytes(a) for a in inputs[1:])
    io_block = Bblk * L * C1 * 2 + Bblk * OUTp * 4
    scratch_bytes = M0 * Ep * 4 + 2 * M0 * Fp * 4
    temp_bytes = (M0 * Ep * 4 + M0 * C1 * 2 +
                  M1 * 2 * Ep * 6 + 2 * M1 * Fp * 4 +
                  M0 * 3 * Fp * 6 + 2 * M0 * Fp * 4)
    need = 2 * (io_block + weight_bytes) + scratch_bytes + temp_bytes + (4 << 20)
    try:
        cap = int(pltpu.get_tpu_info().vmem_capacity_bytes)
    except Exception:
        cap = 64 << 20
    vmem_limit = int(min(max(need, 16 << 20), (cap * 9) // 10))

    kernel = _make_kernel(Bblk, L, C1, Ep, Fp, OUTp, K1, n_res, Lf)

    def cmap(nd):
        return lambda g: (0,) * nd

    out_padded = pl.pallas_call(
        kernel,
        out_shape=jax.ShapeDtypeStruct((Bpad, 1, OUTp), f32),
        grid_spec=pltpu.PrefetchScalarGridSpec(
            num_scalar_prefetch=0,
            grid=(G,),
            in_specs=[
                pl.BlockSpec((Bblk, L, C1), lambda g: (g, 0, 0)),   # per-block input
                pl.BlockSpec((C1, Ep), cmap(2)),                    # stage-1 weights
                pl.BlockSpec((L, Ep), cmap(2)),                     # bias + pos proj
                pl.BlockSpec((NP, 2 * Ep, Fp), cmap(3)),            # paired trunk taps
                pl.BlockSpec((Ep, Fp), cmap(2)),                    # last (odd) trunk tap
                pl.BlockSpec((1, Fp), cmap(2)),                     # trunk conv bias
                pl.BlockSpec((n_res, 3 * Fp, Fp), cmap(3)),         # residual taps (fused)
                pl.BlockSpec((n_res, 1, Fp), cmap(3)),              # residual biases
                pl.BlockSpec((Fp, OUTp), cmap(2)),                  # output weights (/Lf)
                pl.BlockSpec((1, OUTp), cmap(2)),                   # output bias
            ],
            out_specs=pl.BlockSpec((Bblk, 1, OUTp), lambda g: (g, 0, 0)),
            scratch_shapes=[
                pltpu.VMEM((M0, Ep), f32),    # stage-1 activations (flat)
                pltpu.VMEM((M0, Fp), f32),    # trunk activations, ping
                pltpu.VMEM((M0, Fp), f32),    # trunk activations, pong
            ],
        ),
        compiler_params=pltpu.CompilerParams(
            dimension_semantics=("parallel",),
            vmem_limit_bytes=vmem_limit),
        cost_estimate=cost,
    )(*inputs)

    return out_padded[:B, 0, :OUT]


# ----------------------------- pure-JAX reference ---------------------------- #

def ref_forward(x, params):
    dn = ("NCH", "OIH", "NCH")
    K0 = params["iconv_w"].shape[2]
    left = (K0 - 1) // 2
    right = (K0 - 1) - left

    xc = jnp.swapaxes(x, 1, 2)                                  # (B, 4, L)
    y = lax.conv_general_dilated(xc, params["iconv_w"], (1,), [(left, right)],
                                 dimension_numbers=dn)
    y = y + params["iconv_b"][None, :, None]
    y = jnp.swapaxes(y, 1, 2)                                   # (B, L, E)
    p = params["pos_emb"] @ params["pos_proj_w"].T + params["pos_proj_b"]
    h = jnp.maximum(y + p[None], 0.0)

    xt = jnp.swapaxes(h, 1, 2)                                  # (B, E, L)
    y = lax.conv_general_dilated(xt, params["trunk_iconv_w"], (1,), [(0, 0)],
                                 dimension_numbers=dn)
    xcur = jnp.maximum(y + params["trunk_iconv_b"][None, :, None], 0.0)
    for i, (w, b) in enumerate(zip(params["trunk_rconv_w"], params["trunk_rconv_b"])):
        dil = 2 ** i
        yc = lax.conv_general_dilated(xcur, w, (1,), [(0, 0)],
                                      rhs_dilation=(dil,), dimension_numbers=dn)
        yc = jnp.maximum(yc + b[None, :, None], 0.0)
        crop = (xcur.shape[-1] - yc.shape[-1]) // 2
        xcur = xcur[:, :, crop:xcur.shape[-1] - crop] + yc
    m = jnp.mean(xcur, axis=-1)
    return m @ params["out_w"].T + params["out_b"]


# ----------------------------------- main ------------------------------------ #

if __name__ == "__main__":
    B, L = 8, 64               # batch, seq_len  (B=8 -> Bblk=4, grid=2)
    E = 8                      # emb_channels
    P = 6                      # pos_channels
    F = 16                     # n_filters_trunk
    N_RES = 2                  # n_residual_trunk
    K0 = 5                     # init_kernel_size
    K1 = 21                    # trunk first_kernel_size (module default)
    OUT = 2                    # output_size

    key = jax.random.PRNGKey(0)
    ks = jax.random.split(key, 16)

    def nrm(k, shape, scale=0.1):
        return (scale * jax.random.normal(k, shape)).astype(jnp.float32)

    params = {
        "iconv_w": nrm(ks[0], (E, 4, K0)),
        "iconv_b": nrm(ks[1], (E,)),
        # pos_emb is zeros in __init__; randomize for a non-trivial test
        "pos_emb": nrm(ks[2], (L, P)),
        "pos_proj_w": nrm(ks[3], (E, P)),
        "pos_proj_b": nrm(ks[4], (E,)),
        "trunk_iconv_w": nrm(ks[5], (F, E, K1)),
        "trunk_iconv_b": nrm(ks[6], (F,)),
        "trunk_rconv_w": [nrm(ks[7 + i], (F, F, 3)) for i in range(N_RES)],
        "trunk_rconv_b": [nrm(ks[9 + i], (F,)) for i in range(N_RES)],
        "out_w": nrm(ks[11], (OUT, F)),
        "out_b": nrm(ks[12], (OUT,)),
    }

    x = jax.random.normal(ks[13], (B, L, 4), dtype=jnp.float32)

    out = jax.block_until_ready(jax.jit(model_forward)(x, params))
    ref = jax.block_until_ready(ref_forward(x, params))

    assert out.shape == (B, OUT), out.shape
    # bf16 matmul operands (per the perf review) -> looser tolerance than pure-f32.
    assert jnp.allclose(out, ref, rtol=3e-2, atol=3e-2), (out, ref)
    print("KERNEL_OK")
</pallas_src>

<mosaic_0001>
module attributes {stable_mosaic.version = 11 : i64} {
  func.func @kernel(%arg0: i32, %arg1: memref<4x64x20xbf16, #tpu.memory_space<vmem>>, %arg2: memref<20x128xbf16, #tpu.memory_space<vmem>>, %arg3: memref<64x128xf32, #tpu.memory_space<vmem>>, %arg4: memref<10x256x128xbf16, #tpu.memory_space<vmem>>, %arg5: memref<128x128xbf16, #tpu.memory_space<vmem>>, %arg6: memref<1x128xf32, #tpu.memory_space<vmem>>, %arg7: memref<2x384x128xbf16, #tpu.memory_space<vmem>>, %arg8: memref<2x1x128xf32, #tpu.memory_space<vmem>>, %arg9: memref<128x128xf32, #tpu.memory_space<vmem>>, %arg10: memref<1x128xf32, #tpu.memory_space<vmem>>, %arg11: memref<4x1x128xf32, #tpu.memory_space<vmem>>, %arg12: memref<256x128xf32, #tpu.memory_space<vmem>>, %arg13: memref<256x128xf32, #tpu.memory_space<vmem>>, %arg14: memref<256x128xf32, #tpu.memory_space<vmem>>) attributes {dimension_semantics = [#tpu.dimension_semantics<parallel>], iteration_bounds = array<i64: 2>, scalar_prefetch = 0 : i64, scratch_operands = 3 : i64, tpu.core_type = #tpu.core_type<tc>, window_params = [{transform_indices = @transform_0, window_bounds = array<i64: 4, 64, 20>}, {pipeline_mode = #tpu.pipeline_mode<synchronous>, transform_indices = @transform_1, window_bounds = array<i64: 20, 128>}, {pipeline_mode = #tpu.pipeline_mode<synchronous>, transform_indices = @transform_2, window_bounds = array<i64: 64, 128>}, {pipeline_mode = #tpu.pipeline_mode<synchronous>, transform_indices = @transform_3, window_bounds = array<i64: 10, 256, 128>}, {pipeline_mode = #tpu.pipeline_mode<synchronous>, transform_indices = @transform_4, window_bounds = array<i64: 128, 128>}, {pipeline_mode = #tpu.pipeline_mode<synchronous>, transform_indices = @transform_5, window_bounds = array<i64: 1, 128>}, {pipeline_mode = #tpu.pipeline_mode<synchronous>, transform_indices = @transform_6, window_bounds = array<i64: 2, 384, 128>}, {pipeline_mode = #tpu.pipeline_mode<synchronous>, transform_indices = @transform_7, window_bounds = array<i64: 2, 1, 128>}, {pipeline_mode = #tpu.pipeline_mode<synchronous>, transform_indices = @transform_8, window_bounds = array<i64: 128, 128>}, {pipeline_mode = #tpu.pipeline_mode<synchronous>, transform_indices = @transform_9, window_bounds = array<i64: 1, 128>}, {transform_indices = @transform_10, window_bounds = array<i64: 4, 1, 128>}]} {
    %c0 = arith.constant 0 : index
    %c0_0 = arith.constant 0 : index
    %c0_1 = arith.constant 0 : index
    %0 = vector.load %arg1[%c0, %c0_0, %c0_1] : memref<4x64x20xbf16, #tpu.memory_space<vmem>>, vector<4x64x20xbf16>
    %1 = vector.shape_cast %0 : vector<4x64x20xbf16> to vector<256x20xbf16>
    %c0_2 = arith.constant 0 : index
    %c0_3 = arith.constant 0 : index
    %2 = vector.load %arg2[%c0_2, %c0_3] : memref<20x128xbf16, #tpu.memory_space<vmem>>, vector<20x128xbf16>
    %cst = arith.constant dense<0.000000e+00> : vector<256x128xf32>
    %3 = tpu.matmul %1, %2, %cst {dimension_numbers = #tpu.dot_dimension_numbers<[1], [0], [0], [1], [0, 0, 1, 1], [], []>} : vector<256x20xbf16>, vector<20x128xbf16>, vector<256x128xf32> -> vector<256x128xf32>
    %4 = vector.shape_cast %3 : vector<256x128xf32> to vector<4x64x128xf32>
    %c0_4 = arith.constant 0 : index
    %c0_5 = arith.constant 0 : index
    %5 = vector.load %arg3[%c0_4, %c0_5] : memref<64x128xf32, #tpu.memory_space<vmem>>, vector<64x128xf32>
    %6 = vector.shape_cast %5 : vector<64x128xf32> to vector<1x64x128xf32>
    %7 = vector.broadcast %6 : vector<1x64x128xf32> to vector<4x64x128xf32>
    %8 = arith.addf %4, %7 : vector<4x64x128xf32>
    %cst_6 = arith.constant 0.000000e+00 : f32
    %9 = vector.broadcast %cst_6 : f32 to vector<4x64x128xf32>
    %10 = arith.maximumf %8, %9 : vector<4x64x128xf32>
    %11 = vector.shape_cast %10 : vector<4x64x128xf32> to vector<256x128xf32>
    %c0_7 = arith.constant 0 : index
    %c0_8 = arith.constant 0 : index
    %12 = vector.load %arg12[%c0_7, %c0_8] : memref<256x128xf32, #tpu.memory_space<vmem>>, vector<256x128xf32>
    tpu.vector_store %arg12[%c0_7, %c0_8], %11 {strides = array<i32>} : memref<256x128xf32, #tpu.memory_space<vmem>>, vector<256x128xf32>,
    %c0_9 = arith.constant 0 : index
    %c0_10 = arith.constant 0 : index
    %13 = vector.load %arg12[%c0_9, %c0_10] : memref<256x128xf32, #tpu.memory_space<vmem>>, vector<236x128xf32>
    %c1 = arith.constant 1 : index
    %c0_11 = arith.constant 0 : index
    %14 = vector.load %arg12[%c1, %c0_11] : memref<256x128xf32, #tpu.memory_space<vmem>>, vector<236x128xf32>
    %15 = tpu.concatenate %13, %14 in 1 : vector<236x128xf32>, vector<236x128xf32> -> vector<236x256xf32>
    %16 = arith.truncf %15 : vector<236x256xf32> to vector<236x256xbf16>
    %c0_12 = arith.constant 0 : index
    %c0_13 = arith.constant 0 : index
    %c0_14 = arith.constant 0 : index
    %17 = vector.load %arg4[%c0_12, %c0_13, %c0_14] : memref<10x256x128xbf16, #tpu.memory_space<vmem>>, vector<1x256x128xbf16>
    %18 = vector.shape_cast %17 : vector<1x256x128xbf16> to vector<256x128xbf16>
    %cst_15 = arith.constant dense<0.000000e+00> : vector<236x128xf32>
    %19 = tpu.matmul %16, %18, %cst_15 {dimension_numbers = #tpu.dot_dimension_numbers<[1], [0], [0], [1], [0, 0, 1, 1], [], []>} : vector<236x256xbf16>, vector<256x128xbf16>, vector<236x128xf32> -> vector<236x128xf32>
    %c2 = arith.constant 2 : index
    %c0_16 = arith.constant 0 : index
    %20 = vector.load %arg12[%c2, %c0_16] : memref<256x128xf32, #tpu.memory_space<vmem>>, vector<236x128xf32>
    %c3 = arith.constant 3 : index
    %c0_17 = arith.constant 0 : index
    %21 = vector.load %arg12[%c3, %c0_17] : memref<256x128xf32, #tpu.memory_space<vmem>>, vector<236x128xf32>
    %22 = tpu.concatenate %20, %21 in 1 : vector<236x128xf32>, vector<236x128xf32> -> vector<236x256xf32>
    %23 = arith.truncf %22 : vector<236x256xf32> to vector<236x256xbf16>
    %c1_18 = arith.constant 1 : index
    %c0_19 = arith.constant 0 : index
    %c0_20 = arith.constant 0 : index
    %24 = vector.load %arg4[%c1_18, %c0_19, %c0_20] : memref<10x256x128xbf16, #tpu.memory_space<vmem>>, vector<1x256x128xbf16>
    %25 = vector.shape_cast %24 : vector<1x256x128xbf16> to vector<256x128xbf16>
    %cst_21 = arith.constant dense<0.000000e+00> : vector<236x128xf32>
    %26 = tpu.matmul %23, %25, %cst_21 {dimension_numbers = #tpu.dot_dimension_numbers<[1], [0], [0], [1], [0, 0, 1, 1], [], []>} : vector<236x256xbf16>, vector<256x128xbf16>, vector<236x128xf32> -> vector<236x128xf32>
    %27 = arith.addf %19, %26 : vector<236x128xf32>
    %c4 = arith.constant 4 : index
    %c0_22 = arith.constant 0 : index
    %28 = vector.load %arg12[%c4, %c0_22] : memref<256x128xf32, #tpu.memory_space<vmem>>, vector<236x128xf32>
    %c5 = arith.constant 5 : index
    %c0_23 = arith.constant 0 : index
    %29 = vector.load %arg12[%c5, %c0_23] : memref<256x128xf32, #tpu.memory_space<vmem>>, vector<236x128xf32>
    %30 = tpu.concatenate %28, %29 in 1 : vector<236x128xf32>, vector<236x128xf32> -> vector<236x256xf32>
    %31 = arith.truncf %30 : vector<236x256xf32> to vector<236x256xbf16>
    %c2_24 = arith.constant 2 : index
    %c0_25 = arith.constant 0 : index
    %c0_26 = arith.constant 0 : index
    %32 = vector.load %arg4[%c2_24, %c0_25, %c0_26] : memref<10x256x128xbf16, #tpu.memory_space<vmem>>, vector<1x256x128xbf16>
    %33 = vector.shape_cast %32 : vector<1x256x128xbf16> to vector<256x128xbf16>
    %cst_27 = arith.constant dense<0.000000e+00> : vector<236x128xf32>
    %34 = tpu.matmul %31, %33, %cst_27 {dimension_numbers = #tpu.dot_dimension_numbers<[1], [0], [0], [1], [0, 0, 1, 1], [], []>} : vector<236x256xbf16>, vector<256x128xbf16>, vector<236x128xf32> -> vector<236x128xf32>
    %35 = arith.addf %27, %34 : vector<236x128xf32>
    %c6 = arith.constant 6 : index
    %c0_28 = arith.constant 0 : index
    %36 = vector.load %arg12[%c6, %c0_28] : memref<256x128xf32, #tpu.memory_space<vmem>>, vector<236x128xf32>
    %c7 = arith.constant 7 : index
    %c0_29 = arith.constant 0 : index
    %37 = vector.load %arg12[%c7, %c0_29] : memref<256x128xf32, #tpu.memory_space<vmem>>, vector<236x128xf32>
    %38 = tpu.concatenate %36, %37 in 1 : vector<236x128xf32>, vector<236x128xf32> -> vector<236x256xf32>
    %39 = arith.truncf %38 : vector<236x256xf32> to vector<236x256xbf16>
    %c3_30 = arith.constant 3 : index
    %c0_31 = arith.constant 0 : index
    %c0_32 = arith.constant 0 : index
    %40 = vector.load %arg4[%c3_30, %c0_31, %c0_32] : memref<10x256x128xbf16, #tpu.memory_space<vmem>>, vector<1x256x128xbf16>
    %41 = vector.shape_cast %40 : vector<1x256x128xbf16> to vector<256x128xbf16>
    %cst_33 = arith.constant dense<0.000000e+00> : vector<236x128xf32>
    %42 = tpu.matmul %39, %41, %cst_33 {dimension_numbers = #tpu.dot_dimension_numbers<[1], [0], [0], [1], [0, 0, 1, 1], [], []>} : vector<236x256xbf16>, vector<256x128xbf16>, vector<236x128xf32> -> vector<236x128xf32>
    %43 = arith.addf %35, %42 : vector<236x128xf32>
    %c8 = arith.constant 8 : index
    %c0_34 = arith.constant 0 : index
    %44 = vector.load %arg12[%c8, %c0_34] : memref<256x128xf32, #tpu.memory_space<vmem>>, vector<236x128xf32>
    %c9 = arith.constant 9 : index
    %c0_35 = arith.constant 0 : index
    %45 = vector.load %arg12[%c9, %c0_35] : memref<256x128xf32, #tpu.memory_space<vmem>>, vector<236x128xf32>
    %46 = tpu.concatenate %44, %45 in 1 : vector<236x128xf32>, vector<236x128xf32> -> vector<236x256xf32>
    %47 = arith.truncf %46 : vector<236x256xf32> to vector<236x256xbf16>
    %c4_36 = arith.constant 4 : index
    %c0_37 = arith.constant 0 : index
    %c0_38 = arith.constant 0 : index
    %48 = vector.load %arg4[%c4_36, %c0_37, %c0_38] : memref<10x256x128xbf16, #tpu.memory_space<vmem>>, vector<1x256x128xbf16>
    %49 = vector.shape_cast %48 : vector<1x256x128xbf16> to vector<256x128xbf16>
    %cst_39 = arith.constant dense<0.000000e+00> : vector<236x128xf32>
    %50 = tpu.matmul %47, %49, %cst_39 {dimension_numbers = #tpu.dot_dimension_numbers<[1], [0], [0], [1], [0, 0, 1, 1], [], []>} : vector<236x256xbf16>, vector<256x128xbf16>, vector<236x128xf32> -> vector<236x128xf32>
    %51 = arith.addf %43, %50 : vector<236x128xf32>
    %c10 = arith.constant 10 : index
    %c0_40 = arith.constant 0 : index
    %52 = vector.load %arg12[%c10, %c0_40] : memref<256x128xf32, #tpu.memory_space<vmem>>, vector<236x128xf32>
    %c11 = arith.constant 11 : index
    %c0_41 = arith.constant 0 : index
    %53 = vector.load %arg12[%c11, %c0_41] : memref<256x128xf32, #tpu.memory_space<vmem>>, vector<236x128xf32>
    %54 = tpu.concatenate %52, %53 in 1 : vector<236x128xf32>, vector<236x128xf32> -> vector<236x256xf32>
    %55 = arith.truncf %54 : vector<236x256xf32> to vector<236x256xbf16>
    %c5_42 = arith.constant 5 : index
    %c0_43 = arith.constant 0 : index
    %c0_44 = arith.constant 0 : index
    %56 = vector.load %arg4[%c5_42, %c0_43, %c0_44] : memref<10x256x128xbf16, #tpu.memory_space<vmem>>, vector<1x256x128xbf16>
    %57 = vector.shape_cast %56 : vector<1x256x128xbf16> to vector<256x128xbf16>
    %cst_45 = arith.constant dense<0.000000e+00> : vector<236x128xf32>
    %58 = tpu.matmul %55, %57, %cst_45 {dimension_numbers = #tpu.dot_dimension_numbers<[1], [0], [0], [1], [0, 0, 1, 1], [], []>} : vector<236x256xbf16>, vector<256x128xbf16>, vector<236x128xf32> -> vector<236x128xf32>
    %59 = arith.addf %51, %58 : vector<236x128xf32>
    %c12 = arith.constant 12 : index
    %c0_46 = arith.constant 0 : index
    %60 = vector.load %arg12[%c12, %c0_46] : memref<256x128xf32, #tpu.memory_space<vmem>>, vector<236x128xf32>
    %c13 = arith.constant 13 : index
    %c0_47 = arith.constant 0 : index
    %61 = vector.load %arg12[%c13, %c0_47] : memref<256x128xf32, #tpu.memory_space<vmem>>, vector<236x128xf32>
    %62 = tpu.concatenate %60, %61 in 1 : vector<236x128xf32>, vector<236x128xf32> -> vector<236x256xf32>
    %63 = arith.truncf %62 : vector<236x256xf32> to vector<236x256xbf16>
    %c6_48 = arith.constant 6 : index
    %c0_49 = arith.constant 0 : index
    %c0_50 = arith.constant 0 : index
    %64 = vector.load %arg4[%c6_48, %c0_49, %c0_50] : memref<10x256x128xbf16, #tpu.memory_space<vmem>>, vector<1x256x128xbf16>
    %65 = vector.shape_cast %64 : vector<1x256x128xbf16> to vector<256x128xbf16>
    %cst_51 = arith.constant dense<0.000000e+00> : vector<236x128xf32>
    %66 = tpu.matmul %63, %65, %cst_51 {dimension_numbers = #tpu.dot_dimension_numbers<[1], [0], [0], [1], [0, 0, 1, 1], [], []>} : vector<236x256xbf16>, vector<256x128xbf16>, vector<236x128xf32> -> vector<236x128xf32>
    %67 = arith.addf %59, %66 : vector<236x128xf32>
    %c14 = arith.constant 14 : index
    %c0_52 = arith.constant 0 : index
    %68 = vector.load %arg12[%c14, %c0_52] : memref<256x128xf32, #tpu.memory_space<vmem>>, vector<236x128xf32>
    %c15 = arith.constant 15 : index
    %c0_53 = arith.constant 0 : index
    %69 = vector.load %arg12[%c15, %c0_53] : memref<256x128xf32, #tpu.memory_space<vmem>>, vector<236x128xf32>
    %70 = tpu.concatenate %68, %69 in 1 : vector<236x128xf32>, vector<236x128xf32> -> vector<236x256xf32>
    %71 = arith.truncf %70 : vector<236x256xf32> to vector<236x256xbf16>
    %c7_54 = arith.constant 7 : index
    %c0_55 = arith.constant 0 : index
    %c0_56 = arith.constant 0 : index
    %72 = vector.load %arg4[%c7_54, %c0_55, %c0_56] : memref<10x256x128xbf16, #tpu.memory_space<vmem>>, vector<1x256x128xbf16>
    %73 = vector.shape_cast %72 : vector<1x256x128xbf16> to vector<256x128xbf16>
    %cst_57 = arith.constant dense<0.000000e+00> : vector<236x128xf32>
    %74 = tpu.matmul %71, %73, %cst_57 {dimension_numbers = #tpu.dot_dimension_numbers<[1], [0], [0], [1], [0, 0, 1, 1], [], []>} : vector<236x256xbf16>, vector<256x128xbf16>, vector<236x128xf32> -> vector<236x128xf32>
    %75 = arith.addf %67, %74 : vector<236x128xf32>
    %c16 = arith.constant 16 : index
    %c0_58 = arith.constant 0 : index
    %76 = vector.load %arg12[%c16, %c0_58] : memref<256x128xf32, #tpu.memory_space<vmem>>, vector<236x128xf32>
    %c17 = arith.constant 17 : index
    %c0_59 = arith.constant 0 : index
    %77 = vector.load %arg12[%c17, %c0_59] : memref<256x128xf32, #tpu.memory_space<vmem>>, vector<236x128xf32>
    %78 = tpu.concatenate %76, %77 in 1 : vector<236x128xf32>, vector<236x128xf32> -> vector<236x256xf32>
    %79 = arith.truncf %78 : vector<236x256xf32> to vector<236x256xbf16>
    %c8_60 = arith.constant 8 : index
    %c0_61 = arith.constant 0 : index
    %c0_62 = arith.constant 0 : index
    %80 = vector.load %arg4[%c8_60, %c0_61, %c0_62] : memref<10x256x128xbf16, #tpu.memory_space<vmem>>, vector<1x256x128xbf16>
    %81 = vector.shape_cast %80 : vector<1x256x128xbf16> to vector<256x128xbf16>
    %cst_63 = arith.constant dense<0.000000e+00> : vector<236x128xf32>
    %82 = tpu.matmul %79, %81, %cst_63 {dimension_numbers = #tpu.dot_dimension_numbers<[1], [0], [0], [1], [0, 0, 1, 1], [], []>} : vector<236x256xbf16>, vector<256x128xbf16>, vector<236x128xf32> -> vector<236x128xf32>
    %83 = arith.addf %75, %82 : vector<236x128xf32>
    %c18 = arith.constant 18 : index
    %c0_64 = arith.constant 0 : index
    %84 = vector.load %arg12[%c18, %c0_64] : memref<256x128xf32, #tpu.memory_space<vmem>>, vector<236x128xf32>
    %c19 = arith.constant 19 : index
    %c0_65 = arith.constant 0 : index
    %85 = vector.load %arg12[%c19, %c0_65] : memref<256x128xf32, #tpu.memory_space<vmem>>, vector<236x128xf32>
    %86 = tpu.concatenate %84, %85 in 1 : vector<236x128xf32>, vector<236x128xf32> -> vector<236x256xf32>
    %87 = arith.truncf %86 : vector<236x256xf32> to vector<236x256xbf16>
    %c9_66 = arith.constant 9 : index
    %c0_67 = arith.constant 0 : index
    %c0_68 = arith.constant 0 : index
    %88 = vector.load %arg4[%c9_66, %c0_67, %c0_68] : memref<10x256x128xbf16, #tpu.memory_space<vmem>>, vector<1x256x128xbf16>
    %89 = vector.shape_cast %88 : vector<1x256x128xbf16> to vector<256x128xbf16>
    %cst_69 = arith.constant dense<0.000000e+00> : vector<236x128xf32>
    %90 = tpu.matmul %87, %89, %cst_69 {dimension_numbers = #tpu.dot_dimension_numbers<[1], [0], [0], [1], [0, 0, 1, 1], [], []>} : vector<236x256xbf16>, vector<256x128xbf16>, vector<236x128xf32> -> vector<236x128xf32>
    %91 = arith.addf %83, %90 : vector<236x128xf32>
    %c20 = arith.constant 20 : index
    %c0_70 = arith.constant 0 : index
    %92 = vector.load %arg12[%c20, %c0_70] : memref<256x128xf32, #tpu.memory_space<vmem>>, vector<236x128xf32>
    %93 = arith.truncf %92 : vector<236x128xf32> to vector<236x128xbf16>
    %c0_71 = arith.constant 0 : index
    %c0_72 = arith.constant 0 : index
    %94 = vector.load %arg5[%c0_71, %c0_72] : memref<128x128xbf16, #tpu.memory_space<vmem>>, vector<128x128xbf16>
    %cst_73 = arith.constant dense<0.000000e+00> : vector<236x128xf32>
    %95 = tpu.matmul %93, %94, %cst_73 {dimension_numbers = #tpu.dot_dimension_numbers<[1], [0], [0], [1], [0, 0, 1, 1], [], []>} : vector<236x128xbf16>, vector<128x128xbf16>, vector<236x128xf32> -> vector<236x128xf32>
    %96 = arith.addf %91, %95 : vector<236x128xf32>
    %c0_74 = arith.constant 0 : index
    %c0_75 = arith.constant 0 : index
    %97 = vector.load %arg6[%c0_74, %c0_75] : memref<1x128xf32, #tpu.memory_space<vmem>>, vector<1x128xf32>
    %98 = vector.broadcast %97 : vector<1x128xf32> to vector<236x128xf32>
    %99 = arith.addf %96, %98 : vector<236x128xf32>
    %cst_76 = arith.constant 0.000000e+00 : f32
    %100 = vector.broadcast %cst_76 : f32 to vector<236x128xf32>
    %101 = arith.maximumf %99, %100 : vector<236x128xf32>
    %c0_77 = arith.constant 0 : index
    %c0_78 = arith.constant 0 : index
    %102 = vector.load %arg13[%c0_77, %c0_78] : memref<256x128xf32, #tpu.memory_space<vmem>>, vector<236x128xf32>
    tpu.vector_store %arg13[%c0_77, %c0_78], %101 {strides = array<i32>} : memref<256x128xf32, #tpu.memory_space<vmem>>, vector<236x128xf32>,
    %c1_79 = arith.constant 1 : index
    %c0_80 = arith.constant 0 : index
    %103 = vector.load %arg13[%c1_79, %c0_80] : memref<256x128xf32, #tpu.memory_space<vmem>>, vector<234x128xf32>
    %c0_81 = arith.constant 0 : index
    %c0_82 = arith.constant 0 : index
    %104 = vector.load %arg13[%c0_81, %c0_82] : memref<256x128xf32, #tpu.memory_space<vmem>>, vector<234x128xf32>
    %c2_83 = arith.constant 2 : index
    %c0_84 = arith.constant 0 : index
    %105 = vector.load %arg13[%c2_83, %c0_84] : memref<256x128xf32, #tpu.memory_space<vmem>>, vector<234x128xf32>
    %106 = tpu.concatenate %104, %103, %105 in 1 : vector<234x128xf32>, vector<234x128xf32>, vector<234x128xf32> -> vector<234x384xf32>
    %107 = arith.truncf %106 : vector<234x384xf32> to vector<234x384xbf16>
    %c0_85 = arith.constant 0 : index
    %c0_86 = arith.constant 0 : index
    %c0_87 = arith.constant 0 : index
    %108 = vector.load %arg7[%c0_85, %c0_86, %c0_87] : memref<2x384x128xbf16, #tpu.memory_space<vmem>>, vector<1x384x128xbf16>
    %109 = vector.shape_cast %108 : vector<1x384x128xbf16> to vector<384x128xbf16>
    %cst_88 = arith.constant dense<0.000000e+00> : vector<234x128xf32>
    %110 = tpu.matmul %107, %109, %cst_88 {dimension_numbers = #tpu.dot_dimension_numbers<[1], [0], [0], [1], [0, 0, 1, 1], [], []>} : vector<234x384xbf16>, vector<384x128xbf16>, vector<234x128xf32> -> vector<234x128xf32>
    %c0_89 = arith.constant 0 : index
    %c0_90 = arith.constant 0 : index
    %c0_91 = arith.constant 0 : index
    %111 = vector.load %arg8[%c0_89, %c0_90, %c0_91] : memref<2x1x128xf32, #tpu.memory_space<vmem>>, vector<1x1x128xf32>
    %112 = vector.shape_cast %111 : vector<1x1x128xf32> to vector<1x128xf32>
    %113 = vector.broadcast %112 : vector<1x128xf32> to vector<234x128xf32>
    %114 = arith.addf %110, %113 : vector<234x128xf32>
    %cst_92 = arith.constant 0.000000e+00 : f32
    %115 = vector.broadcast %cst_92 : f32 to vector<234x128xf32>
    %116 = arith.maximumf %114, %115 : vector<234x128xf32>
    %117 = arith.addf %103, %116 : vector<234x128xf32>
    %c0_93 = arith.constant 0 : index
    %c0_94 = arith.constant 0 : index
    %118 = vector.load %arg14[%c0_93, %c0_94] : memref<256x128xf32, #tpu.memory_space<vmem>>, vector<234x128xf32>
    tpu.vector_store %arg14[%c0_93, %c0_94], %117 {strides = array<i32>} : memref<256x128xf32, #tpu.memory_space<vmem>>, vector<234x128xf32>,
    %c2_95 = arith.constant 2 : index
    %c0_96 = arith.constant 0 : index
    %119 = vector.load %arg14[%c2_95, %c0_96] : memref<256x128xf32, #tpu.memory_space<vmem>>, vector<230x128xf32>
    %c0_97 = arith.constant 0 : index
    %c0_98 = arith.constant 0 : index
    %120 = vector.load %arg14[%c0_97, %c0_98] : memref<256x128xf32, #tpu.memory_space<vmem>>, vector<230x128xf32>
    %c4_99 = arith.constant 4 : index
    %c0_100 = arith.constant 0 : index
    %121 = vector.load %arg14[%c4_99, %c0_100] : memref<256x128xf32, #tpu.memory_space<vmem>>, vector<230x128xf32>
    %122 = tpu.concatenate %120, %119, %121 in 1 : vector<230x128xf32>, vector<230x128xf32>, vector<230x128xf32> -> vector<230x384xf32>
    %123 = arith.truncf %122 : vector<230x384xf32> to vector<230x384xbf16>
    %c1_101 = arith.constant 1 : index
    %c0_102 = arith.constant 0 : index
    %c0_103 = arith.constant 0 : index
    %124 = vector.load %arg7[%c1_101, %c0_102, %c0_103] : memref<2x384x128xbf16, #tpu.memory_space<vmem>>, vector<1x384x128xbf16>
    %125 = vector.shape_cast %124 : vector<1x384x128xbf16> to vector<384x128xbf16>
    %cst_104 = arith.constant dense<0.000000e+00> : vector<230x128xf32>
    %126 = tpu.matmul %123, %125, %cst_104 {dimension_numbers = #tpu.dot_dimension_numbers<[1], [0], [0], [1], [0, 0, 1, 1], [], []>} : vector<230x384xbf16>, vector<384x128xbf16>, vector<230x128xf32> -> vector<230x128xf32>
    %c1_105 = arith.constant 1 : index
    %c0_106 = arith.constant 0 : index
    %c0_107 = arith.constant 0 : index
    %127 = vector.load %arg8[%c1_105, %c0_106, %c0_107] : memref<2x1x128xf32, #tpu.memory_space<vmem>>, vector<1x1x128xf32>
    %128 = vector.shape_cast %127 : vector<1x1x128xf32> to vector<1x128xf32>
    %129 = vector.broadcast %128 : vector<1x128xf32> to vector<230x128xf32>
    %130 = arith.addf %126, %129 : vector<230x128xf32>
    %cst_108 = arith.constant 0.000000e+00 : f32
    %131 = vector.broadcast %cst_108 : f32 to vector<230x128xf32>
    %132 = arith.maximumf %130, %131 : vector<230x128xf32>
    %133 = arith.addf %119, %132 : vector<230x128xf32>
    %c0_109 = arith.constant 0 : index
    %c0_110 = arith.constant 0 : index
    %134 = vector.load %arg13[%c0_109, %c0_110] : memref<256x128xf32, #tpu.memory_space<vmem>>, vector<230x128xf32>
    tpu.vector_store %arg13[%c0_109, %c0_110], %133 {strides = array<i32>} : memref<256x128xf32, #tpu.memory_space<vmem>>, vector<230x128xf32>,
    %c0_111 = arith.constant 0 : index
    %c0_112 = arith.constant 0 : index
    %135 = vector.load %arg13[%c0_111, %c0_112] : memref<256x128xf32, #tpu.memory_space<vmem>>, vector<256x128xf32>
    %136 = vector.shape_cast %135 : vector<256x128xf32> to vector<4x64x128xf32>
    %137 = vector.extract_strided_slice %136 {offsets = [0, 0, 0], sizes = [4, 38, 128], strides = [1, 1, 1]} : vector<4x64x128xf32> to vector<4x38x128xf32>
    %cst_113 = arith.constant dense<0.000000e+00> : vector<4x128xf32>
    %138 = vector.multi_reduction <add>, %137, %cst_113 [1] : vector<4x38x128xf32> to vector<4x128xf32>
    %c0_114 = arith.constant 0 : index
    %c0_115 = arith.constant 0 : index
    %139 = vector.load %arg9[%c0_114, %c0_115] : memref<128x128xf32, #tpu.memory_space<vmem>>, vector<128x128xf32>
    %cst_116 = arith.constant dense<0.000000e+00> : vector<4x128xf32>
    %140 = tpu.matmul %138, %139, %cst_116 {dimension_numbers = #tpu.dot_dimension_numbers<[1], [0], [0], [1], [0, 0, 1, 1], [], []>} : vector<4x128xf32>, vector<128x128xf32>, vector<4x128xf32> -> vector<4x128xf32>
    %c0_117 = arith.constant 0 : index
    %c0_118 = arith.constant 0 : index
    %141 = vector.load %arg10[%c0_117, %c0_118] : memref<1x128xf32, #tpu.memory_space<vmem>>, vector<1x128xf32>
    %142 = vector.broadcast %141 : vector<1x128xf32> to vector<4x128xf32>
    %143 = arith.addf %140, %142 : vector<4x128xf32>
    %144 = vector.shape_cast %143 : vector<4x128xf32> to vector<4x1x128xf32>
    %c0_119 = arith.constant 0 : index
    %c0_120 = arith.constant 0 : index
    %c0_121 = arith.constant 0 : index
    %145 = vector.load %arg11[%c0_119, %c0_120, %c0_121] : memref<4x1x128xf32, #tpu.memory_space<vmem>>, vector<4x1x128xf32>
    tpu.vector_store %arg11[%c0_119, %c0_120, %c0_121], %144 {strides = array<i32>} : memref<4x1x128xf32, #tpu.memory_space<vmem>>, vector<4x1x128xf32>,
    return
  }
  func.func @transform_0(%arg0: i32) -> (i32, i32, i32) {
    %c0_i32 = arith.constant 0 : i32
    %c0_i32_0 = arith.constant 0 : i32
    %c0_i32_1 = arith.constant 0 : i32
    return %arg0, %c0_i32, %c0_i32_0 : i32, i32, i32
  }
  func.func @transform_1(%arg0: i32) -> (i32, i32) {
    %c0_i32 = arith.constant 0 : i32
    %c0_i32_0 = arith.constant 0 : i32
    %c0_i32_1 = arith.constant 0 : i32
    return %c0_i32, %c0_i32_0 : i32, i32
  }
  func.func @transform_2(%arg0: i32) -> (i32, i32) {
    %c0_i32 = arith.constant 0 : i32
    %c0_i32_0 = arith.constant 0 : i32
    %c0_i32_1 = arith.constant 0 : i32
    return %c0_i32, %c0_i32_0 : i32, i32
  }
  func.func @transform_3(%arg0: i32) -> (i32, i32, i32) {
    %c0_i32 = arith.constant 0 : i32
    %c0_i32_0 = arith.constant 0 : i32
    %c0_i32_1 = arith.constant 0 : i32
    %c0_i32_2 = arith.constant 0 : i32
    return %c0_i32, %c0_i32_0, %c0_i32_1 : i32, i32, i32
  }
  func.func @transform_4(%arg0: i32) -> (i32, i32) {
    %c0_i32 = arith.constant 0 : i32
    %c0_i32_0 = arith.constant 0 : i32
    %c0_i32_1 = arith.constant 0 : i32
    return %c0_i32, %c0_i32_0 : i32, i32
  }
  func.func @transform_5(%arg0: i32) -> (i32, i32) {
    %c0_i32 = arith.constant 0 : i32
    %c0_i32_0 = arith.constant 0 : i32
    %c0_i32_1 = arith.constant 0 : i32
    return %c0_i32, %c0_i32_0 : i32, i32
  }
  func.func @transform_6(%arg0: i32) -> (i32, i32, i32) {
    %c0_i32 = arith.constant 0 : i32
    %c0_i32_0 = arith.constant 0 : i32
    %c0_i32_1 = arith.constant 0 : i32
    %c0_i32_2 = arith.constant 0 : i32
    return %c0_i32, %c0_i32_0, %c0_i32_1 : i32, i32, i32
  }
  func.func @transform_7(%arg0: i32) -> (i32, i32, i32) {
    %c0_i32 = arith.constant 0 : i32
    %c0_i32_0 = arith.constant 0 : i32
    %c0_i32_1 = arith.constant 0 : i32
    %c0_i32_2 = arith.constant 0 : i32
    return %c0_i32, %c0_i32_0, %c0_i32_1 : i32, i32, i32
  }
  func.func @transform_8(%arg0: i32) -> (i32, i32) {
    %c0_i32 = arith.constant 0 : i32
    %c0_i32_0 = arith.constant 0 : i32
    %c0_i32_1 = arith.constant 0 : i32
    return %c0_i32, %c0_i32_0 : i32, i32
  }
  func.func @transform_9(%arg0: i32) -> (i32, i32) {
    %c0_i32 = arith.constant 0 : i32
    %c0_i32_0 = arith.constant 0 : i32
    %c0_i32_1 = arith.constant 0 : i32
    return %c0_i32, %c0_i32_0 : i32, i32
  }
  func.func @transform_10(%arg0: i32) -> (i32, i32, i32) {
    %c0_i32 = arith.constant 0 : i32
    %c0_i32_0 = arith.constant 0 : i32
    %c0_i32_1 = arith.constant 0 : i32
    return %arg0, %c0_i32, %c0_i32_0 : i32, i32, i32
  }
}

</mosaic_0001>

<llo_original>
// kernel: model_forward.1
$region0: #{model_forward.1}
  #allocation0 [shape = 'u32[]', space=smem, size = 0x4, offset = 0x4, fixed_abs, tag = 'smem constant byte address 0x4 - core index']
  #allocation1 [shape = 'u32[144,128]{1,0:T(1,128)}', space=vmem, size = 0x12000, scoped, tag = 'internal scratch']
  #allocation2 [shape = 'f32[256,128]{1,0:T(8,128)}', space=vmem, size = 0x20000, scoped, tag = 'scratch operand']
  #allocation3 [shape = 'f32[256,128]{1,0:T(8,128)}', space=vmem, size = 0x20000, scoped, tag = 'scratch operand']
  #allocation4 [shape = 'f32[256,128]{1,0:T(8,128)}', space=vmem, size = 0x20000, scoped, tag = 'scratch operand']
  %s0 = inlined_call_operand.vmem [shape: bf16[8,64,20], index: 0, kind: input, shape index: {}]
  %s1 = inlined_call_operand.vmem [shape: bf16[20,128], index: 1, kind: input, shape index: {}]
  %s2 = inlined_call_operand.vmem [shape: f32[64,128], index: 2, kind: input, shape index: {}]
  %s3 = inlined_call_operand.vmem [shape: bf16[10,256,128], index: 3, kind: input, shape index: {}]
  %s4 = inlined_call_operand.vmem [shape: bf16[128,128], index: 4, kind: input, shape index: {}]
  %s5 = inlined_call_operand.vmem [shape: f32[1,128], index: 5, kind: input, shape index: {}]
  %s6 = inlined_call_operand.vmem [shape: bf16[2,384,128], index: 6, kind: input, shape index: {}]
  %s7 = inlined_call_operand.vmem [shape: f32[2,1,128], index: 7, kind: input, shape index: {}]
  %s8 = inlined_call_operand.vmem [shape: f32[128,128], index: 8, kind: input, shape index: {}]
  %s9 = inlined_call_operand.vmem [shape: f32[1,128], index: 9, kind: input, shape index: {}]
  %s10 = inlined_call_operand.vmem [shape: f32[8,1,128], index: 10, kind: output, shape index: {}]
  %s11 = sld [smem:[#allocation0]]
  $region73: #{model_forward.1} parent=0
    _
  %s13 = ssub.s32 1, %s11
  %s14 = scalar_select 0, %s13, %s11
  loop: start=0, step=1, limit=4
  $region2: #{model_forward.1} parent=0 // loop_pre_header
    _
  $region3: #{model_forward.1} parent=0 // loop_header
    %s16 = sphi 0, %s20
    %p17 = scmp.ge.s32.totalorder %s16, 4
    %s26 = sphi 0, %s28
    %s29 = sphi 0, %s26
    %s30 = sphi 0, %s29
    %s46 = sphi 0, %s30
    %s50 = sphi 0, %s50
    %s52 = sphi 0, %s50
    %s53 = sphi 0, %s52
    %s67 = sphi 0, %s53
    %s71 = sphi 0, %s71
    %s73 = sphi 0, %s71
    %s74 = sphi 0, %s73
    %s88 = sphi 0, %s74
    %s92 = sphi 0, %s92
    %s94 = sphi 0, %s92
    %s95 = sphi 0, %s94
    %s109 = sphi 0, %s95
    %s113 = sphi 0, %s113
    %s115 = sphi 0, %s113
    %s116 = sphi 0, %s115
    %s130 = sphi 0, %s116
    %s134 = sphi 0, %s134
    %s136 = sphi 0, %s134
    %s137 = sphi 0, %s136
    %s151 = sphi 0, %s137
    %s155 = sphi 0, %s155
    %s157 = sphi 0, %s155
    %s158 = sphi 0, %s157
    %s172 = sphi 0, %s158
    %s176 = sphi 0, %s176
    %s178 = sphi 0, %s176
    %s179 = sphi 0, %s178
    %s193 = sphi 0, %s179
    %s197 = sphi 0, %s197
    %s199 = sphi 0, %s197
    %s200 = sphi 0, %s199
    %s214 = sphi 0, %s200
    %s218 = sphi 0, %s218
    %s220 = sphi 0, %s218
    %s221 = sphi 0, %s220
    %s235 = sphi 0, %s221
    %s241 = sphi 0, %s243
    %s244 = sphi 0, %s241
    %s245 = sphi 0, %s244
    %s261 = sphi 0, %s245
  $region4: #{model_forward.1} parent=0 // loop_header_branch
    %19 = sbr.rel (%p17) target = $region8
  $region5: #{model_forward.1} parent=0 // loop_body
    %s21 = ssub.s32 %s16, 1
    %s22 = ssub.s32 %s16, 2
    %s23 = sadd.s32 %s16, 1
    %s24 = ssub.s32 %s16, %s23
    %p25 = scmp.eq.s32.totalorder %s24, 0
    %s27 = sadd.s32 %s26, 1
    %s28 = scalar_select %p25, %s26, %s27
    %p31 = pneg %p25
    %p32 = scmp.eq.s32.totalorder %s16, 1
    %p33 = por %p31, %p32
    %p34 = scmp.ne.s32.totalorder %s26, %s29
    %p35 = scmp.eq.s32.totalorder %s16, 0
    %p36 = por %p34, %p35
    %p37 = scmp.ne.s32.totalorder %s26, %s29
    %p38 = scmp.eq.s32.totalorder %s21, 1
    %p39 = por %p37, %p38
    %p40 = scmp.ne.s32.totalorder %s29, %s30
    %p41 = scmp.eq.s32.totalorder %s21, 0
    %p42 = por %p40, %p41
    %p43 = scmp.ne.s32.totalorder %s29, %s30
    %p44 = scmp.eq.s32.totalorder %s22, 1
    %p45 = por %p43, %p44
    %p47 = scmp.ne.s32.totalorder %s30, %s46
    %p48 = scmp.eq.s32.totalorder %s22, 0
    %p49 = por %p47, %p48
    %s51 = sadd.s32 %s50, 1
    %p54 = scmp.eq.s32.totalorder %s16, 1
    %p55 = scmp.ne.s32.totalorder %s50, %s52
    %p56 = scmp.eq.s32.totalorder %s16, 0
    %p57 = por %p55, %p56
    %p58 = scmp.ne.s32.totalorder %s50, %s52
    %p59 = scmp.eq.s32.totalorder %s21, 1
    %p60 = por %p58, %p59
    %p61 = scmp.ne.s32.totalorder %s52, %s53
    %p62 = scmp.eq.s32.totalorder %s21, 0
    %p63 = por %p61, %p62
    %p64 = scmp.ne.s32.totalorder %s52, %s53
    %p65 = scmp.eq.s32.totalorder %s22, 1
    %p66 = por %p64, %p65
    %p68 = scmp.ne.s32.totalorder %s53, %s67
    %p69 = scmp.eq.s32.totalorder %s22, 0
    %p70 = por %p68, %p69
    %s72 = sadd.s32 %s71, 1
    %p75 = scmp.eq.s32.totalorder %s16, 1
    %p76 = scmp.ne.s32.totalorder %s71, %s73
    %p77 = scmp.eq.s32.totalorder %s16, 0
    %p78 = por %p76, %p77
    %p79 = scmp.ne.s32.totalorder %s71, %s73
    %p80 = scmp.eq.s32.totalorder %s21, 1
    %p81 = por %p79, %p80
    %p82 = scmp.ne.s32.totalorder %s73, %s74
    %p83 = scmp.eq.s32.totalorder %s21, 0
    %p84 = por %p82, %p83
    %p85 = scmp.ne.s32.totalorder %s73, %s74
    %p86 = scmp.eq.s32.totalorder %s22, 1
    %p87 = por %p85, %p86
    %p89 = scmp.ne.s32.totalorder %s74, %s88
    %p90 = scmp.eq.s32.totalorder %s22, 0
    %p91 = por %p89, %p90
    %s93 = sadd.s32 %s92, 1
    %p96 = scmp.eq.s32.totalorder %s16, 1
    %p97 = scmp.ne.s32.totalorder %s92, %s94
    %p98 = scmp.eq.s32.totalorder %s16, 0
    %p99 = por %p97, %p98
    %p100 = scmp.ne.s32.totalorder %s92, %s94
    %p101 = scmp.eq.s32.totalorder %s21, 1
    %p102 = por %p100, %p101
    %p103 = scmp.ne.s32.totalorder %s94, %s95
    %p104 = scmp.eq.s32.totalorder %s21, 0
    %p105 = por %p103, %p104
    %p106 = scmp.ne.s32.totalorder %s94, %s95
    %p107 = scmp.eq.s32.totalorder %s22, 1
    %p108 = por %p106, %p107
    %p110 = scmp.ne.s32.totalorder %s95, %s109
    %p111 = scmp.eq.s32.totalorder %s22, 0
    %p112 = por %p110, %p111
    %s114 = sadd.s32 %s113, 1
    %p117 = scmp.eq.s32.totalorder %s16, 1
    %p118 = scmp.ne.s32.totalorder %s113, %s115
    %p119 = scmp.eq.s32.totalorder %s16, 0
    %p120 = por %p118, %p119
    %p121 = scmp.ne.s32.totalorder %s113, %s115
    %p122 = scmp.eq.s32.totalorder %s21, 1
    %p123 = por %p121, %p122
    %p124 = scmp.ne.s32.totalorder %s115, %s116
    %p125 = scmp.eq.s32.totalorder %s21, 0
    %p126 = por %p124, %p125
    %p127 = scmp.ne.s32.totalorder %s115, %s116
    %p128 = scmp.eq.s32.totalorder %s22, 1
    %p129 = por %p127, %p128
    %p131 = scmp.ne.s32.totalorder %s116, %s130
    %p132 = scmp.eq.s32.totalorder %s22, 0
    %p133 = por %p131, %p132
    %s135 = sadd.s32 %s134, 1
    %p138 = scmp.eq.s32.totalorder %s16, 1
    %p139 = scmp.ne.s32.totalorder %s134, %s136
    %p140 = scmp.eq.s32.totalorder %s16, 0
    %p141 = por %p139, %p140
    %p142 = scmp.ne.s32.totalorder %s134, %s136
    %p143 = scmp.eq.s32.totalorder %s21, 1
    %p144 = por %p142, %p143
    %p145 = scmp.ne.s32.totalorder %s136, %s137
    %p146 = scmp.eq.s32.totalorder %s21, 0
    %p147 = por %p145, %p146
    %p148 = scmp.ne.s32.totalorder %s136, %s137
    %p149 = scmp.eq.s32.totalorder %s22, 1
    %p150 = por %p148, %p149
    %p152 = scmp.ne.s32.totalorder %s137, %s151
    %p153 = scmp.eq.s32.totalorder %s22, 0
    %p154 = por %p152, %p153
    %s156 = sadd.s32 %s155, 1
    %p159 = scmp.eq.s32.totalorder %s16, 1
    %p160 = scmp.ne.s32.totalorder %s155, %s157
    %p161 = scmp.eq.s32.totalorder %s16, 0
    %p162 = por %p160, %p161
    %p163 = scmp.ne.s32.totalorder %s155, %s157
    %p164 = scmp.eq.s32.totalorder %s21, 1
    %p165 = por %p163, %p164
    %p166 = scmp.ne.s32.totalorder %s157, %s158
    %p167 = scmp.eq.s32.totalorder %s21, 0
    %p168 = por %p166, %p167
    %p169 = scmp.ne.s32.totalorder %s157, %s158
    %p170 = scmp.eq.s32.totalorder %s22, 1
    %p171 = por %p169, %p170
    %p173 = scmp.ne.s32.totalorder %s158, %s172
    %p174 = scmp.eq.s32.totalorder %s22, 0
    %p175 = por %p173, %p174
    %s177 = sadd.s32 %s176, 1
    %p180 = scmp.eq.s32.totalorder %s16, 1
    %p181 = scmp.ne.s32.totalorder %s176, %s178
    %p182 = scmp.eq.s32.totalorder %s16, 0
    %p183 = por %p181, %p182
    %p184 = scmp.ne.s32.totalorder %s176, %s178
    %p185 = scmp.eq.s32.totalorder %s21, 1
    %p186 = por %p184, %p185
    %p187 = scmp.ne.s32.totalorder %s178, %s179
    %p188 = scmp.eq.s32.totalorder %s21, 0
    %p189 = por %p187, %p188
    %p190 = scmp.ne.s32.totalorder %s178, %s179
    %p191 = scmp.eq.s32.totalorder %s22, 1
    %p192 = por %p190, %p191
    %p194 = scmp.ne.s32.totalorder %s179, %s193
    %p195 = scmp.eq.s32.totalorder %s22, 0
    %p196 = por %p194, %p195
    %s198 = sadd.s32 %s197, 1
    %p201 = scmp.eq.s32.totalorder %s16, 1
    %p202 = scmp.ne.s32.totalorder %s197, %s199
    %p203 = scmp.eq.s32.totalorder %s16, 0
    %p204 = por %p202, %p203
    %p205 = scmp.ne.s32.totalorder %s197, %s199
    %p206 = scmp.eq.s32.totalorder %s21, 1
    %p207 = por %p205, %p206
    %p208 = scmp.ne.s32.totalorder %s199, %s200
    %p209 = scmp.eq.s32.totalorder %s21, 0
    %p210 = por %p208, %p209
    %p211 = scmp.ne.s32.totalorder %s199, %s200
    %p212 = scmp.eq.s32.totalorder %s22, 1
    %p213 = por %p211, %p212
    %p215 = scmp.ne.s32.totalorder %s200, %s214
    %p216 = scmp.eq.s32.totalorder %s22, 0
    %p217 = por %p215, %p216
    %s219 = sadd.s32 %s218, 1
    %p222 = scmp.eq.s32.totalorder %s16, 1
    %p223 = scmp.ne.s32.totalorder %s218, %s220
    %p224 = scmp.eq.s32.totalorder %s16, 0
    %p225 = por %p223, %p224
    %p226 = scmp.ne.s32.totalorder %s218, %s220
    %p227 = scmp.eq.s32.totalorder %s21, 1
    %p228 = por %p226, %p227
    %p229 = scmp.ne.s32.totalorder %s220, %s221
    %p230 = scmp.eq.s32.totalorder %s21, 0
    %p231 = por %p229, %p230
    %p232 = scmp.ne.s32.totalorder %s220, %s221
    %p233 = scmp.eq.s32.totalorder %s22, 1
    %p234 = por %p232, %p233
    %p236 = scmp.ne.s32.totalorder %s221, %s235
    %p237 = scmp.eq.s32.totalorder %s22, 0
    %p238 = por %p236, %p237
    %s239 = ssub.s32 %s16, %s23
    %p240 = scmp.eq.s32.totalorder %s239, 0
    %s242 = sadd.s32 %s241, 1
    %s243 = scalar_select %p240, %s241, %s242
    %p246 = pneg %p240
    %p247 = scmp.eq.s32.totalorder %s16, 1
    %p248 = por %p246, %p247
    %p249 = scmp.ne.s32.totalorder %s241, %s244
    %p250 = scmp.eq.s32.totalorder %s16, 0
    %p251 = por %p249, %p250
    %p252 = scmp.ne.s32.totalorder %s241, %s244
    %p253 = scmp.eq.s32.totalorder %s21, 1
    %p254 = por %p252, %p253
    %p255 = scmp.ne.s32.totalorder %s244, %s245
    %p256 = scmp.eq.s32.totalorder %s21, 0
    %p257 = por %p255, %p256
    %p258 = scmp.ne.s32.totalorder %s244, %s245
    %p259 = scmp.eq.s32.totalorder %s22, 1
    %p260 = por %p258, %p259
    %p262 = scmp.ne.s32.totalorder %s245, %s261
    %p263 = scmp.eq.s32.totalorder %s22, 0
    %p264 = por %p262, %p263
    %p265 = scmp.le.s32.totalorder 1, %s16
    %p266 = scmp.lt.s32.totalorder %s16, 3
    %p267 = pnand %p265, %p266
    %p268 = pneg %p267
    // Predicated region
    $region9: #{model_forward.1} parent=5 // pred_check
      _
    $region10: #{model_forward.1} parent=5 // pred_check_branch
      %270 = sbr.rel (%p267) target = $region12
    $region11: #{model_forward.1} parent=5 // pred_region
      %s271 = ssub.s32 %s16, 1
      // Predicated region
      $region13: #{model_forward.1} parent=11 // pred_check
        %p272 = pneg %p63
      $region14: #{model_forward.1} parent=11 // pred_check_branch
        %274 = sbr.rel (%p272) target = $region16
      $region15: #{model_forward.1} parent=11 // pred_region
        _
      $region16: #{model_forward.1} parent=11 // pred_fallthru
        _
      // Predicated region
      $region17: #{model_forward.1} parent=11 // pred_check
        %p275 = pneg %p84
      $region18: #{model_forward.1} parent=11 // pred_check_branch
        %277 = sbr.rel (%p275) target = $region20
      $region19: #{model_forward.1} parent=11 // pred_region
        _
      $region20: #{model_forward.1} parent=11 // pred_fallthru
        _
      // Predicated region
      $region21: #{model_forward.1} parent=11 // pred_check
        %p278 = pneg %p105
      $region22: #{model_forward.1} parent=11 // pred_check_branch
        %280 = sbr.rel (%p278) target = $region24
      $region23: #{model_forward.1} parent=11 // pred_region
        _
      $region24: #{model_forward.1} parent=11 // pred_fallthru
        _
      // Predicated region
      $region25: #{model_forward.1} parent=11 // pred_check
        %p281 = pneg %p126
      $region26: #{model_forward.1} parent=11 // pred_check_branch
        %283 = sbr.rel (%p281) target = $region28
      $region27: #{model_forward.1} parent=11 // pred_region
        _
      $region28: #{model_forward.1} parent=11 // pred_fallthru
        _
      // Predicated region
      $region29: #{model_forward.1} parent=11 // pred_check
        %p284 = pneg %p147
      $region30: #{model_forward.1} parent=11 // pred_check_branch
        %286 = sbr.rel (%p284) target = $region32
      $region31: #{model_forward.1} parent=11 // pred_region
        _
      $region32: #{model_forward.1} parent=11 // pred_fallthru
        _
      // Predicated region
      $region33: #{model_forward.1} parent=11 // pred_check
        %p287 = pneg %p168
      $region34: #{model_forward.1} parent=11 // pred_check_branch
        %289 = sbr.rel (%p287) target = $region36
      $region35: #{model_forward.1} parent=11 // pred_region
        _
      $region36: #{model_forward.1} parent=11 // pred_fallthru
        _
      // Predicated region
      $region37: #{model_forward.1} parent=11 // pred_check
        %p290 = pneg %p189
      $region38: #{model_forward.1} parent=11 // pred_check_branch
        %292 = sbr.rel (%p290) target = $region40
      $region39: #{model_forward.1} parent=11 // pred_region
        _
      $region40: #{model_forward.1} parent=11 // pred_fallthru
        _
      // Predicated region
      $region41: #{model_forward.1} parent=11 // pred_check
        %p293 = pneg %p210
      $region42: #{model_forward.1} parent=11 // pred_check_branch
        %295 = sbr.rel (%p293) target = $region44
      $region43: #{model_forward.1} parent=11 // pred_region
        _
      $region44: #{model_forward.1} parent=11 // pred_fallthru
        _
      // Predicated region
      $region45: #{model_forward.1} parent=11 // pred_check
        %p296 = pneg %p231
      $region46: #{model_forward.1} parent=11 // pred_check_branch
        %298 = sbr.rel (%p296) target = $region48
      $region47: #{model_forward.1} parent=11 // pred_region
        _
      $region48: #{model_forward.1} parent=11 // pred_fallthru
        _
    $region12: #{model_forward.1} parent=5 // pred_fallthru
      _
    %p299 = scmp.lt.s32.totalorder %s16, 2
    // Predicated region
    $region49: #{model_forward.1} parent=5 // pred_check
      %p300 = pneg %p299
    $region50: #{model_forward.1} parent=5 // pred_check_branch
      %302 = sbr.rel (%p300) target = $region52
    $region51: #{model_forward.1} parent=5 // pred_region
      // Predicated region
      $region53: #{model_forward.1} parent=51 // pred_check
        %p303 = pneg %p36
      $region54: #{model_forward.1} parent=51 // pred_check_branch
        %305 = sbr.rel (%p303) target = $region56
      $region55: #{model_forward.1} parent=51 // pred_region
        %s306 = smul.u32 4, %s16
        %p307 = scmp.lt.s32.totalorder %s306, 7
        %s308 = scalar_select %p307, %s306, 7
        %s309 = smul.addr %s308, 8
        %s310 = smul.addr %s309, 4
        %s311 = scalar_lea.vmem %s0, %s310
        %s312 = smul.u32 4, %s16
      $region56: #{model_forward.1} parent=51 // pred_fallthru
        _
    $region52: #{model_forward.1} parent=5 // pred_fallthru
      _
    %p313 = scmp.le.s32.totalorder 1, %s16
    %p314 = scmp.lt.s32.totalorder %s16, 3
    %p315 = pnand %p313, %p314
    %p316 = pneg %p315
    // Predicated region
    $region57: #{model_forward.1} parent=5 // pred_check
      _
    $region58: #{model_forward.1} parent=5 // pred_check_branch
      %318 = sbr.rel (%p315) target = $region60
    $region59: #{model_forward.1} parent=5 // pred_region
      %s319 = ssub.s32 %s16, 1
      %s320 = smul.u32 4, %s21
      %p321 = scmp.lt.s32.totalorder %s320, 7
      %s322 = scalar_select %p321, %s320, 7
      %s323 = smul.addr %s322, 8
      %s324 = smul.addr %s323, 4
      %s325 = scalar_lea.vmem %s0, %s324
      %p326 = pneg %p42
      %p327 = pneg %p39
      %p328 = pneg %p63
      %p329 = pneg %p60
      %p330 = pneg %p84
      %p331 = pneg %p81
      %p332 = pneg %p105
      %p333 = pneg %p102
      %p334 = pneg %p126
      %p335 = pneg %p123
      %p336 = pneg %p147
      %p337 = pneg %p144
      %p338 = pneg %p168
      %p339 = pneg %p165
      %p340 = pneg %p189
      %p341 = pneg %p186
      %p342 = pneg %p210
      %p343 = pneg %p207
      %p344 = pneg %p231
      %p345 = pneg %p228
      %p346 = pneg %p257
      %p347 = pneg %p254
      %s348 = smul.u32 4, %s21
      %p349 = scmp.lt.s32.totalorder %s348, 7
      %s350 = scalar_select %p349, %s348, 7
      %s351 = scalar_lea.vmem %s10, %s350
      %s352 = smul.u32 4, %s21
      %p353 = scmp.lt.s32.totalorder %s352, 7
      %s354 = scalar_select %p353, %s352, 7
      %s355 = smul.addr %s354, 8
      %s356 = smul.addr %s355, 4
      %s357 = scalar_lea.vmem %s0, %s356
      %s358 = smul.u32 4, %s21
      %s359 = smul.u32 4, %s21
      %p360 = scmp.lt.s32.totalorder %s359, 7
      %s361 = scalar_select %p360, %s359, 7
      %s362 = scalar_lea.vmem %s10, %s361
      %s363 = smul.u32 4, %s21
      %v365 = vld [vmem:[%s357] sm:$0xf]
      %v366 = vld [vmem:[%s357 + $0x4] sm:$0xf]
      %v367 = vld [vmem:[%s357 + $0x8] sm:$0xf]
      %v368 = vld [vmem:[%s357 + $0xc] sm:$0xf]
      %v369 = vld [vmem:[%s357 + $0x10] sm:$0xf]
      %v370 = vld [vmem:[%s357 + $0x14] sm:$0xf]
      %v371 = vld [vmem:[%s357 + $0x18] sm:$0xf]
      %v372 = vld [vmem:[%s357 + $0x1c] sm:$0xf]
      %v373 = vld [vmem:[%s357 + $0x20] sm:$0xf]
      %v374 = vld [vmem:[%s357 + $0x24] sm:$0xf]
      %v375 = vld [vmem:[%s357 + $0x28] sm:$0xf]
      %v376 = vld [vmem:[%s357 + $0x2c] sm:$0xf]
      %v377 = vld [vmem:[%s357 + $0x30] sm:$0xf]
      %v378 = vld [vmem:[%s357 + $0x34] sm:$0xf]
      %v379 = vld [vmem:[%s357 + $0x38] sm:$0xf]
      %v380 = vld [vmem:[%s357 + $0x3c] sm:$0xf]
      %v381 = vld [vmem:[%s357 + $0x40] sm:$0xf]
      %v382 = vld [vmem:[%s357 + $0x44] sm:$0xf]
      %v383 = vld [vmem:[%s357 + $0x48] sm:$0xf]
      %v384 = vld [vmem:[%s357 + $0x4c] sm:$0xf]
      %v385 = vld [vmem:[%s357 + $0x50] sm:$0xf]
      %v386 = vld [vmem:[%s357 + $0x54] sm:$0xf]
      %v387 = vld [vmem:[%s357 + $0x58] sm:$0xf]
      %v388 = vld [vmem:[%s357 + $0x5c] sm:$0xf]
      %v389 = vld [vmem:[%s357 + $0x60] sm:$0xf]
      %v390 = vld [vmem:[%s357 + $0x64] sm:$0xf]
      %v391 = vld [vmem:[%s357 + $0x68] sm:$0xf]
      %v392 = vld [vmem:[%s357 + $0x6c] sm:$0xf]
      %v393 = vld [vmem:[%s357 + $0x70] sm:$0xf]
      %v394 = vld [vmem:[%s357 + $0x74] sm:$0xf]
      %v395 = vld [vmem:[%s357 + $0x78] sm:$0xf]
      %v396 = vld [vmem:[%s357 + $0x7c] sm:$0xf]
      %v397 = vld [vmem:[%s1] sm:$0xf]
      %v398 = vld [vmem:[%s1 + $0x4] sm:$0xf]
      %v399 = vld [vmem:[%s1 + $0x8] sm:$0x3]
      %v432 = vunpack.c.l.b16 %v365
      %v433 = vunpack.c.l.b16 %v366
      %v434 = vunpack.c.l.b16 %v367
      %v435 = vunpack.c.l.b16 %v368
      %v436 = vunpack.c.l.b16 %v369
      %v437 = vunpack.c.l.b16 %v370
      %v438 = vunpack.c.l.b16 %v371
      %v439 = vunpack.c.l.b16 %v372
      %v440 = vunpack.c.l.b16 %v373
      %v441 = vunpack.c.l.b16 %v374
      %v442 = vunpack.c.l.b16 %v375
      %v443 = vunpack.c.l.b16 %v376
      %v444 = vunpack.c.l.b16 %v377
      %v445 = vunpack.c.l.b16 %v378
      %v446 = vunpack.c.l.b16 %v379
      %v447 = vunpack.c.l.b16 %v380
      %v448 = vunpack.c.l.b16 %v381
      %v449 = vunpack.c.l.b16 %v382
      %v450 = vunpack.c.l.b16 %v383
      %v451 = vunpack.c.l.b16 %v384
      %v452 = vunpack.c.l.b16 %v385
      %v453 = vunpack.c.l.b16 %v386
      %v454 = vunpack.c.l.b16 %v387
      %v455 = vunpack.c.l.b16 %v388
      %v456 = vunpack.c.l.b16 %v389
      %v457 = vunpack.c.l.b16 %v390
      %v458 = vunpack.c.l.b16 %v391
      %v459 = vunpack.c.l.b16 %v392
      %v460 = vunpack.c.l.b16 %v393
      %v461 = vunpack.c.l.b16 %v394
      %v462 = vunpack.c.l.b16 %v395
      %v463 = vunpack.c.l.b16 %v396
      %v464 = vpack.c.b16 %v433, %v432
      %v465 = vpack.c.b16 %v435, %v434
      %v466 = vpack.c.b16 %v437, %v436
      %v467 = vpack.c.b16 %v439, %v438
      %v468 = vpack.c.b16 %v441, %v440
      %v469 = vpack.c.b16 %v443, %v442
      %v470 = vpack.c.b16 %v445, %v444
      %v471 = vpack.c.b16 %v447, %v446
      %v472 = vpack.c.b16 %v449, %v448
      %v473 = vpack.c.b16 %v451, %v450
      %v474 = vpack.c.b16 %v453, %v452
      %v475 = vpack.c.b16 %v455, %v454
      %v476 = vpack.c.b16 %v457, %v456
      %v477 = vpack.c.b16 %v459, %v458
      %v478 = vpack.c.b16 %v461, %v460
      %v479 = vpack.c.b16 %v463, %v462
      %v483 = vunpack.c.l.b16 %v397
      %v484 = vunpack.c.l.b16 %v398
      %v485 = vunpack.c.l.b16 %v399
      %v486 = vpack.c.b16 %v484, %v483
      %v487 = vpack.c.b16 %v485, %v485
      %vm489 = vcmask 162816
      %v491 = vsel %vm489, %v464, 0
      %v494 = vsel %vm489, %v465, 0
      %v497 = vsel %vm489, %v466, 0
      %v500 = vsel %vm489, %v467, 0
      %v503 = vsel %vm489, %v468, 0
      %v506 = vsel %vm489, %v469, 0
      %v509 = vsel %vm489, %v470, 0
      %v512 = vsel %vm489, %v471, 0
      %v515 = vsel %vm489, %v472, 0
      %v518 = vsel %vm489, %v473, 0
      %v521 = vsel %vm489, %v474, 0
      %v524 = vsel %vm489, %v475, 0
      %v527 = vsel %vm489, %v476, 0
      %v530 = vsel %vm489, %v477, 0
      %v533 = vsel %vm489, %v478, 0
      %v536 = vsel %vm489, %v479, 0
      %vm538 = vcmask 1041408
      %v540 = vsel %vm538, %v487, 0
      %542 = vmatprep.subr.bf16.mxu0 0
      %543 = vmatpush1.bf16.msra.mxu0 %v486
      %544 = vmatprep.subr.bf16.mxu0 0
      %545 = vmatpush1.bf16.msra.mxu0 %v540
      %546 = vmatprep.subr.bf16.mxu0 0
      %547 = vmatpush1.bf16.msra.mxu0 0
      %548 = vmatprep.subr.bf16.mxu0 0
      %549 = vmatpush1.bf16.msra.mxu0 0
      %550 = vmatprep.subr.bf16.mxu0 0
      %551 = vmatpush1.bf16.msra.mxu0 0
      %552 = vmatprep.subr.bf16.mxu0 0
      %553 = vmatpush1.bf16.msra.mxu0 0
      %554 = vmatprep.subr.bf16.mxu0 0
      %555 = vmatpush1.bf16.msra.mxu0 0
      %556 = vmatprep.subr.bf16.mxu0 0
      %557 = vmatpush1.bf16.msra.mxu0 0
      %558 = vmatprep.subr.bf16.mxu0 0
      %559 = vmatpush1.bf16.msra.mxu0 0
      %560 = vmatprep.subr.bf16.mxu0 0
      %561 = vmatpush1.bf16.msra.mxu0 0
      %562 = vmatprep.subr.bf16.mxu0 0
      %563 = vmatpush1.bf16.msra.mxu0 0
      %564 = vmatprep.subr.bf16.mxu0 0
      %565 = vmatpush1.bf16.msra.mxu0 0
      %566 = vmatprep.subr.bf16.mxu0 0
      %567 = vmatpush1.bf16.msra.mxu0 0
      %568 = vmatprep.subr.bf16.mxu0 0
      %569 = vmatpush1.bf16.msra.mxu0 0
      %570 = vmatprep.subr.bf16.mxu0 0
      %571 = vmatpush1.bf16.msra.mxu0 0
      %572 = vmatprep.subr.bf16.mxu0 0
      %573 = vmatpush1.bf16.msra.mxu0 0
      %574 = vmatprep.mubr.bf16.mxu0 0
      %575 = vmatmul.mubr.bf16.gmra.mrb[0].mxu0 %v491
      %v576 = vpop.f32.mrb[0].mxu0
      %v577 = vadd.f32 0.0, %v576
      %v578 = vpop.f32.mrb[0].mxu0
      %v579 = vpop.f32.mrb[0].mxu0
      %v580 = vadd.f32 0.0, %v579
      %v581 = vpop.f32.mrb[0].mxu0
      %582 = vmatprep.mubr.bf16.mxu0 0
      %583 = vmatmul.mubr.bf16.gmra.mrb[0].mxu0 %v494
      %v584 = vpop.f32.mrb[0].mxu0
      %v585 = vadd.f32 0.0, %v584
      %v586 = vpop.f32.mrb[0].mxu0
      %v587 = vpop.f32.mrb[0].mxu0
      %v588 = vadd.f32 0.0, %v587
      %v589 = vpop.f32.mrb[0].mxu0
      %590 = vmatprep.mubr.bf16.mxu0 0
      %591 = vmatmul.mubr.bf16.gmra.mrb[0].mxu0 %v497
      %v592 = vpop.f32.mrb[0].mxu0
      %v593 = vadd.f32 0.0, %v592
      %v594 = vpop.f32.mrb[0].mxu0
      %v595 = vpop.f32.mrb[0].mxu0
      %v596 = vadd.f32 0.0, %v595
      %v597 = vpop.f32.mrb[0].mxu0
      %598 = vmatprep.mubr.bf16.mxu0 0
      %599 = vmatmul.mubr.bf16.gmra.mrb[0].mxu0 %v500
      %v600 = vpop.f32.mrb[0].mxu0
      %v601 = vadd.f32 0.0, %v600
      %v602 = vpop.f32.mrb[0].mxu0
      %v603 = vpop.f32.mrb[0].mxu0
      %v604 = vadd.f32 0.0, %v603
      %v605 = vpop.f32.mrb[0].mxu0
      %606 = vmatprep.mubr.bf16.mxu0 0
      %607 = vmatmul.mubr.bf16.gmra.mrb[0].mxu0 %v503
      %v608 = vpop.f32.mrb[0].mxu0
      %v609 = vadd.f32 0.0, %v608
      %v610 = vpop.f32.mrb[0].mxu0
      %v611 = vpop.f32.mrb[0].mxu0
      %v612 = vadd.f32 0.0, %v611
      %v613 = vpop.f32.mrb[0].mxu0
      %614 = vmatprep.mubr.bf16.mxu0 0
      %615 = vmatmul.mubr.bf16.gmra.mrb[0].mxu0 %v506
      %v616 = vpop.f32.mrb[0].mxu0
      %v617 = vadd.f32 0.0, %v616
      %v618 = vpop.f32.mrb[0].mxu0
      %v619 = vpop.f32.mrb[0].mxu0
      %v620 = vadd.f32 0.0, %v619
      %v621 = vpop.f32.mrb[0].mxu0
      %622 = vmatprep.mubr.bf16.mxu0 0
      %623 = vmatmul.mubr.bf16.gmra.mrb[0].mxu0 %v509
      %v624 = vpop.f32.mrb[0].mxu0
      %v625 = vadd.f32 0.0, %v624
      %v626 = vpop.f32.mrb[0].mxu0
      %v627 = vpop.f32.mrb[0].mxu0
      %v628 = vadd.f32 0.0, %v627
      %v629 = vpop.f32.mrb[0].mxu0
      %630 = vmatprep.mubr.bf16.mxu0 0
      %631 = vmatmul.mubr.bf16.gmra.mrb[0].mxu0 %v512
      %v632 = vpop.f32.mrb[0].mxu0
      %v633 = vadd.f32 0.0, %v632
      %v634 = vpop.f32.mrb[0].mxu0
      %v635 = vpop.f32.mrb[0].mxu0
      %v636 = vadd.f32 0.0, %v635
      %v637 = vpop.f32.mrb[0].mxu0
      %638 = vmatprep.mubr.bf16.mxu0 0
      %639 = vmatmul.mubr.bf16.gmra.mrb[0].mxu0 %v515
      %v640 = vpop.f32.mrb[0].mxu0
      %v641 = vadd.f32 0.0, %v640
      %v642 = vpop.f32.mrb[0].mxu0
      %v643 = vpop.f32.mrb[0].mxu0
      %v644 = vadd.f32 0.0, %v643
      %v645 = vpop.f32.mrb[0].mxu0
      %646 = vmatprep.mubr.bf16.mxu0 0
      %647 = vmatmul.mubr.bf16.gmra.mrb[0].mxu0 %v518
      %v648 = vpop.f32.mrb[0].mxu0
      %v649 = vadd.f32 0.0, %v648
      %v650 = vpop.f32.mrb[0].mxu0
      %v651 = vpop.f32.mrb[0].mxu0
      %v652 = vadd.f32 0.0, %v651
      %v653 = vpop.f32.mrb[0].mxu0
      %654 = vmatprep.mubr.bf16.mxu0 0
      %655 = vmatmul.mubr.bf16.gmra.mrb[0].mxu0 %v521
      %v656 = vpop.f32.mrb[0].mxu0
      %v657 = vadd.f32 0.0, %v656
      %v658 = vpop.f32.mrb[0].mxu0
      %v659 = vpop.f32.mrb[0].mxu0
      %v660 = vadd.f32 0.0, %v659
      %v661 = vpop.f32.mrb[0].mxu0
      %662 = vmatprep.mubr.bf16.mxu0 0
      %663 = vmatmul.mubr.bf16.gmra.mrb[0].mxu0 %v524
      %v664 = vpop.f32.mrb[0].mxu0
      %v665 = vadd.f32 0.0, %v664
      %v666 = vpop.f32.mrb[0].mxu0
      %v667 = vpop.f32.mrb[0].mxu0
      %v668 = vadd.f32 0.0, %v667
      %v669 = vpop.f32.mrb[0].mxu0
      %670 = vmatprep.mubr.bf16.mxu0 0
      %671 = vmatmul.mubr.bf16.gmra.mrb[0].mxu0 %v527
      %v672 = vpop.f32.mrb[0].mxu0
      %v673 = vadd.f32 0.0, %v672
      %v674 = vpop.f32.mrb[0].mxu0
      %v675 = vpop.f32.mrb[0].mxu0
      %v676 = vadd.f32 0.0, %v675
      %v677 = vpop.f32.mrb[0].mxu0
      %678 = vmatprep.mubr.bf16.mxu0 0
      %679 = vmatmul.mubr.bf16.gmra.mrb[0].mxu0 %v530
      %v680 = vpop.f32.mrb[0].mxu0
      %v681 = vadd.f32 0.0, %v680
      %v682 = vpop.f32.mrb[0].mxu0
      %v683 = vpop.f32.mrb[0].mxu0
      %v684 = vadd.f32 0.0, %v683
      %v685 = vpop.f32.mrb[0].mxu0
      %686 = vmatprep.mubr.bf16.mxu0 0
      %687 = vmatmul.mubr.bf16.gmra.mrb[0].mxu0 %v533
      %v688 = vpop.f32.mrb[0].mxu0
      %v689 = vadd.f32 0.0, %v688
      %v690 = vpop.f32.mrb[0].mxu0
      %v691 = vpop.f32.mrb[0].mxu0
      %v692 = vadd.f32 0.0, %v691
      %v693 = vpop.f32.mrb[0].mxu0
      %694 = vmatprep.mubr.bf16.mxu0 0
      %695 = vmatmul.mubr.bf16.gmra.mrb[0].mxu0 %v536
      %v696 = vpop.f32.mrb[0].mxu0
      %v697 = vadd.f32 0.0, %v696
      %v698 = vpop.f32.mrb[0].mxu0
      %v699 = vpop.f32.mrb[0].mxu0
      %v700 = vadd.f32 0.0, %v699
      %v701 = vpop.f32.mrb[0].mxu0
      %702 = vdwg.mxu0
      %v703 = vld [vmem:[%s2] sm:$0xff]
      %v704 = vld [vmem:[%s2 + $0x8] sm:$0xff]
      %v705 = vld [vmem:[%s2 + $0x10] sm:$0xff]
      %v706 = vld [vmem:[%s2 + $0x18] sm:$0xff]
      %v707 = vld [vmem:[%s2 + $0x20] sm:$0xff]
      %v708 = vld [vmem:[%s2 + $0x28] sm:$0xff]
      %v709 = vld [vmem:[%s2 + $0x30] sm:$0xff]
      %v710 = vld [vmem:[%s2 + $0x38] sm:$0xff]
      %v711 = vadd.f32 %v577, %v703
      %v712 = vadd.f32 %v580, %v704
      %v713 = vadd.f32 %v585, %v705
      %v714 = vadd.f32 %v588, %v706
      %v715 = vadd.f32 %v593, %v707
      %v716 = vadd.f32 %v596, %v708
      %v717 = vadd.f32 %v601, %v709
      %v718 = vadd.f32 %v604, %v710
      %v719 = vadd.f32 %v609, %v703
      %v720 = vadd.f32 %v612, %v704
      %v721 = vadd.f32 %v617, %v705
      %v722 = vadd.f32 %v620, %v706
      %v723 = vadd.f32 %v625, %v707
      %v724 = vadd.f32 %v628, %v708
      %v725 = vadd.f32 %v633, %v709
      %v726 = vadd.f32 %v636, %v710
      %v727 = vadd.f32 %v641, %v703
      %v728 = vadd.f32 %v644, %v704
      %v729 = vadd.f32 %v649, %v705
      %v730 = vadd.f32 %v652, %v706
      %v731 = vadd.f32 %v657, %v707
      %v732 = vadd.f32 %v660, %v708
      %v733 = vadd.f32 %v665, %v709
      %v734 = vadd.f32 %v668, %v710
      %v735 = vadd.f32 %v673, %v703
      %v736 = vadd.f32 %v676, %v704
      %v737 = vadd.f32 %v681, %v705
      %v738 = vadd.f32 %v684, %v706
      %v739 = vadd.f32 %v689, %v707
      %v740 = vadd.f32 %v692, %v708
      %v741 = vadd.f32 %v697, %v709
      %v742 = vadd.f32 %v700, %v710
      %v743 = vmax.f32 %v711, 0.0
      %v744 = vmax.f32 %v712, 0.0
      %v745 = vmax.f32 %v713, 0.0
      %v746 = vmax.f32 %v714, 0.0
      %v747 = vmax.f32 %v715, 0.0
      %v748 = vmax.f32 %v716, 0.0
      %v749 = vmax.f32 %v717, 0.0
      %v750 = vmax.f32 %v718, 0.0
      %v751 = vmax.f32 %v719, 0.0
      %v752 = vmax.f32 %v720, 0.0
      %v753 = vmax.f32 %v721, 0.0
      %v754 = vmax.f32 %v722, 0.0
      %v755 = vmax.f32 %v723, 0.0
      %v756 = vmax.f32 %v724, 0.0
      %v757 = vmax.f32 %v725, 0.0
      %v758 = vmax.f32 %v726, 0.0
      %v759 = vmax.f32 %v727, 0.0
      %v760 = vmax.f32 %v728, 0.0
      %v761 = vmax.f32 %v729, 0.0
      %v762 = vmax.f32 %v730, 0.0
      %v763 = vmax.f32 %v731, 0.0
      %v764 = vmax.f32 %v732, 0.0
      %v765 = vmax.f32 %v733, 0.0
      %v766 = vmax.f32 %v734, 0.0
      %v767 = vmax.f32 %v735, 0.0
      %v768 = vmax.f32 %v736, 0.0
      %v769 = vmax.f32 %v737, 0.0
      %v770 = vmax.f32 %v738, 0.0
      %v771 = vmax.f32 %v739, 0.0
      %v772 = vmax.f32 %v740, 0.0
      %v773 = vmax.f32 %v741, 0.0
      %v774 = vmax.f32 %v742, 0.0
      %775 = vst [vmem:[#allocation2] sm:$0xff] %v743
      %776 = vst [vmem:[#allocation2 + $0x8] sm:$0xff] %v744
      %777 = vst [vmem:[#allocation2 + $0x10] sm:$0xff] %v745
      %778 = vst [vmem:[#allocation2 + $0x18] sm:$0xff] %v746
      %779 = vst [vmem:[#allocation2 + $0x20] sm:$0xff] %v747
      %780 = vst [vmem:[#allocation2 + $0x28] sm:$0xff] %v748
      %781 = vst [vmem:[#allocation2 + $0x30] sm:$0xff] %v749
      %782 = vst [vmem:[#allocation2 + $0x38] sm:$0xff] %v750
      %783 = vst [vmem:[#allocation2 + $0x40] sm:$0xff] %v751
      %784 = vst [vmem:[#allocation2 + $0x48] sm:$0xff] %v752
      %785 = vst [vmem:[#allocation2 + $0x50] sm:$0xff] %v753
      %786 = vst [vmem:[#allocation2 + $0x58] sm:$0xff] %v754
      %787 = vst [vmem:[#allocation2 + $0x60] sm:$0xff] %v755
      %788 = vst [vmem:[#allocation2 + $0x68] sm:$0xff] %v756
      %789 = vst [vmem:[#allocation2 + $0x70] sm:$0xff] %v757
      %790 = vst [vmem:[#allocation2 + $0x78] sm:$0xff] %v758
      %791 = vst [vmem:[#allocation2 + $0x80] sm:$0xff] %v759
      %792 = vst [vmem:[#allocation2 + $0x88] sm:$0xff] %v760
      %793 = vst [vmem:[#allocation2 + $0x90] sm:$0xff] %v761
      %794 = vst [vmem:[#allocation2 + $0x98] sm:$0xff] %v762
      %795 = vst [vmem:[#allocation2 + $0xa0] sm:$0xff] %v763
      %796 = vst [vmem:[#allocation2 + $0xa8] sm:$0xff] %v764
      %797 = vst [vmem:[#allocation2 + $0xb0] sm:$0xff] %v765
      %798 = vst [vmem:[#allocation2 + $0xb8] sm:$0xff] %v766
      %799 = vst [vmem:[#allocation2 + $0xc0] sm:$0xff] %v767
      %800 = vst [vmem:[#allocation2 + $0xc8] sm:$0xff] %v768
      %801 = vst [vmem:[#allocation2 + $0xd0] sm:$0xff] %v769
      %802 = vst [vmem:[#allocation2 + $0xd8] sm:$0xff] %v770
      %803 = vst [vmem:[#allocation2 + $0xe0] sm:$0xff] %v771
      %804 = vst [vmem:[#allocation2 + $0xe8] sm:$0xff] %v772
      %805 = vst [vmem:[#allocation2 + $0xf0] sm:$0xff] %v773
      %806 = vst [vmem:[#allocation2 + $0xf8] sm:$0xff] %v774
      %v807 = vld [vmem:[#allocation2] sm:$0xff]
      %v808 = vld [vmem:[#allocation2 + $0x8] sm:$0xff]
      %v809 = vld [vmem:[#allocation2 + $0x10] sm:$0xff]
      %v810 = vld [vmem:[#allocation2 + $0x18] sm:$0xff]
      %v811 = vld [vmem:[#allocation2 + $0x20] sm:$0xff]
      %v812 = vld [vmem:[#allocation2 + $0x28] sm:$0xff]
      %v813 = vld [vmem:[#allocation2 + $0x30] sm:$0xff]
      %v814 = vld [vmem:[#allocation2 + $0x38] sm:$0xff]
      %v815 = vld [vmem:[#allocation2 + $0x40] sm:$0xff]
      %v816 = vld [vmem:[#allocation2 + $0x48] sm:$0xff]
      %v817 = vld [vmem:[#allocation2 + $0x50] sm:$0xff]
      %v818 = vld [vmem:[#allocation2 + $0x58] sm:$0xff]
      %v819 = vld [vmem:[#allocation2 + $0x60] sm:$0xff]
      %v820 = vld [vmem:[#allocation2 + $0x68] sm:$0xff]
      %v821 = vld [vmem:[#allocation2 + $0x70] sm:$0xff]
      %v822 = vld [vmem:[#allocation2 + $0x78] sm:$0xff]
      %v823 = vld [vmem:[#allocation2 + $0x80] sm:$0xff]
      %v824 = vld [vmem:[#allocation2 + $0x88] sm:$0xff]
      %v825 = vld [vmem:[#allocation2 + $0x90] sm:$0xff]
      %v826 = vld [vmem:[#allocation2 + $0x98] sm:$0xff]
      %v827 = vld [vmem:[#allocation2 + $0xa0] sm:$0xff]
      %v828 = vld [vmem:[#allocation2 + $0xa8] sm:$0xff]
      %v829 = vld [vmem:[#allocation2 + $0xb0] sm:$0xff]
      %v830 = vld [vmem:[#allocation2 + $0xb8] sm:$0xff]
      %v831 = vld [vmem:[#allocation2 + $0xc0] sm:$0xff]
      %v832 = vld [vmem:[#allocation2 + $0xc8] sm:$0xff]
      %v833 = vld [vmem:[#allocation2 + $0xd0] sm:$0xff]
      %v834 = vld [vmem:[#allocation2 + $0xd8] sm:$0xff]
      %v835 = vld [vmem:[#allocation2 + $0xe0] sm:$0xff]
      %v836 = vld [vmem:[#allocation2 + $0xe8] sm:$0xf]
      %v837 = vld [vmem:[#allocation2 + $0x1] sm:$0xff]
      %v838 = vld [vmem:[#allocation2 + $0x9] sm:$0xff]
      %v839 = vld [vmem:[#allocation2 + $0x11] sm:$0xff]
      %v840 = vld [vmem:[#allocation2 + $0x19] sm:$0xff]
      %v841 = vld [vmem:[#allocation2 + $0x21] sm:$0xff]
      %v842 = vld [vmem:[#allocation2 + $0x29] sm:$0xff]
      %v843 = vld [vmem:[#allocation2 + $0x31] sm:$0xff]
      %v844 = vld [vmem:[#allocation2 + $0x39] sm:$0xff]
      %v845 = vld [vmem:[#allocation2 + $0x41] sm:$0xff]
      %v846 = vld [vmem:[#allocation2 + $0x49] sm:$0xff]
      %v847 = vld [vmem:[#allocation2 + $0x51] sm:$0xff]
      %v848 = vld [vmem:[#allocation2 + $0x59] sm:$0xff]
      %v849 = vld [vmem:[#allocation2 + $0x61] sm:$0xff]
      %v850 = vld [vmem:[#allocation2 + $0x69] sm:$0xff]
      %v851 = vld [vmem:[#allocation2 + $0x71] sm:$0xff]
      %v852 = vld [vmem:[#allocation2 + $0x79] sm:$0xff]
      %v853 = vld [vmem:[#allocation2 + $0x81] sm:$0xff]
      %v854 = vld [vmem:[#allocation2 + $0x89] sm:$0xff]
      %v855 = vld [vmem:[#allocation2 + $0x91] sm:$0xff]
      %v856 = vld [vmem:[#allocation2 + $0x99] sm:$0xff]
      %v857 = vld [vmem:[#allocation2 + $0xa1] sm:$0xff]
      %v858 = vld [vmem:[#allocation2 + $0xa9] sm:$0xff]
      %v859 = vld [vmem:[#allocation2 + $0xb1] sm:$0xff]
      %v860 = vld [vmem:[#allocation2 + $0xb9] sm:$0xff]
      %v861 = vld [vmem:[#allocation2 + $0xc1] sm:$0xff]
      %v862 = vld [vmem:[#allocation2 + $0xc9] sm:$0xff]
      %v863 = vld [vmem:[#allocation2 + $0xd1] sm:$0xff]
      %v864 = vld [vmem:[#allocation2 + $0xd9] sm:$0xff]
      %v865 = vld [vmem:[#allocation2 + $0xe1] sm:$0xff]
      %v866 = vld [vmem:[#allocation2 + $0xe9] sm:$0xf]
      %v867 = vpack.c.bf16 %v808, %v807
      %v868 = vpack.c.bf16 %v838, %v837
      %v869 = vpack.c.bf16 %v810, %v809
      %v870 = vpack.c.bf16 %v840, %v839
      %v871 = vpack.c.bf16 %v812, %v811
      %v872 = vpack.c.bf16 %v842, %v841
      %v873 = vpack.c.bf16 %v814, %v813
      %v874 = vpack.c.bf16 %v844, %v843
      %v875 = vpack.c.bf16 %v816, %v815
      %v876 = vpack.c.bf16 %v846, %v845
      %v877 = vpack.c.bf16 %v818, %v817
      %v878 = vpack.c.bf16 %v848, %v847
      %v879 = vpack.c.bf16 %v820, %v819
      %v880 = vpack.c.bf16 %v850, %v849
      %v881 = vpack.c.bf16 %v822, %v821
      %v882 = vpack.c.bf16 %v852, %v851
      %v883 = vpack.c.bf16 %v824, %v823
      %v884 = vpack.c.bf16 %v854, %v853
      %v885 = vpack.c.bf16 %v826, %v825
      %v886 = vpack.c.bf16 %v856, %v855
      %v887 = vpack.c.bf16 %v828, %v827
      %v888 = vpack.c.bf16 %v858, %v857
      %v889 = vpack.c.bf16 %v830, %v829
      %v890 = vpack.c.bf16 %v860, %v859
      %v891 = vpack.c.bf16 %v832, %v831
      %v892 = vpack.c.bf16 %v862, %v861
      %v893 = vpack.c.bf16 %v834, %v833
      %v894 = vpack.c.bf16 %v864, %v863
      %v895 = vpack.c.bf16 %v836, %v835
      %v896 = vpack.c.bf16 %v866, %v865
      %v897 = vld [vmem:[%s3] sm:$0xf]
      %v898 = vld [vmem:[%s3 + $0x4] sm:$0xf]
      %v899 = vld [vmem:[%s3 + $0x8] sm:$0xf]
      %v900 = vld [vmem:[%s3 + $0xc] sm:$0xf]
      %v901 = vld [vmem:[%s3 + $0x10] sm:$0xf]
      %v902 = vld [vmem:[%s3 + $0x14] sm:$0xf]
      %v903 = vld [vmem:[%s3 + $0x18] sm:$0xf]
      %v904 = vld [vmem:[%s3 + $0x1c] sm:$0xf]
      %v905 = vld [vmem:[%s3 + $0x20] sm:$0xf]
      %v906 = vld [vmem:[%s3 + $0x24] sm:$0xf]
      %v907 = vld [vmem:[%s3 + $0x28] sm:$0xf]
      %v908 = vld [vmem:[%s3 + $0x2c] sm:$0xf]
      %v909 = vld [vmem:[%s3 + $0x30] sm:$0xf]
      %v910 = vld [vmem:[%s3 + $0x34] sm:$0xf]
      %v911 = vld [vmem:[%s3 + $0x38] sm:$0xf]
      %v912 = vld [vmem:[%s3 + $0x3c] sm:$0xf]
      %v913 = vld [vmem:[%s3 + $0x40] sm:$0xf]
      %v914 = vld [vmem:[%s3 + $0x44] sm:$0xf]
      %v915 = vld [vmem:[%s3 + $0x48] sm:$0xf]
      %v916 = vld [vmem:[%s3 + $0x4c] sm:$0xf]
      %v917 = vld [vmem:[%s3 + $0x50] sm:$0xf]
      %v918 = vld [vmem:[%s3 + $0x54] sm:$0xf]
      %v919 = vld [vmem:[%s3 + $0x58] sm:$0xf]
      %v920 = vld [vmem:[%s3 + $0x5c] sm:$0xf]
      %v921 = vld [vmem:[%s3 + $0x60] sm:$0xf]
      %v922 = vld [vmem:[%s3 + $0x64] sm:$0xf]
      %v923 = vld [vmem:[%s3 + $0x68] sm:$0xf]
      %v924 = vld [vmem:[%s3 + $0x6c] sm:$0xf]
      %v925 = vld [vmem:[%s3 + $0x70] sm:$0xf]
      %v926 = vld [vmem:[%s3 + $0x74] sm:$0xf]
      %v927 = vld [vmem:[%s3 + $0x78] sm:$0xf]
      %v928 = vld [vmem:[%s3 + $0x7c] sm:$0xf]
      %v929 = vld [vmem:[#allocation2 + $0x2] sm:$0xff]
      %v930 = vld [vmem:[#allocation2 + $0xa] sm:$0xff]
      %v931 = vld [vmem:[#allocation2 + $0x12] sm:$0xff]
      %v932 = vld [vmem:[#allocation2 + $0x1a] sm:$0xff]
      %v933 = vld [vmem:[#allocation2 + $0x22] sm:$0xff]
      %v934 = vld [vmem:[#allocation2 + $0x2a] sm:$0xff]
      %v935 = vld [vmem:[#allocation2 + $0x32] sm:$0xff]
      %v936 = vld [vmem:[#allocation2 + $0x3a] sm:$0xff]
      %v937 = vld [vmem:[#allocation2 + $0x42] sm:$0xff]
      %v938 = vld [vmem:[#allocation2 + $0x4a] sm:$0xff]
      %v939 = vld [vmem:[#allocation2 + $0x52] sm:$0xff]
      %v940 = vld [vmem:[#allocation2 + $0x5a] sm:$0xff]
      %v941 = vld [vmem:[#allocation2 + $0x62] sm:$0xff]
      %v942 = vld [vmem:[#allocation2 + $0x6a] sm:$0xff]
      %v943 = vld [vmem:[#allocation2 + $0x72] sm:$0xff]
      %v944 = vld [vmem:[#allocation2 + $0x7a] sm:$0xff]
      %v945 = vld [vmem:[#allocation2 + $0x82] sm:$0xff]
      %v946 = vld [vmem:[#allocation2 + $0x8a] sm:$0xff]
      %v947 = vld [vmem:[#allocation2 + $0x92] sm:$0xff]
      %v948 = vld [vmem:[#allocation2 + $0x9a] sm:$0xff]
      %v949 = vld [vmem:[#allocation2 + $0xa2] sm:$0xff]
      %v950 = vld [vmem:[#allocation2 + $0xaa] sm:$0xff]
      %v951 = vld [vmem:[#allocation2 + $0xb2] sm:$0xff]
      %v952 = vld [vmem:[#allocation2 + $0xba] sm:$0xff]
      %v953 = vld [vmem:[#allocation2 + $0xc2] sm:$0xff]
      %v954 = vld [vmem:[#allocation2 + $0xca] sm:$0xff]
      %v955 = vld [vmem:[#allocation2 + $0xd2] sm:$0xff]
      %v956 = vld [vmem:[#allocation2 + $0xda] sm:$0xff]
      %v957 = vld [vmem:[#allocation2 + $0xe2] sm:$0xff]
      %v958 = vld [vmem:[#allocation2 + $0xea] sm:$0xf]
      %v959 = vld [vmem:[#allocation2 + $0x3] sm:$0xff]
      %v960 = vld [vmem:[#allocation2 + $0xb] sm:$0xff]
      %v961 = vld [vmem:[#allocation2 + $0x13] sm:$0xff]
      %v962 = vld [vmem:[#allocation2 + $0x1b] sm:$0xff]
      %v963 = vld [vmem:[#allocation2 + $0x23] sm:$0xff]
      %v964 = vld [vmem:[#allocation2 + $0x2b] sm:$0xff]
      %v965 = vld [vmem:[#allocation2 + $0x33] sm:$0xff]
      %v966 = vld [vmem:[#allocation2 + $0x3b] sm:$0xff]
      %v967 = vld [vmem:[#allocation2 + $0x43] sm:$0xff]
      %v968 = vld [vmem:[#allocation2 + $0x4b] sm:$0xff]
      %v969 = vld [vmem:[#allocation2 + $0x53] sm:$0xff]
      %v970 = vld [vmem:[#allocation2 + $0x5b] sm:$0xff]
      %v971 = vld [vmem:[#allocation2 + $0x63] sm:$0xff]
      %v972 = vld [vmem:[#allocation2 + $0x6b] sm:$0xff]
      %v973 = vld [vmem:[#allocation2 + $0x73] sm:$0xff]
      %v974 = vld [vmem:[#allocation2 + $0x7b] sm:$0xff]
      %v975 = vld [vmem:[#allocation2 + $0x83] sm:$0xff]
      %v976 = vld [vmem:[#allocation2 + $0x8b] sm:$0xff]
      %v977 = vld [vmem:[#allocation2 + $0x93] sm:$0xff]
      %v978 = vld [vmem:[#allocation2 + $0x9b] sm:$0xff]
      %v979 = vld [vmem:[#allocation2 + $0xa3] sm:$0xff]
      %v980 = vld [vmem:[#allocation2 + $0xab] sm:$0xff]
      %v981 = vld [vmem:[#allocation2 + $0xb3] sm:$0xff]
      %v982 = vld [vmem:[#allocation2 + $0xbb] sm:$0xff]
      %v983 = vld [vmem:[#allocation2 + $0xc3] sm:$0xff]
      %v984 = vld [vmem:[#allocation2 + $0xcb] sm:$0xff]
      %v985 = vld [vmem:[#allocation2 + $0xd3] sm:$0xff]
      %v986 = vld [vmem:[#allocation2 + $0xdb] sm:$0xff]
      %v987 = vld [vmem:[#allocation2 + $0xe3] sm:$0xff]
      %v988 = vld [vmem:[#allocation2 + $0xeb] sm:$0xf]
      %v989 = vpack.c.bf16 %v930, %v929
      %v990 = vpack.c.bf16 %v960, %v959
      %v991 = vpack.c.bf16 %v932, %v931
      %v992 = vpack.c.bf16 %v962, %v961
      %v993 = vpack.c.bf16 %v934, %v933
      %v994 = vpack.c.bf16 %v964, %v963
      %v995 = vpack.c.bf16 %v936, %v935
      %v996 = vpack.c.bf16 %v966, %v965
      %v997 = vpack.c.bf16 %v938, %v937
      %v998 = vpack.c.bf16 %v968, %v967
      %v999 = vpack.c.bf16 %v940, %v939
      %v1000 = vpack.c.bf16 %v970, %v969
      %v1001 = vpack.c.bf16 %v942, %v941
      %v1002 = vpack.c.bf16 %v972, %v971
      %v1003 = vpack.c.bf16 %v944, %v943
      %v1004 = vpack.c.bf16 %v974, %v973
      %v1005 = vpack.c.bf16 %v946, %v945
      %v1006 = vpack.c.bf16 %v976, %v975
      %v1007 = vpack.c.bf16 %v948, %v947
      %v1008 = vpack.c.bf16 %v978, %v977
      %v1009 = vpack.c.bf16 %v950, %v949
      %v1010 = vpack.c.bf16 %v980, %v979
      %v1011 = vpack.c.bf16 %v952, %v951
      %v1012 = vpack.c.bf16 %v982, %v981
      %v1013 = vpack.c.bf16 %v954, %v953
      %v1014 = vpack.c.bf16 %v984, %v983
      %v1015 = vpack.c.bf16 %v956, %v955
      %v1016 = vpack.c.bf16 %v986, %v985
      %v1017 = vpack.c.bf16 %v958, %v957
      %v1018 = vpack.c.bf16 %v988, %v987
      %s1019 = scalar_lea.vmem %s3, 128
      %v1020 = vld [vmem:[%s1019] sm:$0xf]
      %v1021 = vld [vmem:[%s1019 + $0x4] sm:$0xf]
      %v1022 = vld [vmem:[%s1019 + $0x8] sm:$0xf]
      %v1023 = vld [vmem:[%s1019 + $0xc] sm:$0xf]
      %v1024 = vld [vmem:[%s1019 + $0x10] sm:$0xf]
      %v1025 = vld [vmem:[%s1019 + $0x14] sm:$0xf]
      %v1026 = vld [vmem:[%s1019 + $0x18] sm:$0xf]
      %v1027 = vld [vmem:[%s1019 + $0x1c] sm:$0xf]
      %v1028 = vld [vmem:[%s1019 + $0x20] sm:$0xf]
      %v1029 = vld [vmem:[%s1019 + $0x24] sm:$0xf]
      %v1030 = vld [vmem:[%s1019 + $0x28] sm:$0xf]
      %v1031 = vld [vmem:[%s1019 + $0x2c] sm:$0xf]
      %v1032 = vld [vmem:[%s1019 + $0x30] sm:$0xf]
      %v1033 = vld [vmem:[%s1019 + $0x34] sm:$0xf]
      %v1034 = vld [vmem:[%s1019 + $0x38] sm:$0xf]
      %v1035 = vld [vmem:[%s1019 + $0x3c] sm:$0xf]
      %v1036 = vld [vmem:[%s1019 + $0x40] sm:$0xf]
      %v1037 = vld [vmem:[%s1019 + $0x44] sm:$0xf]
      %v1038 = vld [vmem:[%s1019 + $0x48] sm:$0xf]
      %v1039 = vld [vmem:[%s1019 + $0x4c] sm:$0xf]
      %v1040 = vld [vmem:[%s1019 + $0x50] sm:$0xf]
      %v1041 = vld [vmem:[%s1019 + $0x54] sm:$0xf]
      %v1042 = vld [vmem:[%s1019 + $0x58] sm:$0xf]
      %v1043 = vld [vmem:[%s1019 + $0x5c] sm:$0xf]
      %v1044 = vld [vmem:[%s1019 + $0x60] sm:$0xf]
      %v1045 = vld [vmem:[%s1019 + $0x64] sm:$0xf]
      %v1046 = vld [vmem:[%s1019 + $0x68] sm:$0xf]
      %v1047 = vld [vmem:[%s1019 + $0x6c] sm:$0xf]
      %v1048 = vld [vmem:[%s1019 + $0x70] sm:$0xf]
      %v1049 = vld [vmem:[%s1019 + $0x74] sm:$0xf]
      %v1050 = vld [vmem:[%s1019 + $0x78] sm:$0xf]
      %v1051 = vld [vmem:[%s1019 + $0x7c] sm:$0xf]
      %v1084 = vunpack.c.l.b16 %v1020
      %v1085 = vunpack.c.l.b16 %v1021
      %v1086 = vunpack.c.l.b16 %v1022
      %v1087 = vunpack.c.l.b16 %v1023
      %v1088 = vunpack.c.l.b16 %v1024
      %v1089 = vunpack.c.l.b16 %v1025
      %v1090 = vunpack.c.l.b16 %v1026
      %v1091 = vunpack.c.l.b16 %v1027
      %v1092 = vunpack.c.l.b16 %v1028
      %v1093 = vunpack.c.l.b16 %v1029
      %v1094 = vunpack.c.l.b16 %v1030
      %v1095 = vunpack.c.l.b16 %v1031
      %v1096 = vunpack.c.l.b16 %v1032
      %v1097 = vunpack.c.l.b16 %v1033
      %v1098 = vunpack.c.l.b16 %v1034
      %v1099 = vunpack.c.l.b16 %v1035
      %v1100 = vunpack.c.l.b16 %v1036
      %v1101 = vunpack.c.l.b16 %v1037
      %v1102 = vunpack.c.l.b16 %v1038
      %v1103 = vunpack.c.l.b16 %v1039
      %v1104 = vunpack.c.l.b16 %v1040
      %v1105 = vunpack.c.l.b16 %v1041
      %v1106 = vunpack.c.l.b16 %v1042
      %v1107 = vunpack.c.l.b16 %v1043
      %v1108 = vunpack.c.l.b16 %v1044
      %v1109 = vunpack.c.l.b16 %v1045
      %v1110 = vunpack.c.l.b16 %v1046
      %v1111 = vunpack.c.l.b16 %v1047
      %v1112 = vunpack.c.l.b16 %v1048
      %v1113 = vunpack.c.l.b16 %v1049
      %v1114 = vunpack.c.l.b16 %v1050
      %v1115 = vunpack.c.l.b16 %v1051
      %v1116 = vpack.c.b16 %v1085, %v1084
      %v1117 = vpack.c.b16 %v1087, %v1086
      %v1118 = vpack.c.b16 %v1089, %v1088
      %v1119 = vpack.c.b16 %v1091, %v1090
      %v1120 = vpack.c.b16 %v1093, %v1092
      %v1121 = vpack.c.b16 %v1095, %v1094
      %v1122 = vpack.c.b16 %v1097, %v1096
      %v1123 = vpack.c.b16 %v1099, %v1098
      %v1124 = vpack.c.b16 %v1101, %v1100
      %v1125 = vpack.c.b16 %v1103, %v1102
      %v1126 = vpack.c.b16 %v1105, %v1104
      %v1127 = vpack.c.b16 %v1107, %v1106
      %v1128 = vpack.c.b16 %v1109, %v1108
      %v1129 = vpack.c.b16 %v1111, %v1110
      %v1130 = vpack.c.b16 %v1113, %v1112
      %v1131 = vpack.c.b16 %v1115, %v1114
      %1148 = vmatprep.subr.bf16.mxu0 0
      %1149 = vmatpush1.bf16.msra.mxu0 %v1116
      %1150 = vmatprep.subr.bf16.mxu0 0
      %1151 = vmatpush1.bf16.msra.mxu0 %v1117
      %1152 = vmatprep.subr.bf16.mxu0 0
      %1153 = vmatpush1.bf16.msra.mxu0 %v1118
      %1154 = vmatprep.subr.bf16.mxu0 0
      %1155 = vmatpush1.bf16.msra.mxu0 %v1119
      %1156 = vmatprep.subr.bf16.mxu0 0
      %1157 = vmatpush1.bf16.msra.mxu0 %v1120
      %1158 = vmatprep.subr.bf16.mxu0 0
      %1159 = vmatpush1.bf16.msra.mxu0 %v1121
      %1160 = vmatprep.subr.bf16.mxu0 0
      %1161 = vmatpush1.bf16.msra.mxu0 %v1122
      %1162 = vmatprep.subr.bf16.mxu0 0
      %1163 = vmatpush1.bf16.msra.mxu0 %v1123
      %1164 = vmatprep.subr.bf16.mxu0 0
      %1165 = vmatpush1.bf16.msra.mxu0 %v1124
      %1166 = vmatprep.subr.bf16.mxu0 0
      %1167 = vmatpush1.bf16.msra.mxu0 %v1125
      %1168 = vmatprep.subr.bf16.mxu0 0
      %1169 = vmatpush1.bf16.msra.mxu0 %v1126
      %1170 = vmatprep.subr.bf16.mxu0 0
      %1171 = vmatpush1.bf16.msra.mxu0 %v1127
      %1172 = vmatprep.subr.bf16.mxu0 0
      %1173 = vmatpush1.bf16.msra.mxu0 %v1128
      %1174 = vmatprep.subr.bf16.mxu0 0
      %1175 = vmatpush1.bf16.msra.mxu0 %v1129
      %1176 = vmatprep.subr.bf16.mxu0 0
      %1177 = vmatpush1.bf16.msra.mxu0 %v1130
      %1178 = vmatprep.subr.bf16.mxu0 0
      %1179 = vmatpush1.bf16.msra.mxu0 %v1131
      %1180 = vmatprep.mubr.bf16.mxu0 %v990
      %1181 = vmatmul.mubr.bf16.gmra.mrb[0].mxu0 %v989
      %v1182 = vpop.f32.mrb[0].mxu0
      %v1183 = vadd.f32 0.0, %v1182
      %v1184 = vpop.f32.mrb[0].mxu0
      %v1185 = vpop.f32.mrb[0].mxu0
      %v1186 = vadd.f32 0.0, %v1185
      %v1187 = vpop.f32.mrb[0].mxu0
      %1188 = vmatprep.mubr.bf16.mxu0 %v992
      %1189 = vmatmul.mubr.bf16.gmra.mrb[0].mxu0 %v991
      %v1190 = vpop.f32.mrb[0].mxu0
      %v1191 = vadd.f32 0.0, %v1190
      %v1192 = vpop.f32.mrb[0].mxu0
      %v1193 = vpop.f32.mrb[0].mxu0
      %v1194 = vadd.f32 0.0, %v1193
      %v1195 = vpop.f32.mrb[0].mxu0
      %1196 = vmatprep.mubr.bf16.mxu0 %v994
      %1197 = vmatmul.mubr.bf16.gmra.mrb[0].mxu0 %v993
      %v1198 = vpop.f32.mrb[0].mxu0
      %v1199 = vadd.f32 0.0, %v1198
      %v1200 = vpop.f32.mrb[0].mxu0
      %v1201 = vpop.f32.mrb[0].mxu0
      %v1202 = vadd.f32 0.0, %v1201
      %v1203 = vpop.f32.mrb[0].mxu0
      %1204 = vmatprep.mubr.bf16.mxu0 %v996
      %1205 = vmatmul.mubr.bf16.gmra.mrb[0].mxu0 %v995
      %v1206 = vpop.f32.mrb[0].mxu0
      %v1207 = vadd.f32 0.0, %v1206
      %v1208 = vpop.f32.mrb[0].mxu0
      %v1209 = vpop.f32.mrb[0].mxu0
      %v1210 = vadd.f32 0.0, %v1209
      %v1211 = vpop.f32.mrb[0].mxu0
      %1212 = vmatprep.mubr.bf16.mxu0 %v998
      %1213 = vmatmul.mubr.bf16.gmra.mrb[0].mxu0 %v997
      %v1214 = vpop.f32.mrb[0].mxu0
      %v1215 = vadd.f32 0.0, %v1214
      %v1216 = vpop.f32.mrb[0].mxu0
      %v1217 = vpop.f32.mrb[0].mxu0
      %v1218 = vadd.f32 0.0, %v1217
      %v1219 = vpop.f32.mrb[0].mxu0
      %1220 = vmatprep.mubr.bf16.mxu0 %v1000
      %1221 = vmatmul.mubr.bf16.gmra.mrb[0].mxu0 %v999
      %v1222 = vpop.f32.mrb[0].mxu0
      %v1223 = vadd.f32 0.0, %v1222
      %v1224 = vpop.f32.mrb[0].mxu0
      %v1225 = vpop.f32.mrb[0].mxu0
      %v1226 = vadd.f32 0.0, %v1225
      %v1227 = vpop.f32.mrb[0].mxu0
      %1228 = vmatprep.mubr.bf16.mxu0 %v1002
      %1229 = vmatmul.mubr.bf16.gmra.mrb[0].mxu0 %v1001
      %v1230 = vpop.f32.mrb[0].mxu0
      %v1231 = vadd.f32 0.0, %v1230
      %v1232 = vpop.f32.mrb[0].mxu0
      %v1233 = vpop.f32.mrb[0].mxu0
      %v1234 = vadd.f32 0.0, %v1233
      %v1235 = vpop.f32.mrb[0].mxu0
      %1236 = vmatprep.mubr.bf16.mxu0 %v1004
      %1237 = vmatmul.mubr.bf16.gmra.mrb[0].mxu0 %v1003
      %v1238 = vpop.f32.mrb[0].mxu0
      %v1239 = vadd.f32 0.0, %v1238
      %v1240 = vpop.f32.mrb[0].mxu0
      %v1241 = vpop.f32.mrb[0].mxu0
      %v1242 = vadd.f32 0.0, %v1241
      %v1243 = vpop.f32.mrb[0].mxu0
      %1244 = vmatprep.mubr.bf16.mxu0 %v1006
      %1245 = vmatmul.mubr.bf16.gmra.mrb[0].mxu0 %v1005
      %v1246 = vpop.f32.mrb[0].mxu0
      %v1247 = vadd.f32 0.0, %v1246
      %v1248 = vpop.f32.mrb[0].mxu0
      %v1249 = vpop.f32.mrb[0].mxu0
      %v1250 = vadd.f32 0.0, %v1249
      %v1251 = vpop.f32.mrb[0].mxu0
      %1252 = vmatprep.mubr.bf16.mxu0 %v1008
      %1253 = vmatmul.mubr.bf16.gmra.mrb[0].mxu0 %v1007
      %v1254 = vpop.f32.mrb[0].mxu0
      %v1255 = vadd.f32 0.0, %v1254
      %v1256 = vpop.f32.mrb[0].mxu0
      %v1257 = vpop.f32.mrb[0].mxu0
      %v1258 = vadd.f32 0.0, %v1257
      %v1259 = vpop.f32.mrb[0].mxu0
      %1260 = vmatprep.mubr.bf16.mxu0 %v1010
      %1261 = vmatmul.mubr.bf16.gmra.mrb[0].mxu0 %v1009
      %v1262 = vpop.f32.mrb[0].mxu0
      %v1263 = vadd.f32 0.0, %v1262
      %v1264 = vpop.f32.mrb[0].mxu0
      %v1265 = vpop.f32.mrb[0].mxu0
      %v1266 = vadd.f32 0.0, %v1265
      %v1267 = vpop.f32.mrb[0].mxu0
      %1268 = vmatprep.mubr.bf16.mxu0 %v1012
      %1269 = vmatmul.mubr.bf16.gmra.mrb[0].mxu0 %v1011
      %v1270 = vpop.f32.mrb[0].mxu0
      %v1271 = vadd.f32 0.0, %v1270
      %v1272 = vpop.f32.mrb[0].mxu0
      %v1273 = vpop.f32.mrb[0].mxu0
      %v1274 = vadd.f32 0.0, %v1273
      %v1275 = vpop.f32.mrb[0].mxu0
      %1276 = vmatprep.mubr.bf16.mxu0 %v1014
      %1277 = vmatmul.mubr.bf16.gmra.mrb[0].mxu0 %v1013
      %v1278 = vpop.f32.mrb[0].mxu0
      %v1279 = vadd.f32 0.0, %v1278
      %v1280 = vpop.f32.mrb[0].mxu0
      %v1281 = vpop.f32.mrb[0].mxu0
      %v1282 = vadd.f32 0.0, %v1281
      %v1283 = vpop.f32.mrb[0].mxu0
      %1284 = vmatprep.mubr.bf16.mxu0 %v1016
      %1285 = vmatmul.mubr.bf16.gmra.mrb[0].mxu0 %v1015
      %v1286 = vpop.f32.mrb[0].mxu0
      %v1287 = vadd.f32 0.0, %v1286
      %v1288 = vpop.f32.mrb[0].mxu0
      %v1289 = vpop.f32.mrb[0].mxu0
      %v1290 = vadd.f32 0.0, %v1289
      %v1291 = vpop.f32.mrb[0].mxu0
      %1292 = vmatprep.mubr.bf16.mxu0 %v1018
      %1293 = vmatmul.mubr.bf16.gmra.mrb[0].mxu0 %v1017
      %v1294 = vpop.f32.mrb[0].mxu0
      %v1295 = vadd.f32 0.0, %v1294
      %v1296 = vpop.f32.mrb[0].mxu0
      %v1297 = vpop.f32.mrb[0].mxu0
      %v1298 = vadd.f32 0.0, %v1297
      %v1299 = vpop.f32.mrb[0].mxu0
      %1300 = vdwg.mxu0
      %v1333 = vunpack.c.l.b16 %v897
      %v1334 = vunpack.c.l.b16 %v898
      %v1335 = vunpack.c.l.b16 %v899
      %v1336 = vunpack.c.l.b16 %v900
      %v1337 = vunpack.c.l.b16 %v901
      %v1338 = vunpack.c.l.b16 %v902
      %v1339 = vunpack.c.l.b16 %v903
      %v1340 = vunpack.c.l.b16 %v904
      %v1341 = vunpack.c.l.b16 %v905
      %v1342 = vunpack.c.l.b16 %v906
      %v1343 = vunpack.c.l.b16 %v907
      %v1344 = vunpack.c.l.b16 %v908
      %v1345 = vunpack.c.l.b16 %v909
      %v1346 = vunpack.c.l.b16 %v910
      %v1347 = vunpack.c.l.b16 %v911
      %v1348 = vunpack.c.l.b16 %v912
      %v1349 = vunpack.c.l.b16 %v913
      %v1350 = vunpack.c.l.b16 %v914
      %v1351 = vunpack.c.l.b16 %v915
      %v1352 = vunpack.c.l.b16 %v916
      %v1353 = vunpack.c.l.b16 %v917
      %v1354 = vunpack.c.l.b16 %v918
      %v1355 = vunpack.c.l.b16 %v919
      %v1356 = vunpack.c.l.b16 %v920
      %v1357 = vunpack.c.l.b16 %v921
      %v1358 = vunpack.c.l.b16 %v922
      %v1359 = vunpack.c.l.b16 %v923
      %v1360 = vunpack.c.l.b16 %v924
      %v1361 = vunpack.c.l.b16 %v925
      %v1362 = vunpack.c.l.b16 %v926
      %v1363 = vunpack.c.l.b16 %v927
      %v1364 = vunpack.c.l.b16 %v928
      %v1365 = vpack.c.b16 %v1334, %v1333
      %v1366 = vpack.c.b16 %v1336, %v1335
      %v1367 = vpack.c.b16 %v1338, %v1337
      %v1368 = vpack.c.b16 %v1340, %v1339
      %v1369 = vpack.c.b16 %v1342, %v1341
      %v1370 = vpack.c.b16 %v1344, %v1343
      %v1371 = vpack.c.b16 %v1346, %v1345
      %v1372 = vpack.c.b16 %v1348, %v1347
      %v1373 = vpack.c.b16 %v1350, %v1349
      %v1374 = vpack.c.b16 %v1352, %v1351
      %v1375 = vpack.c.b16 %v1354, %v1353
      %v1376 = vpack.c.b16 %v1356, %v1355
      %v1377 = vpack.c.b16 %v1358, %v1357
      %v1378 = vpack.c.b16 %v1360, %v1359
      %v1379 = vpack.c.b16 %v1362, %v1361
      %v1380 = vpack.c.b16 %v1364, %v1363
      %1397 = vmatprep.subr.bf16.mxu0 0
      %1398 = vmatpush1.bf16.msra.mxu0 %v1365
      %1399 = vmatprep.subr.bf16.mxu0 0
      %1400 = vmatpush1.bf16.msra.mxu0 %v1366
      %1401 = vmatprep.subr.bf16.mxu0 0
      %1402 = vmatpush1.bf16.msra.mxu0 %v1367
      %1403 = vmatprep.subr.bf16.mxu0 0
      %1404 = vmatpush1.bf16.msra.mxu0 %v1368
      %1405 = vmatprep.subr.bf16.mxu0 0
      %1406 = vmatpush1.bf16.msra.mxu0 %v1369
      %1407 = vmatprep.subr.bf16.mxu0 0
      %1408 = vmatpush1.bf16.msra.mxu0 %v1370
      %1409 = vmatprep.subr.bf16.mxu0 0
      %1410 = vmatpush1.bf16.msra.mxu0 %v1371
      %1411 = vmatprep.subr.bf16.mxu0 0
      %1412 = vmatpush1.bf16.msra.mxu0 %v1372
      %1413 = vmatprep.subr.bf16.mxu0 0
      %1414 = vmatpush1.bf16.msra.mxu0 %v1373
      %1415 = vmatprep.subr.bf16.mxu0 0
      %1416 = vmatpush1.bf16.msra.mxu0 %v1374
      %1417 = vmatprep.subr.bf16.mxu0 0
      %1418 = vmatpush1.bf16.msra.mxu0 %v1375
      %1419 = vmatprep.subr.bf16.mxu0 0
      %1420 = vmatpush1.bf16.msra.mxu0 %v1376
      %1421 = vmatprep.subr.bf16.mxu0 0
      %1422 = vmatpush1.bf16.msra.mxu0 %v1377
      %1423 = vmatprep.subr.bf16.mxu0 0
      %1424 = vmatpush1.bf16.msra.mxu0 %v1378
      %1425 = vmatprep.subr.bf16.mxu0 0
      %1426 = vmatpush1.bf16.msra.mxu0 %v1379
      %1427 = vmatprep.subr.bf16.mxu0 0
      %1428 = vmatpush1.bf16.msra.mxu0 %v1380
      %1429 = vmatprep.mubr.bf16.mxu0 %v868
      %1430 = vmatmul.mubr.bf16.gmra.mrb[0].mxu0 %v867
      %v1431 = vpop.f32.mrb[0].mxu0
      %v1432 = vadd.f32 %v1183, %v1431
      %v1433 = vpop.f32.mrb[0].mxu0
      %v1434 = vpop.f32.mrb[0].mxu0
      %v1435 = vadd.f32 %v1186, %v1434
      %v1436 = vpop.f32.mrb[0].mxu0
      %1437 = vmatprep.mubr.bf16.mxu0 %v870
      %1438 = vmatmul.mubr.bf16.gmra.mrb[0].mxu0 %v869
      %v1439 = vpop.f32.mrb[0].mxu0
      %v1440 = vadd.f32 %v1191, %v1439
      %v1441 = vpop.f32.mrb[0].mxu0
      %v1442 = vpop.f32.mrb[0].mxu0
      %v1443 = vadd.f32 %v1194, %v1442
      %v1444 = vpop.f32.mrb[0].mxu0
      %1445 = vmatprep.mubr.bf16.mxu0 %v872
      %1446 = vmatmul.mubr.bf16.gmra.mrb[0].mxu0 %v871
      %v1447 = vpop.f32.mrb[0].mxu0
      %v1448 = vadd.f32 %v1199, %v1447
      %v1449 = vpop.f32.mrb[0].mxu0
      %v1450 = vpop.f32.mrb[0].mxu0
      %v1451 = vadd.f32 %v1202, %v1450
      %v1452 = vpop.f32.mrb[0].mxu0
      %1453 = vmatprep.mubr.bf16.mxu0 %v874
      %1454 = vmatmul.mubr.bf16.gmra.mrb[0].mxu0 %v873
      %v1455 = vpop.f32.mrb[0].mxu0
      %v1456 = vadd.f32 %v1207, %v1455
      %v1457 = vpop.f32.mrb[0].mxu0
      %v1458 = vpop.f32.mrb[0].mxu0
      %v1459 = vadd.f32 %v1210, %v1458
      %v1460 = vpop.f32.mrb[0].mxu0
      %1461 = vmatprep.mubr.bf16.mxu0 %v876
      %1462 = vmatmul.mubr.bf16.gmra.mrb[0].mxu0 %v875
      %v1463 = vpop.f32.mrb[0].mxu0
      %v1464 = vadd.f32 %v1215, %v1463
      %v1465 = vpop.f32.mrb[0].mxu0
      %v1466 = vpop.f32.mrb[0].mxu0
      %v1467 = vadd.f32 %v1218, %v1466
      %v1468 = vpop.f32.mrb[0].mxu0
      %1469 = vmatprep.mubr.bf16.mxu0 %v878
      %1470 = vmatmul.mubr.bf16.gmra.mrb[0].mxu0 %v877
      %v1471 = vpop.f32.mrb[0].mxu0
      %v1472 = vadd.f32 %v1223, %v1471
      %v1473 = vpop.f32.mrb[0].mxu0
      %v1474 = vpop.f32.mrb[0].mxu0
      %v1475 = vadd.f32 %v1226, %v1474
      %v1476 = vpop.f32.mrb[0].mxu0
      %1477 = vmatprep.mubr.bf16.mxu0 %v880
      %1478 = vmatmul.mubr.bf16.gmra.mrb[0].mxu0 %v879
      %v1479 = vpop.f32.mrb[0].mxu0
      %v1480 = vadd.f32 %v1231, %v1479
      %v1481 = vpop.f32.mrb[0].mxu0
      %v1482 = vpop.f32.mrb[0].mxu0
      %v1483 = vadd.f32 %v1234, %v1482
      %v1484 = vpop.f32.mrb[0].mxu0
      %1485 = vmatprep.mubr.bf16.mxu0 %v882
      %1486 = vmatmul.mubr.bf16.gmra.mrb[0].mxu0 %v881
      %v1487 = vpop.f32.mrb[0].mxu0
      %v1488 = vadd.f32 %v1239, %v1487
      %v1489 = vpop.f32.mrb[0].mxu0
      %v1490 = vpop.f32.mrb[0].mxu0
      %v1491 = vadd.f32 %v1242, %v1490
      %v1492 = vpop.f32.mrb[0].mxu0
      %1493 = vmatprep.mubr.bf16.mxu0 %v884
      %1494 = vmatmul.mubr.bf16.gmra.mrb[0].mxu0 %v883
      %v1495 = vpop.f32.mrb[0].mxu0
      %v1496 = vadd.f32 %v1247, %v1495
      %v1497 = vpop.f32.mrb[0].mxu0
      %v1498 = vpop.f32.mrb[0].mxu0
      %v1499 = vadd.f32 %v1250, %v1498
      %v1500 = vpop.f32.mrb[0].mxu0
      %1501 = vmatprep.mubr.bf16.mxu0 %v886
      %1502 = vmatmul.mubr.bf16.gmra.mrb[0].mxu0 %v885
      %v1503 = vpop.f32.mrb[0].mxu0
      %v1504 = vadd.f32 %v1255, %v1503
      %v1505 = vpop.f32.mrb[0].mxu0
      %v1506 = vpop.f32.mrb[0].mxu0
      %v1507 = vadd.f32 %v1258, %v1506
      %v1508 = vpop.f32.mrb[0].mxu0
      %1509 = vmatprep.mubr.bf16.mxu0 %v888
      %1510 = vmatmul.mubr.bf16.gmra.mrb[0].mxu0 %v887
      %v1511 = vpop.f32.mrb[0].mxu0
      %v1512 = vadd.f32 %v1263, %v1511
      %v1513 = vpop.f32.mrb[0].mxu0
      %v1514 = vpop.f32.mrb[0].mxu0
      %v1515 = vadd.f32 %v1266, %v1514
      %v1516 = vpop.f32.mrb[0].mxu0
      %1517 = vmatprep.mubr.bf16.mxu0 %v890
      %1518 = vmatmul.mubr.bf16.gmra.mrb[0].mxu0 %v889
      %v1519 = vpop.f32.mrb[0].mxu0
      %v1520 = vadd.f32 %v1271, %v1519
      %v1521 = vpop.f32.mrb[0].mxu0
      %v1522 = vpop.f32.mrb[0].mxu0
      %v1523 = vadd.f32 %v1274, %v1522
      %v1524 = vpop.f32.mrb[0].mxu0
      %1525 = vmatprep.mubr.bf16.mxu0 %v892
      %1526 = vmatmul.mubr.bf16.gmra.mrb[0].mxu0 %v891
      %v1527 = vpop.f32.mrb[0].mxu0
      %v1528 = vadd.f32 %v1279, %v1527
      %v1529 = vpop.f32.mrb[0].mxu0
      %v1530 = vpop.f32.mrb[0].mxu0
      %v1531 = vadd.f32 %v1282, %v1530
      %v1532 = vpop.f32.mrb[0].mxu0
      %1533 = vmatprep.mubr.bf16.mxu0 %v894
      %1534 = vmatmul.mubr.bf16.gmra.mrb[0].mxu0 %v893
      %v1535 = vpop.f32.mrb[0].mxu0
      %v1536 = vadd.f32 %v1287, %v1535
      %v1537 = vpop.f32.mrb[0].mxu0
      %v1538 = vpop.f32.mrb[0].mxu0
      %v1539 = vadd.f32 %v1290, %v1538
      %v1540 = vpop.f32.mrb[0].mxu0
      %1541 = vmatprep.mubr.bf16.mxu0 %v896
      %1542 = vmatmul.mubr.bf16.gmra.mrb[0].mxu0 %v895
      %v1543 = vpop.f32.mrb[0].mxu0
      %v1544 = vadd.f32 %v1295, %v1543
      %v1545 = vpop.f32.mrb[0].mxu0
      %v1546 = vpop.f32.mrb[0].mxu0
      %v1547 = vadd.f32 %v1298, %v1546
      %v1548 = vpop.f32.mrb[0].mxu0
      %1549 = vdwg.mxu0
      %v1550 = vld [vmem:[#allocation2 + $0x4] sm:$0xff]
      %v1551 = vld [vmem:[#allocation2 + $0xc] sm:$0xff]
      %v1552 = vld [vmem:[#allocation2 + $0x14] sm:$0xff]
      %v1553 = vld [vmem:[#allocation2 + $0x1c] sm:$0xff]
      %v1554 = vld [vmem:[#allocation2 + $0x24] sm:$0xff]
      %v1555 = vld [vmem:[#allocation2 + $0x2c] sm:$0xff]
      %v1556 = vld [vmem:[#allocation2 + $0x34] sm:$0xff]
      %v1557 = vld [vmem:[#allocation2 + $0x3c] sm:$0xff]
      %v1558 = vld [vmem:[#allocation2 + $0x44] sm:$0xff]
      %v1559 = vld [vmem:[#allocation2 + $0x4c] sm:$0xff]
      %v1560 = vld [vmem:[#allocation2 + $0x54] sm:$0xff]
      %v1561 = vld [vmem:[#allocation2 + $0x5c] sm:$0xff]
      %v1562 = vld [vmem:[#allocation2 + $0x64] sm:$0xff]
      %v1563 = vld [vmem:[#allocation2 + $0x6c] sm:$0xff]
      %v1564 = vld [vmem:[#allocation2 + $0x74] sm:$0xff]
      %v1565 = vld [vmem:[#allocation2 + $0x7c] sm:$0xff]
      %v1566 = vld [vmem:[#allocation2 + $0x84] sm:$0xff]
      %v1567 = vld [vmem:[#allocation2 + $0x8c] sm:$0xff]
      %v1568 = vld [vmem:[#allocation2 + $0x94] sm:$0xff]
      %v1569 = vld [vmem:[#allocation2 + $0x9c] sm:$0xff]
      %v1570 = vld [vmem:[#allocation2 + $0xa4] sm:$0xff]
      %v1571 = vld [vmem:[#allocation2 + $0xac] sm:$0xff]
      %v1572 = vld [vmem:[#allocation2 + $0xb4] sm:$0xff]
      %v1573 = vld [vmem:[#allocation2 + $0xbc] sm:$0xff]
      %v1574 = vld [vmem:[#allocation2 + $0xc4] sm:$0xff]
      %v1575 = vld [vmem:[#allocation2 + $0xcc] sm:$0xff]
      %v1576 = vld [vmem:[#allocation2 + $0xd4] sm:$0xff]
      %v1577 = vld [vmem:[#allocation2 + $0xdc] sm:$0xff]
      %v1578 = vld [vmem:[#allocation2 + $0xe4] sm:$0xff]
      %v1579 = vld [vmem:[#allocation2 + $0xec] sm:$0xf]
      %v1580 = vld [vmem:[#allocation2 + $0x5] sm:$0xff]
      %v1581 = vld [vmem:[#allocation2 + $0xd] sm:$0xff]
      %v1582 = vld [vmem:[#allocation2 + $0x15] sm:$0xff]
      %v1583 = vld [vmem:[#allocation2 + $0x1d] sm:$0xff]
      %v1584 = vld [vmem:[#allocation2 + $0x25] sm:$0xff]
      %v1585 = vld [vmem:[#allocation2 + $0x2d] sm:$0xff]
      %v1586 = vld [vmem:[#allocation2 + $0x35] sm:$0xff]
      %v1587 = vld [vmem:[#allocation2 + $0x3d] sm:$0xff]
      %v1588 = vld [vmem:[#allocation2 + $0x45] sm:$0xff]
      %v1589 = vld [vmem:[#allocation2 + $0x4d] sm:$0xff]
      %v1590 = vld [vmem:[#allocation2 + $0x55] sm:$0xff]
      %v1591 = vld [vmem:[#allocation2 + $0x5d] sm:$0xff]
      %v1592 = vld [vmem:[#allocation2 + $0x65] sm:$0xff]
      %v1593 = vld [vmem:[#allocation2 + $0x6d] sm:$0xff]
      %v1594 = vld [vmem:[#allocation2 + $0x75] sm:$0xff]
      %v1595 = vld [vmem:[#allocation2 + $0x7d] sm:$0xff]
      %v1596 = vld [vmem:[#allocation2 + $0x85] sm:$0xff]
      %v1597 = vld [vmem:[#allocation2 + $0x8d] sm:$0xff]
      %v1598 = vld [vmem:[#allocation2 + $0x95] sm:$0xff]
      %v1599 = vld [vmem:[#allocation2 + $0x9d] sm:$0xff]
      %v1600 = vld [vmem:[#allocation2 + $0xa5] sm:$0xff]
      %v1601 = vld [vmem:[#allocation2 + $0xad] sm:$0xff]
      %v1602 = vld [vmem:[#allocation2 + $0xb5] sm:$0xff]
      %v1603 = vld [vmem:[#allocation2 + $0xbd] sm:$0xff]
      %v1604 = vld [vmem:[#allocation2 + $0xc5] sm:$0xff]
      %v1605 = vld [vmem:[#allocation2 + $0xcd] sm:$0xff]
      %v1606 = vld [vmem:[#allocation2 + $0xd5] sm:$0xff]
      %v1607 = vld [vmem:[#allocation2 + $0xdd] sm:$0xff]
      %v1608 = vld [vmem:[#allocation2 + $0xe5] sm:$0xff]
      %v1609 = vld [vmem:[#allocation2 + $0xed] sm:$0xf]
      %v1610 = vpack.c.bf16 %v1551, %v1550
      %v1611 = vpack.c.bf16 %v1581, %v1580
      %v1612 = vpack.c.bf16 %v1553, %v1552
      %v1613 = vpack.c.bf16 %v1583, %v1582
      %v1614 = vpack.c.bf16 %v1555, %v1554
      %v1615 = vpack.c.bf16 %v1585, %v1584
      %v1616 = vpack.c.bf16 %v1557, %v1556
      %v1617 = vpack.c.bf16 %v1587, %v1586
      %v1618 = vpack.c.bf16 %v1559, %v1558
      %v1619 = vpack.c.bf16 %v1589, %v1588
      %v1620 = vpack.c.bf16 %v1561, %v1560
      %v1621 = vpack.c.bf16 %v1591, %v1590
      %v1622 = vpack.c.bf16 %v1563, %v1562
      %v1623 = vpack.c.bf16 %v1593, %v1592
      %v1624 = vpack.c.bf16 %v1565, %v1564
      %v1625 = vpack.c.bf16 %v1595, %v1594
      %v1626 = vpack.c.bf16 %v1567, %v1566
      %v1627 = vpack.c.bf16 %v1597, %v1596
      %v1628 = vpack.c.bf16 %v1569, %v1568
      %v1629 = vpack.c.bf16 %v1599, %v1598
      %v1630 = vpack.c.bf16 %v1571, %v1570
      %v1631 = vpack.c.bf16 %v1601, %v1600
      %v1632 = vpack.c.bf16 %v1573, %v1572
      %v1633 = vpack.c.bf16 %v1603, %v1602
      %v1634 = vpack.c.bf16 %v1575, %v1574
      %v1635 = vpack.c.bf16 %v1605, %v1604
      %v1636 = vpack.c.bf16 %v1577, %v1576
      %v1637 = vpack.c.bf16 %v1607, %v1606
      %v1638 = vpack.c.bf16 %v1579, %v1578
      %v1639 = vpack.c.bf16 %v1609, %v1608
      %s1640 = scalar_lea.vmem %s3, 256
      %v1641 = vld [vmem:[%s1640] sm:$0xf]
      %v1642 = vld [vmem:[%s1640 + $0x4] sm:$0xf]
      %v1643 = vld [vmem:[%s1640 + $0x8] sm:$0xf]
      %v1644 = vld [vmem:[%s1640 + $0xc] sm:$0xf]
      %v1645 = vld [vmem:[%s1640 + $0x10] sm:$0xf]
      %v1646 = vld [vmem:[%s1640 + $0x14] sm:$0xf]
      %v1647 = vld [vmem:[%s1640 + $0x18] sm:$0xf]
      %v1648 = vld [vmem:[%s1640 + $0x1c] sm:$0xf]
      %v1649 = vld [vmem:[%s1640 + $0x20] sm:$0xf]
      %v1650 = vld [vmem:[%s1640 + $0x24] sm:$0xf]
      %v1651 = vld [vmem:[%s1640 + $0x28] sm:$0xf]
      %v1652 = vld [vmem:[%s1640 + $0x2c] sm:$0xf]
      %v1653 = vld [vmem:[%s1640 + $0x30] sm:$0xf]
      %v1654 = vld [vmem:[%s1640 + $0x34] sm:$0xf]
      %v1655 = vld [vmem:[%s1640 + $0x38] sm:$0xf]
      %v1656 = vld [vmem:[%s1640 + $0x3c] sm:$0xf]
      %v1657 = vld [vmem:[%s1640 + $0x40] sm:$0xf]
      %v1658 = vld [vmem:[%s1640 + $0x44] sm:$0xf]
      %v1659 = vld [vmem:[%s1640 + $0x48] sm:$0xf]
      %v1660 = vld [vmem:[%s1640 + $0x4c] sm:$0xf]
      %v1661 = vld [vmem:[%s1640 + $0x50] sm:$0xf]
      %v1662 = vld [vmem:[%s1640 + $0x54] sm:$0xf]
      %v1663 = vld [vmem:[%s1640 + $0x58] sm:$0xf]
      %v1664 = vld [vmem:[%s1640 + $0x5c] sm:$0xf]
      %v1665 = vld [vmem:[%s1640 + $0x60] sm:$0xf]
      %v1666 = vld [vmem:[%s1640 + $0x64] sm:$0xf]
      %v1667 = vld [vmem:[%s1640 + $0x68] sm:$0xf]
      %v1668 = vld [vmem:[%s1640 + $0x6c] sm:$0xf]
      %v1669 = vld [vmem:[%s1640 + $0x70] sm:$0xf]
      %v1670 = vld [vmem:[%s1640 + $0x74] sm:$0xf]
      %v1671 = vld [vmem:[%s1640 + $0x78] sm:$0xf]
      %v1672 = vld [vmem:[%s1640 + $0x7c] sm:$0xf]
      %v1705 = vunpack.c.l.b16 %v1641
      %v1706 = vunpack.c.l.b16 %v1642
      %v1707 = vunpack.c.l.b16 %v1643
      %v1708 = vunpack.c.l.b16 %v1644
      %v1709 = vunpack.c.l.b16 %v1645
      %v1710 = vunpack.c.l.b16 %v1646
      %v1711 = vunpack.c.l.b16 %v1647
      %v1712 = vunpack.c.l.b16 %v1648
      %v1713 = vunpack.c.l.b16 %v1649
      %v1714 = vunpack.c.l.b16 %v1650
      %v1715 = vunpack.c.l.b16 %v1651
      %v1716 = vunpack.c.l.b16 %v1652
      %v1717 = vunpack.c.l.b16 %v1653
      %v1718 = vunpack.c.l.b16 %v1654
      %v1719 = vunpack.c.l.b16 %v1655
      %v1720 = vunpack.c.l.b16 %v1656
      %v1721 = vunpack.c.l.b16 %v1657
      %v1722 = vunpack.c.l.b16 %v1658
      %v1723 = vunpack.c.l.b16 %v1659
      %v1724 = vunpack.c.l.b16 %v1660
      %v1725 = vunpack.c.l.b16 %v1661
      %v1726 = vunpack.c.l.b16 %v1662
      %v1727 = vunpack.c.l.b16 %v1663
      %v1728 = vunpack.c.l.b16 %v1664
      %v1729 = vunpack.c.l.b16 %v1665
      %v1730 = vunpack.c.l.b16 %v1666
      %v1731 = vunpack.c.l.b16 %v1667
      %v1732 = vunpack.c.l.b16 %v1668
      %v1733 = vunpack.c.l.b16 %v1669
      %v1734 = vunpack.c.l.b16 %v1670
      %v1735 = vunpack.c.l.b16 %v1671
      %v1736 = vunpack.c.l.b16 %v1672
      %v1737 = vpack.c.b16 %v1706, %v1705
      %v1738 = vpack.c.b16 %v1708, %v1707
      %v1739 = vpack.c.b16 %v1710, %v1709
      %v1740 = vpack.c.b16 %v1712, %v1711
      %v1741 = vpack.c.b16 %v1714, %v1713
      %v1742 = vpack.c.b16 %v1716, %v1715
      %v1743 = vpack.c.b16 %v1718, %v1717
      %v1744 = vpack.c.b16 %v1720, %v1719
      %v1745 = vpack.c.b16 %v1722, %v1721
      %v1746 = vpack.c.b16 %v1724, %v1723
      %v1747 = vpack.c.b16 %v1726, %v1725
      %v1748 = vpack.c.b16 %v1728, %v1727
      %v1749 = vpack.c.b16 %v1730, %v1729
      %v1750 = vpack.c.b16 %v1732, %v1731
      %v1751 = vpack.c.b16 %v1734, %v1733
      %v1752 = vpack.c.b16 %v1736, %v1735
      %1769 = vmatprep.subr.bf16.mxu0 0
      %1770 = vmatpush1.bf16.msra.mxu0 %v1737
      %1771 = vmatprep.subr.bf16.mxu0 0
      %1772 = vmatpush1.bf16.msra.mxu0 %v1738
      %1773 = vmatprep.subr.bf16.mxu0 0
      %1774 = vmatpush1.bf16.msra.mxu0 %v1739
      %1775 = vmatprep.subr.bf16.mxu0 0
      %1776 = vmatpush1.bf16.msra.mxu0 %v1740
      %1777 = vmatprep.subr.bf16.mxu0 0
      %1778 = vmatpush1.bf16.msra.mxu0 %v1741
      %1779 = vmatprep.subr.bf16.mxu0 0
      %1780 = vmatpush1.bf16.msra.mxu0 %v1742
      %1781 = vmatprep.subr.bf16.mxu0 0
      %1782 = vmatpush1.bf16.msra.mxu0 %v1743
      %1783 = vmatprep.subr.bf16.mxu0 0
      %1784 = vmatpush1.bf16.msra.mxu0 %v1744
      %1785 = vmatprep.subr.bf16.mxu0 0
      %1786 = vmatpush1.bf16.msra.mxu0 %v1745
      %1787 = vmatprep.subr.bf16.mxu0 0
      %1788 = vmatpush1.bf16.msra.mxu0 %v1746
      %1789 = vmatprep.subr.bf16.mxu0 0
      %1790 = vmatpush1.bf16.msra.mxu0 %v1747
      %1791 = vmatprep.subr.bf16.mxu0 0
      %1792 = vmatpush1.bf16.msra.mxu0 %v1748
      %1793 = vmatprep.subr.bf16.mxu0 0
      %1794 = vmatpush1.bf16.msra.mxu0 %v1749
      %1795 = vmatprep.subr.bf16.mxu0 0
      %1796 = vmatpush1.bf16.msra.mxu0 %v1750
      %1797 = vmatprep.subr.bf16.mxu0 0
      %1798 = vmatpush1.bf16.msra.mxu0 %v1751
      %1799 = vmatprep.subr.bf16.mxu0 0
      %1800 = vmatpush1.bf16.msra.mxu0 %v1752
      %1801 = vmatprep.mubr.bf16.mxu0 %v1611
      %1802 = vmatmul.mubr.bf16.gmra.mrb[0].mxu0 %v1610
      %v1803 = vpop.f32.mrb[0].mxu0
      %v1804 = vadd.f32 0.0, %v1803
      %v1805 = vpop.f32.mrb[0].mxu0
      %v1806 = vpop.f32.mrb[0].mxu0
      %v1807 = vadd.f32 0.0, %v1806
      %v1808 = vpop.f32.mrb[0].mxu0
      %1809 = vmatprep.mubr.bf16.mxu0 %v1613
      %1810 = vmatmul.mubr.bf16.gmra.mrb[0].mxu0 %v1612
      %v1811 = vpop.f32.mrb[0].mxu0
      %v1812 = vadd.f32 0.0, %v1811
      %v1813 = vpop.f32.mrb[0].mxu0
      %v1814 = vpop.f32.mrb[0].mxu0
      %v1815 = vadd.f32 0.0, %v1814
      %v1816 = vpop.f32.mrb[0].mxu0
      %1817 = vmatprep.mubr.bf16.mxu0 %v1615
      %1818 = vmatmul.mubr.bf16.gmra.mrb[0].mxu0 %v1614
      %v1819 = vpop.f32.mrb[0].mxu0
      %v1820 = vadd.f32 0.0, %v1819
      %v1821 = vpop.f32.mrb[0].mxu0
      %v1822 = vpop.f32.mrb[0].mxu0
      %v1823 = vadd.f32 0.0, %v1822
      %v1824 = vpop.f32.mrb[0].mxu0
      %1825 = vmatprep.mubr.bf16.mxu0 %v1617
      %1826 = vmatmul.mubr.bf16.gmra.mrb[0].mxu0 %v1616
      %v1827 = vpop.f32.mrb[0].mxu0
      %v1828 = vadd.f32 0.0, %v1827
      %v1829 = vpop.f32.mrb[0].mxu0
      %v1830 = vpop.f32.mrb[0].mxu0
      %v1831 = vadd.f32 0.0, %v1830
      %v1832 = vpop.f32.mrb[0].mxu0
      %1833 = vmatprep.mubr.bf16.mxu0 %v1619
      %1834 = vmatmul.mubr.bf16.gmra.mrb[0].mxu0 %v1618
      %v1835 = vpop.f32.mrb[0].mxu0
      %v1836 = vadd.f32 0.0, %v1835
      %v1837 = vpop.f32.mrb[0].mxu0
      %v1838 = vpop.f32.mrb[0].mxu0
      %v1839 = vadd.f32 0.0, %v1838
      %v1840 = vpop.f32.mrb[0].mxu0
      %1841 = vmatprep.mubr.bf16.mxu0 %v1621
      %1842 = vmatmul.mubr.bf16.gmra.mrb[0].mxu0 %v1620
      %v1843 = vpop.f32.mrb[0].mxu0
      %v1844 = vadd.f32 0.0, %v1843
      %v1845 = vpop.f32.mrb[0].mxu0
      %v1846 = vpop.f32.mrb[0].mxu0
      %v1847 = vadd.f32 0.0, %v1846
      %v1848 = vpop.f32.mrb[0].mxu0
      %1849 = vmatprep.mubr.bf16.mxu0 %v1623
      %1850 = vmatmul.mubr.bf16.gmra.mrb[0].mxu0 %v1622
      %v1851 = vpop.f32.mrb[0].mxu0
      %v1852 = vadd.f32 0.0, %v1851
      %v1853 = vpop.f32.mrb[0].mxu0
      %v1854 = vpop.f32.mrb[0].mxu0
      %v1855 = vadd.f32 0.0, %v1854
      %v1856 = vpop.f32.mrb[0].mxu0
      %1857 = vmatprep.mubr.bf16.mxu0 %v1625
      %1858 = vmatmul.mubr.bf16.gmra.mrb[0].mxu0 %v1624
      %v1859 = vpop.f32.mrb[0].mxu0
      %v1860 = vadd.f32 0.0, %v1859
      %v1861 = vpop.f32.mrb[0].mxu0
      %v1862 = vpop.f32.mrb[0].mxu0
      %v1863 = vadd.f32 0.0, %v1862
      %v1864 = vpop.f32.mrb[0].mxu0
      %1865 = vmatprep.mubr.bf16.mxu0 %v1627
      %1866 = vmatmul.mubr.bf16.gmra.mrb[0].mxu0 %v1626
      %v1867 = vpop.f32.mrb[0].mxu0
      %v1868 = vadd.f32 0.0, %v1867
      %v1869 = vpop.f32.mrb[0].mxu0
      %v1870 = vpop.f32.mrb[0].mxu0
      %v1871 = vadd.f32 0.0, %v1870
      %v1872 = vpop.f32.mrb[0].mxu0
      %1873 = vmatprep.mubr.bf16.mxu0 %v1629
      %1874 = vmatmul.mubr.bf16.gmra.mrb[0].mxu0 %v1628
      %v1875 = vpop.f32.mrb[0].mxu0
      %v1876 = vadd.f32 0.0, %v1875
      %v1877 = vpop.f32.mrb[0].mxu0
      %v1878 = vpop.f32.mrb[0].mxu0
      %v1879 = vadd.f32 0.0, %v1878
      %v1880 = vpop.f32.mrb[0].mxu0
      %1881 = vmatprep.mubr.bf16.mxu0 %v1631
      %1882 = vmatmul.mubr.bf16.gmra.mrb[0].mxu0 %v1630
      %v1883 = vpop.f32.mrb[0].mxu0
      %v1884 = vadd.f32 0.0, %v1883
      %v1885 = vpop.f32.mrb[0].mxu0
      %v1886 = vpop.f32.mrb[0].mxu0
      %v1887 = vadd.f32 0.0, %v1886
      %v1888 = vpop.f32.mrb[0].mxu0
      %1889 = vmatprep.mubr.bf16.mxu0 %v1633
      %1890 = vmatmul.mubr.bf16.gmra.mrb[0].mxu0 %v1632
      %v1891 = vpop.f32.mrb[0].mxu0
      %v1892 = vadd.f32 0.0, %v1891
      %v1893 = vpop.f32.mrb[0].mxu0
      %v1894 = vpop.f32.mrb[0].mxu0
      %v1895 = vadd.f32 0.0, %v1894
      %v1896 = vpop.f32.mrb[0].mxu0
      %1897 = vmatprep.mubr.bf16.mxu0 %v1635
      %1898 = vmatmul.mubr.bf16.gmra.mrb[0].mxu0 %v1634
      %v1899 = vpop.f32.mrb[0].mxu0
      %v1900 = vadd.f32 0.0, %v1899
      %v1901 = vpop.f32.mrb[0].mxu0
      %v1902 = vpop.f32.mrb[0].mxu0
      %v1903 = vadd.f32 0.0, %v1902
      %v1904 = vpop.f32.mrb[0].mxu0
      %1905 = vmatprep.mubr.bf16.mxu0 %v1637
      %1906 = vmatmul.mubr.bf16.gmra.mrb[0].mxu0 %v1636
      %v1907 = vpop.f32.mrb[0].mxu0
      %v1908 = vadd.f32 0.0, %v1907
      %v1909 = vpop.f32.mrb[0].mxu0
      %v1910 = vpop.f32.mrb[0].mxu0
      %v1911 = vadd.f32 0.0, %v1910
      %v1912 = vpop.f32.mrb[0].mxu0
      %1913 = vmatprep.mubr.bf16.mxu0 %v1639
      %1914 = vmatmul.mubr.bf16.gmra.mrb[0].mxu0 %v1638
      %v1915 = vpop.f32.mrb[0].mxu0
      %v1916 = vadd.f32 0.0, %v1915
      %v1917 = vpop.f32.mrb[0].mxu0
      %v1918 = vpop.f32.mrb[0].mxu0
      %v1919 = vadd.f32 0.0, %v1918
      %v1920 = vpop.f32.mrb[0].mxu0
      %1921 = vdwg.mxu0
      %v1922 = vadd.f32 %v1432, %v1804
      %v1923 = vadd.f32 %v1435, %v1807
      %v1924 = vadd.f32 %v1440, %v1812
      %v1925 = vadd.f32 %v1443, %v1815
      %v1926 = vadd.f32 %v1448, %v1820
      %v1927 = vadd.f32 %v1451, %v1823
      %v1928 = vadd.f32 %v1456, %v1828
      %v1929 = vadd.f32 %v1459, %v1831
      %v1930 = vadd.f32 %v1464, %v1836
      %v1931 = vadd.f32 %v1467, %v1839
      %v1932 = vadd.f32 %v1472, %v1844
      %v1933 = vadd.f32 %v1475, %v1847
      %v1934 = vadd.f32 %v1480, %v1852
      %v1935 = vadd.f32 %v1483, %v1855
      %v1936 = vadd.f32 %v1488, %v1860
      %v1937 = vadd.f32 %v1491, %v1863
      %v1938 = vadd.f32 %v1496, %v1868
      %v1939 = vadd.f32 %v1499, %v1871
      %v1940 = vadd.f32 %v1504, %v1876
      %v1941 = vadd.f32 %v1507, %v1879
      %v1942 = vadd.f32 %v1512, %v1884
      %v1943 = vadd.f32 %v1515, %v1887
      %v1944 = vadd.f32 %v1520, %v1892
      %v1945 = vadd.f32 %v1523, %v1895
      %v1946 = vadd.f32 %v1528, %v1900
      %v1947 = vadd.f32 %v1531, %v1903
      %v1948 = vadd.f32 %v1536, %v1908
      %v1949 = vadd.f32 %v1539, %v1911
      %v1950 = vadd.f32 %v1544, %v1916
      %v1951 = vadd.f32 %v1547, %v1919
      %v1952 = vld [vmem:[#allocation2 + $0x6] sm:$0xff]
      %v1953 = vld [vmem:[#allocation2 + $0xe] sm:$0xff]
      %v1954 = vld [vmem:[#allocation2 + $0x16] sm:$0xff]
      %v1955 = vld [vmem:[#allocation2 + $0x1e] sm:$0xff]
      %v1956 = vld [vmem:[#allocation2 + $0x26] sm:$0xff]
      %v1957 = vld [vmem:[#allocation2 + $0x2e] sm:$0xff]
      %v1958 = vld [vmem:[#allocation2 + $0x36] sm:$0xff]
      %v1959 = vld [vmem:[#allocation2 + $0x3e] sm:$0xff]
      %v1960 = vld [vmem:[#allocation2 + $0x46] sm:$0xff]
      %v1961 = vld [vmem:[#allocation2 + $0x4e] sm:$0xff]
      %v1962 = vld [vmem:[#allocation2 + $0x56] sm:$0xff]
      %v1963 = vld [vmem:[#allocation2 + $0x5e] sm:$0xff]
      %v1964 = vld [vmem:[#allocation2 + $0x66] sm:$0xff]
      %v1965 = vld [vmem:[#allocation2 + $0x6e] sm:$0xff]
      %v1966 = vld [vmem:[#allocation2 + $0x76] sm:$0xff]
      %v1967 = vld [vmem:[#allocation2 + $0x7e] sm:$0xff]
      %v1968 = vld [vmem:[#allocation2 + $0x86] sm:$0xff]
      %v1969 = vld [vmem:[#allocation2 + $0x8e] sm:$0xff]
      %v1970 = vld [vmem:[#allocation2 + $0x96] sm:$0xff]
      %v1971 = vld [vmem:[#allocation2 + $0x9e] sm:$0xff]
      %v1972 = vld [vmem:[#allocation2 + $0xa6] sm:$0xff]
      %v1973 = vld [vmem:[#allocation2 + $0xae] sm:$0xff]
      %v1974 = vld [vmem:[#allocation2 + $0xb6] sm:$0xff]
      %v1975 = vld [vmem:[#allocation2 + $0xbe] sm:$0xff]
      %v1976 = vld [vmem:[#allocation2 + $0xc6] sm:$0xff]
      %v1977 = vld [vmem:[#allocation2 + $0xce] sm:$0xff]
      %v1978 = vld [vmem:[#allocation2 + $0xd6] sm:$0xff]
      %v1979 = vld [vmem:[#allocation2 + $0xde] sm:$0xff]
      %v1980 = vld [vmem:[#allocation2 + $0xe6] sm:$0xff]
      %v1981 = vld [vmem:[#allocation2 + $0xee] sm:$0xf]
      %v1982 = vld [vmem:[#allocation2 + $0x7] sm:$0xff]
      %v1983 = vld [vmem:[#allocation2 + $0xf] sm:$0xff]
      %v1984 = vld [vmem:[#allocation2 + $0x17] sm:$0xff]
      %v1985 = vld [vmem:[#allocation2 + $0x1f] sm:$0xff]
      %v1986 = vld [vmem:[#allocation2 + $0x27] sm:$0xff]
      %v1987 = vld [vmem:[#allocation2 + $0x2f] sm:$0xff]
      %v1988 = vld [vmem:[#allocation2 + $0x37] sm:$0xff]
      %v1989 = vld [vmem:[#allocation2 + $0x3f] sm:$0xff]
      %v1990 = vld [vmem:[#allocation2 + $0x47] sm:$0xff]
      %v1991 = vld [vmem:[#allocation2 + $0x4f] sm:$0xff]
      %v1992 = vld [vmem:[#allocation2 + $0x57] sm:$0xff]
      %v1993 = vld [vmem:[#allocation2 + $0x5f] sm:$0xff]
      %v1994 = vld [vmem:[#allocation2 + $0x67] sm:$0xff]
      %v1995 = vld [vmem:[#allocation2 + $0x6f] sm:$0xff]
      %v1996 = vld [vmem:[#allocation2 + $0x77] sm:$0xff]
      %v1997 = vld [vmem:[#allocation2 + $0x7f] sm:$0xff]
      %v1998 = vld [vmem:[#allocation2 + $0x87] sm:$0xff]
      %v1999 = vld [vmem:[#allocation2 + $0x8f] sm:$0xff]
      %v2000 = vld [vmem:[#allocation2 + $0x97] sm:$0xff]
      %v2001 = vld [vmem:[#allocation2 + $0x9f] sm:$0xff]
      %v2002 = vld [vmem:[#allocation2 + $0xa7] sm:$0xff]
      %v2003 = vld [vmem:[#allocation2 + $0xaf] sm:$0xff]
      %v2004 = vld [vmem:[#allocation2 + $0xb7] sm:$0xff]
      %v2005 = vld [vmem:[#allocation2 + $0xbf] sm:$0xff]
      %v2006 = vld [vmem:[#allocation2 + $0xc7] sm:$0xff]
      %v2007 = vld [vmem:[#allocation2 + $0xcf] sm:$0xff]
      %v2008 = vld [vmem:[#allocation2 + $0xd7] sm:$0xff]
      %v2009 = vld [vmem:[#allocation2 + $0xdf] sm:$0xff]
      %v2010 = vld [vmem:[#allocation2 + $0xe7] sm:$0xff]
      %v2011 = vld [vmem:[#allocation2 + $0xef] sm:$0xf]
      %v2012 = vpack.c.bf16 %v1953, %v1952
      %v2013 = vpack.c.bf16 %v1983, %v1982
      %v2014 = vpack.c.bf16 %v1955, %v1954
      %v2015 = vpack.c.bf16 %v1985, %v1984
      %v2016 = vpack.c.bf16 %v1957, %v1956
      %v2017 = vpack.c.bf16 %v1987, %v1986
      %v2018 = vpack.c.bf16 %v1959, %v1958
      %v2019 = vpack.c.bf16 %v1989, %v1988
      %v2020 = vpack.c.bf16 %v1961, %v1960
      %v2021 = vpack.c.bf16 %v1991, %v1990
      %v2022 = vpack.c.bf16 %v1963, %v1962
      %v2023 = vpack.c.bf16 %v1993, %v1992
      %v2024 = vpack.c.bf16 %v1965, %v1964
      %v2025 = vpack.c.bf16 %v1995, %v1994
      %v2026 = vpack.c.bf16 %v1967, %v1966
      %v2027 = vpack.c.bf16 %v1997, %v1996
      %v2028 = vpack.c.bf16 %v1969, %v1968
      %v2029 = vpack.c.bf16 %v1999, %v1998
      %v2030 = vpack.c.bf16 %v1971, %v1970
      %v2031 = vpack.c.bf16 %v2001, %v2000
      %v2032 = vpack.c.bf16 %v1973, %v1972
      %v2033 = vpack.c.bf16 %v2003, %v2002
      %v2034 = vpack.c.bf16 %v1975, %v1974
      %v2035 = vpack.c.bf16 %v2005, %v2004
      %v2036 = vpack.c.bf16 %v1977, %v1976
      %v2037 = vpack.c.bf16 %v2007, %v2006
      %v2038 = vpack.c.bf16 %v1979, %v1978
      %v2039 = vpack.c.bf16 %v2009, %v2008
      %v2040 = vpack.c.bf16 %v1981, %v1980
      %v2041 = vpack.c.bf16 %v2011, %v2010
      %s2042 = scalar_lea.vmem %s3, 384
      %v2043 = vld [vmem:[%s2042] sm:$0xf]
      %v2044 = vld [vmem:[%s2042 + $0x4] sm:$0xf]
      %v2045 = vld [vmem:[%s2042 + $0x8] sm:$0xf]
      %v2046 = vld [vmem:[%s2042 + $0xc] sm:$0xf]
      %v2047 = vld [vmem:[%s2042 + $0x10] sm:$0xf]
      %v2048 = vld [vmem:[%s2042 + $0x14] sm:$0xf]
      %v2049 = vld [vmem:[%s2042 + $0x18] sm:$0xf]
      %v2050 = vld [vmem:[%s2042 + $0x1c] sm:$0xf]
      %v2051 = vld [vmem:[%s2042 + $0x20] sm:$0xf]
      %v2052 = vld [vmem:[%s2042 + $0x24] sm:$0xf]
      %v2053 = vld [vmem:[%s2042 + $0x28] sm:$0xf]
      %v2054 = vld [vmem:[%s2042 + $0x2c] sm:$0xf]
      %v2055 = vld [vmem:[%s2042 + $0x30] sm:$0xf]
      %v2056 = vld [vmem:[%s2042 + $0x34] sm:$0xf]
      %v2057 = vld [vmem:[%s2042 + $0x38] sm:$0xf]
      %v2058 = vld [vmem:[%s2042 + $0x3c] sm:$0xf]
      %v2059 = vld [vmem:[%s2042 + $0x40] sm:$0xf]
      %v2060 = vld [vmem:[%s2042 + $0x44] sm:$0xf]
      %v2061 = vld [vmem:[%s2042 + $0x48] sm:$0xf]
      %v2062 = vld [vmem:[%s2042 + $0x4c] sm:$0xf]
      %v2063 = vld [vmem:[%s2042 + $0x50] sm:$0xf]
      %v2064 = vld [vmem:[%s2042 + $0x54] sm:$0xf]
      %v2065 = vld [vmem:[%s2042 + $0x58] sm:$0xf]
      %v2066 = vld [vmem:[%s2042 + $0x5c] sm:$0xf]
      %v2067 = vld [vmem:[%s2042 + $0x60] sm:$0xf]
      %v2068 = vld [vmem:[%s2042 + $0x64] sm:$0xf]
      %v2069 = vld [vmem:[%s2042 + $0x68] sm:$0xf]
      %v2070 = vld [vmem:[%s2042 + $0x6c] sm:$0xf]
      %v2071 = vld [vmem:[%s2042 + $0x70] sm:$0xf]
      %v2072 = vld [vmem:[%s2042 + $0x74] sm:$0xf]
      %v2073 = vld [vmem:[%s2042 + $0x78] sm:$0xf]
      %v2074 = vld [vmem:[%s2042 + $0x7c] sm:$0xf]
      %v2107 = vunpack.c.l.b16 %v2043
      %v2108 = vunpack.c.l.b16 %v2044
      %v2109 = vunpack.c.l.b16 %v2045
      %v2110 = vunpack.c.l.b16 %v2046
      %v2111 = vunpack.c.l.b16 %v2047
      %v2112 = vunpack.c.l.b16 %v2048
      %v2113 = vunpack.c.l.b16 %v2049
      %v2114 = vunpack.c.l.b16 %v2050
      %v2115 = vunpack.c.l.b16 %v2051
      %v2116 = vunpack.c.l.b16 %v2052
      %v2117 = vunpack.c.l.b16 %v2053
      %v2118 = vunpack.c.l.b16 %v2054
      %v2119 = vunpack.c.l.b16 %v2055
      %v2120 = vunpack.c.l.b16 %v2056
      %v2121 = vunpack.c.l.b16 %v2057
      %v2122 = vunpack.c.l.b16 %v2058
      %v2123 = vunpack.c.l.b16 %v2059
      %v2124 = vunpack.c.l.b16 %v2060
      %v2125 = vunpack.c.l.b16 %v2061
      %v2126 = vunpack.c.l.b16 %v2062
      %v2127 = vunpack.c.l.b16 %v2063
      %v2128 = vunpack.c.l.b16 %v2064
      %v2129 = vunpack.c.l.b16 %v2065
      %v2130 = vunpack.c.l.b16 %v2066
      %v2131 = vunpack.c.l.b16 %v2067
      %v2132 = vunpack.c.l.b16 %v2068
      %v2133 = vunpack.c.l.b16 %v2069
      %v2134 = vunpack.c.l.b16 %v2070
      %v2135 = vunpack.c.l.b16 %v2071
      %v2136 = vunpack.c.l.b16 %v2072
      %v2137 = vunpack.c.l.b16 %v2073
      %v2138 = vunpack.c.l.b16 %v2074
      %v2139 = vpack.c.b16 %v2108, %v2107
      %v2140 = vpack.c.b16 %v2110, %v2109
      %v2141 = vpack.c.b16 %v2112, %v2111
      %v2142 = vpack.c.b16 %v2114, %v2113
      %v2143 = vpack.c.b16 %v2116, %v2115
      %v2144 = vpack.c.b16 %v2118, %v2117
      %v2145 = vpack.c.b16 %v2120, %v2119
      %v2146 = vpack.c.b16 %v2122, %v2121
      %v2147 = vpack.c.b16 %v2124, %v2123
      %v2148 = vpack.c.b16 %v2126, %v2125
      %v2149 = vpack.c.b16 %v2128, %v2127
      %v2150 = vpack.c.b16 %v2130, %v2129
      %v2151 = vpack.c.b16 %v2132, %v2131
      %v2152 = vpack.c.b16 %v2134, %v2133
      %v2153 = vpack.c.b16 %v2136, %v2135
      %v2154 = vpack.c.b16 %v2138, %v2137
      %2171 = vmatprep.subr.bf16.mxu0 0
      %2172 = vmatpush1.bf16.msra.mxu0 %v2139
      %2173 = vmatprep.subr.bf16.mxu0 0
      %2174 = vmatpush1.bf16.msra.mxu0 %v2140
      %2175 = vmatprep.subr.bf16.mxu0 0
      %2176 = vmatpush1.bf16.msra.mxu0 %v2141
      %2177 = vmatprep.subr.bf16.mxu0 0
      %2178 = vmatpush1.bf16.msra.mxu0 %v2142
      %2179 = vmatprep.subr.bf16.mxu0 0
      %2180 = vmatpush1.bf16.msra.mxu0 %v2143
      %2181 = vmatprep.subr.bf16.mxu0 0
      %2182 = vmatpush1.bf16.msra.mxu0 %v2144
      %2183 = vmatprep.subr.bf16.mxu0 0
      %2184 = vmatpush1.bf16.msra.mxu0 %v2145
      %2185 = vmatprep.subr.bf16.mxu0 0
      %2186 = vmatpush1.bf16.msra.mxu0 %v2146
      %2187 = vmatprep.subr.bf16.mxu0 0
      %2188 = vmatpush1.bf16.msra.mxu0 %v2147
      %2189 = vmatprep.subr.bf16.mxu0 0
      %2190 = vmatpush1.bf16.msra.mxu0 %v2148
      %2191 = vmatprep.subr.bf16.mxu0 0
      %2192 = vmatpush1.bf16.msra.mxu0 %v2149
      %2193 = vmatprep.subr.bf16.mxu0 0
      %2194 = vmatpush1.bf16.msra.mxu0 %v2150
      %2195 = vmatprep.subr.bf16.mxu0 0
      %2196 = vmatpush1.bf16.msra.mxu0 %v2151
      %2197 = vmatprep.subr.bf16.mxu0 0
      %2198 = vmatpush1.bf16.msra.mxu0 %v2152
      %2199 = vmatprep.subr.bf16.mxu0 0
      %2200 = vmatpush1.bf16.msra.mxu0 %v2153
      %2201 = vmatprep.subr.bf16.mxu0 0
      %2202 = vmatpush1.bf16.msra.mxu0 %v2154
      %2203 = vmatprep.mubr.bf16.mxu0 %v2013
      %2204 = vmatmul.mubr.bf16.gmra.mrb[0].mxu0 %v2012
      %v2205 = vpop.f32.mrb[0].mxu0
      %v2206 = vadd.f32 0.0, %v2205
      %v2207 = vpop.f32.mrb[0].mxu0
      %v2208 = vpop.f32.mrb[0].mxu0
      %v2209 = vadd.f32 0.0, %v2208
      %v2210 = vpop.f32.mrb[0].mxu0
      %2211 = vmatprep.mubr.bf16.mxu0 %v2015
      %2212 = vmatmul.mubr.bf16.gmra.mrb[0].mxu0 %v2014
      %v2213 = vpop.f32.mrb[0].mxu0
      %v2214 = vadd.f32 0.0, %v2213
      %v2215 = vpop.f32.mrb[0].mxu0
      %v2216 = vpop.f32.mrb[0].mxu0
      %v2217 = vadd.f32 0.0, %v2216
      %v2218 = vpop.f32.mrb[0].mxu0
      %2219 = vmatprep.mubr.bf16.mxu0 %v2017
      %2220 = vmatmul.mubr.bf16.gmra.mrb[0].mxu0 %v2016
      %v2221 = vpop.f32.mrb[0].mxu0
      %v2222 = vadd.f32 0.0, %v2221
      %v2223 = vpop.f32.mrb[0].mxu0
      %v2224 = vpop.f32.mrb[0].mxu0
      %v2225 = vadd.f32 0.0, %v2224
      %v2226 = vpop.f32.mrb[0].mxu0
      %2227 = vmatprep.mubr.bf16.mxu0 %v2019
      %2228 = vmatmul.mubr.bf16.gmra.mrb[0].mxu0 %v2018
      %v2229 = vpop.f32.mrb[0].mxu0
      %v2230 = vadd.f32 0.0, %v2229
      %v2231 = vpop.f32.mrb[0].mxu0
      %v2232 = vpop.f32.mrb[0].mxu0
      %v2233 = vadd.f32 0.0, %v2232
      %v2234 = vpop.f32.mrb[0].mxu0
      %2235 = vmatprep.mubr.bf16.mxu0 %v2021
      %2236 = vmatmul.mubr.bf16.gmra.mrb[0].mxu0 %v2020
      %v2237 = vpop.f32.mrb[0].mxu0
      %v2238 = vadd.f32 0.0, %v2237
      %v2239 = vpop.f32.mrb[0].mxu0
      %v2240 = vpop.f32.mrb[0].mxu0
      %v2241 = vadd.f32 0.0, %v2240
      %v2242 = vpop.f32.mrb[0].mxu0
      %2243 = vmatprep.mubr.bf16.mxu0 %v2023
      %2244 = vmatmul.mubr.bf16.gmra.mrb[0].mxu0 %v2022
      %v2245 = vpop.f32.mrb[0].mxu0
      %v2246 = vadd.f32 0.0, %v2245
      %v2247 = vpop.f32.mrb[0].mxu0
      %v2248 = vpop.f32.mrb[0].mxu0
      %v2249 = vadd.f32 0.0, %v2248
      %v2250 = vpop.f32.mrb[0].mxu0
      %2251 = vmatprep.mubr.bf16.mxu0 %v2025
      %2252 = vmatmul.mubr.bf16.gmra.mrb[0].mxu0 %v2024
      %v2253 = vpop.f32.mrb[0].mxu0
      %v2254 = vadd.f32 0.0, %v2253
      %v2255 = vpop.f32.mrb[0].mxu0
      %v2256 = vpop.f32.mrb[0].mxu0
      %v2257 = vadd.f32 0.0, %v2256
      %v2258 = vpop.f32.mrb[0].mxu0
      %2259 = vmatprep.mubr.bf16.mxu0 %v2027
      %2260 = vmatmul.mubr.bf16.gmra.mrb[0].mxu0 %v2026
      %v2261 = vpop.f32.mrb[0].mxu0
      %v2262 = vadd.f32 0.0, %v2261
      %v2263 = vpop.f32.mrb[0].mxu0
      %v2264 = vpop.f32.mrb[0].mxu0
      %v2265 = vadd.f32 0.0, %v2264
      %v2266 = vpop.f32.mrb[0].mxu0
      %2267 = vmatprep.mubr.bf16.mxu0 %v2029
      %2268 = vmatmul.mubr.bf16.gmra.mrb[0].mxu0 %v2028
      %v2269 = vpop.f32.mrb[0].mxu0
      %v2270 = vadd.f32 0.0, %v2269
      %v2271 = vpop.f32.mrb[0].mxu0
      %v2272 = vpop.f32.mrb[0].mxu0
      %v2273 = vadd.f32 0.0, %v2272
      %v2274 = vpop.f32.mrb[0].mxu0
      %2275 = vmatprep.mubr.bf16.mxu0 %v2031
      %2276 = vmatmul.mubr.bf16.gmra.mrb[0].mxu0 %v2030
      %v2277 = vpop.f32.mrb[0].mxu0
      %v2278 = vadd.f32 0.0, %v2277
      %v2279 = vpop.f32.mrb[0].mxu0
      %v2280 = vpop.f32.mrb[0].mxu0
      %v2281 = vadd.f32 0.0, %v2280
      %v2282 = vpop.f32.mrb[0].mxu0
      %2283 = vmatprep.mubr.bf16.mxu0 %v2033
      %2284 = vmatmul.mubr.bf16.gmra.mrb[0].mxu0 %v2032
      %v2285 = vpop.f32.mrb[0].mxu0
      %v2286 = vadd.f32 0.0, %v2285
      %v2287 = vpop.f32.mrb[0].mxu0
      %v2288 = vpop.f32.mrb[0].mxu0
      %v2289 = vadd.f32 0.0, %v2288
      %v2290 = vpop.f32.mrb[0].mxu0
      %2291 = vmatprep.mubr.bf16.mxu0 %v2035
      %2292 = vmatmul.mubr.bf16.gmra.mrb[0].mxu0 %v2034
      %v2293 = vpop.f32.mrb[0].mxu0
      %v2294 = vadd.f32 0.0, %v2293
      %v2295 = vpop.f32.mrb[0].mxu0
      %v2296 = vpop.f32.mrb[0].mxu0
      %v2297 = vadd.f32 0.0, %v2296
      %v2298 = vpop.f32.mrb[0].mxu0
      %2299 = vmatprep.mubr.bf16.mxu0 %v2037
      %2300 = vmatmul.mubr.bf16.gmra.mrb[0].mxu0 %v2036
      %v2301 = vpop.f32.mrb[0].mxu0
      %v2302 = vadd.f32 0.0, %v2301
      %v2303 = vpop.f32.mrb[0].mxu0
      %v2304 = vpop.f32.mrb[0].mxu0
      %v2305 = vadd.f32 0.0, %v2304
      %v2306 = vpop.f32.mrb[0].mxu0
      %2307 = vmatprep.mubr.bf16.mxu0 %v2039
      %2308 = vmatmul.mubr.bf16.gmra.mrb[0].mxu0 %v2038
      %v2309 = vpop.f32.mrb[0].mxu0
      %v2310 = vadd.f32 0.0, %v2309
      %v2311 = vpop.f32.mrb[0].mxu0
      %v2312 = vpop.f32.mrb[0].mxu0
      %v2313 = vadd.f32 0.0, %v2312
      %v2314 = vpop.f32.mrb[0].mxu0
      %2315 = vmatprep.mubr.bf16.mxu0 %v2041
      %2316 = vmatmul.mubr.bf16.gmra.mrb[0].mxu0 %v2040
      %v2317 = vpop.f32.mrb[0].mxu0
      %v2318 = vadd.f32 0.0, %v2317
      %v2319 = vpop.f32.mrb[0].mxu0
      %v2320 = vpop.f32.mrb[0].mxu0
      %v2321 = vadd.f32 0.0, %v2320
      %v2322 = vpop.f32.mrb[0].mxu0
      %2323 = vdwg.mxu0
      %v2324 = vadd.f32 %v1922, %v2206
      %v2325 = vadd.f32 %v1923, %v2209
      %v2326 = vadd.f32 %v1924, %v2214
      %v2327 = vadd.f32 %v1925, %v2217
      %v2328 = vadd.f32 %v1926, %v2222
      %v2329 = vadd.f32 %v1927, %v2225
      %v2330 = vadd.f32 %v1928, %v2230
      %v2331 = vadd.f32 %v1929, %v2233
      %v2332 = vadd.f32 %v1930, %v2238
      %v2333 = vadd.f32 %v1931, %v2241
      %v2334 = vadd.f32 %v1932, %v2246
      %v2335 = vadd.f32 %v1933, %v2249
      %v2336 = vadd.f32 %v1934, %v2254
      %v2337 = vadd.f32 %v1935, %v2257
      %v2338 = vadd.f32 %v1936, %v2262
      %v2339 = vadd.f32 %v1937, %v2265
      %v2340 = vadd.f32 %v1938, %v2270
      %v2341 = vadd.f32 %v1939, %v2273
      %v2342 = vadd.f32 %v1940, %v2278
      %v2343 = vadd.f32 %v1941, %v2281
      %v2344 = vadd.f32 %v1942, %v2286
      %v2345 = vadd.f32 %v1943, %v2289
      %v2346 = vadd.f32 %v1944, %v2294
      %v2347 = vadd.f32 %v1945, %v2297
      %v2348 = vadd.f32 %v1946, %v2302
      %v2349 = vadd.f32 %v1947, %v2305
      %v2350 = vadd.f32 %v1948, %v2310
      %v2351 = vadd.f32 %v1949, %v2313
      %v2352 = vadd.f32 %v1950, %v2318
      %v2353 = vadd.f32 %v1951, %v2321
      %v2354 = vld [vmem:[#allocation2 + $0x8] sm:$0xff]
      %v2355 = vld [vmem:[#allocation2 + $0x10] sm:$0xff]
      %v2356 = vld [vmem:[#allocation2 + $0x18] sm:$0xff]
      %v2357 = vld [vmem:[#allocation2 + $0x20] sm:$0xff]
      %v2358 = vld [vmem:[#allocation2 + $0x28] sm:$0xff]
      %v2359 = vld [vmem:[#allocation2 + $0x30] sm:$0xff]
      %v2360 = vld [vmem:[#allocation2 + $0x38] sm:$0xff]
      %v2361 = vld [vmem:[#allocation2 + $0x40] sm:$0xff]
      %v2362 = vld [vmem:[#allocation2 + $0x48] sm:$0xff]
      %v2363 = vld [vmem:[#allocation2 + $0x50] sm:$0xff]
      %v2364 = vld [vmem:[#allocation2 + $0x58] sm:$0xff]
      %v2365 = vld [vmem:[#allocation2 + $0x60] sm:$0xff]
      %v2366 = vld [vmem:[#allocation2 + $0x68] sm:$0xff]
      %v2367 = vld [vmem:[#allocation2 + $0x70] sm:$0xff]
      %v2368 = vld [vmem:[#allocation2 + $0x78] sm:$0xff]
      %v2369 = vld [vmem:[#allocation2 + $0x80] sm:$0xff]
      %v2370 = vld [vmem:[#allocation2 + $0x88] sm:$0xff]
      %v2371 = vld [vmem:[#allocation2 + $0x90] sm:$0xff]
      %v2372 = vld [vmem:[#allocation2 + $0x98] sm:$0xff]
      %v2373 = vld [vmem:[#allocation2 + $0xa0] sm:$0xff]
      %v2374 = vld [vmem:[#allocation2 + $0xa8] sm:$0xff]
      %v2375 = vld [vmem:[#allocation2 + $0xb0] sm:$0xff]
      %v2376 = vld [vmem:[#allocation2 + $0xb8] sm:$0xff]
      %v2377 = vld [vmem:[#allocation2 + $0xc0] sm:$0xff]
      %v2378 = vld [vmem:[#allocation2 + $0xc8] sm:$0xff]
      %v2379 = vld [vmem:[#allocation2 + $0xd0] sm:$0xff]
      %v2380 = vld [vmem:[#allocation2 + $0xd8] sm:$0xff]
      %v2381 = vld [vmem:[#allocation2 + $0xe0] sm:$0xff]
      %v2382 = vld [vmem:[#allocation2 + $0xe8] sm:$0xff]
      %v2383 = vld [vmem:[#allocation2 + $0xf0] sm:$0xf]
      %v2384 = vld [vmem:[#allocation2 + $0x9] sm:$0xff]
      %v2385 = vld [vmem:[#allocation2 + $0x11] sm:$0xff]
      %v2386 = vld [vmem:[#allocation2 + $0x19] sm:$0xff]
      %v2387 = vld [vmem:[#allocation2 + $0x21] sm:$0xff]
      %v2388 = vld [vmem:[#allocation2 + $0x29] sm:$0xff]
      %v2389 = vld [vmem:[#allocation2 + $0x31] sm:$0xff]
      %v2390 = vld [vmem:[#allocation2 + $0x39] sm:$0xff]
      %v2391 = vld [vmem:[#allocation2 + $0x41] sm:$0xff]
      %v2392 = vld [vmem:[#allocation2 + $0x49] sm:$0xff]
      %v2393 = vld [vmem:[#allocation2 + $0x51] sm:$0xff]
      %v2394 = vld [vmem:[#allocation2 + $0x59] sm:$0xff]
      %v2395 = vld [vmem:[#allocation2 + $0x61] sm:$0xff]
      %v2396 = vld [vmem:[#allocation2 + $0x69] sm:$0xff]
      %v2397 = vld [vmem:[#allocation2 + $0x71] sm:$0xff]
      %v2398 = vld [vmem:[#allocation2 + $0x79] sm:$0xff]
      %v2399 = vld [vmem:[#allocation2 + $0x81] sm:$0xff]
      %v2400 = vld [vmem:[#allocation2 + $0x89] sm:$0xff]
      %v2401 = vld [vmem:[#allocation2 + $0x91] sm:$0xff]
      %v2402 = vld [vmem:[#allocation2 + $0x99] sm:$0xff]
      %v2403 = vld [vmem:[#allocation2 + $0xa1] sm:$0xff]
      %v2404 = vld [vmem:[#allocation2 + $0xa9] sm:$0xff]
      %v2405 = vld [vmem:[#allocation2 + $0xb1] sm:$0xff]
      %v2406 = vld [vmem:[#allocation2 + $0xb9] sm:$0xff]
      %v2407 = vld [vmem:[#allocation2 + $0xc1] sm:$0xff]
      %v2408 = vld [vmem:[#allocation2 + $0xc9] sm:$0xff]
      %v2409 = vld [vmem:[#allocation2 + $0xd1] sm:$0xff]
      %v2410 = vld [vmem:[#allocation2 + $0xd9] sm:$0xff]
      %v2411 = vld [vmem:[#allocation2 + $0xe1] sm:$0xff]
      %v2412 = vld [vmem:[#allocation2 + $0xe9] sm:$0xff]
      %v2413 = vld [vmem:[#allocation2 + $0xf1] sm:$0xf]
      %v2414 = vpack.c.bf16 %v2355, %v2354
      %v2415 = vpack.c.bf16 %v2385, %v2384
      %v2416 = vpack.c.bf16 %v2357, %v2356
      %v2417 = vpack.c.bf16 %v2387, %v2386
      %v2418 = vpack.c.bf16 %v2359, %v2358
      %v2419 = vpack.c.bf16 %v2389, %v2388
      %v2420 = vpack.c.bf16 %v2361, %v2360
      %v2421 = vpack.c.bf16 %v2391, %v2390
      %v2422 = vpack.c.bf16 %v2363, %v2362
      %v2423 = vpack.c.bf16 %v2393, %v2392
      %v2424 = vpack.c.bf16 %v2365, %v2364
      %v2425 = vpack.c.bf16 %v2395, %v2394
      %v2426 = vpack.c.bf16 %v2367, %v2366
      %v2427 = vpack.c.bf16 %v2397, %v2396
      %v2428 = vpack.c.bf16 %v2369, %v2368
      %v2429 = vpack.c.bf16 %v2399, %v2398
      %v2430 = vpack.c.bf16 %v2371, %v2370
      %v2431 = vpack.c.bf16 %v2401, %v2400
      %v2432 = vpack.c.bf16 %v2373, %v2372
      %v2433 = vpack.c.bf16 %v2403, %v2402
      %v2434 = vpack.c.bf16 %v2375, %v2374
      %v2435 = vpack.c.bf16 %v2405, %v2404
      %v2436 = vpack.c.bf16 %v2377, %v2376
      %v2437 = vpack.c.bf16 %v2407, %v2406
      %v2438 = vpack.c.bf16 %v2379, %v2378
      %v2439 = vpack.c.bf16 %v2409, %v2408
      %v2440 = vpack.c.bf16 %v2381, %v2380
      %v2441 = vpack.c.bf16 %v2411, %v2410
      %v2442 = vpack.c.bf16 %v2383, %v2382
      %v2443 = vpack.c.bf16 %v2413, %v2412
      %s2444 = scalar_lea.vmem %s3, 512
      %v2445 = vld [vmem:[%s2444] sm:$0xf]
      %v2446 = vld [vmem:[%s2444 + $0x4] sm:$0xf]
      %v2447 = vld [vmem:[%s2444 + $0x8] sm:$0xf]
      %v2448 = vld [vmem:[%s2444 + $0xc] sm:$0xf]
      %v2449 = vld [vmem:[%s2444 + $0x10] sm:$0xf]
      %v2450 = vld [vmem:[%s2444 + $0x14] sm:$0xf]
      %v2451 = vld [vmem:[%s2444 + $0x18] sm:$0xf]
      %v2452 = vld [vmem:[%s2444 + $0x1c] sm:$0xf]
      %v2453 = vld [vmem:[%s2444 + $0x20] sm:$0xf]
      %v2454 = vld [vmem:[%s2444 + $0x24] sm:$0xf]
      %v2455 = vld [vmem:[%s2444 + $0x28] sm:$0xf]
      %v2456 = vld [vmem:[%s2444 + $0x2c] sm:$0xf]
      %v2457 = vld [vmem:[%s2444 + $0x30] sm:$0xf]
      %v2458 = vld [vmem:[%s2444 + $0x34] sm:$0xf]
      %v2459 = vld [vmem:[%s2444 + $0x38] sm:$0xf]
      %v2460 = vld [vmem:[%s2444 + $0x3c] sm:$0xf]
      %v2461 = vld [vmem:[%s2444 + $0x40] sm:$0xf]
      %v2462 = vld [vmem:[%s2444 + $0x44] sm:$0xf]
      %v2463 = vld [vmem:[%s2444 + $0x48] sm:$0xf]
      %v2464 = vld [vmem:[%s2444 + $0x4c] sm:$0xf]
      %v2465 = vld [vmem:[%s2444 + $0x50] sm:$0xf]
      %v2466 = vld [vmem:[%s2444 + $0x54] sm:$0xf]
      %v2467 = vld [vmem:[%s2444 + $0x58] sm:$0xf]
      %v2468 = vld [vmem:[%s2444 + $0x5c] sm:$0xf]
      %v2469 = vld [vmem:[%s2444 + $0x60] sm:$0xf]
      %v2470 = vld [vmem:[%s2444 + $0x64] sm:$0xf]
      %v2471 = vld [vmem:[%s2444 + $0x68] sm:$0xf]
      %v2472 = vld [vmem:[%s2444 + $0x6c] sm:$0xf]
      %v2473 = vld [vmem:[%s2444 + $0x70] sm:$0xf]
      %v2474 = vld [vmem:[%s2444 + $0x74] sm:$0xf]
      %v2475 = vld [vmem:[%s2444 + $0x78] sm:$0xf]
      %v2476 = vld [vmem:[%s2444 + $0x7c] sm:$0xf]
      %v2509 = vunpack.c.l.b16 %v2445
      %v2510 = vunpack.c.l.b16 %v2446
      %v2511 = vunpack.c.l.b16 %v2447
      %v2512 = vunpack.c.l.b16 %v2448
      %v2513 = vunpack.c.l.b16 %v2449
      %v2514 = vunpack.c.l.b16 %v2450
      %v2515 = vunpack.c.l.b16 %v2451
      %v2516 = vunpack.c.l.b16 %v2452
      %v2517 = vunpack.c.l.b16 %v2453
      %v2518 = vunpack.c.l.b16 %v2454
      %v2519 = vunpack.c.l.b16 %v2455
      %v2520 = vunpack.c.l.b16 %v2456
      %v2521 = vunpack.c.l.b16 %v2457
      %v2522 = vunpack.c.l.b16 %v2458
      %v2523 = vunpack.c.l.b16 %v2459
      %v2524 = vunpack.c.l.b16 %v2460
      %v2525 = vunpack.c.l.b16 %v2461
      %v2526 = vunpack.c.l.b16 %v2462
      %v2527 = vunpack.c.l.b16 %v2463
      %v2528 = vunpack.c.l.b16 %v2464
      %v2529 = vunpack.c.l.b16 %v2465
      %v2530 = vunpack.c.l.b16 %v2466
      %v2531 = vunpack.c.l.b16 %v2467
      %v2532 = vunpack.c.l.b16 %v2468
      %v2533 = vunpack.c.l.b16 %v2469
      %v2534 = vunpack.c.l.b16 %v2470
      %v2535 = vunpack.c.l.b16 %v2471
      %v2536 = vunpack.c.l.b16 %v2472
      %v2537 = vunpack.c.l.b16 %v2473
      %v2538 = vunpack.c.l.b16 %v2474
      %v2539 = vunpack.c.l.b16 %v2475
      %v2540 = vunpack.c.l.b16 %v2476
      %v2541 = vpack.c.b16 %v2510, %v2509
      %v2542 = vpack.c.b16 %v2512, %v2511
      %v2543 = vpack.c.b16 %v2514, %v2513
      %v2544 = vpack.c.b16 %v2516, %v2515
      %v2545 = vpack.c.b16 %v2518, %v2517
      %v2546 = vpack.c.b16 %v2520, %v2519
      %v2547 = vpack.c.b16 %v2522, %v2521
      %v2548 = vpack.c.b16 %v2524, %v2523
      %v2549 = vpack.c.b16 %v2526, %v2525
      %v2550 = vpack.c.b16 %v2528, %v2527
      %v2551 = vpack.c.b16 %v2530, %v2529
      %v2552 = vpack.c.b16 %v2532, %v2531
      %v2553 = vpack.c.b16 %v2534, %v2533
      %v2554 = vpack.c.b16 %v2536, %v2535
      %v2555 = vpack.c.b16 %v2538, %v2537
      %v2556 = vpack.c.b16 %v2540, %v2539
      %2573 = vmatprep.subr.bf16.mxu0 0
      %2574 = vmatpush1.bf16.msra.mxu0 %v2541
      %2575 = vmatprep.subr.bf16.mxu0 0
      %2576 = vmatpush1.bf16.msra.mxu0 %v2542
      %2577 = vmatprep.subr.bf16.mxu0 0
      %2578 = vmatpush1.bf16.msra.mxu0 %v2543
      %2579 = vmatprep.subr.bf16.mxu0 0
      %2580 = vmatpush1.bf16.msra.mxu0 %v2544
      %2581 = vmatprep.subr.bf16.mxu0 0
      %2582 = vmatpush1.bf16.msra.mxu0 %v2545
      %2583 = vmatprep.subr.bf16.mxu0 0
      %2584 = vmatpush1.bf16.msra.mxu0 %v2546
      %2585 = vmatprep.subr.bf16.mxu0 0
      %2586 = vmatpush1.bf16.msra.mxu0 %v2547
      %2587 = vmatprep.subr.bf16.mxu0 0
      %2588 = vmatpush1.bf16.msra.mxu0 %v2548
      %2589 = vmatprep.subr.bf16.mxu0 0
      %2590 = vmatpush1.bf16.msra.mxu0 %v2549
      %2591 = vmatprep.subr.bf16.mxu0 0
      %2592 = vmatpush1.bf16.msra.mxu0 %v2550
      %2593 = vmatprep.subr.bf16.mxu0 0
      %2594 = vmatpush1.bf16.msra.mxu0 %v2551
      %2595 = vmatprep.subr.bf16.mxu0 0
      %2596 = vmatpush1.bf16.msra.mxu0 %v2552
      %2597 = vmatprep.subr.bf16.mxu0 0
      %2598 = vmatpush1.bf16.msra.mxu0 %v2553
      %2599 = vmatprep.subr.bf16.mxu0 0
      %2600 = vmatpush1.bf16.msra.mxu0 %v2554
      %2601 = vmatprep.subr.bf16.mxu0 0
      %2602 = vmatpush1.bf16.msra.mxu0 %v2555
      %2603 = vmatprep.subr.bf16.mxu0 0
      %2604 = vmatpush1.bf16.msra.mxu0 %v2556
      %2605 = vmatprep.mubr.bf16.mxu0 %v2415
      %2606 = vmatmul.mubr.bf16.gmra.mrb[0].mxu0 %v2414
      %v2607 = vpop.f32.mrb[0].mxu0
      %v2608 = vadd.f32 0.0, %v2607
      %v2609 = vpop.f32.mrb[0].mxu0
      %v2610 = vpop.f32.mrb[0].mxu0
      %v2611 = vadd.f32 0.0, %v2610
      %v2612 = vpop.f32.mrb[0].mxu0
      %2613 = vmatprep.mubr.bf16.mxu0 %v2417
      %2614 = vmatmul.mubr.bf16.gmra.mrb[0].mxu0 %v2416
      %v2615 = vpop.f32.mrb[0].mxu0
      %v2616 = vadd.f32 0.0, %v2615
      %v2617 = vpop.f32.mrb[0].mxu0
      %v2618 = vpop.f32.mrb[0].mxu0
      %v2619 = vadd.f32 0.0, %v2618
      %v2620 = vpop.f32.mrb[0].mxu0
      %2621 = vmatprep.mubr.bf16.mxu0 %v2419
      %2622 = vmatmul.mubr.bf16.gmra.mrb[0].mxu0 %v2418
      %v2623 = vpop.f32.mrb[0].mxu0
      %v2624 = vadd.f32 0.0, %v2623
      %v2625 = vpop.f32.mrb[0].mxu0
      %v2626 = vpop.f32.mrb[0].mxu0
      %v2627 = vadd.f32 0.0, %v2626
      %v2628 = vpop.f32.mrb[0].mxu0
      %2629 = vmatprep.mubr.bf16.mxu0 %v2421
      %2630 = vmatmul.mubr.bf16.gmra.mrb[0].mxu0 %v2420
      %v2631 = vpop.f32.mrb[0].mxu0
      %v2632 = vadd.f32 0.0, %v2631
      %v2633 = vpop.f32.mrb[0].mxu0
      %v2634 = vpop.f32.mrb[0].mxu0
      %v2635 = vadd.f32 0.0, %v2634
      %v2636 = vpop.f32.mrb[0].mxu0
      %2637 = vmatprep.mubr.bf16.mxu0 %v2423
      %2638 = vmatmul.mubr.bf16.gmra.mrb[0].mxu0 %v2422
      %v2639 = vpop.f32.mrb[0].mxu0
      %v2640 = vadd.f32 0.0, %v2639
      %v2641 = vpop.f32.mrb[0].mxu0
      %v2642 = vpop.f32.mrb[0].mxu0
      %v2643 = vadd.f32 0.0, %v2642
      %v2644 = vpop.f32.mrb[0].mxu0
      %2645 = vmatprep.mubr.bf16.mxu0 %v2425
      %2646 = vmatmul.mubr.bf16.gmra.mrb[0].mxu0 %v2424
      %v2647 = vpop.f32.mrb[0].mxu0
      %v2648 = vadd.f32 0.0, %v2647
      %v2649 = vpop.f32.mrb[0].mxu0
      %v2650 = vpop.f32.mrb[0].mxu0
      %v2651 = vadd.f32 0.0, %v2650
      %v2652 = vpop.f32.mrb[0].mxu0
      %2653 = vmatprep.mubr.bf16.mxu0 %v2427
      %2654 = vmatmul.mubr.bf16.gmra.mrb[0].mxu0 %v2426
      %v2655 = vpop.f32.mrb[0].mxu0
      %v2656 = vadd.f32 0.0, %v2655
      %v2657 = vpop.f32.mrb[0].mxu0
      %v2658 = vpop.f32.mrb[0].mxu0
      %v2659 = vadd.f32 0.0, %v2658
      %v2660 = vpop.f32.mrb[0].mxu0
      %2661 = vmatprep.mubr.bf16.mxu0 %v2429
      %2662 = vmatmul.mubr.bf16.gmra.mrb[0].mxu0 %v2428
      %v2663 = vpop.f32.mrb[0].mxu0
      %v2664 = vadd.f32 0.0, %v2663
      %v2665 = vpop.f32.mrb[0].mxu0
      %v2666 = vpop.f32.mrb[0].mxu0
      %v2667 = vadd.f32 0.0, %v2666
      %v2668 = vpop.f32.mrb[0].mxu0
      %2669 = vmatprep.mubr.bf16.mxu0 %v2431
      %2670 = vmatmul.mubr.bf16.gmra.mrb[0].mxu0 %v2430
      %v2671 = vpop.f32.mrb[0].mxu0
      %v2672 = vadd.f32 0.0, %v2671
      %v2673 = vpop.f32.mrb[0].mxu0
      %v2674 = vpop.f32.mrb[0].mxu0
      %v2675 = vadd.f32 0.0, %v2674
      %v2676 = vpop.f32.mrb[0].mxu0
      %2677 = vmatprep.mubr.bf16.mxu0 %v2433
      %2678 = vmatmul.mubr.bf16.gmra.mrb[0].mxu0 %v2432
      %v2679 = vpop.f32.mrb[0].mxu0
      %v2680 = vadd.f32 0.0, %v2679
      %v2681 = vpop.f32.mrb[0].mxu0
      %v2682 = vpop.f32.mrb[0].mxu0
      %v2683 = vadd.f32 0.0, %v2682
      %v2684 = vpop.f32.mrb[0].mxu0
      %2685 = vmatprep.mubr.bf16.mxu0 %v2435
      %2686 = vmatmul.mubr.bf16.gmra.mrb[0].mxu0 %v2434
      %v2687 = vpop.f32.mrb[0].mxu0
      %v2688 = vadd.f32 0.0, %v2687
      %v2689 = vpop.f32.mrb[0].mxu0
      %v2690 = vpop.f32.mrb[0].mxu0
      %v2691 = vadd.f32 0.0, %v2690
      %v2692 = vpop.f32.mrb[0].mxu0
      %2693 = vmatprep.mubr.bf16.mxu0 %v2437
      %2694 = vmatmul.mubr.bf16.gmra.mrb[0].mxu0 %v2436
      %v2695 = vpop.f32.mrb[0].mxu0
      %v2696 = vadd.f32 0.0, %v2695
      %v2697 = vpop.f32.mrb[0].mxu0
      %v2698 = vpop.f32.mrb[0].mxu0
      %v2699 = vadd.f32 0.0, %v2698
      %v2700 = vpop.f32.mrb[0].mxu0
      %2701 = vmatprep.mubr.bf16.mxu0 %v2439
      %2702 = vmatmul.mubr.bf16.gmra.mrb[0].mxu0 %v2438
      %v2703 = vpop.f32.mrb[0].mxu0
      %v2704 = vadd.f32 0.0, %v2703
      %v2705 = vpop.f32.mrb[0].mxu0
      %v2706 = vpop.f32.mrb[0].mxu0
      %v2707 = vadd.f32 0.0, %v2706
      %v2708 = vpop.f32.mrb[0].mxu0
      %2709 = vmatprep.mubr.bf16.mxu0 %v2441
      %2710 = vmatmul.mubr.bf16.gmra.mrb[0].mxu0 %v2440
      %v2711 = vpop.f32.mrb[0].mxu0
      %v2712 = vadd.f32 0.0, %v2711
      %v2713 = vpop.f32.mrb[0].mxu0
      %v2714 = vpop.f32.mrb[0].mxu0
      %v2715 = vadd.f32 0.0, %v2714
      %v2716 = vpop.f32.mrb[0].mxu0
      %2717 = vmatprep.mubr.bf16.mxu0 %v2443
      %2718 = vmatmul.mubr.bf16.gmra.mrb[0].mxu0 %v2442
      %v2719 = vpop.f32.mrb[0].mxu0
      %v2720 = vadd.f32 0.0, %v2719
      %v2721 = vpop.f32.mrb[0].mxu0
      %v2722 = vpop.f32.mrb[0].mxu0
      %v2723 = vadd.f32 0.0, %v2722
      %v2724 = vpop.f32.mrb[0].mxu0
      %2725 = vdwg.mxu0
      %v2726 = vadd.f32 %v2324, %v2608
      %v2727 = vadd.f32 %v2325, %v2611
      %v2728 = vadd.f32 %v2326, %v2616
      %v2729 = vadd.f32 %v2327, %v2619
      %v2730 = vadd.f32 %v2328, %v2624
      %v2731 = vadd.f32 %v2329, %v2627
      %v2732 = vadd.f32 %v2330, %v2632
      %v2733 = vadd.f32 %v2331, %v2635
      %v2734 = vadd.f32 %v2332, %v2640
      %v2735 = vadd.f32 %v2333, %v2643
      %v2736 = vadd.f32 %v2334, %v2648
      %v2737 = vadd.f32 %v2335, %v2651
      %v2738 = vadd.f32 %v2336, %v2656
      %v2739 = vadd.f32 %v2337, %v2659
      %v2740 = vadd.f32 %v2338, %v2664
      %v2741 = vadd.f32 %v2339, %v2667
      %v2742 = vadd.f32 %v2340, %v2672
      %v2743 = vadd.f32 %v2341, %v2675
      %v2744 = vadd.f32 %v2342, %v2680
      %v2745 = vadd.f32 %v2343, %v2683
      %v2746 = vadd.f32 %v2344, %v2688
      %v2747 = vadd.f32 %v2345, %v2691
      %v2748 = vadd.f32 %v2346, %v2696
      %v2749 = vadd.f32 %v2347, %v2699
      %v2750 = vadd.f32 %v2348, %v2704
      %v2751 = vadd.f32 %v2349, %v2707
      %v2752 = vadd.f32 %v2350, %v2712
      %v2753 = vadd.f32 %v2351, %v2715
      %v2754 = vadd.f32 %v2352, %v2720
      %v2755 = vadd.f32 %v2353, %v2723
      %v2756 = vld [vmem:[#allocation2 + $0xa] sm:$0xff]
      %v2757 = vld [vmem:[#allocation2 + $0x12] sm:$0xff]
      %v2758 = vld [vmem:[#allocation2 + $0x1a] sm:$0xff]
      %v2759 = vld [vmem:[#allocation2 + $0x22] sm:$0xff]
      %v2760 = vld [vmem:[#allocation2 + $0x2a] sm:$0xff]
      %v2761 = vld [vmem:[#allocation2 + $0x32] sm:$0xff]
      %v2762 = vld [vmem:[#allocation2 + $0x3a] sm:$0xff]
      %v2763 = vld [vmem:[#allocation2 + $0x42] sm:$0xff]
      %v2764 = vld [vmem:[#allocation2 + $0x4a] sm:$0xff]
      %v2765 = vld [vmem:[#allocation2 + $0x52] sm:$0xff]
      %v2766 = vld [vmem:[#allocation2 + $0x5a] sm:$0xff]
      %v2767 = vld [vmem:[#allocation2 + $0x62] sm:$0xff]
      %v2768 = vld [vmem:[#allocation2 + $0x6a] sm:$0xff]
      %v2769 = vld [vmem:[#allocation2 + $0x72] sm:$0xff]
      %v2770 = vld [vmem:[#allocation2 + $0x7a] sm:$0xff]
      %v2771 = vld [vmem:[#allocation2 + $0x82] sm:$0xff]
      %v2772 = vld [vmem:[#allocation2 + $0x8a] sm:$0xff]
      %v2773 = vld [vmem:[#allocation2 + $0x92] sm:$0xff]
      %v2774 = vld [vmem:[#allocation2 + $0x9a] sm:$0xff]
      %v2775 = vld [vmem:[#allocation2 + $0xa2] sm:$0xff]
      %v2776 = vld [vmem:[#allocation2 + $0xaa] sm:$0xff]
      %v2777 = vld [vmem:[#allocation2 + $0xb2] sm:$0xff]
      %v2778 = vld [vmem:[#allocation2 + $0xba] sm:$0xff]
      %v2779 = vld [vmem:[#allocation2 + $0xc2] sm:$0xff]
      %v2780 = vld [vmem:[#allocation2 + $0xca] sm:$0xff]
      %v2781 = vld [vmem:[#allocation2 + $0xd2] sm:$0xff]
      %v2782 = vld [vmem:[#allocation2 + $0xda] sm:$0xff]
      %v2783 = vld [vmem:[#allocation2 + $0xe2] sm:$0xff]
      %v2784 = vld [vmem:[#allocation2 + $0xea] sm:$0xff]
      %v2785 = vld [vmem:[#allocation2 + $0xf2] sm:$0xf]
      %v2786 = vld [vmem:[#allocation2 + $0xb] sm:$0xff]
      %v2787 = vld [vmem:[#allocation2 + $0x13] sm:$0xff]
      %v2788 = vld [vmem:[#allocation2 + $0x1b] sm:$0xff]
      %v2789 = vld [vmem:[#allocation2 + $0x23] sm:$0xff]
      %v2790 = vld [vmem:[#allocation2 + $0x2b] sm:$0xff]
      %v2791 = vld [vmem:[#allocation2 + $0x33] sm:$0xff]
      %v2792 = vld [vmem:[#allocation2 + $0x3b] sm:$0xff]
      %v2793 = vld [vmem:[#allocation2 + $0x43] sm:$0xff]
      %v2794 = vld [vmem:[#allocation2 + $0x4b] sm:$0xff]
      %v2795 = vld [vmem:[#allocation2 + $0x53] sm:$0xff]
      %v2796 = vld [vmem:[#allocation2 + $0x5b] sm:$0xff]
      %v2797 = vld [vmem:[#allocation2 + $0x63] sm:$0xff]
      %v2798 = vld [vmem:[#allocation2 + $0x6b] sm:$0xff]
      %v2799 = vld [vmem:[#allocation2 + $0x73] sm:$0xff]
      %v2800 = vld [vmem:[#allocation2 + $0x7b] sm:$0xff]
      %v2801 = vld [vmem:[#allocation2 + $0x83] sm:$0xff]
      %v2802 = vld [vmem:[#allocation2 + $0x8b] sm:$0xff]
      %v2803 = vld [vmem:[#allocation2 + $0x93] sm:$0xff]
      %v2804 = vld [vmem:[#allocation2 + $0x9b] sm:$0xff]
      %v2805 = vld [vmem:[#allocation2 + $0xa3] sm:$0xff]
      %v2806 = vld [vmem:[#allocation2 + $0xab] sm:$0xff]
      %v2807 = vld [vmem:[#allocation2 + $0xb3] sm:$0xff]
      %v2808 = vld [vmem:[#allocation2 + $0xbb] sm:$0xff]
      %v2809 = vld [vmem:[#allocation2 + $0xc3] sm:$0xff]
      %v2810 = vld [vmem:[#allocation2 + $0xcb] sm:$0xff]
      %v2811 = vld [vmem:[#allocation2 + $0xd3] sm:$0xff]
      %v2812 = vld [vmem:[#allocation2 + $0xdb] sm:$0xff]
      %v2813 = vld [vmem:[#allocation2 + $0xe3] sm:$0xff]
      %v2814 = vld [vmem:[#allocation2 + $0xeb] sm:$0xff]
      %v2815 = vld [vmem:[#allocation2 + $0xf3] sm:$0xf]
      %v2816 = vpack.c.bf16 %v2757, %v2756
      %v2817 = vpack.c.bf16 %v2787, %v2786
      %v2818 = vpack.c.bf16 %v2759, %v2758
      %v2819 = vpack.c.bf16 %v2789, %v2788
      %v2820 = vpack.c.bf16 %v2761, %v2760
      %v2821 = vpack.c.bf16 %v2791, %v2790
      %v2822 = vpack.c.bf16 %v2763, %v2762
      %v2823 = vpack.c.bf16 %v2793, %v2792
      %v2824 = vpack.c.bf16 %v2765, %v2764
      %v2825 = vpack.c.bf16 %v2795, %v2794
      %v2826 = vpack.c.bf16 %v2767, %v2766
      %v2827 = vpack.c.bf16 %v2797, %v2796
      %v2828 = vpack.c.bf16 %v2769, %v2768
      %v2829 = vpack.c.bf16 %v2799, %v2798
      %v2830 = vpack.c.bf16 %v2771, %v2770
      %v2831 = vpack.c.bf16 %v2801, %v2800
      %v2832 = vpack.c.bf16 %v2773, %v2772
      %v2833 = vpack.c.bf16 %v2803, %v2802
      %v2834 = vpack.c.bf16 %v2775, %v2774
      %v2835 = vpack.c.bf16 %v2805, %v2804
      %v2836 = vpack.c.bf16 %v2777, %v2776
      %v2837 = vpack.c.bf16 %v2807, %v2806
      %v2838 = vpack.c.bf16 %v2779, %v2778
      %v2839 = vpack.c.bf16 %v2809, %v2808
      %v2840 = vpack.c.bf16 %v2781, %v2780
      %v2841 = vpack.c.bf16 %v2811, %v2810
      %v2842 = vpack.c.bf16 %v2783, %v2782
      %v2843 = vpack.c.bf16 %v2813, %v2812
      %v2844 = vpack.c.bf16 %v2785, %v2784
      %v2845 = vpack.c.bf16 %v2815, %v2814
      %s2846 = scalar_lea.vmem %s3, 640
      %v2847 = vld [vmem:[%s2846] sm:$0xf]
      %v2848 = vld [vmem:[%s2846 + $0x4] sm:$0xf]
      %v2849 = vld [vmem:[%s2846 + $0x8] sm:$0xf]
      %v2850 = vld [vmem:[%s2846 + $0xc] sm:$0xf]
      %v2851 = vld [vmem:[%s2846 + $0x10] sm:$0xf]
      %v2852 = vld [vmem:[%s2846 + $0x14] sm:$0xf]
      %v2853 = vld [vmem:[%s2846 + $0x18] sm:$0xf]
      %v2854 = vld [vmem:[%s2846 + $0x1c] sm:$0xf]
      %v2855 = vld [vmem:[%s2846 + $0x20] sm:$0xf]
      %v2856 = vld [vmem:[%s2846 + $0x24] sm:$0xf]
      %v2857 = vld [vmem:[%s2846 + $0x28] sm:$0xf]
      %v2858 = vld [vmem:[%s2846 + $0x2c] sm:$0xf]
      %v2859 = vld [vmem:[%s2846 + $0x30] sm:$0xf]
      %v2860 = vld [vmem:[%s2846 + $0x34] sm:$0xf]
      %v2861 = vld [vmem:[%s2846 + $0x38] sm:$0xf]
      %v2862 = vld [vmem:[%s2846 + $0x3c] sm:$0xf]
      %v2863 = vld [vmem:[%s2846 + $0x40] sm:$0xf]
      %v2864 = vld [vmem:[%s2846 + $0x44] sm:$0xf]
      %v2865 = vld [vmem:[%s2846 + $0x48] sm:$0xf]
      %v2866 = vld [vmem:[%s2846 + $0x4c] sm:$0xf]
      %v2867 = vld [vmem:[%s2846 + $0x50] sm:$0xf]
      %v2868 = vld [vmem:[%s2846 + $0x54] sm:$0xf]
      %v2869 = vld [vmem:[%s2846 + $0x58] sm:$0xf]
      %v2870 = vld [vmem:[%s2846 + $0x5c] sm:$0xf]
      %v2871 = vld [vmem:[%s2846 + $0x60] sm:$0xf]
      %v2872 = vld [vmem:[%s2846 + $0x64] sm:$0xf]
      %v2873 = vld [vmem:[%s2846 + $0x68] sm:$0xf]
      %v2874 = vld [vmem:[%s2846 + $0x6c] sm:$0xf]
      %v2875 = vld [vmem:[%s2846 + $0x70] sm:$0xf]
      %v2876 = vld [vmem:[%s2846 + $0x74] sm:$0xf]
      %v2877 = vld [vmem:[%s2846 + $0x78] sm:$0xf]
      %v2878 = vld [vmem:[%s2846 + $0x7c] sm:$0xf]
      %v2911 = vunpack.c.l.b16 %v2847
      %v2912 = vunpack.c.l.b16 %v2848
      %v2913 = vunpack.c.l.b16 %v2849
      %v2914 = vunpack.c.l.b16 %v2850
      %v2915 = vunpack.c.l.b16 %v2851
      %v2916 = vunpack.c.l.b16 %v2852
      %v2917 = vunpack.c.l.b16 %v2853
      %v2918 = vunpack.c.l.b16 %v2854
      %v2919 = vunpack.c.l.b16 %v2855
      %v2920 = vunpack.c.l.b16 %v2856
      %v2921 = vunpack.c.l.b16 %v2857
      %v2922 = vunpack.c.l.b16 %v2858
      %v2923 = vunpack.c.l.b16 %v2859
      %v2924 = vunpack.c.l.b16 %v2860
      %v2925 = vunpack.c.l.b16 %v2861
      %v2926 = vunpack.c.l.b16 %v2862
      %v2927 = vunpack.c.l.b16 %v2863
      %v2928 = vunpack.c.l.b16 %v2864
      %v2929 = vunpack.c.l.b16 %v2865
      %v2930 = vunpack.c.l.b16 %v2866
      %v2931 = vunpack.c.l.b16 %v2867
      %v2932 = vunpack.c.l.b16 %v2868
      %v2933 = vunpack.c.l.b16 %v2869
      %v2934 = vunpack.c.l.b16 %v2870
      %v2935 = vunpack.c.l.b16 %v2871
      %v2936 = vunpack.c.l.b16 %v2872
      %v2937 = vunpack.c.l.b16 %v2873
      %v2938 = vunpack.c.l.b16 %v2874
      %v2939 = vunpack.c.l.b16 %v2875
      %v2940 = vunpack.c.l.b16 %v2876
      %v2941 = vunpack.c.l.b16 %v2877
      %v2942 = vunpack.c.l.b16 %v2878
      %v2943 = vpack.c.b16 %v2912, %v2911
      %v2944 = vpack.c.b16 %v2914, %v2913
      %v2945 = vpack.c.b16 %v2916, %v2915
      %v2946 = vpack.c.b16 %v2918, %v2917
      %v2947 = vpack.c.b16 %v2920, %v2919
      %v2948 = vpack.c.b16 %v2922, %v2921
      %v2949 = vpack.c.b16 %v2924, %v2923
      %v2950 = vpack.c.b16 %v2926, %v2925
      %v2951 = vpack.c.b16 %v2928, %v2927
      %v2952 = vpack.c.b16 %v2930, %v2929
      %v2953 = vpack.c.b16 %v2932, %v2931
      %v2954 = vpack.c.b16 %v2934, %v2933
      %v2955 = vpack.c.b16 %v2936, %v2935
      %v2956 = vpack.c.b16 %v2938, %v2937
      %v2957 = vpack.c.b16 %v2940, %v2939
      %v2958 = vpack.c.b16 %v2942, %v2941
      %2975 = vmatprep.subr.bf16.mxu0 0
      %2976 = vmatpush1.bf16.msra.mxu0 %v2943
      %2977 = vmatprep.subr.bf16.mxu0 0
      %2978 = vmatpush1.bf16.msra.mxu0 %v2944
      %2979 = vmatprep.subr.bf16.mxu0 0
      %2980 = vmatpush1.bf16.msra.mxu0 %v2945
      %2981 = vmatprep.subr.bf16.mxu0 0
      %2982 = vmatpush1.bf16.msra.mxu0 %v2946
      %2983 = vmatprep.subr.bf16.mxu0 0
      %2984 = vmatpush1.bf16.msra.mxu0 %v2947
      %2985 = vmatprep.subr.bf16.mxu0 0
      %2986 = vmatpush1.bf16.msra.mxu0 %v2948
      %2987 = vmatprep.subr.bf16.mxu0 0
      %2988 = vmatpush1.bf16.msra.mxu0 %v2949
      %2989 = vmatprep.subr.bf16.mxu0 0
      %2990 = vmatpush1.bf16.msra.mxu0 %v2950
      %2991 = vmatprep.subr.bf16.mxu0 0
      %2992 = vmatpush1.bf16.msra.mxu0 %v2951
      %2993 = vmatprep.subr.bf16.mxu0 0
      %2994 = vmatpush1.bf16.msra.mxu0 %v2952
      %2995 = vmatprep.subr.bf16.mxu0 0
      %2996 = vmatpush1.bf16.msra.mxu0 %v2953
      %2997 = vmatprep.subr.bf16.mxu0 0
      %2998 = vmatpush1.bf16.msra.mxu0 %v2954
      %2999 = vmatprep.subr.bf16.mxu0 0
      %3000 = vmatpush1.bf16.msra.mxu0 %v2955
      %3001 = vmatprep.subr.bf16.mxu0 0
      %3002 = vmatpush1.bf16.msra.mxu0 %v2956
      %3003 = vmatprep.subr.bf16.mxu0 0
      %3004 = vmatpush1.bf16.msra.mxu0 %v2957
      %3005 = vmatprep.subr.bf16.mxu0 0
      %3006 = vmatpush1.bf16.msra.mxu0 %v2958
      %3007 = vmatprep.mubr.bf16.mxu0 %v2817
      %3008 = vmatmul.mubr.bf16.gmra.mrb[0].mxu0 %v2816
      %v3009 = vpop.f32.mrb[0].mxu0
      %v3010 = vadd.f32 0.0, %v3009
      %v3011 = vpop.f32.mrb[0].mxu0
      %v3012 = vpop.f32.mrb[0].mxu0
      %v3013 = vadd.f32 0.0, %v3012
      %v3014 = vpop.f32.mrb[0].mxu0
      %3015 = vmatprep.mubr.bf16.mxu0 %v2819
      %3016 = vmatmul.mubr.bf16.gmra.mrb[0].mxu0 %v2818
      %v3017 = vpop.f32.mrb[0].mxu0
      %v3018 = vadd.f32 0.0, %v3017
      %v3019 = vpop.f32.mrb[0].mxu0
      %v3020 = vpop.f32.mrb[0].mxu0
      %v3021 = vadd.f32 0.0, %v3020
      %v3022 = vpop.f32.mrb[0].mxu0
      %3023 = vmatprep.mubr.bf16.mxu0 %v2821
      %3024 = vmatmul.mubr.bf16.gmra.mrb[0].mxu0 %v2820
      %v3025 = vpop.f32.mrb[0].mxu0
      %v3026 = vadd.f32 0.0, %v3025
      %v3027 = vpop.f32.mrb[0].mxu0
      %v3028 = vpop.f32.mrb[0].mxu0
      %v3029 = vadd.f32 0.0, %v3028
      %v3030 = vpop.f32.mrb[0].mxu0
      %3031 = vmatprep.mubr.bf16.mxu0 %v2823
      %3032 = vmatmul.mubr.bf16.gmra.mrb[0].mxu0 %v2822
      %v3033 = vpop.f32.mrb[0].mxu0
      %v3034 = vadd.f32 0.0, %v3033
      %v3035 = vpop.f32.mrb[0].mxu0
      %v3036 = vpop.f32.mrb[0].mxu0
      %v3037 = vadd.f32 0.0, %v3036
      %v3038 = vpop.f32.mrb[0].mxu0
      %3039 = vmatprep.mubr.bf16.mxu0 %v2825
      %3040 = vmatmul.mubr.bf16.gmra.mrb[0].mxu0 %v2824
      %v3041 = vpop.f32.mrb[0].mxu0
      %v3042 = vadd.f32 0.0, %v3041
      %v3043 = vpop.f32.mrb[0].mxu0
      %v3044 = vpop.f32.mrb[0].mxu0
      %v3045 = vadd.f32 0.0, %v3044
      %v3046 = vpop.f32.mrb[0].mxu0
      %3047 = vmatprep.mubr.bf16.mxu0 %v2827
      %3048 = vmatmul.mubr.bf16.gmra.mrb[0].mxu0 %v2826
      %v3049 = vpop.f32.mrb[0].mxu0
      %v3050 = vadd.f32 0.0, %v3049
      %v3051 = vpop.f32.mrb[0].mxu0
      %v3052 = vpop.f32.mrb[0].mxu0
      %v3053 = vadd.f32 0.0, %v3052
      %v3054 = vpop.f32.mrb[0].mxu0
      %3055 = vmatprep.mubr.bf16.mxu0 %v2829
      %3056 = vmatmul.mubr.bf16.gmra.mrb[0].mxu0 %v2828
      %v3057 = vpop.f32.mrb[0].mxu0
      %v3058 = vadd.f32 0.0, %v3057
      %v3059 = vpop.f32.mrb[0].mxu0
      %v3060 = vpop.f32.mrb[0].mxu0
      %v3061 = vadd.f32 0.0, %v3060
      %v3062 = vpop.f32.mrb[0].mxu0
      %3063 = vmatprep.mubr.bf16.mxu0 %v2831
      %3064 = vmatmul.mubr.bf16.gmra.mrb[0].mxu0 %v2830
      %v3065 = vpop.f32.mrb[0].mxu0
      %v3066 = vadd.f32 0.0, %v3065
      %v3067 = vpop.f32.mrb[0].mxu0
      %v3068 = vpop.f32.mrb[0].mxu0
      %v3069 = vadd.f32 0.0, %v3068
      %v3070 = vpop.f32.mrb[0].mxu0
      %3071 = vmatprep.mubr.bf16.mxu0 %v2833
      %3072 = vmatmul.mubr.bf16.gmra.mrb[0].mxu0 %v2832
      %v3073 = vpop.f32.mrb[0].mxu0
      %v3074 = vadd.f32 0.0, %v3073
      %v3075 = vpop.f32.mrb[0].mxu0
      %v3076 = vpop.f32.mrb[0].mxu0
      %v3077 = vadd.f32 0.0, %v3076
      %v3078 = vpop.f32.mrb[0].mxu0
      %3079 = vmatprep.mubr.bf16.mxu0 %v2835
      %3080 = vmatmul.mubr.bf16.gmra.mrb[0].mxu0 %v2834
      %v3081 = vpop.f32.mrb[0].mxu0
      %v3082 = vadd.f32 0.0, %v3081
      %v3083 = vpop.f32.mrb[0].mxu0
      %v3084 = vpop.f32.mrb[0].mxu0
      %v3085 = vadd.f32 0.0, %v3084
      %v3086 = vpop.f32.mrb[0].mxu0
      %3087 = vmatprep.mubr.bf16.mxu0 %v2837
      %3088 = vmatmul.mubr.bf16.gmra.mrb[0].mxu0 %v2836
      %v3089 = vpop.f32.mrb[0].mxu0
      %v3090 = vadd.f32 0.0, %v3089
      %v3091 = vpop.f32.mrb[0].mxu0
      %v3092 = vpop.f32.mrb[0].mxu0
      %v3093 = vadd.f32 0.0, %v3092
      %v3094 = vpop.f32.mrb[0].mxu0
      %3095 = vmatprep.mubr.bf16.mxu0 %v2839
      %3096 = vmatmul.mubr.bf16.gmra.mrb[0].mxu0 %v2838
      %v3097 = vpop.f32.mrb[0].mxu0
      %v3098 = vadd.f32 0.0, %v3097
      %v3099 = vpop.f32.mrb[0].mxu0
      %v3100 = vpop.f32.mrb[0].mxu0
      %v3101 = vadd.f32 0.0, %v3100
      %v3102 = vpop.f32.mrb[0].mxu0
      %3103 = vmatprep.mubr.bf16.mxu0 %v2841
      %3104 = vmatmul.mubr.bf16.gmra.mrb[0].mxu0 %v2840
      %v3105 = vpop.f32.mrb[0].mxu0
      %v3106 = vadd.f32 0.0, %v3105
      %v3107 = vpop.f32.mrb[0].mxu0
      %v3108 = vpop.f32.mrb[0].mxu0
      %v3109 = vadd.f32 0.0, %v3108
      %v3110 = vpop.f32.mrb[0].mxu0
      %3111 = vmatprep.mubr.bf16.mxu0 %v2843
      %3112 = vmatmul.mubr.bf16.gmra.mrb[0].mxu0 %v2842
      %v3113 = vpop.f32.mrb[0].mxu0
      %v3114 = vadd.f32 0.0, %v3113
      %v3115 = vpop.f32.mrb[0].mxu0
      %v3116 = vpop.f32.mrb[0].mxu0
      %v3117 = vadd.f32 0.0, %v3116
      %v3118 = vpop.f32.mrb[0].mxu0
      %3119 = vmatprep.mubr.bf16.mxu0 %v2845
      %3120 = vmatmul.mubr.bf16.gmra.mrb[0].mxu0 %v2844
      %v3121 = vpop.f32.mrb[0].mxu0
      %v3122 = vadd.f32 0.0, %v3121
      %v3123 = vpop.f32.mrb[0].mxu0
      %v3124 = vpop.f32.mrb[0].mxu0
      %v3125 = vadd.f32 0.0, %v3124
      %v3126 = vpop.f32.mrb[0].mxu0
      %3127 = vdwg.mxu0
      %v3128 = vadd.f32 %v2726, %v3010
      %v3129 = vadd.f32 %v2727, %v3013
      %v3130 = vadd.f32 %v2728, %v3018
      %v3131 = vadd.f32 %v2729, %v3021
      %v3132 = vadd.f32 %v2730, %v3026
      %v3133 = vadd.f32 %v2731, %v3029
      %v3134 = vadd.f32 %v2732, %v3034
      %v3135 = vadd.f32 %v2733, %v3037
      %v3136 = vadd.f32 %v2734, %v3042
      %v3137 = vadd.f32 %v2735, %v3045
      %v3138 = vadd.f32 %v2736, %v3050
      %v3139 = vadd.f32 %v2737, %v3053
      %v3140 = vadd.f32 %v2738, %v3058
      %v3141 = vadd.f32 %v2739, %v3061
      %v3142 = vadd.f32 %v2740, %v3066
      %v3143 = vadd.f32 %v2741, %v3069
      %v3144 = vadd.f32 %v2742, %v3074
      %v3145 = vadd.f32 %v2743, %v3077
      %v3146 = vadd.f32 %v2744, %v3082
      %v3147 = vadd.f32 %v2745, %v3085
      %v3148 = vadd.f32 %v2746, %v3090
      %v3149 = vadd.f32 %v2747, %v3093
      %v3150 = vadd.f32 %v2748, %v3098
      %v3151 = vadd.f32 %v2749, %v3101
      %v3152 = vadd.f32 %v2750, %v3106
      %v3153 = vadd.f32 %v2751, %v3109
      %v3154 = vadd.f32 %v2752, %v3114
      %v3155 = vadd.f32 %v2753, %v3117
      %v3156 = vadd.f32 %v2754, %v3122
      %v3157 = vadd.f32 %v2755, %v3125
      %v3158 = vld [vmem:[#allocation2 + $0xc] sm:$0xff]
      %v3159 = vld [vmem:[#allocation2 + $0x14] sm:$0xff]
      %v3160 = vld [vmem:[#allocation2 + $0x1c] sm:$0xff]
      %v3161 = vld [vmem:[#allocation2 + $0x24] sm:$0xff]
      %v3162 = vld [vmem:[#allocation2 + $0x2c] sm:$0xff]
      %v3163 = vld [vmem:[#allocation2 + $0x34] sm:$0xff]
      %v3164 = vld [vmem:[#allocation2 + $0x3c] sm:$0xff]
      %v3165 = vld [vmem:[#allocation2 + $0x44] sm:$0xff]
      %v3166 = vld [vmem:[#allocation2 + $0x4c] sm:$0xff]
      %v3167 = vld [vmem:[#allocation2 + $0x54] sm:$0xff]
      %v3168 = vld [vmem:[#allocation2 + $0x5c] sm:$0xff]
      %v3169 = vld [vmem:[#allocation2 + $0x64] sm:$0xff]
      %v3170 = vld [vmem:[#allocation2 + $0x6c] sm:$0xff]
      %v3171 = vld [vmem:[#allocation2 + $0x74] sm:$0xff]
      %v3172 = vld [vmem:[#allocation2 + $0x7c] sm:$0xff]
      %v3173 = vld [vmem:[#allocation2 + $0x84] sm:$0xff]
      %v3174 = vld [vmem:[#allocation2 + $0x8c] sm:$0xff]
      %v3175 = vld [vmem:[#allocation2 + $0x94] sm:$0xff]
      %v3176 = vld [vmem:[#allocation2 + $0x9c] sm:$0xff]
      %v3177 = vld [vmem:[#allocation2 + $0xa4] sm:$0xff]
      %v3178 = vld [vmem:[#allocation2 + $0xac] sm:$0xff]
      %v3179 = vld [vmem:[#allocation2 + $0xb4] sm:$0xff]
      %v3180 = vld [vmem:[#allocation2 + $0xbc] sm:$0xff]
      %v3181 = vld [vmem:[#allocation2 + $0xc4] sm:$0xff]
      %v3182 = vld [vmem:[#allocation2 + $0xcc] sm:$0xff]
      %v3183 = vld [vmem:[#allocation2 + $0xd4] sm:$0xff]
      %v3184 = vld [vmem:[#allocation2 + $0xdc] sm:$0xff]
      %v3185 = vld [vmem:[#allocation2 + $0xe4] sm:$0xff]
      %v3186 = vld [vmem:[#allocation2 + $0xec] sm:$0xff]
      %v3187 = vld [vmem:[#allocation2 + $0xf4] sm:$0xf]
      %v3188 = vld [vmem:[#allocation2 + $0xd] sm:$0xff]
      %v3189 = vld [vmem:[#allocation2 + $0x15] sm:$0xff]
      %v3190 = vld [vmem:[#allocation2 + $0x1d] sm:$0xff]
      %v3191 = vld [vmem:[#allocation2 + $0x25] sm:$0xff]
      %v3192 = vld [vmem:[#allocation2 + $0x2d] sm:$0xff]
      %v3193 = vld [vmem:[#allocation2 + $0x35] sm:$0xff]
      %v3194 = vld [vmem:[#allocation2 + $0x3d] sm:$0xff]
      %v3195 = vld [vmem:[#allocation2 + $0x45] sm:$0xff]
      %v3196 = vld [vmem:[#allocation2 + $0x4d] sm:$0xff]
      %v3197 = vld [vmem:[#allocation2 + $0x55] sm:$0xff]
      %v3198 = vld [vmem:[#allocation2 + $0x5d] sm:$0xff]
      %v3199 = vld [vmem:[#allocation2 + $0x65] sm:$0xff]
      %v3200 = vld [vmem:[#allocation2 + $0x6d] sm:$0xff]
      %v3201 = vld [vmem:[#allocation2 + $0x75] sm:$0xff]
      %v3202 = vld [vmem:[#allocation2 + $0x7d] sm:$0xff]
      %v3203 = vld [vmem:[#allocation2 + $0x85] sm:$0xff]
      %v3204 = vld [vmem:[#allocation2 + $0x8d] sm:$0xff]
      %v3205 = vld [vmem:[#allocation2 + $0x95] sm:$0xff]
      %v3206 = vld [vmem:[#allocation2 + $0x9d] sm:$0xff]
      %v3207 = vld [vmem:[#allocation2 + $0xa5] sm:$0xff]
      %v3208 = vld [vmem:[#allocation2 + $0xad] sm:$0xff]
      %v3209 = vld [vmem:[#allocation2 + $0xb5] sm:$0xff]
      %v3210 = vld [vmem:[#allocation2 + $0xbd] sm:$0xff]
      %v3211 = vld [vmem:[#allocation2 + $0xc5] sm:$0xff]
      %v3212 = vld [vmem:[#allocation2 + $0xcd] sm:$0xff]
      %v3213 = vld [vmem:[#allocation2 + $0xd5] sm:$0xff]
      %v3214 = vld [vmem:[#allocation2 + $0xdd] sm:$0xff]
      %v3215 = vld [vmem:[#allocation2 + $0xe5] sm:$0xff]
      %v3216 = vld [vmem:[#allocation2 + $0xed] sm:$0xff]
      %v3217 = vld [vmem:[#allocation2 + $0xf5] sm:$0xf]
      %v3218 = vpack.c.bf16 %v3159, %v3158
      %v3219 = vpack.c.bf16 %v3189, %v3188
      %v3220 = vpack.c.bf16 %v3161, %v3160
      %v3221 = vpack.c.bf16 %v3191, %v3190
      %v3222 = vpack.c.bf16 %v3163, %v3162
      %v3223 = vpack.c.bf16 %v3193, %v3192
      %v3224 = vpack.c.bf16 %v3165, %v3164
      %v3225 = vpack.c.bf16 %v3195, %v3194
      %v3226 = vpack.c.bf16 %v3167, %v3166
      %v3227 = vpack.c.bf16 %v3197, %v3196
      %v3228 = vpack.c.bf16 %v3169, %v3168
      %v3229 = vpack.c.bf16 %v3199, %v3198
      %v3230 = vpack.c.bf16 %v3171, %v3170
      %v3231 = vpack.c.bf16 %v3201, %v3200
      %v3232 = vpack.c.bf16 %v3173, %v3172
      %v3233 = vpack.c.bf16 %v3203, %v3202
      %v3234 = vpack.c.bf16 %v3175, %v3174
      %v3235 = vpack.c.bf16 %v3205, %v3204
      %v3236 = vpack.c.bf16 %v3177, %v3176
      %v3237 = vpack.c.bf16 %v3207, %v3206
      %v3238 = vpack.c.bf16 %v3179, %v3178
      %v3239 = vpack.c.bf16 %v3209, %v3208
      %v3240 = vpack.c.bf16 %v3181, %v3180
      %v3241 = vpack.c.bf16 %v3211, %v3210
      %v3242 = vpack.c.bf16 %v3183, %v3182
      %v3243 = vpack.c.bf16 %v3213, %v3212
      %v3244 = vpack.c.bf16 %v3185, %v3184
      %v3245 = vpack.c.bf16 %v3215, %v3214
      %v3246 = vpack.c.bf16 %v3187, %v3186
      %v3247 = vpack.c.bf16 %v3217, %v3216
      %s3248 = scalar_lea.vmem %s3, 768
      %v3249 = vld [vmem:[%s3248] sm:$0xf]
      %v3250 = vld [vmem:[%s3248 + $0x4] sm:$0xf]
      %v3251 = vld [vmem:[%s3248 + $0x8] sm:$0xf]
      %v3252 = vld [vmem:[%s3248 + $0xc] sm:$0xf]
      %v3253 = vld [vmem:[%s3248 + $0x10] sm:$0xf]
      %v3254 = vld [vmem:[%s3248 + $0x14] sm:$0xf]
      %v3255 = vld [vmem:[%s3248 + $0x18] sm:$0xf]
      %v3256 = vld [vmem:[%s3248 + $0x1c] sm:$0xf]
      %v3257 = vld [vmem:[%s3248 + $0x20] sm:$0xf]
      %v3258 = vld [vmem:[%s3248 + $0x24] sm:$0xf]
      %v3259 = vld [vmem:[%s3248 + $0x28] sm:$0xf]
      %v3260 = vld [vmem:[%s3248 + $0x2c] sm:$0xf]
      %v3261 = vld [vmem:[%s3248 + $0x30] sm:$0xf]
      %v3262 = vld [vmem:[%s3248 + $0x34] sm:$0xf]
      %v3263 = vld [vmem:[%s3248 + $0x38] sm:$0xf]
      %v3264 = vld [vmem:[%s3248 + $0x3c] sm:$0xf]
      %v3265 = vld [vmem:[%s3248 + $0x40] sm:$0xf]
      %v3266 = vld [vmem:[%s3248 + $0x44] sm:$0xf]
      %v3267 = vld [vmem:[%s3248 + $0x48] sm:$0xf]
      %v3268 = vld [vmem:[%s3248 + $0x4c] sm:$0xf]
      %v3269 = vld [vmem:[%s3248 + $0x50] sm:$0xf]
      %v3270 = vld [vmem:[%s3248 + $0x54] sm:$0xf]
      %v3271 = vld [vmem:[%s3248 + $0x58] sm:$0xf]
      %v3272 = vld [vmem:[%s3248 + $0x5c] sm:$0xf]
      %v3273 = vld [vmem:[%s3248 + $0x60] sm:$0xf]
      %v3274 = vld [vmem:[%s3248 + $0x64] sm:$0xf]
      %v3275 = vld [vmem:[%s3248 + $0x68] sm:$0xf]
      %v3276 = vld [vmem:[%s3248 + $0x6c] sm:$0xf]
      %v3277 = vld [vmem:[%s3248 + $0x70] sm:$0xf]
      %v3278 = vld [vmem:[%s3248 + $0x74] sm:$0xf]
      %v3279 = vld [vmem:[%s3248 + $0x78] sm:$0xf]
      %v3280 = vld [vmem:[%s3248 + $0x7c] sm:$0xf]
      %v3313 = vunpack.c.l.b16 %v3249
      %v3314 = vunpack.c.l.b16 %v3250
      %v3315 = vunpack.c.l.b16 %v3251
      %v3316 = vunpack.c.l.b16 %v3252
      %v3317 = vunpack.c.l.b16 %v3253
      %v3318 = vunpack.c.l.b16 %v3254
      %v3319 = vunpack.c.l.b16 %v3255
      %v3320 = vunpack.c.l.b16 %v3256
      %v3321 = vunpack.c.l.b16 %v3257
      %v3322 = vunpack.c.l.b16 %v3258
      %v3323 = vunpack.c.l.b16 %v3259
      %v3324 = vunpack.c.l.b16 %v3260
      %v3325 = vunpack.c.l.b16 %v3261
      %v3326 = vunpack.c.l.b16 %v3262
      %v3327 = vunpack.c.l.b16 %v3263
      %v3328 = vunpack.c.l.b16 %v3264
      %v3329 = vunpack.c.l.b16 %v3265
      %v3330 = vunpack.c.l.b16 %v3266
      %v3331 = vunpack.c.l.b16 %v3267
      %v3332 = vunpack.c.l.b16 %v3268
      %v3333 = vunpack.c.l.b16 %v3269
      %v3334 = vunpack.c.l.b16 %v3270
      %v3335 = vunpack.c.l.b16 %v3271
      %v3336 = vunpack.c.l.b16 %v3272
      %v3337 = vunpack.c.l.b16 %v3273
      %v3338 = vunpack.c.l.b16 %v3274
      %v3339 = vunpack.c.l.b16 %v3275
      %v3340 = vunpack.c.l.b16 %v3276
      %v3341 = vunpack.c.l.b16 %v3277
      %v3342 = vunpack.c.l.b16 %v3278
      %v3343 = vunpack.c.l.b16 %v3279
      %v3344 = vunpack.c.l.b16 %v3280
      %v3345 = vpack.c.b16 %v3314, %v3313
      %v3346 = vpack.c.b16 %v3316, %v3315
      %v3347 = vpack.c.b16 %v3318, %v3317
      %v3348 = vpack.c.b16 %v3320, %v3319
      %v3349 = vpack.c.b16 %v3322, %v3321
      %v3350 = vpack.c.b16 %v3324, %v3323
      %v3351 = vpack.c.b16 %v3326, %v3325
      %v3352 = vpack.c.b16 %v3328, %v3327
      %v3353 = vpack.c.b16 %v3330, %v3329
      %v3354 = vpack.c.b16 %v3332, %v3331
      %v3355 = vpack.c.b16 %v3334, %v3333
      %v3356 = vpack.c.b16 %v3336, %v3335
      %v3357 = vpack.c.b16 %v3338, %v3337
      %v3358 = vpack.c.b16 %v3340, %v3339
      %v3359 = vpack.c.b16 %v3342, %v3341
      %v3360 = vpack.c.b16 %v3344, %v3343
      %3377 = vmatprep.subr.bf16.mxu0 0
      %3378 = vmatpush1.bf16.msra.mxu0 %v3345
      %3379 = vmatprep.subr.bf16.mxu0 0
      %3380 = vmatpush1.bf16.msra.mxu0 %v3346
      %3381 = vmatprep.subr.bf16.mxu0 0
      %3382 = vmatpush1.bf16.msra.mxu0 %v3347
      %3383 = vmatprep.subr.bf16.mxu0 0
      %3384 = vmatpush1.bf16.msra.mxu0 %v3348
      %3385 = vmatprep.subr.bf16.mxu0 0
      %3386 = vmatpush1.bf16.msra.mxu0 %v3349
      %3387 = vmatprep.subr.bf16.mxu0 0
      %3388 = vmatpush1.bf16.msra.mxu0 %v3350
      %3389 = vmatprep.subr.bf16.mxu0 0
      %3390 = vmatpush1.bf16.msra.mxu0 %v3351
      %3391 = vmatprep.subr.bf16.mxu0 0
      %3392 = vmatpush1.bf16.msra.mxu0 %v3352
      %3393 = vmatprep.subr.bf16.mxu0 0
      %3394 = vmatpush1.bf16.msra.mxu0 %v3353
      %3395 = vmatprep.subr.bf16.mxu0 0
      %3396 = vmatpush1.bf16.msra.mxu0 %v3354
      %3397 = vmatprep.subr.bf16.mxu0 0
      %3398 = vmatpush1.bf16.msra.mxu0 %v3355
      %3399 = vmatprep.subr.bf16.mxu0 0
      %3400 = vmatpush1.bf16.msra.mxu0 %v3356
      %3401 = vmatprep.subr.bf16.mxu0 0
      %3402 = vmatpush1.bf16.msra.mxu0 %v3357
      %3403 = vmatprep.subr.bf16.mxu0 0
      %3404 = vmatpush1.bf16.msra.mxu0 %v3358
      %3405 = vmatprep.subr.bf16.mxu0 0
      %3406 = vmatpush1.bf16.msra.mxu0 %v3359
      %3407 = vmatprep.subr.bf16.mxu0 0
      %3408 = vmatpush1.bf16.msra.mxu0 %v3360
      %3409 = vmatprep.mubr.bf16.mxu0 %v3219
      %3410 = vmatmul.mubr.bf16.gmra.mrb[0].mxu0 %v3218
      %v3411 = vpop.f32.mrb[0].mxu0
      %v3412 = vadd.f32 0.0, %v3411
      %v3413 = vpop.f32.mrb[0].mxu0
      %v3414 = vpop.f32.mrb[0].mxu0
      %v3415 = vadd.f32 0.0, %v3414
      %v3416 = vpop.f32.mrb[0].mxu0
      %3417 = vmatprep.mubr.bf16.mxu0 %v3221
      %3418 = vmatmul.mubr.bf16.gmra.mrb[0].mxu0 %v3220
      %v3419 = vpop.f32.mrb[0].mxu0
      %v3420 = vadd.f32 0.0, %v3419
      %v3421 = vpop.f32.mrb[0].mxu0
      %v3422 = vpop.f32.mrb[0].mxu0
      %v3423 = vadd.f32 0.0, %v3422
      %v3424 = vpop.f32.mrb[0].mxu0
      %3425 = vmatprep.mubr.bf16.mxu0 %v3223
      %3426 = vmatmul.mubr.bf16.gmra.mrb[0].mxu0 %v3222
      %v3427 = vpop.f32.mrb[0].mxu0
      %v3428 = vadd.f32 0.0, %v3427
      %v3429 = vpop.f32.mrb[0].mxu0
      %v3430 = vpop.f32.mrb[0].mxu0
      %v3431 = vadd.f32 0.0, %v3430
      %v3432 = vpop.f32.mrb[0].mxu0
      %3433 = vmatprep.mubr.bf16.mxu0 %v3225
      %3434 = vmatmul.mubr.bf16.gmra.mrb[0].mxu0 %v3224
      %v3435 = vpop.f32.mrb[0].mxu0
      %v3436 = vadd.f32 0.0, %v3435
      %v3437 = vpop.f32.mrb[0].mxu0
      %v3438 = vpop.f32.mrb[0].mxu0
      %v3439 = vadd.f32 0.0, %v3438
      %v3440 = vpop.f32.mrb[0].mxu0
      %3441 = vmatprep.mubr.bf16.mxu0 %v3227
      %3442 = vmatmul.mubr.bf16.gmra.mrb[0].mxu0 %v3226
      %v3443 = vpop.f32.mrb[0].mxu0
      %v3444 = vadd.f32 0.0, %v3443
      %v3445 = vpop.f32.mrb[0].mxu0
      %v3446 = vpop.f32.mrb[0].mxu0
      %v3447 = vadd.f32 0.0, %v3446
      %v3448 = vpop.f32.mrb[0].mxu0
      %3449 = vmatprep.mubr.bf16.mxu0 %v3229
      %3450 = vmatmul.mubr.bf16.gmra.mrb[0].mxu0 %v3228
      %v3451 = vpop.f32.mrb[0].mxu0
      %v3452 = vadd.f32 0.0, %v3451
      %v3453 = vpop.f32.mrb[0].mxu0
      %v3454 = vpop.f32.mrb[0].mxu0
      %v3455 = vadd.f32 0.0, %v3454
      %v3456 = vpop.f32.mrb[0].mxu0
      %3457 = vmatprep.mubr.bf16.mxu0 %v3231
      %3458 = vmatmul.mubr.bf16.gmra.mrb[0].mxu0 %v3230
      %v3459 = vpop.f32.mrb[0].mxu0
      %v3460 = vadd.f32 0.0, %v3459
      %v3461 = vpop.f32.mrb[0].mxu0
      %v3462 = vpop.f32.mrb[0].mxu0
      %v3463 = vadd.f32 0.0, %v3462
      %v3464 = vpop.f32.mrb[0].mxu0
      %3465 = vmatprep.mubr.bf16.mxu0 %v3233
      %3466 = vmatmul.mubr.bf16.gmra.mrb[0].mxu0 %v3232
      %v3467 = vpop.f32.mrb[0].mxu0
      %v3468 = vadd.f32 0.0, %v3467
      %v3469 = vpop.f32.mrb[0].mxu0
      %v3470 = vpop.f32.mrb[0].mxu0
      %v3471 = vadd.f32 0.0, %v3470
      %v3472 = vpop.f32.mrb[0].mxu0
      %3473 = vmatprep.mubr.bf16.mxu0 %v3235
      %3474 = vmatmul.mubr.bf16.gmra.mrb[0].mxu0 %v3234
      %v3475 = vpop.f32.mrb[0].mxu0
      %v3476 = vadd.f32 0.0, %v3475
      %v3477 = vpop.f32.mrb[0].mxu0
      %v3478 = vpop.f32.mrb[0].mxu0
      %v3479 = vadd.f32 0.0, %v3478
      %v3480 = vpop.f32.mrb[0].mxu0
      %3481 = vmatprep.mubr.bf16.mxu0 %v3237
      %3482 = vmatmul.mubr.bf16.gmra.mrb[0].mxu0 %v3236
      %v3483 = vpop.f32.mrb[0].mxu0
      %v3484 = vadd.f32 0.0, %v3483
      %v3485 = vpop.f32.mrb[0].mxu0
      %v3486 = vpop.f32.mrb[0].mxu0
      %v3487 = vadd.f32 0.0, %v3486
      %v3488 = vpop.f32.mrb[0].mxu0
      %3489 = vmatprep.mubr.bf16.mxu0 %v3239
      %3490 = vmatmul.mubr.bf16.gmra.mrb[0].mxu0 %v3238
      %v3491 = vpop.f32.mrb[0].mxu0
      %v3492 = vadd.f32 0.0, %v3491
      %v3493 = vpop.f32.mrb[0].mxu0
      %v3494 = vpop.f32.mrb[0].mxu0
      %v3495 = vadd.f32 0.0, %v3494
      %v3496 = vpop.f32.mrb[0].mxu0
      %3497 = vmatprep.mubr.bf16.mxu0 %v3241
      %3498 = vmatmul.mubr.bf16.gmra.mrb[0].mxu0 %v3240
      %v3499 = vpop.f32.mrb[0].mxu0
      %v3500 = vadd.f32 0.0, %v3499
      %v3501 = vpop.f32.mrb[0].mxu0
      %v3502 = vpop.f32.mrb[0].mxu0
      %v3503 = vadd.f32 0.0, %v3502
      %v3504 = vpop.f32.mrb[0].mxu0
      %3505 = vmatprep.mubr.bf16.mxu0 %v3243
      %3506 = vmatmul.mubr.bf16.gmra.mrb[0].mxu0 %v3242
      %v3507 = vpop.f32.mrb[0].mxu0
      %v3508 = vadd.f32 0.0, %v3507
      %v3509 = vpop.f32.mrb[0].mxu0
      %v3510 = vpop.f32.mrb[0].mxu0
      %v3511 = vadd.f32 0.0, %v3510
      %v3512 = vpop.f32.mrb[0].mxu0
      %3513 = vmatprep.mubr.bf16.mxu0 %v3245
      %3514 = vmatmul.mubr.bf16.gmra.mrb[0].mxu0 %v3244
      %v3515 = vpop.f32.mrb[0].mxu0
      %v3516 = vadd.f32 0.0, %v3515
      %v3517 = vpop.f32.mrb[0].mxu0
      %v3518 = vpop.f32.mrb[0].mxu0
      %v3519 = vadd.f32 0.0, %v3518
      %v3520 = vpop.f32.mrb[0].mxu0
      %3521 = vmatprep.mubr.bf16.mxu0 %v3247
      %3522 = vmatmul.mubr.bf16.gmra.mrb[0].mxu0 %v3246
      %v3523 = vpop.f32.mrb[0].mxu0
      %v3524 = vadd.f32 0.0, %v3523
      %v3525 = vpop.f32.mrb[0].mxu0
      %v3526 = vpop.f32.mrb[0].mxu0
      %v3527 = vadd.f32 0.0, %v3526
      %v3528 = vpop.f32.mrb[0].mxu0
      %3529 = vdwg.mxu0
      %v3530 = vadd.f32 %v3128, %v3412
      %v3531 = vadd.f32 %v3129, %v3415
      %v3532 = vadd.f32 %v3130, %v3420
      %v3533 = vadd.f32 %v3131, %v3423
      %v3534 = vadd.f32 %v3132, %v3428
      %v3535 = vadd.f32 %v3133, %v3431
      %v3536 = vadd.f32 %v3134, %v3436
      %v3537 = vadd.f32 %v3135, %v3439
      %v3538 = vadd.f32 %v3136, %v3444
      %v3539 = vadd.f32 %v3137, %v3447
      %v3540 = vadd.f32 %v3138, %v3452
      %v3541 = vadd.f32 %v3139, %v3455
      %v3542 = vadd.f32 %v3140, %v3460
      %v3543 = vadd.f32 %v3141, %v3463
      %v3544 = vadd.f32 %v3142, %v3468
      %v3545 = vadd.f32 %v3143, %v3471
      %v3546 = vadd.f32 %v3144, %v3476
      %v3547 = vadd.f32 %v3145, %v3479
      %v3548 = vadd.f32 %v3146, %v3484
      %v3549 = vadd.f32 %v3147, %v3487
      %v3550 = vadd.f32 %v3148, %v3492
      %v3551 = vadd.f32 %v3149, %v3495
      %v3552 = vadd.f32 %v3150, %v3500
      %v3553 = vadd.f32 %v3151, %v3503
      %v3554 = vadd.f32 %v3152, %v3508
      %v3555 = vadd.f32 %v3153, %v3511
      %v3556 = vadd.f32 %v3154, %v3516
      %v3557 = vadd.f32 %v3155, %v3519
      %v3558 = vadd.f32 %v3156, %v3524
      %v3559 = vadd.f32 %v3157, %v3527
      %v3560 = vld [vmem:[#allocation2 + $0xe] sm:$0xff]
      %v3561 = vld [vmem:[#allocation2 + $0x16] sm:$0xff]
      %v3562 = vld [vmem:[#allocation2 + $0x1e] sm:$0xff]
      %v3563 = vld [vmem:[#allocation2 + $0x26] sm:$0xff]
      %v3564 = vld [vmem:[#allocation2 + $0x2e] sm:$0xff]
      %v3565 = vld [vmem:[#allocation2 + $0x36] sm:$0xff]
      %v3566 = vld [vmem:[#allocation2 + $0x3e] sm:$0xff]
      %v3567 = vld [vmem:[#allocation2 + $0x46] sm:$0xff]
      %v3568 = vld [vmem:[#allocation2 + $0x4e] sm:$0xff]
      %v3569 = vld [vmem:[#allocation2 + $0x56] sm:$0xff]
      %v3570 = vld [vmem:[#allocation2 + $0x5e] sm:$0xff]
      %v3571 = vld [vmem:[#allocation2 + $0x66] sm:$0xff]
      %v3572 = vld [vmem:[#allocation2 + $0x6e] sm:$0xff]
      %v3573 = vld [vmem:[#allocation2 + $0x76] sm:$0xff]
      %v3574 = vld [vmem:[#allocation2 + $0x7e] sm:$0xff]
      %v3575 = vld [vmem:[#allocation2 + $0x86] sm:$0xff]
      %v3576 = vld [vmem:[#allocation2 + $0x8e] sm:$0xff]
      %v3577 = vld [vmem:[#allocation2 + $0x96] sm:$0xff]
      %v3578 = vld [vmem:[#allocation2 + $0x9e] sm:$0xff]
      %v3579 = vld [vmem:[#allocation2 + $0xa6] sm:$0xff]
      %v3580 = vld [vmem:[#allocation2 + $0xae] sm:$0xff]
      %v3581 = vld [vmem:[#allocation2 + $0xb6] sm:$0xff]
      %v3582 = vld [vmem:[#allocation2 + $0xbe] sm:$0xff]
      %v3583 = vld [vmem:[#allocation2 + $0xc6] sm:$0xff]
      %v3584 = vld [vmem:[#allocation2 + $0xce] sm:$0xff]
      %v3585 = vld [vmem:[#allocation2 + $0xd6] sm:$0xff]
      %v3586 = vld [vmem:[#allocation2 + $0xde] sm:$0xff]
      %v3587 = vld [vmem:[#allocation2 + $0xe6] sm:$0xff]
      %v3588 = vld [vmem:[#allocation2 + $0xee] sm:$0xff]
      %v3589 = vld [vmem:[#allocation2 + $0xf6] sm:$0xf]
      %v3590 = vld [vmem:[#allocation2 + $0xf] sm:$0xff]
      %v3591 = vld [vmem:[#allocation2 + $0x17] sm:$0xff]
      %v3592 = vld [vmem:[#allocation2 + $0x1f] sm:$0xff]
      %v3593 = vld [vmem:[#allocation2 + $0x27] sm:$0xff]
      %v3594 = vld [vmem:[#allocation2 + $0x2f] sm:$0xff]
      %v3595 = vld [vmem:[#allocation2 + $0x37] sm:$0xff]
      %v3596 = vld [vmem:[#allocation2 + $0x3f] sm:$0xff]
      %v3597 = vld [vmem:[#allocation2 + $0x47] sm:$0xff]
      %v3598 = vld [vmem:[#allocation2 + $0x4f] sm:$0xff]
      %v3599 = vld [vmem:[#allocation2 + $0x57] sm:$0xff]
      %v3600 = vld [vmem:[#allocation2 + $0x5f] sm:$0xff]
      %v3601 = vld [vmem:[#allocation2 + $0x67] sm:$0xff]
      %v3602 = vld [vmem:[#allocation2 + $0x6f] sm:$0xff]
      %v3603 = vld [vmem:[#allocation2 + $0x77] sm:$0xff]
      %v3604 = vld [vmem:[#allocation2 + $0x7f] sm:$0xff]
      %v3605 = vld [vmem:[#allocation2 + $0x87] sm:$0xff]
      %v3606 = vld [vmem:[#allocation2 + $0x8f] sm:$0xff]
      %v3607 = vld [vmem:[#allocation2 + $0x97] sm:$0xff]
      %v3608 = vld [vmem:[#allocation2 + $0x9f] sm:$0xff]
      %v3609 = vld [vmem:[#allocation2 + $0xa7] sm:$0xff]
      %v3610 = vld [vmem:[#allocation2 + $0xaf] sm:$0xff]
      %v3611 = vld [vmem:[#allocation2 + $0xb7] sm:$0xff]
      %v3612 = vld [vmem:[#allocation2 + $0xbf] sm:$0xff]
      %v3613 = vld [vmem:[#allocation2 + $0xc7] sm:$0xff]
      %v3614 = vld [vmem:[#allocation2 + $0xcf] sm:$0xff]
      %v3615 = vld [vmem:[#allocation2 + $0xd7] sm:$0xff]
      %v3616 = vld [vmem:[#allocation2 + $0xdf] sm:$0xff]
      %v3617 = vld [vmem:[#allocation2 + $0xe7] sm:$0xff]
      %v3618 = vld [vmem:[#allocation2 + $0xef] sm:$0xff]
      %v3619 = vld [vmem:[#allocation2 + $0xf7] sm:$0xf]
      %v3620 = vpack.c.bf16 %v3561, %v3560
      %v3621 = vpack.c.bf16 %v3591, %v3590
      %v3622 = vpack.c.bf16 %v3563, %v3562
      %v3623 = vpack.c.bf16 %v3593, %v3592
      %v3624 = vpack.c.bf16 %v3565, %v3564
      %v3625 = vpack.c.bf16 %v3595, %v3594
      %v3626 = vpack.c.bf16 %v3567, %v3566
      %v3627 = vpack.c.bf16 %v3597, %v3596
      %v3628 = vpack.c.bf16 %v3569, %v3568
      %v3629 = vpack.c.bf16 %v3599, %v3598
      %v3630 = vpack.c.bf16 %v3571, %v3570
      %v3631 = vpack.c.bf16 %v3601, %v3600
      %v3632 = vpack.c.bf16 %v3573, %v3572
      %v3633 = vpack.c.bf16 %v3603, %v3602
      %v3634 = vpack.c.bf16 %v3575, %v3574
      %v3635 = vpack.c.bf16 %v3605, %v3604
      %v3636 = vpack.c.bf16 %v3577, %v3576
      %v3637 = vpack.c.bf16 %v3607, %v3606
      %v3638 = vpack.c.bf16 %v3579, %v3578
      %v3639 = vpack.c.bf16 %v3609, %v3608
      %v3640 = vpack.c.bf16 %v3581, %v3580
      %v3641 = vpack.c.bf16 %v3611, %v3610
      %v3642 = vpack.c.bf16 %v3583, %v3582
      %v3643 = vpack.c.bf16 %v3613, %v3612
      %v3644 = vpack.c.bf16 %v3585, %v3584
      %v3645 = vpack.c.bf16 %v3615, %v3614
      %v3646 = vpack.c.bf16 %v3587, %v3586
      %v3647 = vpack.c.bf16 %v3617, %v3616
      %v3648 = vpack.c.bf16 %v3589, %v3588
      %v3649 = vpack.c.bf16 %v3619, %v3618
      %s3650 = scalar_lea.vmem %s3, 896
      %v3651 = vld [vmem:[%s3650] sm:$0xf]
      %v3652 = vld [vmem:[%s3650 + $0x4] sm:$0xf]
      %v3653 = vld [vmem:[%s3650 + $0x8] sm:$0xf]
      %v3654 = vld [vmem:[%s3650 + $0xc] sm:$0xf]
      %v3655 = vld [vmem:[%s3650 + $0x10] sm:$0xf]
      %v3656 = vld [vmem:[%s3650 + $0x14] sm:$0xf]
      %v3657 = vld [vmem:[%s3650 + $0x18] sm:$0xf]
      %v3658 = vld [vmem:[%s3650 + $0x1c] sm:$0xf]
      %v3659 = vld [vmem:[%s3650 + $0x20] sm:$0xf]
      %v3660 = vld [vmem:[%s3650 + $0x24] sm:$0xf]
      %v3661 = vld [vmem:[%s3650 + $0x28] sm:$0xf]
      %v3662 = vld [vmem:[%s3650 + $0x2c] sm:$0xf]
      %v3663 = vld [vmem:[%s3650 + $0x30] sm:$0xf]
      %v3664 = vld [vmem:[%s3650 + $0x34] sm:$0xf]
      %v3665 = vld [vmem:[%s3650 + $0x38] sm:$0xf]
      %v3666 = vld [vmem:[%s3650 + $0x3c] sm:$0xf]
      %v3667 = vld [vmem:[%s3650 + $0x40] sm:$0xf]
      %v3668 = vld [vmem:[%s3650 + $0x44] sm:$0xf]
      %v3669 = vld [vmem:[%s3650 + $0x48] sm:$0xf]
      %v3670 = vld [vmem:[%s3650 + $0x4c] sm:$0xf]
      %v3671 = vld [vmem:[%s3650 + $0x50] sm:$0xf]
      %v3672 = vld [vmem:[%s3650 + $0x54] sm:$0xf]
      %v3673 = vld [vmem:[%s3650 + $0x58] sm:$0xf]
      %v3674 = vld [vmem:[%s3650 + $0x5c] sm:$0xf]
      %v3675 = vld [vmem:[%s3650 + $0x60] sm:$0xf]
      %v3676 = vld [vmem:[%s3650 + $0x64] sm:$0xf]
      %v3677 = vld [vmem:[%s3650 + $0x68] sm:$0xf]
      %v3678 = vld [vmem:[%s3650 + $0x6c] sm:$0xf]
      %v3679 = vld [vmem:[%s3650 + $0x70] sm:$0xf]
      %v3680 = vld [vmem:[%s3650 + $0x74] sm:$0xf]
      %v3681 = vld [vmem:[%s3650 + $0x78] sm:$0xf]
      %v3682 = vld [vmem:[%s3650 + $0x7c] sm:$0xf]
      %v3715 = vunpack.c.l.b16 %v3651
      %v3716 = vunpack.c.l.b16 %v3652
      %v3717 = vunpack.c.l.b16 %v3653
      %v3718 = vunpack.c.l.b16 %v3654
      %v3719 = vunpack.c.l.b16 %v3655
      %v3720 = vunpack.c.l.b16 %v3656
      %v3721 = vunpack.c.l.b16 %v3657
      %v3722 = vunpack.c.l.b16 %v3658
      %v3723 = vunpack.c.l.b16 %v3659
      %v3724 = vunpack.c.l.b16 %v3660
      %v3725 = vunpack.c.l.b16 %v3661
      %v3726 = vunpack.c.l.b16 %v3662
      %v3727 = vunpack.c.l.b16 %v3663
      %v3728 = vunpack.c.l.b16 %v3664
      %v3729 = vunpack.c.l.b16 %v3665
      %v3730 = vunpack.c.l.b16 %v3666
      %v3731 = vunpack.c.l.b16 %v3667
      %v3732 = vunpack.c.l.b16 %v3668
      %v3733 = vunpack.c.l.b16 %v3669
      %v3734 = vunpack.c.l.b16 %v3670
      %v3735 = vunpack.c.l.b16 %v3671
      %v3736 = vunpack.c.l.b16 %v3672
      %v3737 = vunpack.c.l.b16 %v3673
      %v3738 = vunpack.c.l.b16 %v3674
      %v3739 = vunpack.c.l.b16 %v3675
      %v3740 = vunpack.c.l.b16 %v3676
      %v3741 = vunpack.c.l.b16 %v3677
      %v3742 = vunpack.c.l.b16 %v3678
      %v3743 = vunpack.c.l.b16 %v3679
      %v3744 = vunpack.c.l.b16 %v3680
      %v3745 = vunpack.c.l.b16 %v3681
      %v3746 = vunpack.c.l.b16 %v3682
      %v3747 = vpack.c.b16 %v3716, %v3715
      %v3748 = vpack.c.b16 %v3718, %v3717
      %v3749 = vpack.c.b16 %v3720, %v3719
      %v3750 = vpack.c.b16 %v3722, %v3721
      %v3751 = vpack.c.b16 %v3724, %v3723
      %v3752 = vpack.c.b16 %v3726, %v3725
      %v3753 = vpack.c.b16 %v3728, %v3727
      %v3754 = vpack.c.b16 %v3730, %v3729
      %v3755 = vpack.c.b16 %v3732, %v3731
      %v3756 = vpack.c.b16 %v3734, %v3733
      %v3757 = vpack.c.b16 %v3736, %v3735
      %v3758 = vpack.c.b16 %v3738, %v3737
      %v3759 = vpack.c.b16 %v3740, %v3739
      %v3760 = vpack.c.b16 %v3742, %v3741
      %v3761 = vpack.c.b16 %v3744, %v3743
      %v3762 = vpack.c.b16 %v3746, %v3745
      %3779 = vmatprep.subr.bf16.mxu0 0
      %3780 = vmatpush1.bf16.msra.mxu0 %v3747
      %3781 = vmatprep.subr.bf16.mxu0 0
      %3782 = vmatpush1.bf16.msra.mxu0 %v3748
      %3783 = vmatprep.subr.bf16.mxu0 0
      %3784 = vmatpush1.bf16.msra.mxu0 %v3749
      %3785 = vmatprep.subr.bf16.mxu0 0
      %3786 = vmatpush1.bf16.msra.mxu0 %v3750
      %3787 = vmatprep.subr.bf16.mxu0 0
      %3788 = vmatpush1.bf16.msra.mxu0 %v3751
      %3789 = vmatprep.subr.bf16.mxu0 0
      %3790 = vmatpush1.bf16.msra.mxu0 %v3752
      %3791 = vmatprep.subr.bf16.mxu0 0
      %3792 = vmatpush1.bf16.msra.mxu0 %v3753
      %3793 = vmatprep.subr.bf16.mxu0 0
      %3794 = vmatpush1.bf16.msra.mxu0 %v3754
      %3795 = vmatprep.subr.bf16.mxu0 0
      %3796 = vmatpush1.bf16.msra.mxu0 %v3755
      %3797 = vmatprep.subr.bf16.mxu0 0
      %3798 = vmatpush1.bf16.msra.mxu0 %v3756
      %3799 = vmatprep.subr.bf16.mxu0 0
      %3800 = vmatpush1.bf16.msra.mxu0 %v3757
      %3801 = vmatprep.subr.bf16.mxu0 0
      %3802 = vmatpush1.bf16.msra.mxu0 %v3758
      %3803 = vmatprep.subr.bf16.mxu0 0
      %3804 = vmatpush1.bf16.msra.mxu0 %v3759
      %3805 = vmatprep.subr.bf16.mxu0 0
      %3806 = vmatpush1.bf16.msra.mxu0 %v3760
      %3807 = vmatprep.subr.bf16.mxu0 0
      %3808 = vmatpush1.bf16.msra.mxu0 %v3761
      %3809 = vmatprep.subr.bf16.mxu0 0
      %3810 = vmatpush1.bf16.msra.mxu0 %v3762
      %3811 = vmatprep.mubr.bf16.mxu0 %v3621
      %3812 = vmatmul.mubr.bf16.gmra.mrb[0].mxu0 %v3620
      %v3813 = vpop.f32.mrb[0].mxu0
      %v3814 = vadd.f32 0.0, %v3813
      %v3815 = vpop.f32.mrb[0].mxu0
      %v3816 = vpop.f32.mrb[0].mxu0
      %v3817 = vadd.f32 0.0, %v3816
      %v3818 = vpop.f32.mrb[0].mxu0
      %3819 = vmatprep.mubr.bf16.mxu0 %v3623
      %3820 = vmatmul.mubr.bf16.gmra.mrb[0].mxu0 %v3622
      %v3821 = vpop.f32.mrb[0].mxu0
      %v3822 = vadd.f32 0.0, %v3821
      %v3823 = vpop.f32.mrb[0].mxu0
      %v3824 = vpop.f32.mrb[0].mxu0
      %v3825 = vadd.f32 0.0, %v3824
      %v3826 = vpop.f32.mrb[0].mxu0
      %3827 = vmatprep.mubr.bf16.mxu0 %v3625
      %3828 = vmatmul.mubr.bf16.gmra.mrb[0].mxu0 %v3624
      %v3829 = vpop.f32.mrb[0].mxu0
      %v3830 = vadd.f32 0.0, %v3829
      %v3831 = vpop.f32.mrb[0].mxu0
      %v3832 = vpop.f32.mrb[0].mxu0
      %v3833 = vadd.f32 0.0, %v3832
      %v3834 = vpop.f32.mrb[0].mxu0
      %3835 = vmatprep.mubr.bf16.mxu0 %v3627
      %3836 = vmatmul.mubr.bf16.gmra.mrb[0].mxu0 %v3626
      %v3837 = vpop.f32.mrb[0].mxu0
      %v3838 = vadd.f32 0.0, %v3837
      %v3839 = vpop.f32.mrb[0].mxu0
      %v3840 = vpop.f32.mrb[0].mxu0
      %v3841 = vadd.f32 0.0, %v3840
      %v3842 = vpop.f32.mrb[0].mxu0
      %3843 = vmatprep.mubr.bf16.mxu0 %v3629
      %3844 = vmatmul.mubr.bf16.gmra.mrb[0].mxu0 %v3628
      %v3845 = vpop.f32.mrb[0].mxu0
      %v3846 = vadd.f32 0.0, %v3845
      %v3847 = vpop.f32.mrb[0].mxu0
      %v3848 = vpop.f32.mrb[0].mxu0
      %v3849 = vadd.f32 0.0, %v3848
      %v3850 = vpop.f32.mrb[0].mxu0
      %3851 = vmatprep.mubr.bf16.mxu0 %v3631
      %3852 = vmatmul.mubr.bf16.gmra.mrb[0].mxu0 %v3630
      %v3853 = vpop.f32.mrb[0].mxu0
      %v3854 = vadd.f32 0.0, %v3853
      %v3855 = vpop.f32.mrb[0].mxu0
      %v3856 = vpop.f32.mrb[0].mxu0
      %v3857 = vadd.f32 0.0, %v3856
      %v3858 = vpop.f32.mrb[0].mxu0
      %3859 = vmatprep.mubr.bf16.mxu0 %v3633
      %3860 = vmatmul.mubr.bf16.gmra.mrb[0].mxu0 %v3632
      %v3861 = vpop.f32.mrb[0].mxu0
      %v3862 = vadd.f32 0.0, %v3861
      %v3863 = vpop.f32.mrb[0].mxu0
      %v3864 = vpop.f32.mrb[0].mxu0
      %v3865 = vadd.f32 0.0, %v3864
      %v3866 = vpop.f32.mrb[0].mxu0
      %3867 = vmatprep.mubr.bf16.mxu0 %v3635
      %3868 = vmatmul.mubr.bf16.gmra.mrb[0].mxu0 %v3634
      %v3869 = vpop.f32.mrb[0].mxu0
      %v3870 = vadd.f32 0.0, %v3869
      %v3871 = vpop.f32.mrb[0].mxu0
      %v3872 = vpop.f32.mrb[0].mxu0
      %v3873 = vadd.f32 0.0, %v3872
      %v3874 = vpop.f32.mrb[0].mxu0
      %3875 = vmatprep.mubr.bf16.mxu0 %v3637
      %3876 = vmatmul.mubr.bf16.gmra.mrb[0].mxu0 %v3636
      %v3877 = vpop.f32.mrb[0].mxu0
      %v3878 = vadd.f32 0.0, %v3877
      %v3879 = vpop.f32.mrb[0].mxu0
      %v3880 = vpop.f32.mrb[0].mxu0
      %v3881 = vadd.f32 0.0, %v3880
      %v3882 = vpop.f32.mrb[0].mxu0
      %3883 = vmatprep.mubr.bf16.mxu0 %v3639
      %3884 = vmatmul.mubr.bf16.gmra.mrb[0].mxu0 %v3638
      %v3885 = vpop.f32.mrb[0].mxu0
      %v3886 = vadd.f32 0.0, %v3885
      %v3887 = vpop.f32.mrb[0].mxu0
      %v3888 = vpop.f32.mrb[0].mxu0
      %v3889 = vadd.f32 0.0, %v3888
      %v3890 = vpop.f32.mrb[0].mxu0
      %3891 = vmatprep.mubr.bf16.mxu0 %v3641
      %3892 = vmatmul.mubr.bf16.gmra.mrb[0].mxu0 %v3640
      %v3893 = vpop.f32.mrb[0].mxu0
      %v3894 = vadd.f32 0.0, %v3893
      %v3895 = vpop.f32.mrb[0].mxu0
      %v3896 = vpop.f32.mrb[0].mxu0
      %v3897 = vadd.f32 0.0, %v3896
      %v3898 = vpop.f32.mrb[0].mxu0
      %3899 = vmatprep.mubr.bf16.mxu0 %v3643
      %3900 = vmatmul.mubr.bf16.gmra.mrb[0].mxu0 %v3642
      %v3901 = vpop.f32.mrb[0].mxu0
      %v3902 = vadd.f32 0.0, %v3901
      %v3903 = vpop.f32.mrb[0].mxu0
      %v3904 = vpop.f32.mrb[0].mxu0
      %v3905 = vadd.f32 0.0, %v3904
      %v3906 = vpop.f32.mrb[0].mxu0
      %3907 = vmatprep.mubr.bf16.mxu0 %v3645
      %3908 = vmatmul.mubr.bf16.gmra.mrb[0].mxu0 %v3644
      %v3909 = vpop.f32.mrb[0].mxu0
      %v3910 = vadd.f32 0.0, %v3909
      %v3911 = vpop.f32.mrb[0].mxu0
      %v3912 = vpop.f32.mrb[0].mxu0
      %v3913 = vadd.f32 0.0, %v3912
      %v3914 = vpop.f32.mrb[0].mxu0
      %3915 = vmatprep.mubr.bf16.mxu0 %v3647
      %3916 = vmatmul.mubr.bf16.gmra.mrb[0].mxu0 %v3646
      %v3917 = vpop.f32.mrb[0].mxu0
      %v3918 = vadd.f32 0.0, %v3917
      %v3919 = vpop.f32.mrb[0].mxu0
      %v3920 = vpop.f32.mrb[0].mxu0
      %v3921 = vadd.f32 0.0, %v3920
      %v3922 = vpop.f32.mrb[0].mxu0
      %3923 = vmatprep.mubr.bf16.mxu0 %v3649
      %3924 = vmatmul.mubr.bf16.gmra.mrb[0].mxu0 %v3648
      %v3925 = vpop.f32.mrb[0].mxu0
      %v3926 = vadd.f32 0.0, %v3925
      %v3927 = vpop.f32.mrb[0].mxu0
      %v3928 = vpop.f32.mrb[0].mxu0
      %v3929 = vadd.f32 0.0, %v3928
      %v3930 = vpop.f32.mrb[0].mxu0
      %3931 = vdwg.mxu0
      %v3932 = vadd.f32 %v3530, %v3814
      %v3933 = vadd.f32 %v3531, %v3817
      %v3934 = vadd.f32 %v3532, %v3822
      %v3935 = vadd.f32 %v3533, %v3825
      %v3936 = vadd.f32 %v3534, %v3830
      %v3937 = vadd.f32 %v3535, %v3833
      %v3938 = vadd.f32 %v3536, %v3838
      %v3939 = vadd.f32 %v3537, %v3841
      %v3940 = vadd.f32 %v3538, %v3846
      %v3941 = vadd.f32 %v3539, %v3849
      %v3942 = vadd.f32 %v3540, %v3854
      %v3943 = vadd.f32 %v3541, %v3857
      %v3944 = vadd.f32 %v3542, %v3862
      %v3945 = vadd.f32 %v3543, %v3865
      %v3946 = vadd.f32 %v3544, %v3870
      %v3947 = vadd.f32 %v3545, %v3873
      %v3948 = vadd.f32 %v3546, %v3878
      %v3949 = vadd.f32 %v3547, %v3881
      %v3950 = vadd.f32 %v3548, %v3886
      %v3951 = vadd.f32 %v3549, %v3889
      %v3952 = vadd.f32 %v3550, %v3894
      %v3953 = vadd.f32 %v3551, %v3897
      %v3954 = vadd.f32 %v3552, %v3902
      %v3955 = vadd.f32 %v3553, %v3905
      %v3956 = vadd.f32 %v3554, %v3910
      %v3957 = vadd.f32 %v3555, %v3913
      %v3958 = vadd.f32 %v3556, %v3918
      %v3959 = vadd.f32 %v3557, %v3921
      %v3960 = vadd.f32 %v3558, %v3926
      %v3961 = vadd.f32 %v3559, %v3929
      %v3962 = vld [vmem:[#allocation2 + $0x10] sm:$0xff]
      %v3963 = vld [vmem:[#allocation2 + $0x18] sm:$0xff]
      %v3964 = vld [vmem:[#allocation2 + $0x20] sm:$0xff]
      %v3965 = vld [vmem:[#allocation2 + $0x28] sm:$0xff]
      %v3966 = vld [vmem:[#allocation2 + $0x30] sm:$0xff]
      %v3967 = vld [vmem:[#allocation2 + $0x38] sm:$0xff]
      %v3968 = vld [vmem:[#allocation2 + $0x40] sm:$0xff]
      %v3969 = vld [vmem:[#allocation2 + $0x48] sm:$0xff]
      %v3970 = vld [vmem:[#allocation2 + $0x50] sm:$0xff]
      %v3971 = vld [vmem:[#allocation2 + $0x58] sm:$0xff]
      %v3972 = vld [vmem:[#allocation2 + $0x60] sm:$0xff]
      %v3973 = vld [vmem:[#allocation2 + $0x68] sm:$0xff]
      %v3974 = vld [vmem:[#allocation2 + $0x70] sm:$0xff]
      %v3975 = vld [vmem:[#allocation2 + $0x78] sm:$0xff]
      %v3976 = vld [vmem:[#allocation2 + $0x80] sm:$0xff]
      %v3977 = vld [vmem:[#allocation2 + $0x88] sm:$0xff]
      %v3978 = vld [vmem:[#allocation2 + $0x90] sm:$0xff]
      %v3979 = vld [vmem:[#allocation2 + $0x98] sm:$0xff]
      %v3980 = vld [vmem:[#allocation2 + $0xa0] sm:$0xff]
      %v3981 = vld [vmem:[#allocation2 + $0xa8] sm:$0xff]
      %v3982 = vld [vmem:[#allocation2 + $0xb0] sm:$0xff]
      %v3983 = vld [vmem:[#allocation2 + $0xb8] sm:$0xff]
      %v3984 = vld [vmem:[#allocation2 + $0xc0] sm:$0xff]
      %v3985 = vld [vmem:[#allocation2 + $0xc8] sm:$0xff]
      %v3986 = vld [vmem:[#allocation2 + $0xd0] sm:$0xff]
      %v3987 = vld [vmem:[#allocation2 + $0xd8] sm:$0xff]
      %v3988 = vld [vmem:[#allocation2 + $0xe0] sm:$0xff]
      %v3989 = vld [vmem:[#allocation2 + $0xe8] sm:$0xff]
      %v3990 = vld [vmem:[#allocation2 + $0xf0] sm:$0xff]
      %v3991 = vld [vmem:[#allocation2 + $0xf8] sm:$0xf]
      %v3992 = vld [vmem:[#allocation2 + $0x11] sm:$0xff]
      %v3993 = vld [vmem:[#allocation2 + $0x19] sm:$0xff]
      %v3994 = vld [vmem:[#allocation2 + $0x21] sm:$0xff]
      %v3995 = vld [vmem:[#allocation2 + $0x29] sm:$0xff]
      %v3996 = vld [vmem:[#allocation2 + $0x31] sm:$0xff]
      %v3997 = vld [vmem:[#allocation2 + $0x39] sm:$0xff]
      %v3998 = vld [vmem:[#allocation2 + $0x41] sm:$0xff]
      %v3999 = vld [vmem:[#allocation2 + $0x49] sm:$0xff]
      %v4000 = vld [vmem:[#allocation2 + $0x51] sm:$0xff]
      %v4001 = vld [vmem:[#allocation2 + $0x59] sm:$0xff]
      %v4002 = vld [vmem:[#allocation2 + $0x61] sm:$0xff]
      %v4003 = vld [vmem:[#allocation2 + $0x69] sm:$0xff]
      %v4004 = vld [vmem:[#allocation2 + $0x71] sm:$0xff]
      %v4005 = vld [vmem:[#allocation2 + $0x79] sm:$0xff]
      %v4006 = vld [vmem:[#allocation2 + $0x81] sm:$0xff]
      %v4007 = vld [vmem:[#allocation2 + $0x89] sm:$0xff]
      %v4008 = vld [vmem:[#allocation2 + $0x91] sm:$0xff]
      %v4009 = vld [vmem:[#allocation2 + $0x99] sm:$0xff]
      %v4010 = vld [vmem:[#allocation2 + $0xa1] sm:$0xff]
      %v4011 = vld [vmem:[#allocation2 + $0xa9] sm:$0xff]
      %v4012 = vld [vmem:[#allocation2 + $0xb1] sm:$0xff]
      %v4013 = vld [vmem:[#allocation2 + $0xb9] sm:$0xff]
      %v4014 = vld [vmem:[#allocation2 + $0xc1] sm:$0xff]
      %v4015 = vld [vmem:[#allocation2 + $0xc9] sm:$0xff]
      %v4016 = vld [vmem:[#allocation2 + $0xd1] sm:$0xff]
      %v4017 = vld [vmem:[#allocation2 + $0xd9] sm:$0xff]
      %v4018 = vld [vmem:[#allocation2 + $0xe1] sm:$0xff]
      %v4019 = vld [vmem:[#allocation2 + $0xe9] sm:$0xff]
      %v4020 = vld [vmem:[#allocation2 + $0xf1] sm:$0xff]
      %v4021 = vld [vmem:[#allocation2 + $0xf9] sm:$0xf]
      %v4022 = vpack.c.bf16 %v3963, %v3962
      %v4023 = vpack.c.bf16 %v3993, %v3992
      %v4024 = vpack.c.bf16 %v3965, %v3964
      %v4025 = vpack.c.bf16 %v3995, %v3994
      %v4026 = vpack.c.bf16 %v3967, %v3966
      %v4027 = vpack.c.bf16 %v3997, %v3996
      %v4028 = vpack.c.bf16 %v3969, %v3968
      %v4029 = vpack.c.bf16 %v3999, %v3998
      %v4030 = vpack.c.bf16 %v3971, %v3970
      %v4031 = vpack.c.bf16 %v4001, %v4000
      %v4032 = vpack.c.bf16 %v3973, %v3972
      %v4033 = vpack.c.bf16 %v4003, %v4002
      %v4034 = vpack.c.bf16 %v3975, %v3974
      %v4035 = vpack.c.bf16 %v4005, %v4004
      %v4036 = vpack.c.bf16 %v3977, %v3976
      %v4037 = vpack.c.bf16 %v4007, %v4006
      %v4038 = vpack.c.bf16 %v3979, %v3978
      %v4039 = vpack.c.bf16 %v4009, %v4008
      %v4040 = vpack.c.bf16 %v3981, %v3980
      %v4041 = vpack.c.bf16 %v4011, %v4010
      %v4042 = vpack.c.bf16 %v3983, %v3982
      %v4043 = vpack.c.bf16 %v4013, %v4012
      %v4044 = vpack.c.bf16 %v3985, %v3984
      %v4045 = vpack.c.bf16 %v4015, %v4014
      %v4046 = vpack.c.bf16 %v3987, %v3986
      %v4047 = vpack.c.bf16 %v4017, %v4016
      %v4048 = vpack.c.bf16 %v3989, %v3988
      %v4049 = vpack.c.bf16 %v4019, %v4018
      %v4050 = vpack.c.bf16 %v3991, %v3990
      %v4051 = vpack.c.bf16 %v4021, %v4020
      %s4052 = scalar_lea.vmem %s3, 1024
      %v4053 = vld [vmem:[%s4052] sm:$0xf]
      %v4054 = vld [vmem:[%s4052 + $0x4] sm:$0xf]
      %v4055 = vld [vmem:[%s4052 + $0x8] sm:$0xf]
      %v4056 = vld [vmem:[%s4052 + $0xc] sm:$0xf]
      %v4057 = vld [vmem:[%s4052 + $0x10] sm:$0xf]
      %v4058 = vld [vmem:[%s4052 + $0x14] sm:$0xf]
      %v4059 = vld [vmem:[%s4052 + $0x18] sm:$0xf]
      %v4060 = vld [vmem:[%s4052 + $0x1c] sm:$0xf]
      %v4061 = vld [vmem:[%s4052 + $0x20] sm:$0xf]
      %v4062 = vld [vmem:[%s4052 + $0x24] sm:$0xf]
      %v4063 = vld [vmem:[%s4052 + $0x28] sm:$0xf]
      %v4064 = vld [vmem:[%s4052 + $0x2c] sm:$0xf]
      %v4065 = vld [vmem:[%s4052 + $0x30] sm:$0xf]
      %v4066 = vld [vmem:[%s4052 + $0x34] sm:$0xf]
      %v4067 = vld [vmem:[%s4052 + $0x38] sm:$0xf]
      %v4068 = vld [vmem:[%s4052 + $0x3c] sm:$0xf]
      %v4069 = vld [vmem:[%s4052 + $0x40] sm:$0xf]
      %v4070 = vld [vmem:[%s4052 + $0x44] sm:$0xf]
      %v4071 = vld [vmem:[%s4052 + $0x48] sm:$0xf]
      %v4072 = vld [vmem:[%s4052 + $0x4c] sm:$0xf]
      %v4073 = vld [vmem:[%s4052 + $0x50] sm:$0xf]
      %v4074 = vld [vmem:[%s4052 + $0x54] sm:$0xf]
      %v4075 = vld [vmem:[%s4052 + $0x58] sm:$0xf]
      %v4076 = vld [vmem:[%s4052 + $0x5c] sm:$0xf]
      %v4077 = vld [vmem:[%s4052 + $0x60] sm:$0xf]
      %v4078 = vld [vmem:[%s4052 + $0x64] sm:$0xf]
      %v4079 = vld [vmem:[%s4052 + $0x68] sm:$0xf]
      %v4080 = vld [vmem:[%s4052 + $0x6c] sm:$0xf]
      %v4081 = vld [vmem:[%s4052 + $0x70] sm:$0xf]
      %v4082 = vld [vmem:[%s4052 + $0x74] sm:$0xf]
      %v4083 = vld [vmem:[%s4052 + $0x78] sm:$0xf]
      %v4084 = vld [vmem:[%s4052 + $0x7c] sm:$0xf]
      %v4117 = vunpack.c.l.b16 %v4053
      %v4118 = vunpack.c.l.b16 %v4054
      %v4119 = vunpack.c.l.b16 %v4055
      %v4120 = vunpack.c.l.b16 %v4056
      %v4121 = vunpack.c.l.b16 %v4057
      %v4122 = vunpack.c.l.b16 %v4058
      %v4123 = vunpack.c.l.b16 %v4059
      %v4124 = vunpack.c.l.b16 %v4060
      %v4125 = vunpack.c.l.b16 %v4061
      %v4126 = vunpack.c.l.b16 %v4062
      %v4127 = vunpack.c.l.b16 %v4063
      %v4128 = vunpack.c.l.b16 %v4064
      %v4129 = vunpack.c.l.b16 %v4065
      %v4130 = vunpack.c.l.b16 %v4066
      %v4131 = vunpack.c.l.b16 %v4067
      %v4132 = vunpack.c.l.b16 %v4068
      %v4133 = vunpack.c.l.b16 %v4069
      %v4134 = vunpack.c.l.b16 %v4070
      %v4135 = vunpack.c.l.b16 %v4071
      %v4136 = vunpack.c.l.b16 %v4072
      %v4137 = vunpack.c.l.b16 %v4073
      %v4138 = vunpack.c.l.b16 %v4074
      %v4139 = vunpack.c.l.b16 %v4075
      %v4140 = vunpack.c.l.b16 %v4076
      %v4141 = vunpack.c.l.b16 %v4077
      %v4142 = vunpack.c.l.b16 %v4078
      %v4143 = vunpack.c.l.b16 %v4079
      %v4144 = vunpack.c.l.b16 %v4080
      %v4145 = vunpack.c.l.b16 %v4081
      %v4146 = vunpack.c.l.b16 %v4082
      %v4147 = vunpack.c.l.b16 %v4083
      %v4148 = vunpack.c.l.b16 %v4084
      %v4149 = vpack.c.b16 %v4118, %v4117
      %v4150 = vpack.c.b16 %v4120, %v4119
      %v4151 = vpack.c.b16 %v4122, %v4121
      %v4152 = vpack.c.b16 %v4124, %v4123
      %v4153 = vpack.c.b16 %v4126, %v4125
      %v4154 = vpack.c.b16 %v4128, %v4127
      %v4155 = vpack.c.b16 %v4130, %v4129
      %v4156 = vpack.c.b16 %v4132, %v4131
      %v4157 = vpack.c.b16 %v4134, %v4133
      %v4158 = vpack.c.b16 %v4136, %v4135
      %v4159 = vpack.c.b16 %v4138, %v4137
      %v4160 = vpack.c.b16 %v4140, %v4139
      %v4161 = vpack.c.b16 %v4142, %v4141
      %v4162 = vpack.c.b16 %v4144, %v4143
      %v4163 = vpack.c.b16 %v4146, %v4145
      %v4164 = vpack.c.b16 %v4148, %v4147
      %4181 = vmatprep.subr.bf16.mxu0 0
      %4182 = vmatpush1.bf16.msra.mxu0 %v4149
      %4183 = vmatprep.subr.bf16.mxu0 0
      %4184 = vmatpush1.bf16.msra.mxu0 %v4150
      %4185 = vmatprep.subr.bf16.mxu0 0
      %4186 = vmatpush1.bf16.msra.mxu0 %v4151
      %4187 = vmatprep.subr.bf16.mxu0 0
      %4188 = vmatpush1.bf16.msra.mxu0 %v4152
      %4189 = vmatprep.subr.bf16.mxu0 0
      %4190 = vmatpush1.bf16.msra.mxu0 %v4153
      %4191 = vmatprep.subr.bf16.mxu0 0
      %4192 = vmatpush1.bf16.msra.mxu0 %v4154
      %4193 = vmatprep.subr.bf16.mxu0 0
      %4194 = vmatpush1.bf16.msra.mxu0 %v4155
      %4195 = vmatprep.subr.bf16.mxu0 0
      %4196 = vmatpush1.bf16.msra.mxu0 %v4156
      %4197 = vmatprep.subr.bf16.mxu0 0
      %4198 = vmatpush1.bf16.msra.mxu0 %v4157
      %4199 = vmatprep.subr.bf16.mxu0 0
      %4200 = vmatpush1.bf16.msra.mxu0 %v4158
      %4201 = vmatprep.subr.bf16.mxu0 0
      %4202 = vmatpush1.bf16.msra.mxu0 %v4159
      %4203 = vmatprep.subr.bf16.mxu0 0
      %4204 = vmatpush1.bf16.msra.mxu0 %v4160
      %4205 = vmatprep.subr.bf16.mxu0 0
      %4206 = vmatpush1.bf16.msra.mxu0 %v4161
      %4207 = vmatprep.subr.bf16.mxu0 0
      %4208 = vmatpush1.bf16.msra.mxu0 %v4162
      %4209 = vmatprep.subr.bf16.mxu0 0
      %4210 = vmatpush1.bf16.msra.mxu0 %v4163
      %4211 = vmatprep.subr.bf16.mxu0 0
      %4212 = vmatpush1.bf16.msra.mxu0 %v4164
      %4213 = vmatprep.mubr.bf16.mxu0 %v4023
      %4214 = vmatmul.mubr.bf16.gmra.mrb[0].mxu0 %v4022
      %v4215 = vpop.f32.mrb[0].mxu0
      %v4216 = vadd.f32 0.0, %v4215
      %v4217 = vpop.f32.mrb[0].mxu0
      %v4218 = vpop.f32.mrb[0].mxu0
      %v4219 = vadd.f32 0.0, %v4218
      %v4220 = vpop.f32.mrb[0].mxu0
      %4221 = vmatprep.mubr.bf16.mxu0 %v4025
      %4222 = vmatmul.mubr.bf16.gmra.mrb[0].mxu0 %v4024
      %v4223 = vpop.f32.mrb[0].mxu0
      %v4224 = vadd.f32 0.0, %v4223
      %v4225 = vpop.f32.mrb[0].mxu0
      %v4226 = vpop.f32.mrb[0].mxu0
      %v4227 = vadd.f32 0.0, %v4226
      %v4228 = vpop.f32.mrb[0].mxu0
      %4229 = vmatprep.mubr.bf16.mxu0 %v4027
      %4230 = vmatmul.mubr.bf16.gmra.mrb[0].mxu0 %v4026
      %v4231 = vpop.f32.mrb[0].mxu0
      %v4232 = vadd.f32 0.0, %v4231
      %v4233 = vpop.f32.mrb[0].mxu0
      %v4234 = vpop.f32.mrb[0].mxu0
      %v4235 = vadd.f32 0.0, %v4234
      %v4236 = vpop.f32.mrb[0].mxu0
      %4237 = vmatprep.mubr.bf16.mxu0 %v4029
      %4238 = vmatmul.mubr.bf16.gmra.mrb[0].mxu0 %v4028
      %v4239 = vpop.f32.mrb[0].mxu0
      %v4240 = vadd.f32 0.0, %v4239
      %v4241 = vpop.f32.mrb[0].mxu0
      %v4242 = vpop.f32.mrb[0].mxu0
      %v4243 = vadd.f32 0.0, %v4242
      %v4244 = vpop.f32.mrb[0].mxu0
      %4245 = vmatprep.mubr.bf16.mxu0 %v4031
      %4246 = vmatmul.mubr.bf16.gmra.mrb[0].mxu0 %v4030
      %v4247 = vpop.f32.mrb[0].mxu0
      %v4248 = vadd.f32 0.0, %v4247
      %v4249 = vpop.f32.mrb[0].mxu0
      %v4250 = vpop.f32.mrb[0].mxu0
      %v4251 = vadd.f32 0.0, %v4250
      %v4252 = vpop.f32.mrb[0].mxu0
      %4253 = vmatprep.mubr.bf16.mxu0 %v4033
      %4254 = vmatmul.mubr.bf16.gmra.mrb[0].mxu0 %v4032
      %v4255 = vpop.f32.mrb[0].mxu0
      %v4256 = vadd.f32 0.0, %v4255
      %v4257 = vpop.f32.mrb[0].mxu0
      %v4258 = vpop.f32.mrb[0].mxu0
      %v4259 = vadd.f32 0.0, %v4258
      %v4260 = vpop.f32.mrb[0].mxu0
      %4261 = vmatprep.mubr.bf16.mxu0 %v4035
      %4262 = vmatmul.mubr.bf16.gmra.mrb[0].mxu0 %v4034
      %v4263 = vpop.f32.mrb[0].mxu0
      %v4264 = vadd.f32 0.0, %v4263
      %v4265 = vpop.f32.mrb[0].mxu0
      %v4266 = vpop.f32.mrb[0].mxu0
      %v4267 = vadd.f32 0.0, %v4266
      %v4268 = vpop.f32.mrb[0].mxu0
      %4269 = vmatprep.mubr.bf16.mxu0 %v4037
      %4270 = vmatmul.mubr.bf16.gmra.mrb[0].mxu0 %v4036
      %v4271 = vpop.f32.mrb[0].mxu0
      %v4272 = vadd.f32 0.0, %v4271
      %v4273 = vpop.f32.mrb[0].mxu0
      %v4274 = vpop.f32.mrb[0].mxu0
      %v4275 = vadd.f32 0.0, %v4274
      %v4276 = vpop.f32.mrb[0].mxu0
      %4277 = vmatprep.mubr.bf16.mxu0 %v4039
      %4278 = vmatmul.mubr.bf16.gmra.mrb[0].mxu0 %v4038
      %v4279 = vpop.f32.mrb[0].mxu0
      %v4280 = vadd.f32 0.0, %v4279
      %v4281 = vpop.f32.mrb[0].mxu0
      %v4282 = vpop.f32.mrb[0].mxu0
      %v4283 = vadd.f32 0.0, %v4282
      %v4284 = vpop.f32.mrb[0].mxu0
      %4285 = vmatprep.mubr.bf16.mxu0 %v4041
      %4286 = vmatmul.mubr.bf16.gmra.mrb[0].mxu0 %v4040
      %v4287 = vpop.f32.mrb[0].mxu0
      %v4288 = vadd.f32 0.0, %v4287
      %v4289 = vpop.f32.mrb[0].mxu0
      %v4290 = vpop.f32.mrb[0].mxu0
      %v4291 = vadd.f32 0.0, %v4290
      %v4292 = vpop.f32.mrb[0].mxu0
      %4293 = vmatprep.mubr.bf16.mxu0 %v4043
      %4294 = vmatmul.mubr.bf16.gmra.mrb[0].mxu0 %v4042
      %v4295 = vpop.f32.mrb[0].mxu0
      %v4296 = vadd.f32 0.0, %v4295
      %v4297 = vpop.f32.mrb[0].mxu0
      %v4298 = vpop.f32.mrb[0].mxu0
      %v4299 = vadd.f32 0.0, %v4298
      %v4300 = vpop.f32.mrb[0].mxu0
      %4301 = vmatprep.mubr.bf16.mxu0 %v4045
      %4302 = vmatmul.mubr.bf16.gmra.mrb[0].mxu0 %v4044
      %v4303 = vpop.f32.mrb[0].mxu0
      %v4304 = vadd.f32 0.0, %v4303
      %v4305 = vpop.f32.mrb[0].mxu0
      %v4306 = vpop.f32.mrb[0].mxu0
      %v4307 = vadd.f32 0.0, %v4306
      %v4308 = vpop.f32.mrb[0].mxu0
      %4309 = vmatprep.mubr.bf16.mxu0 %v4047
      %4310 = vmatmul.mubr.bf16.gmra.mrb[0].mxu0 %v4046
      %v4311 = vpop.f32.mrb[0].mxu0
      %v4312 = vadd.f32 0.0, %v4311
      %v4313 = vpop.f32.mrb[0].mxu0
      %v4314 = vpop.f32.mrb[0].mxu0
      %v4315 = vadd.f32 0.0, %v4314
      %v4316 = vpop.f32.mrb[0].mxu0
      %4317 = vmatprep.mubr.bf16.mxu0 %v4049
      %4318 = vmatmul.mubr.bf16.gmra.mrb[0].mxu0 %v4048
      %v4319 = vpop.f32.mrb[0].mxu0
      %v4320 = vadd.f32 0.0, %v4319
      %v4321 = vpop.f32.mrb[0].mxu0
      %v4322 = vpop.f32.mrb[0].mxu0
      %v4323 = vadd.f32 0.0, %v4322
      %v4324 = vpop.f32.mrb[0].mxu0
      %4325 = vmatprep.mubr.bf16.mxu0 %v4051
      %4326 = vmatmul.mubr.bf16.gmra.mrb[0].mxu0 %v4050
      %v4327 = vpop.f32.mrb[0].mxu0
      %v4328 = vadd.f32 0.0, %v4327
      %v4329 = vpop.f32.mrb[0].mxu0
      %v4330 = vpop.f32.mrb[0].mxu0
      %v4331 = vadd.f32 0.0, %v4330
      %v4332 = vpop.f32.mrb[0].mxu0
      %4333 = vdwg.mxu0
      %v4334 = vadd.f32 %v3932, %v4216
      %v4335 = vadd.f32 %v3933, %v4219
      %v4336 = vadd.f32 %v3934, %v4224
      %v4337 = vadd.f32 %v3935, %v4227
      %v4338 = vadd.f32 %v3936, %v4232
      %v4339 = vadd.f32 %v3937, %v4235
      %v4340 = vadd.f32 %v3938, %v4240
      %v4341 = vadd.f32 %v3939, %v4243
      %v4342 = vadd.f32 %v3940, %v4248
      %v4343 = vadd.f32 %v3941, %v4251
      %v4344 = vadd.f32 %v3942, %v4256
      %v4345 = vadd.f32 %v3943, %v4259
      %v4346 = vadd.f32 %v3944, %v4264
      %v4347 = vadd.f32 %v3945, %v4267
      %v4348 = vadd.f32 %v3946, %v4272
      %v4349 = vadd.f32 %v3947, %v4275
      %v4350 = vadd.f32 %v3948, %v4280
      %v4351 = vadd.f32 %v3949, %v4283
      %v4352 = vadd.f32 %v3950, %v4288
      %v4353 = vadd.f32 %v3951, %v4291
      %v4354 = vadd.f32 %v3952, %v4296
      %v4355 = vadd.f32 %v3953, %v4299
      %v4356 = vadd.f32 %v3954, %v4304
      %v4357 = vadd.f32 %v3955, %v4307
      %v4358 = vadd.f32 %v3956, %v4312
      %v4359 = vadd.f32 %v3957, %v4315
      %v4360 = vadd.f32 %v3958, %v4320
      %v4361 = vadd.f32 %v3959, %v4323
      %v4362 = vadd.f32 %v3960, %v4328
      %v4363 = vadd.f32 %v3961, %v4331
      %v4364 = vld [vmem:[#allocation2 + $0x12] sm:$0xff]
      %v4365 = vld [vmem:[#allocation2 + $0x1a] sm:$0xff]
      %v4366 = vld [vmem:[#allocation2 + $0x22] sm:$0xff]
      %v4367 = vld [vmem:[#allocation2 + $0x2a] sm:$0xff]
      %v4368 = vld [vmem:[#allocation2 + $0x32] sm:$0xff]
      %v4369 = vld [vmem:[#allocation2 + $0x3a] sm:$0xff]
      %v4370 = vld [vmem:[#allocation2 + $0x42] sm:$0xff]
      %v4371 = vld [vmem:[#allocation2 + $0x4a] sm:$0xff]
      %v4372 = vld [vmem:[#allocation2 + $0x52] sm:$0xff]
      %v4373 = vld [vmem:[#allocation2 + $0x5a] sm:$0xff]
      %v4374 = vld [vmem:[#allocation2 + $0x62] sm:$0xff]
      %v4375 = vld [vmem:[#allocation2 + $0x6a] sm:$0xff]
      %v4376 = vld [vmem:[#allocation2 + $0x72] sm:$0xff]
      %v4377 = vld [vmem:[#allocation2 + $0x7a] sm:$0xff]
      %v4378 = vld [vmem:[#allocation2 + $0x82] sm:$0xff]
      %v4379 = vld [vmem:[#allocation2 + $0x8a] sm:$0xff]
      %v4380 = vld [vmem:[#allocation2 + $0x92] sm:$0xff]
      %v4381 = vld [vmem:[#allocation2 + $0x9a] sm:$0xff]
      %v4382 = vld [vmem:[#allocation2 + $0xa2] sm:$0xff]
      %v4383 = vld [vmem:[#allocation2 + $0xaa] sm:$0xff]
      %v4384 = vld [vmem:[#allocation2 + $0xb2] sm:$0xff]
      %v4385 = vld [vmem:[#allocation2 + $0xba] sm:$0xff]
      %v4386 = vld [vmem:[#allocation2 + $0xc2] sm:$0xff]
      %v4387 = vld [vmem:[#allocation2 + $0xca] sm:$0xff]
      %v4388 = vld [vmem:[#allocation2 + $0xd2] sm:$0xff]
      %v4389 = vld [vmem:[#allocation2 + $0xda] sm:$0xff]
      %v4390 = vld [vmem:[#allocation2 + $0xe2] sm:$0xff]
      %v4391 = vld [vmem:[#allocation2 + $0xea] sm:$0xff]
      %v4392 = vld [vmem:[#allocation2 + $0xf2] sm:$0xff]
      %v4393 = vld [vmem:[#allocation2 + $0xfa] sm:$0xf]
      %v4394 = vld [vmem:[#allocation2 + $0x13] sm:$0xff]
      %v4395 = vld [vmem:[#allocation2 + $0x1b] sm:$0xff]
      %v4396 = vld [vmem:[#allocation2 + $0x23] sm:$0xff]
      %v4397 = vld [vmem:[#allocation2 + $0x2b] sm:$0xff]
      %v4398 = vld [vmem:[#allocation2 + $0x33] sm:$0xff]
      %v4399 = vld [vmem:[#allocation2 + $0x3b] sm:$0xff]
      %v4400 = vld [vmem:[#allocation2 + $0x43] sm:$0xff]
      %v4401 = vld [vmem:[#allocation2 + $0x4b] sm:$0xff]
      %v4402 = vld [vmem:[#allocation2 + $0x53] sm:$0xff]
      %v4403 = vld [vmem:[#allocation2 + $0x5b] sm:$0xff]
      %v4404 = vld [vmem:[#allocation2 + $0x63] sm:$0xff]
      %v4405 = vld [vmem:[#allocation2 + $0x6b] sm:$0xff]
      %v4406 = vld [vmem:[#allocation2 + $0x73] sm:$0xff]
      %v4407 = vld [vmem:[#allocation2 + $0x7b] sm:$0xff]
      %v4408 = vld [vmem:[#allocation2 + $0x83] sm:$0xff]
      %v4409 = vld [vmem:[#allocation2 + $0x8b] sm:$0xff]
      %v4410 = vld [vmem:[#allocation2 + $0x93] sm:$0xff]
      %v4411 = vld [vmem:[#allocation2 + $0x9b] sm:$0xff]
      %v4412 = vld [vmem:[#allocation2 + $0xa3] sm:$0xff]
      %v4413 = vld [vmem:[#allocation2 + $0xab] sm:$0xff]
      %v4414 = vld [vmem:[#allocation2 + $0xb3] sm:$0xff]
      %v4415 = vld [vmem:[#allocation2 + $0xbb] sm:$0xff]
      %v4416 = vld [vmem:[#allocation2 + $0xc3] sm:$0xff]
      %v4417 = vld [vmem:[#allocation2 + $0xcb] sm:$0xff]
      %v4418 = vld [vmem:[#allocation2 + $0xd3] sm:$0xff]
      %v4419 = vld [vmem:[#allocation2 + $0xdb] sm:$0xff]
      %v4420 = vld [vmem:[#allocation2 + $0xe3] sm:$0xff]
      %v4421 = vld [vmem:[#allocation2 + $0xeb] sm:$0xff]
      %v4422 = vld [vmem:[#allocation2 + $0xf3] sm:$0xff]
      %v4423 = vld [vmem:[#allocation2 + $0xfb] sm:$0xf]
      %v4424 = vpack.c.bf16 %v4365, %v4364
      %v4425 = vpack.c.bf16 %v4395, %v4394
      %v4426 = vpack.c.bf16 %v4367, %v4366
      %v4427 = vpack.c.bf16 %v4397, %v4396
      %v4428 = vpack.c.bf16 %v4369, %v4368
      %v4429 = vpack.c.bf16 %v4399, %v4398
      %v4430 = vpack.c.bf16 %v4371, %v4370
      %v4431 = vpack.c.bf16 %v4401, %v4400
      %v4432 = vpack.c.bf16 %v4373, %v4372
      %v4433 = vpack.c.bf16 %v4403, %v4402
      %v4434 = vpack.c.bf16 %v4375, %v4374
      %v4435 = vpack.c.bf16 %v4405, %v4404
      %v4436 = vpack.c.bf16 %v4377, %v4376
      %v4437 = vpack.c.bf16 %v4407, %v4406
      %v4438 = vpack.c.bf16 %v4379, %v4378
      %v4439 = vpack.c.bf16 %v4409, %v4408
      %v4440 = vpack.c.bf16 %v4381, %v4380
      %v4441 = vpack.c.bf16 %v4411, %v4410
      %v4442 = vpack.c.bf16 %v4383, %v4382
      %v4443 = vpack.c.bf16 %v4413, %v4412
      %v4444 = vpack.c.bf16 %v4385, %v4384
      %v4445 = vpack.c.bf16 %v4415, %v4414
      %v4446 = vpack.c.bf16 %v4387, %v4386
      %v4447 = vpack.c.bf16 %v4417, %v4416
      %v4448 = vpack.c.bf16 %v4389, %v4388
      %v4449 = vpack.c.bf16 %v4419, %v4418
      %v4450 = vpack.c.bf16 %v4391, %v4390
      %v4451 = vpack.c.bf16 %v4421, %v4420
      %v4452 = vpack.c.bf16 %v4393, %v4392
      %v4453 = vpack.c.bf16 %v4423, %v4422
      %s4454 = scalar_lea.vmem %s3, 1152
      %v4455 = vld [vmem:[%s4454] sm:$0xf]
      %v4456 = vld [vmem:[%s4454 + $0x4] sm:$0xf]
      %v4457 = vld [vmem:[%s4454 + $0x8] sm:$0xf]
      %v4458 = vld [vmem:[%s4454 + $0xc] sm:$0xf]
      %v4459 = vld [vmem:[%s4454 + $0x10] sm:$0xf]
      %v4460 = vld [vmem:[%s4454 + $0x14] sm:$0xf]
      %v4461 = vld [vmem:[%s4454 + $0x18] sm:$0xf]
      %v4462 = vld [vmem:[%s4454 + $0x1c] sm:$0xf]
      %v4463 = vld [vmem:[%s4454 + $0x20] sm:$0xf]
      %v4464 = vld [vmem:[%s4454 + $0x24] sm:$0xf]
      %v4465 = vld [vmem:[%s4454 + $0x28] sm:$0xf]
      %v4466 = vld [vmem:[%s4454 + $0x2c] sm:$0xf]
      %v4467 = vld [vmem:[%s4454 + $0x30] sm:$0xf]
      %v4468 = vld [vmem:[%s4454 + $0x34] sm:$0xf]
      %v4469 = vld [vmem:[%s4454 + $0x38] sm:$0xf]
      %v4470 = vld [vmem:[%s4454 + $0x3c] sm:$0xf]
      %v4471 = vld [vmem:[%s4454 + $0x40] sm:$0xf]
      %v4472 = vld [vmem:[%s4454 + $0x44] sm:$0xf]
      %v4473 = vld [vmem:[%s4454 + $0x48] sm:$0xf]
      %v4474 = vld [vmem:[%s4454 + $0x4c] sm:$0xf]
      %v4475 = vld [vmem:[%s4454 + $0x50] sm:$0xf]
      %v4476 = vld [vmem:[%s4454 + $0x54] sm:$0xf]
      %v4477 = vld [vmem:[%s4454 + $0x58] sm:$0xf]
      %v4478 = vld [vmem:[%s4454 + $0x5c] sm:$0xf]
      %v4479 = vld [vmem:[%s4454 + $0x60] sm:$0xf]
      %v4480 = vld [vmem:[%s4454 + $0x64] sm:$0xf]
      %v4481 = vld [vmem:[%s4454 + $0x68] sm:$0xf]
      %v4482 = vld [vmem:[%s4454 + $0x6c] sm:$0xf]
      %v4483 = vld [vmem:[%s4454 + $0x70] sm:$0xf]
      %v4484 = vld [vmem:[%s4454 + $0x74] sm:$0xf]
      %v4485 = vld [vmem:[%s4454 + $0x78] sm:$0xf]
      %v4486 = vld [vmem:[%s4454 + $0x7c] sm:$0xf]
      %v4519 = vunpack.c.l.b16 %v4455
      %v4520 = vunpack.c.l.b16 %v4456
      %v4521 = vunpack.c.l.b16 %v4457
      %v4522 = vunpack.c.l.b16 %v4458
      %v4523 = vunpack.c.l.b16 %v4459
      %v4524 = vunpack.c.l.b16 %v4460
      %v4525 = vunpack.c.l.b16 %v4461
      %v4526 = vunpack.c.l.b16 %v4462
      %v4527 = vunpack.c.l.b16 %v4463
      %v4528 = vunpack.c.l.b16 %v4464
      %v4529 = vunpack.c.l.b16 %v4465
      %v4530 = vunpack.c.l.b16 %v4466
      %v4531 = vunpack.c.l.b16 %v4467
      %v4532 = vunpack.c.l.b16 %v4468
      %v4533 = vunpack.c.l.b16 %v4469
      %v4534 = vunpack.c.l.b16 %v4470
      %v4535 = vunpack.c.l.b16 %v4471
      %v4536 = vunpack.c.l.b16 %v4472
      %v4537 = vunpack.c.l.b16 %v4473
      %v4538 = vunpack.c.l.b16 %v4474
      %v4539 = vunpack.c.l.b16 %v4475
      %v4540 = vunpack.c.l.b16 %v4476
      %v4541 = vunpack.c.l.b16 %v4477
      %v4542 = vunpack.c.l.b16 %v4478
      %v4543 = vunpack.c.l.b16 %v4479
      %v4544 = vunpack.c.l.b16 %v4480
      %v4545 = vunpack.c.l.b16 %v4481
      %v4546 = vunpack.c.l.b16 %v4482
      %v4547 = vunpack.c.l.b16 %v4483
      %v4548 = vunpack.c.l.b16 %v4484
      %v4549 = vunpack.c.l.b16 %v4485
      %v4550 = vunpack.c.l.b16 %v4486
      %v4551 = vpack.c.b16 %v4520, %v4519
      %v4552 = vpack.c.b16 %v4522, %v4521
      %v4553 = vpack.c.b16 %v4524, %v4523
      %v4554 = vpack.c.b16 %v4526, %v4525
      %v4555 = vpack.c.b16 %v4528, %v4527
      %v4556 = vpack.c.b16 %v4530, %v4529
      %v4557 = vpack.c.b16 %v4532, %v4531
      %v4558 = vpack.c.b16 %v4534, %v4533
      %v4559 = vpack.c.b16 %v4536, %v4535
      %v4560 = vpack.c.b16 %v4538, %v4537
      %v4561 = vpack.c.b16 %v4540, %v4539
      %v4562 = vpack.c.b16 %v4542, %v4541
      %v4563 = vpack.c.b16 %v4544, %v4543
      %v4564 = vpack.c.b16 %v4546, %v4545
      %v4565 = vpack.c.b16 %v4548, %v4547
      %v4566 = vpack.c.b16 %v4550, %v4549
      %4583 = vmatprep.subr.bf16.mxu0 0
      %4584 = vmatpush1.bf16.msra.mxu0 %v4551
      %4585 = vmatprep.subr.bf16.mxu0 0
      %4586 = vmatpush1.bf16.msra.mxu0 %v4552
      %4587 = vmatprep.subr.bf16.mxu0 0
      %4588 = vmatpush1.bf16.msra.mxu0 %v4553
      %4589 = vmatprep.subr.bf16.mxu0 0
      %4590 = vmatpush1.bf16.msra.mxu0 %v4554
      %4591 = vmatprep.subr.bf16.mxu0 0
      %4592 = vmatpush1.bf16.msra.mxu0 %v4555
      %4593 = vmatprep.subr.bf16.mxu0 0
      %4594 = vmatpush1.bf16.msra.mxu0 %v4556
      %4595 = vmatprep.subr.bf16.mxu0 0
      %4596 = vmatpush1.bf16.msra.mxu0 %v4557
      %4597 = vmatprep.subr.bf16.mxu0 0
      %4598 = vmatpush1.bf16.msra.mxu0 %v4558
      %4599 = vmatprep.subr.bf16.mxu0 0
      %4600 = vmatpush1.bf16.msra.mxu0 %v4559
      %4601 = vmatprep.subr.bf16.mxu0 0
      %4602 = vmatpush1.bf16.msra.mxu0 %v4560
      %4603 = vmatprep.subr.bf16.mxu0 0
      %4604 = vmatpush1.bf16.msra.mxu0 %v4561
      %4605 = vmatprep.subr.bf16.mxu0 0
      %4606 = vmatpush1.bf16.msra.mxu0 %v4562
      %4607 = vmatprep.subr.bf16.mxu0 0
      %4608 = vmatpush1.bf16.msra.mxu0 %v4563
      %4609 = vmatprep.subr.bf16.mxu0 0
      %4610 = vmatpush1.bf16.msra.mxu0 %v4564
      %4611 = vmatprep.subr.bf16.mxu0 0
      %4612 = vmatpush1.bf16.msra.mxu0 %v4565
      %4613 = vmatprep.subr.bf16.mxu0 0
      %4614 = vmatpush1.bf16.msra.mxu0 %v4566
      %4615 = vmatprep.mubr.bf16.mxu0 %v4425
      %4616 = vmatmul.mubr.bf16.gmra.mrb[0].mxu0 %v4424
      %v4617 = vpop.f32.mrb[0].mxu0
      %v4618 = vadd.f32 0.0, %v4617
      %v4619 = vpop.f32.mrb[0].mxu0
      %v4620 = vpop.f32.mrb[0].mxu0
      %v4621 = vadd.f32 0.0, %v4620
      %v4622 = vpop.f32.mrb[0].mxu0
      %4623 = vmatprep.mubr.bf16.mxu0 %v4427
      %4624 = vmatmul.mubr.bf16.gmra.mrb[0].mxu0 %v4426
      %v4625 = vpop.f32.mrb[0].mxu0
      %v4626 = vadd.f32 0.0, %v4625
      %v4627 = vpop.f32.mrb[0].mxu0
      %v4628 = vpop.f32.mrb[0].mxu0
      %v4629 = vadd.f32 0.0, %v4628
      %v4630 = vpop.f32.mrb[0].mxu0
      %4631 = vmatprep.mubr.bf16.mxu0 %v4429
      %4632 = vmatmul.mubr.bf16.gmra.mrb[0].mxu0 %v4428
      %v4633 = vpop.f32.mrb[0].mxu0
      %v4634 = vadd.f32 0.0, %v4633
      %v4635 = vpop.f32.mrb[0].mxu0
      %v4636 = vpop.f32.mrb[0].mxu0
      %v4637 = vadd.f32 0.0, %v4636
      %v4638 = vpop.f32.mrb[0].mxu0
      %4639 = vmatprep.mubr.bf16.mxu0 %v4431
      %4640 = vmatmul.mubr.bf16.gmra.mrb[0].mxu0 %v4430
      %v4641 = vpop.f32.mrb[0].mxu0
      %v4642 = vadd.f32 0.0, %v4641
      %v4643 = vpop.f32.mrb[0].mxu0
      %v4644 = vpop.f32.mrb[0].mxu0
      %v4645 = vadd.f32 0.0, %v4644
      %v4646 = vpop.f32.mrb[0].mxu0
      %4647 = vmatprep.mubr.bf16.mxu0 %v4433
      %4648 = vmatmul.mubr.bf16.gmra.mrb[0].mxu0 %v4432
      %v4649 = vpop.f32.mrb[0].mxu0
      %v4650 = vadd.f32 0.0, %v4649
      %v4651 = vpop.f32.mrb[0].mxu0
      %v4652 = vpop.f32.mrb[0].mxu0
      %v4653 = vadd.f32 0.0, %v4652
      %v4654 = vpop.f32.mrb[0].mxu0
      %4655 = vmatprep.mubr.bf16.mxu0 %v4435
      %4656 = vmatmul.mubr.bf16.gmra.mrb[0].mxu0 %v4434
      %v4657 = vpop.f32.mrb[0].mxu0
      %v4658 = vadd.f32 0.0, %v4657
      %v4659 = vpop.f32.mrb[0].mxu0
      %v4660 = vpop.f32.mrb[0].mxu0
      %v4661 = vadd.f32 0.0, %v4660
      %v4662 = vpop.f32.mrb[0].mxu0
      %4663 = vmatprep.mubr.bf16.mxu0 %v4437
      %4664 = vmatmul.mubr.bf16.gmra.mrb[0].mxu0 %v4436
      %v4665 = vpop.f32.mrb[0].mxu0
      %v4666 = vadd.f32 0.0, %v4665
      %v4667 = vpop.f32.mrb[0].mxu0
      %v4668 = vpop.f32.mrb[0].mxu0
      %v4669 = vadd.f32 0.0, %v4668
      %v4670 = vpop.f32.mrb[0].mxu0
      %4671 = vmatprep.mubr.bf16.mxu0 %v4439
      %4672 = vmatmul.mubr.bf16.gmra.mrb[0].mxu0 %v4438
      %v4673 = vpop.f32.mrb[0].mxu0
      %v4674 = vadd.f32 0.0, %v4673
      %v4675 = vpop.f32.mrb[0].mxu0
      %v4676 = vpop.f32.mrb[0].mxu0
      %v4677 = vadd.f32 0.0, %v4676
      %v4678 = vpop.f32.mrb[0].mxu0
      %4679 = vmatprep.mubr.bf16.mxu0 %v4441
      %4680 = vmatmul.mubr.bf16.gmra.mrb[0].mxu0 %v4440
      %v4681 = vpop.f32.mrb[0].mxu0
      %v4682 = vadd.f32 0.0, %v4681
      %v4683 = vpop.f32.mrb[0].mxu0
      %v4684 = vpop.f32.mrb[0].mxu0
      %v4685 = vadd.f32 0.0, %v4684
      %v4686 = vpop.f32.mrb[0].mxu0
      %4687 = vmatprep.mubr.bf16.mxu0 %v4443
      %4688 = vmatmul.mubr.bf16.gmra.mrb[0].mxu0 %v4442
      %v4689 = vpop.f32.mrb[0].mxu0
      %v4690 = vadd.f32 0.0, %v4689
      %v4691 = vpop.f32.mrb[0].mxu0
      %v4692 = vpop.f32.mrb[0].mxu0
      %v4693 = vadd.f32 0.0, %v4692
      %v4694 = vpop.f32.mrb[0].mxu0
      %4695 = vmatprep.mubr.bf16.mxu0 %v4445
      %4696 = vmatmul.mubr.bf16.gmra.mrb[0].mxu0 %v4444
      %v4697 = vpop.f32.mrb[0].mxu0
      %v4698 = vadd.f32 0.0, %v4697
      %v4699 = vpop.f32.mrb[0].mxu0
      %v4700 = vpop.f32.mrb[0].mxu0
      %v4701 = vadd.f32 0.0, %v4700
      %v4702 = vpop.f32.mrb[0].mxu0
      %4703 = vmatprep.mubr.bf16.mxu0 %v4447
      %4704 = vmatmul.mubr.bf16.gmra.mrb[0].mxu0 %v4446
      %v4705 = vpop.f32.mrb[0].mxu0
      %v4706 = vadd.f32 0.0, %v4705
      %v4707 = vpop.f32.mrb[0].mxu0
      %v4708 = vpop.f32.mrb[0].mxu0
      %v4709 = vadd.f32 0.0, %v4708
      %v4710 = vpop.f32.mrb[0].mxu0
      %4711 = vmatprep.mubr.bf16.mxu0 %v4449
      %4712 = vmatmul.mubr.bf16.gmra.mrb[0].mxu0 %v4448
      %v4713 = vpop.f32.mrb[0].mxu0
      %v4714 = vadd.f32 0.0, %v4713
      %v4715 = vpop.f32.mrb[0].mxu0
      %v4716 = vpop.f32.mrb[0].mxu0
      %v4717 = vadd.f32 0.0, %v4716
      %v4718 = vpop.f32.mrb[0].mxu0
      %4719 = vmatprep.mubr.bf16.mxu0 %v4451
      %4720 = vmatmul.mubr.bf16.gmra.mrb[0].mxu0 %v4450
      %v4721 = vpop.f32.mrb[0].mxu0
      %v4722 = vadd.f32 0.0, %v4721
      %v4723 = vpop.f32.mrb[0].mxu0
      %v4724 = vpop.f32.mrb[0].mxu0
      %v4725 = vadd.f32 0.0, %v4724
      %v4726 = vpop.f32.mrb[0].mxu0
      %4727 = vmatprep.mubr.bf16.mxu0 %v4453
      %4728 = vmatmul.mubr.bf16.gmra.mrb[0].mxu0 %v4452
      %v4729 = vpop.f32.mrb[0].mxu0
      %v4730 = vadd.f32 0.0, %v4729
      %v4731 = vpop.f32.mrb[0].mxu0
      %v4732 = vpop.f32.mrb[0].mxu0
      %v4733 = vadd.f32 0.0, %v4732
      %v4734 = vpop.f32.mrb[0].mxu0
      %4735 = vdwg.mxu0
      %v4736 = vadd.f32 %v4334, %v4618
      %v4737 = vadd.f32 %v4335, %v4621
      %v4738 = vadd.f32 %v4336, %v4626
      %v4739 = vadd.f32 %v4337, %v4629
      %v4740 = vadd.f32 %v4338, %v4634
      %v4741 = vadd.f32 %v4339, %v4637
      %v4742 = vadd.f32 %v4340, %v4642
      %v4743 = vadd.f32 %v4341, %v4645
      %v4744 = vadd.f32 %v4342, %v4650
      %v4745 = vadd.f32 %v4343, %v4653
      %v4746 = vadd.f32 %v4344, %v4658
      %v4747 = vadd.f32 %v4345, %v4661
      %v4748 = vadd.f32 %v4346, %v4666
      %v4749 = vadd.f32 %v4347, %v4669
      %v4750 = vadd.f32 %v4348, %v4674
      %v4751 = vadd.f32 %v4349, %v4677
      %v4752 = vadd.f32 %v4350, %v4682
      %v4753 = vadd.f32 %v4351, %v4685
      %v4754 = vadd.f32 %v4352, %v4690
      %v4755 = vadd.f32 %v4353, %v4693
      %v4756 = vadd.f32 %v4354, %v4698
      %v4757 = vadd.f32 %v4355, %v4701
      %v4758 = vadd.f32 %v4356, %v4706
      %v4759 = vadd.f32 %v4357, %v4709
      %v4760 = vadd.f32 %v4358, %v4714
      %v4761 = vadd.f32 %v4359, %v4717
      %v4762 = vadd.f32 %v4360, %v4722
      %v4763 = vadd.f32 %v4361, %v4725
      %v4764 = vadd.f32 %v4362, %v4730
      %v4765 = vadd.f32 %v4363, %v4733
      %v4766 = vld [vmem:[#allocation2 + $0x14] sm:$0xff]
      %v4767 = vld [vmem:[#allocation2 + $0x1c] sm:$0xff]
      %v4768 = vld [vmem:[#allocation2 + $0x24] sm:$0xff]
      %v4769 = vld [vmem:[#allocation2 + $0x2c] sm:$0xff]
      %v4770 = vld [vmem:[#allocation2 + $0x34] sm:$0xff]
      %v4771 = vld [vmem:[#allocation2 + $0x3c] sm:$0xff]
      %v4772 = vld [vmem:[#allocation2 + $0x44] sm:$0xff]
      %v4773 = vld [vmem:[#allocation2 + $0x4c] sm:$0xff]
      %v4774 = vld [vmem:[#allocation2 + $0x54] sm:$0xff]
      %v4775 = vld [vmem:[#allocation2 + $0x5c] sm:$0xff]
      %v4776 = vld [vmem:[#allocation2 + $0x64] sm:$0xff]
      %v4777 = vld [vmem:[#allocation2 + $0x6c] sm:$0xff]
      %v4778 = vld [vmem:[#allocation2 + $0x74] sm:$0xff]
      %v4779 = vld [vmem:[#allocation2 + $0x7c] sm:$0xff]
      %v4780 = vld [vmem:[#allocation2 + $0x84] sm:$0xff]
      %v4781 = vld [vmem:[#allocation2 + $0x8c] sm:$0xff]
      %v4782 = vld [vmem:[#allocation2 + $0x94] sm:$0xff]
      %v4783 = vld [vmem:[#allocation2 + $0x9c] sm:$0xff]
      %v4784 = vld [vmem:[#allocation2 + $0xa4] sm:$0xff]
      %v4785 = vld [vmem:[#allocation2 + $0xac] sm:$0xff]
      %v4786 = vld [vmem:[#allocation2 + $0xb4] sm:$0xff]
      %v4787 = vld [vmem:[#allocation2 + $0xbc] sm:$0xff]
      %v4788 = vld [vmem:[#allocation2 + $0xc4] sm:$0xff]
      %v4789 = vld [vmem:[#allocation2 + $0xcc] sm:$0xff]
      %v4790 = vld [vmem:[#allocation2 + $0xd4] sm:$0xff]
      %v4791 = vld [vmem:[#allocation2 + $0xdc] sm:$0xff]
      %v4792 = vld [vmem:[#allocation2 + $0xe4] sm:$0xff]
      %v4793 = vld [vmem:[#allocation2 + $0xec] sm:$0xff]
      %v4794 = vld [vmem:[#allocation2 + $0xf4] sm:$0xff]
      %v4795 = vld [vmem:[#allocation2 + $0xfc] sm:$0xf]
      %v4796 = vpack.c.bf16 %v4767, %v4766
      %v4797 = vpack.c.bf16 %v4769, %v4768
      %v4798 = vpack.c.bf16 %v4771, %v4770
      %v4799 = vpack.c.bf16 %v4773, %v4772
      %v4800 = vpack.c.bf16 %v4775, %v4774
      %v4801 = vpack.c.bf16 %v4777, %v4776
      %v4802 = vpack.c.bf16 %v4779, %v4778
      %v4803 = vpack.c.bf16 %v4781, %v4780
      %v4804 = vpack.c.bf16 %v4783, %v4782
      %v4805 = vpack.c.bf16 %v4785, %v4784
      %v4806 = vpack.c.bf16 %v4787, %v4786
      %v4807 = vpack.c.bf16 %v4789, %v4788
      %v4808 = vpack.c.bf16 %v4791, %v4790
      %v4809 = vpack.c.bf16 %v4793, %v4792
      %v4810 = vpack.c.bf16 %v4795, %v4794
      %v4811 = vld [vmem:[%s4] sm:$0xf]
      %v4812 = vld [vmem:[%s4 + $0x4] sm:$0xf]
      %v4813 = vld [vmem:[%s4 + $0x8] sm:$0xf]
      %v4814 = vld [vmem:[%s4 + $0xc] sm:$0xf]
      %v4815 = vld [vmem:[%s4 + $0x10] sm:$0xf]
      %v4816 = vld [vmem:[%s4 + $0x14] sm:$0xf]
      %v4817 = vld [vmem:[%s4 + $0x18] sm:$0xf]
      %v4818 = vld [vmem:[%s4 + $0x1c] sm:$0xf]
      %v4819 = vld [vmem:[%s4 + $0x20] sm:$0xf]
      %v4820 = vld [vmem:[%s4 + $0x24] sm:$0xf]
      %v4821 = vld [vmem:[%s4 + $0x28] sm:$0xf]
      %v4822 = vld [vmem:[%s4 + $0x2c] sm:$0xf]
      %v4823 = vld [vmem:[%s4 + $0x30] sm:$0xf]
      %v4824 = vld [vmem:[%s4 + $0x34] sm:$0xf]
      %v4825 = vld [vmem:[%s4 + $0x38] sm:$0xf]
      %v4826 = vld [vmem:[%s4 + $0x3c] sm:$0xf]
      %v4843 = vunpack.c.l.b16 %v4811
      %v4844 = vunpack.c.l.b16 %v4812
      %v4845 = vunpack.c.l.b16 %v4813
      %v4846 = vunpack.c.l.b16 %v4814
      %v4847 = vunpack.c.l.b16 %v4815
      %v4848 = vunpack.c.l.b16 %v4816
      %v4849 = vunpack.c.l.b16 %v4817
      %v4850 = vunpack.c.l.b16 %v4818
      %v4851 = vunpack.c.l.b16 %v4819
      %v4852 = vunpack.c.l.b16 %v4820
      %v4853 = vunpack.c.l.b16 %v4821
      %v4854 = vunpack.c.l.b16 %v4822
      %v4855 = vunpack.c.l.b16 %v4823
      %v4856 = vunpack.c.l.b16 %v4824
      %v4857 = vunpack.c.l.b16 %v4825
      %v4858 = vunpack.c.l.b16 %v4826
      %v4859 = vpack.c.b16 %v4844, %v4843
      %v4860 = vpack.c.b16 %v4846, %v4845
      %v4861 = vpack.c.b16 %v4848, %v4847
      %v4862 = vpack.c.b16 %v4850, %v4849
      %v4863 = vpack.c.b16 %v4852, %v4851
      %v4864 = vpack.c.b16 %v4854, %v4853
      %v4865 = vpack.c.b16 %v4856, %v4855
      %v4866 = vpack.c.b16 %v4858, %v4857
      %4875 = vmatprep.subr.bf16.mxu0 0
      %4876 = vmatpush1.bf16.msra.mxu0 %v4859
      %4877 = vmatprep.subr.bf16.mxu0 0
      %4878 = vmatpush1.bf16.msra.mxu0 %v4860
      %4879 = vmatprep.subr.bf16.mxu0 0
      %4880 = vmatpush1.bf16.msra.mxu0 %v4861
      %4881 = vmatprep.subr.bf16.mxu0 0
      %4882 = vmatpush1.bf16.msra.mxu0 %v4862
      %4883 = vmatprep.subr.bf16.mxu0 0
      %4884 = vmatpush1.bf16.msra.mxu0 %v4863
      %4885 = vmatprep.subr.bf16.mxu0 0
      %4886 = vmatpush1.bf16.msra.mxu0 %v4864
      %4887 = vmatprep.subr.bf16.mxu0 0
      %4888 = vmatpush1.bf16.msra.mxu0 %v4865
      %4889 = vmatprep.subr.bf16.mxu0 0
      %4890 = vmatpush1.bf16.msra.mxu0 %v4866
      %4891 = vmatprep.subr.bf16.mxu0 0
      %4892 = vmatpush1.bf16.msra.mxu0 0
      %4893 = vmatprep.subr.bf16.mxu0 0
      %4894 = vmatpush1.bf16.msra.mxu0 0
      %4895 = vmatprep.subr.bf16.mxu0 0
      %4896 = vmatpush1.bf16.msra.mxu0 0
      %4897 = vmatprep.subr.bf16.mxu0 0
      %4898 = vmatpush1.bf16.msra.mxu0 0
      %4899 = vmatprep.subr.bf16.mxu0 0
      %4900 = vmatpush1.bf16.msra.mxu0 0
      %4901 = vmatprep.subr.bf16.mxu0 0
      %4902 = vmatpush1.bf16.msra.mxu0 0
      %4903 = vmatprep.subr.bf16.mxu0 0
      %4904 = vmatpush1.bf16.msra.mxu0 0
      %4905 = vmatprep.subr.bf16.mxu0 0
      %4906 = vmatpush1.bf16.msra.mxu0 0
      %4907 = vmatprep.mubr.bf16.mxu0 0
      %4908 = vmatmul.mubr.bf16.gmra.mrb[0].mxu0 %v4796
      %v4909 = vpop.f32.mrb[0].mxu0
      %v4910 = vadd.f32 0.0, %v4909
      %v4911 = vpop.f32.mrb[0].mxu0
      %v4912 = vpop.f32.mrb[0].mxu0
      %v4913 = vadd.f32 0.0, %v4912
      %v4914 = vpop.f32.mrb[0].mxu0
      %4915 = vmatprep.mubr.bf16.mxu0 0
      %4916 = vmatmul.mubr.bf16.gmra.mrb[0].mxu0 %v4797
      %v4917 = vpop.f32.mrb[0].mxu0
      %v4918 = vadd.f32 0.0, %v4917
      %v4919 = vpop.f32.mrb[0].mxu0
      %v4920 = vpop.f32.mrb[0].mxu0
      %v4921 = vadd.f32 0.0, %v4920
      %v4922 = vpop.f32.mrb[0].mxu0
      %4923 = vmatprep.mubr.bf16.mxu0 0
      %4924 = vmatmul.mubr.bf16.gmra.mrb[0].mxu0 %v4798
      %v4925 = vpop.f32.mrb[0].mxu0
      %v4926 = vadd.f32 0.0, %v4925
      %v4927 = vpop.f32.mrb[0].mxu0
      %v4928 = vpop.f32.mrb[0].mxu0
      %v4929 = vadd.f32 0.0, %v4928
      %v4930 = vpop.f32.mrb[0].mxu0
      %4931 = vmatprep.mubr.bf16.mxu0 0
      %4932 = vmatmul.mubr.bf16.gmra.mrb[0].mxu0 %v4799
      %v4933 = vpop.f32.mrb[0].mxu0
      %v4934 = vadd.f32 0.0, %v4933
      %v4935 = vpop.f32.mrb[0].mxu0
      %v4936 = vpop.f32.mrb[0].mxu0
      %v4937 = vadd.f32 0.0, %v4936
      %v4938 = vpop.f32.mrb[0].mxu0
      %4939 = vmatprep.mubr.bf16.mxu0 0
      %4940 = vmatmul.mubr.bf16.gmra.mrb[0].mxu0 %v4800
      %v4941 = vpop.f32.mrb[0].mxu0
      %v4942 = vadd.f32 0.0, %v4941
      %v4943 = vpop.f32.mrb[0].mxu0
      %v4944 = vpop.f32.mrb[0].mxu0
      %v4945 = vadd.f32 0.0, %v4944
      %v4946 = vpop.f32.mrb[0].mxu0
      %4947 = vmatprep.mubr.bf16.mxu0 0
      %4948 = vmatmul.mubr.bf16.gmra.mrb[0].mxu0 %v4801
      %v4949 = vpop.f32.mrb[0].mxu0
      %v4950 = vadd.f32 0.0, %v4949
      %v4951 = vpop.f32.mrb[0].mxu0
      %v4952 = vpop.f32.mrb[0].mxu0
      %v4953 = vadd.f32 0.0, %v4952
      %v4954 = vpop.f32.mrb[0].mxu0
      %4955 = vmatprep.mubr.bf16.mxu0 0
      %4956 = vmatmul.mubr.bf16.gmra.mrb[0].mxu0 %v4802
      %v4957 = vpop.f32.mrb[0].mxu0
      %v4958 = vadd.f32 0.0, %v4957
      %v4959 = vpop.f32.mrb[0].mxu0
      %v4960 = vpop.f32.mrb[0].mxu0
      %v4961 = vadd.f32 0.0, %v4960
      %v4962 = vpop.f32.mrb[0].mxu0
      %4963 = vmatprep.mubr.bf16.mxu0 0
      %4964 = vmatmul.mubr.bf16.gmra.mrb[0].mxu0 %v4803
      %v4965 = vpop.f32.mrb[0].mxu0
      %v4966 = vadd.f32 0.0, %v4965
      %v4967 = vpop.f32.mrb[0].mxu0
      %v4968 = vpop.f32.mrb[0].mxu0
      %v4969 = vadd.f32 0.0, %v4968
      %v4970 = vpop.f32.mrb[0].mxu0
      %4971 = vmatprep.mubr.bf16.mxu0 0
      %4972 = vmatmul.mubr.bf16.gmra.mrb[0].mxu0 %v4804
      %v4973 = vpop.f32.mrb[0].mxu0
      %v4974 = vadd.f32 0.0, %v4973
      %v4975 = vpop.f32.mrb[0].mxu0
      %v4976 = vpop.f32.mrb[0].mxu0
      %v4977 = vadd.f32 0.0, %v4976
      %v4978 = vpop.f32.mrb[0].mxu0
      %4979 = vmatprep.mubr.bf16.mxu0 0
      %4980 = vmatmul.mubr.bf16.gmra.mrb[0].mxu0 %v4805
      %v4981 = vpop.f32.mrb[0].mxu0
      %v4982 = vadd.f32 0.0, %v4981
      %v4983 = vpop.f32.mrb[0].mxu0
      %v4984 = vpop.f32.mrb[0].mxu0
      %v4985 = vadd.f32 0.0, %v4984
      %v4986 = vpop.f32.mrb[0].mxu0
      %4987 = vmatprep.mubr.bf16.mxu0 0
      %4988 = vmatmul.mubr.bf16.gmra.mrb[0].mxu0 %v4806
      %v4989 = vpop.f32.mrb[0].mxu0
      %v4990 = vadd.f32 0.0, %v4989
      %v4991 = vpop.f32.mrb[0].mxu0
      %v4992 = vpop.f32.mrb[0].mxu0
      %v4993 = vadd.f32 0.0, %v4992
      %v4994 = vpop.f32.mrb[0].mxu0
      %4995 = vmatprep.mubr.bf16.mxu0 0
      %4996 = vmatmul.mubr.bf16.gmra.mrb[0].mxu0 %v4807
      %v4997 = vpop.f32.mrb[0].mxu0
      %v4998 = vadd.f32 0.0, %v4997
      %v4999 = vpop.f32.mrb[0].mxu0
      %v5000 = vpop.f32.mrb[0].mxu0
      %v5001 = vadd.f32 0.0, %v5000
      %v5002 = vpop.f32.mrb[0].mxu0
      %5003 = vmatprep.mubr.bf16.mxu0 0
      %5004 = vmatmul.mubr.bf16.gmra.mrb[0].mxu0 %v4808
      %v5005 = vpop.f32.mrb[0].mxu0
      %v5006 = vadd.f32 0.0, %v5005
      %v5007 = vpop.f32.mrb[0].mxu0
      %v5008 = vpop.f32.mrb[0].mxu0
      %v5009 = vadd.f32 0.0, %v5008
      %v5010 = vpop.f32.mrb[0].mxu0
      %5011 = vmatprep.mubr.bf16.mxu0 0
      %5012 = vmatmul.mubr.bf16.gmra.mrb[0].mxu0 %v4809
      %v5013 = vpop.f32.mrb[0].mxu0
      %v5014 = vadd.f32 0.0, %v5013
      %v5015 = vpop.f32.mrb[0].mxu0
      %v5016 = vpop.f32.mrb[0].mxu0
      %v5017 = vadd.f32 0.0, %v5016
      %v5018 = vpop.f32.mrb[0].mxu0
      %5019 = vmatprep.mubr.bf16.mxu0 0
      %5020 = vmatmul.mubr.bf16.gmra.mrb[0].mxu0 %v4810
      %v5021 = vpop.f32.mrb[0].mxu0
      %v5022 = vadd.f32 0.0, %v5021
      %v5023 = vpop.f32.mrb[0].mxu0
      %v5024 = vpop.f32.mrb[0].mxu0
      %v5025 = vadd.f32 0.0, %v5024
      %v5026 = vpop.f32.mrb[0].mxu0
      %5027 = vdwg.mxu0
      %v5028 = vadd.f32 %v4736, %v4910
      %v5029 = vadd.f32 %v4737, %v4913
      %v5030 = vadd.f32 %v4738, %v4918
      %v5031 = vadd.f32 %v4739, %v4921
      %v5032 = vadd.f32 %v4740, %v4926
      %v5033 = vadd.f32 %v4741, %v4929
      %v5034 = vadd.f32 %v4742, %v4934
      %v5035 = vadd.f32 %v4743, %v4937
      %v5036 = vadd.f32 %v4744, %v4942
      %v5037 = vadd.f32 %v4745, %v4945
      %v5038 = vadd.f32 %v4746, %v4950
      %v5039 = vadd.f32 %v4747, %v4953
      %v5040 = vadd.f32 %v4748, %v4958
      %v5041 = vadd.f32 %v4749, %v4961
      %v5042 = vadd.f32 %v4750, %v4966
      %v5043 = vadd.f32 %v4751, %v4969
      %v5044 = vadd.f32 %v4752, %v4974
      %v5045 = vadd.f32 %v4753, %v4977
      %v5046 = vadd.f32 %v4754, %v4982
      %v5047 = vadd.f32 %v4755, %v4985
      %v5048 = vadd.f32 %v4756, %v4990
      %v5049 = vadd.f32 %v4757, %v4993
      %v5050 = vadd.f32 %v4758, %v4998
      %v5051 = vadd.f32 %v4759, %v5001
      %v5052 = vadd.f32 %v4760, %v5006
      %v5053 = vadd.f32 %v4761, %v5009
      %v5054 = vadd.f32 %v4762, %v5014
      %v5055 = vadd.f32 %v4763, %v5017
      %v5056 = vadd.f32 %v4764, %v5022
      %v5057 = vadd.f32 %v4765, %v5025
      %v5058 = vld [vmem:[%s5] sm:$0x1]
      %v5060 = vlaneseq
      %v5061 = vshrl.u32 %v5060, 7
      %v5062 = vsub.s32 0, %v5061
      %v5063 = vrot.slane %v5058, %v5062
      %v5065 = vadd.f32 %v5028, %v5063
      %v5066 = vadd.f32 %v5029, %v5063
      %v5067 = vadd.f32 %v5030, %v5063
      %v5068 = vadd.f32 %v5031, %v5063
      %v5069 = vadd.f32 %v5032, %v5063
      %v5070 = vadd.f32 %v5033, %v5063
      %v5071 = vadd.f32 %v5034, %v5063
      %v5072 = vadd.f32 %v5035, %v5063
      %v5073 = vadd.f32 %v5036, %v5063
      %v5074 = vadd.f32 %v5037, %v5063
      %v5075 = vadd.f32 %v5038, %v5063
      %v5076 = vadd.f32 %v5039, %v5063
      %v5077 = vadd.f32 %v5040, %v5063
      %v5078 = vadd.f32 %v5041, %v5063
      %v5079 = vadd.f32 %v5042, %v5063
      %v5080 = vadd.f32 %v5043, %v5063
      %v5081 = vadd.f32 %v5044, %v5063
      %v5082 = vadd.f32 %v5045, %v5063
      %v5083 = vadd.f32 %v5046, %v5063
      %v5084 = vadd.f32 %v5047, %v5063
      %v5085 = vadd.f32 %v5048, %v5063
      %v5086 = vadd.f32 %v5049, %v5063
      %v5087 = vadd.f32 %v5050, %v5063
      %v5088 = vadd.f32 %v5051, %v5063
      %v5089 = vadd.f32 %v5052, %v5063
      %v5090 = vadd.f32 %v5053, %v5063
      %v5091 = vadd.f32 %v5054, %v5063
      %v5092 = vadd.f32 %v5055, %v5063
      %v5093 = vadd.f32 %v5056, %v5063
      %v5094 = vadd.f32 %v5057, %v5063
      %v5095 = vmax.f32 %v5065, 0.0
      %v5096 = vmax.f32 %v5066, 0.0
      %v5097 = vmax.f32 %v5067, 0.0
      %v5098 = vmax.f32 %v5068, 0.0
      %v5099 = vmax.f32 %v5069, 0.0
      %v5100 = vmax.f32 %v5070, 0.0
      %v5101 = vmax.f32 %v5071, 0.0
      %v5102 = vmax.f32 %v5072, 0.0
      %v5103 = vmax.f32 %v5073, 0.0
      %v5104 = vmax.f32 %v5074, 0.0
      %v5105 = vmax.f32 %v5075, 0.0
      %v5106 = vmax.f32 %v5076, 0.0
      %v5107 = vmax.f32 %v5077, 0.0
      %v5108 = vmax.f32 %v5078, 0.0
      %v5109 = vmax.f32 %v5079, 0.0
      %v5110 = vmax.f32 %v5080, 0.0
      %v5111 = vmax.f32 %v5081, 0.0
      %v5112 = vmax.f32 %v5082, 0.0
      %v5113 = vmax.f32 %v5083, 0.0
      %v5114 = vmax.f32 %v5084, 0.0
      %v5115 = vmax.f32 %v5085, 0.0
      %v5116 = vmax.f32 %v5086, 0.0
      %v5117 = vmax.f32 %v5087, 0.0
      %v5118 = vmax.f32 %v5088, 0.0
      %v5119 = vmax.f32 %v5089, 0.0
      %v5120 = vmax.f32 %v5090, 0.0
      %v5121 = vmax.f32 %v5091, 0.0
      %v5122 = vmax.f32 %v5092, 0.0
      %v5123 = vmax.f32 %v5093, 0.0
      %v5124 = vmax.f32 %v5094, 0.0
      %5125 = vst [vmem:[#allocation3] sm:$0xff] %v5095
      %5126 = vst [vmem:[#allocation3 + $0x8] sm:$0xff] %v5096
      %5127 = vst [vmem:[#allocation3 + $0x10] sm:$0xff] %v5097
      %5128 = vst [vmem:[#allocation3 + $0x18] sm:$0xff] %v5098
      %5129 = vst [vmem:[#allocation3 + $0x20] sm:$0xff] %v5099
      %5130 = vst [vmem:[#allocation3 + $0x28] sm:$0xff] %v5100
      %5131 = vst [vmem:[#allocation3 + $0x30] sm:$0xff] %v5101
      %5132 = vst [vmem:[#allocation3 + $0x38] sm:$0xff] %v5102
      %5133 = vst [vmem:[#allocation3 + $0x40] sm:$0xff] %v5103
      %5134 = vst [vmem:[#allocation3 + $0x48] sm:$0xff] %v5104
      %5135 = vst [vmem:[#allocation3 + $0x50] sm:$0xff] %v5105
      %5136 = vst [vmem:[#allocation3 + $0x58] sm:$0xff] %v5106
      %5137 = vst [vmem:[#allocation3 + $0x60] sm:$0xff] %v5107
      %5138 = vst [vmem:[#allocation3 + $0x68] sm:$0xff] %v5108
      %5139 = vst [vmem:[#allocation3 + $0x70] sm:$0xff] %v5109
      %5140 = vst [vmem:[#allocation3 + $0x78] sm:$0xff] %v5110
      %5141 = vst [vmem:[#allocation3 + $0x80] sm:$0xff] %v5111
      %5142 = vst [vmem:[#allocation3 + $0x88] sm:$0xff] %v5112
      %5143 = vst [vmem:[#allocation3 + $0x90] sm:$0xff] %v5113
      %5144 = vst [vmem:[#allocation3 + $0x98] sm:$0xff] %v5114
      %5145 = vst [vmem:[#allocation3 + $0xa0] sm:$0xff] %v5115
      %5146 = vst [vmem:[#allocation3 + $0xa8] sm:$0xff] %v5116
      %5147 = vst [vmem:[#allocation3 + $0xb0] sm:$0xff] %v5117
      %5148 = vst [vmem:[#allocation3 + $0xb8] sm:$0xff] %v5118
      %5149 = vst [vmem:[#allocation3 + $0xc0] sm:$0xff] %v5119
      %5150 = vst [vmem:[#allocation3 + $0xc8] sm:$0xff] %v5120
      %5151 = vst [vmem:[#allocation3 + $0xd0] sm:$0xff] %v5121
      %5152 = vst [vmem:[#allocation3 + $0xd8] sm:$0xff] %v5122
      %5153 = vst [vmem:[#allocation3 + $0xe0] sm:$0xff] %v5123
      %5154 = vst [vmem:[#allocation3 + $0xe8] sm:$0xf] %v5124
      %v5155 = vld [vmem:[#allocation3 + $0x1] sm:$0xff]
      %v5156 = vld [vmem:[#allocation3 + $0x9] sm:$0xff]
      %v5157 = vld [vmem:[#allocation3 + $0x11] sm:$0xff]
      %v5158 = vld [vmem:[#allocation3 + $0x19] sm:$0xff]
      %v5159 = vld [vmem:[#allocation3 + $0x21] sm:$0xff]
      %v5160 = vld [vmem:[#allocation3 + $0x29] sm:$0xff]
      %v5161 = vld [vmem:[#allocation3 + $0x31] sm:$0xff]
      %v5162 = vld [vmem:[#allocation3 + $0x39] sm:$0xff]
      %v5163 = vld [vmem:[#allocation3 + $0x41] sm:$0xff]
      %v5164 = vld [vmem:[#allocation3 + $0x49] sm:$0xff]
      %v5165 = vld [vmem:[#allocation3 + $0x51] sm:$0xff]
      %v5166 = vld [vmem:[#allocation3 + $0x59] sm:$0xff]
      %v5167 = vld [vmem:[#allocation3 + $0x61] sm:$0xff]
      %v5168 = vld [vmem:[#allocation3 + $0x69] sm:$0xff]
      %v5169 = vld [vmem:[#allocation3 + $0x71] sm:$0xff]
      %v5170 = vld [vmem:[#allocation3 + $0x79] sm:$0xff]
      %v5171 = vld [vmem:[#allocation3 + $0x81] sm:$0xff]
      %v5172 = vld [vmem:[#allocation3 + $0x89] sm:$0xff]
      %v5173 = vld [vmem:[#allocation3 + $0x91] sm:$0xff]
      %v5174 = vld [vmem:[#allocation3 + $0x99] sm:$0xff]
      %v5175 = vld [vmem:[#allocation3 + $0xa1] sm:$0xff]
      %v5176 = vld [vmem:[#allocation3 + $0xa9] sm:$0xff]
      %v5177 = vld [vmem:[#allocation3 + $0xb1] sm:$0xff]
      %v5178 = vld [vmem:[#allocation3 + $0xb9] sm:$0xff]
      %v5179 = vld [vmem:[#allocation3 + $0xc1] sm:$0xff]
      %v5180 = vld [vmem:[#allocation3 + $0xc9] sm:$0xff]
      %v5181 = vld [vmem:[#allocation3 + $0xd1] sm:$0xff]
      %v5182 = vld [vmem:[#allocation3 + $0xd9] sm:$0xff]
      %v5183 = vld [vmem:[#allocation3 + $0xe1] sm:$0xff]
      %v5184 = vld [vmem:[#allocation3 + $0xe9] sm:$0x3]
      %v5185 = vld [vmem:[#allocation3] sm:$0xff]
      %v5186 = vld [vmem:[#allocation3 + $0x8] sm:$0xff]
      %v5187 = vld [vmem:[#allocation3 + $0x10] sm:$0xff]
      %v5188 = vld [vmem:[#allocation3 + $0x18] sm:$0xff]
      %v5189 = vld [vmem:[#allocation3 + $0x20] sm:$0xff]
      %v5190 = vld [vmem:[#allocation3 + $0x28] sm:$0xff]
      %v5191 = vld [vmem:[#allocation3 + $0x30] sm:$0xff]
      %v5192 = vld [vmem:[#allocation3 + $0x38] sm:$0xff]
      %v5193 = vld [vmem:[#allocation3 + $0x40] sm:$0xff]
      %v5194 = vld [vmem:[#allocation3 + $0x48] sm:$0xff]
      %v5195 = vld [vmem:[#allocation3 + $0x50] sm:$0xff]
      %v5196 = vld [vmem:[#allocation3 + $0x58] sm:$0xff]
      %v5197 = vld [vmem:[#allocation3 + $0x60] sm:$0xff]
      %v5198 = vld [vmem:[#allocation3 + $0x68] sm:$0xff]
      %v5199 = vld [vmem:[#allocation3 + $0x70] sm:$0xff]
      %v5200 = vld [vmem:[#allocation3 + $0x78] sm:$0xff]
      %v5201 = vld [vmem:[#allocation3 + $0x80] sm:$0xff]
      %v5202 = vld [vmem:[#allocation3 + $0x88] sm:$0xff]
      %v5203 = vld [vmem:[#allocation3 + $0x90] sm:$0xff]
      %v5204 = vld [vmem:[#allocation3 + $0x98] sm:$0xff]
      %v5205 = vld [vmem:[#allocation3 + $0xa0] sm:$0xff]
      %v5206 = vld [vmem:[#allocation3 + $0xa8] sm:$0xff]
      %v5207 = vld [vmem:[#allocation3 + $0xb0] sm:$0xff]
      %v5208 = vld [vmem:[#allocation3 + $0xb8] sm:$0xff]
      %v5209 = vld [vmem:[#allocation3 + $0xc0] sm:$0xff]
      %v5210 = vld [vmem:[#allocation3 + $0xc8] sm:$0xff]
      %v5211 = vld [vmem:[#allocation3 + $0xd0] sm:$0xff]
      %v5212 = vld [vmem:[#allocation3 + $0xd8] sm:$0xff]
      %v5213 = vld [vmem:[#allocation3 + $0xe0] sm:$0xff]
      %v5214 = vld [vmem:[#allocation3 + $0xe8] sm:$0x3]
      %v5215 = vld [vmem:[#allocation3 + $0x2] sm:$0xff]
      %v5216 = vld [vmem:[#allocation3 + $0xa] sm:$0xff]
      %v5217 = vld [vmem:[#allocation3 + $0x12] sm:$0xff]
      %v5218 = vld [vmem:[#allocation3 + $0x1a] sm:$0xff]
      %v5219 = vld [vmem:[#allocation3 + $0x22] sm:$0xff]
      %v5220 = vld [vmem:[#allocation3 + $0x2a] sm:$0xff]
      %v5221 = vld [vmem:[#allocation3 + $0x32] sm:$0xff]
      %v5222 = vld [vmem:[#allocation3 + $0x3a] sm:$0xff]
      %v5223 = vld [vmem:[#allocation3 + $0x42] sm:$0xff]
      %v5224 = vld [vmem:[#allocation3 + $0x4a] sm:$0xff]
      %v5225 = vld [vmem:[#allocation3 + $0x52] sm:$0xff]
      %v5226 = vld [vmem:[#allocation3 + $0x5a] sm:$0xff]
      %v5227 = vld [vmem:[#allocation3 + $0x62] sm:$0xff]
      %v5228 = vld [vmem:[#allocation3 + $0x6a] sm:$0xff]
      %v5229 = vld [vmem:[#allocation3 + $0x72] sm:$0xff]
      %v5230 = vld [vmem:[#allocation3 + $0x7a] sm:$0xff]
      %v5231 = vld [vmem:[#allocation3 + $0x82] sm:$0xff]
      %v5232 = vld [vmem:[#allocation3 + $0x8a] sm:$0xff]
      %v5233 = vld [vmem:[#allocation3 + $0x92] sm:$0xff]
      %v5234 = vld [vmem:[#allocation3 + $0x9a] sm:$0xff]
      %v5235 = vld [vmem:[#allocation3 + $0xa2] sm:$0xff]
      %v5236 = vld [vmem:[#allocation3 + $0xaa] sm:$0xff]
      %v5237 = vld [vmem:[#allocation3 + $0xb2] sm:$0xff]
      %v5238 = vld [vmem:[#allocation3 + $0xba] sm:$0xff]
      %v5239 = vld [vmem:[#allocation3 + $0xc2] sm:$0xff]
      %v5240 = vld [vmem:[#allocation3 + $0xca] sm:$0xff]
      %v5241 = vld [vmem:[#allocation3 + $0xd2] sm:$0xff]
      %v5242 = vld [vmem:[#allocation3 + $0xda] sm:$0xff]
      %v5243 = vld [vmem:[#allocation3 + $0xe2] sm:$0xff]
      %v5244 = vld [vmem:[#allocation3 + $0xea] sm:$0x3]
      %v5245 = vpack.c.bf16 %v5186, %v5185
      %v5246 = vpack.c.bf16 %v5156, %v5155
      %v5247 = vpack.c.bf16 %v5216, %v5215
      %v5248 = vpack.c.bf16 %v5188, %v5187
      %v5249 = vpack.c.bf16 %v5158, %v5157
      %v5250 = vpack.c.bf16 %v5218, %v5217
      %v5251 = vpack.c.bf16 %v5190, %v5189
      %v5252 = vpack.c.bf16 %v5160, %v5159
      %v5253 = vpack.c.bf16 %v5220, %v5219
      %v5254 = vpack.c.bf16 %v5192, %v5191
      %v5255 = vpack.c.bf16 %v5162, %v5161
      %v5256 = vpack.c.bf16 %v5222, %v5221
      %v5257 = vpack.c.bf16 %v5194, %v5193
      %v5258 = vpack.c.bf16 %v5164, %v5163
      %v5259 = vpack.c.bf16 %v5224, %v5223
      %v5260 = vpack.c.bf16 %v5196, %v5195
      %v5261 = vpack.c.bf16 %v5166, %v5165
      %v5262 = vpack.c.bf16 %v5226, %v5225
      %v5263 = vpack.c.bf16 %v5198, %v5197
      %v5264 = vpack.c.bf16 %v5168, %v5167
      %v5265 = vpack.c.bf16 %v5228, %v5227
      %v5266 = vpack.c.bf16 %v5200, %v5199
      %v5267 = vpack.c.bf16 %v5170, %v5169
      %v5268 = vpack.c.bf16 %v5230, %v5229
      %v5269 = vpack.c.bf16 %v5202, %v5201
      %v5270 = vpack.c.bf16 %v5172, %v5171
      %v5271 = vpack.c.bf16 %v5232, %v5231
      %v5272 = vpack.c.bf16 %v5204, %v5203
      %v5273 = vpack.c.bf16 %v5174, %v5173
      %v5274 = vpack.c.bf16 %v5234, %v5233
      %v5275 = vpack.c.bf16 %v5206, %v5205
      %v5276 = vpack.c.bf16 %v5176, %v5175
      %v5277 = vpack.c.bf16 %v5236, %v5235
      %v5278 = vpack.c.bf16 %v5208, %v5207
      %v5279 = vpack.c.bf16 %v5178, %v5177
      %v5280 = vpack.c.bf16 %v5238, %v5237
      %v5281 = vpack.c.bf16 %v5210, %v5209
      %v5282 = vpack.c.bf16 %v5180, %v5179
      %v5283 = vpack.c.bf16 %v5240, %v5239
      %v5284 = vpack.c.bf16 %v5212, %v5211
      %v5285 = vpack.c.bf16 %v5182, %v5181
      %v5286 = vpack.c.bf16 %v5242, %v5241
      %v5287 = vpack.c.bf16 %v5214, %v5213
      %v5288 = vpack.c.bf16 %v5184, %v5183
      %v5289 = vpack.c.bf16 %v5244, %v5243
      %v5290 = vld [vmem:[%s6] sm:$0xf]
      %v5291 = vld [vmem:[%s6 + $0x4] sm:$0xf]
      %v5292 = vld [vmem:[%s6 + $0x8] sm:$0xf]
      %v5293 = vld [vmem:[%s6 + $0xc] sm:$0xf]
      %v5294 = vld [vmem:[%s6 + $0x10] sm:$0xf]
      %v5295 = vld [vmem:[%s6 + $0x14] sm:$0xf]
      %v5296 = vld [vmem:[%s6 + $0x18] sm:$0xf]
      %v5297 = vld [vmem:[%s6 + $0x1c] sm:$0xf]
      %v5298 = vld [vmem:[%s6 + $0x20] sm:$0xf]
      %v5299 = vld [vmem:[%s6 + $0x24] sm:$0xf]
      %v5300 = vld [vmem:[%s6 + $0x28] sm:$0xf]
      %v5301 = vld [vmem:[%s6 + $0x2c] sm:$0xf]
      %v5302 = vld [vmem:[%s6 + $0x30] sm:$0xf]
      %v5303 = vld [vmem:[%s6 + $0x34] sm:$0xf]
      %v5304 = vld [vmem:[%s6 + $0x38] sm:$0xf]
      %v5305 = vld [vmem:[%s6 + $0x3c] sm:$0xf]
      %v5306 = vld [vmem:[%s6 + $0x40] sm:$0xf]
      %v5307 = vld [vmem:[%s6 + $0x44] sm:$0xf]
      %v5308 = vld [vmem:[%s6 + $0x48] sm:$0xf]
      %v5309 = vld [vmem:[%s6 + $0x4c] sm:$0xf]
      %v5310 = vld [vmem:[%s6 + $0x50] sm:$0xf]
      %v5311 = vld [vmem:[%s6 + $0x54] sm:$0xf]
      %v5312 = vld [vmem:[%s6 + $0x58] sm:$0xf]
      %v5313 = vld [vmem:[%s6 + $0x5c] sm:$0xf]
      %v5314 = vld [vmem:[%s6 + $0x60] sm:$0xf]
      %v5315 = vld [vmem:[%s6 + $0x64] sm:$0xf]
      %v5316 = vld [vmem:[%s6 + $0x68] sm:$0xf]
      %v5317 = vld [vmem:[%s6 + $0x6c] sm:$0xf]
      %v5318 = vld [vmem:[%s6 + $0x70] sm:$0xf]
      %v5319 = vld [vmem:[%s6 + $0x74] sm:$0xf]
      %v5320 = vld [vmem:[%s6 + $0x78] sm:$0xf]
      %v5321 = vld [vmem:[%s6 + $0x7c] sm:$0xf]
      %v5322 = vld [vmem:[%s6 + $0x80] sm:$0xf]
      %v5323 = vld [vmem:[%s6 + $0x84] sm:$0xf]
      %v5324 = vld [vmem:[%s6 + $0x88] sm:$0xf]
      %v5325 = vld [vmem:[%s6 + $0x8c] sm:$0xf]
      %v5326 = vld [vmem:[%s6 + $0x90] sm:$0xf]
      %v5327 = vld [vmem:[%s6 + $0x94] sm:$0xf]
      %v5328 = vld [vmem:[%s6 + $0x98] sm:$0xf]
      %v5329 = vld [vmem:[%s6 + $0x9c] sm:$0xf]
      %v5330 = vld [vmem:[%s6 + $0xa0] sm:$0xf]
      %v5331 = vld [vmem:[%s6 + $0xa4] sm:$0xf]
      %v5332 = vld [vmem:[%s6 + $0xa8] sm:$0xf]
      %v5333 = vld [vmem:[%s6 + $0xac] sm:$0xf]
      %v5334 = vld [vmem:[%s6 + $0xb0] sm:$0xf]
      %v5335 = vld [vmem:[%s6 + $0xb4] sm:$0xf]
      %v5336 = vld [vmem:[%s6 + $0xb8] sm:$0xf]
      %v5337 = vld [vmem:[%s6 + $0xbc] sm:$0xf]
      %v5338 = vld [vmem:[%s7] sm:$0x1]
      %v5340 = vlaneseq
      %v5341 = vshrl.u32 %v5340, 7
      %v5342 = vsub.s32 0, %v5341
      %v5343 = vrot.slane %v5338, %v5342
      %v5393 = vunpack.c.l.b16 %v5290
      %v5394 = vunpack.c.l.b16 %v5291
      %v5395 = vunpack.c.l.b16 %v5292
      %v5396 = vunpack.c.l.b16 %v5293
      %v5397 = vunpack.c.l.b16 %v5294
      %v5398 = vunpack.c.l.b16 %v5295
      %v5399 = vunpack.c.l.b16 %v5296
      %v5400 = vunpack.c.l.b16 %v5297
      %v5401 = vunpack.c.l.b16 %v5298
      %v5402 = vunpack.c.l.b16 %v5299
      %v5403 = vunpack.c.l.b16 %v5300
      %v5404 = vunpack.c.l.b16 %v5301
      %v5405 = vunpack.c.l.b16 %v5302
      %v5406 = vunpack.c.l.b16 %v5303
      %v5407 = vunpack.c.l.b16 %v5304
      %v5408 = vunpack.c.l.b16 %v5305
      %v5409 = vunpack.c.l.b16 %v5306
      %v5410 = vunpack.c.l.b16 %v5307
      %v5411 = vunpack.c.l.b16 %v5308
      %v5412 = vunpack.c.l.b16 %v5309
      %v5413 = vunpack.c.l.b16 %v5310
      %v5414 = vunpack.c.l.b16 %v5311
      %v5415 = vunpack.c.l.b16 %v5312
      %v5416 = vunpack.c.l.b16 %v5313
      %v5417 = vunpack.c.l.b16 %v5314
      %v5418 = vunpack.c.l.b16 %v5315
      %v5419 = vunpack.c.l.b16 %v5316
      %v5420 = vunpack.c.l.b16 %v5317
      %v5421 = vunpack.c.l.b16 %v5318
      %v5422 = vunpack.c.l.b16 %v5319
      %v5423 = vunpack.c.l.b16 %v5320
      %v5424 = vunpack.c.l.b16 %v5321
      %v5425 = vunpack.c.l.b16 %v5322
      %v5426 = vunpack.c.l.b16 %v5323
      %v5427 = vunpack.c.l.b16 %v5324
      %v5428 = vunpack.c.l.b16 %v5325
      %v5429 = vunpack.c.l.b16 %v5326
      %v5430 = vunpack.c.l.b16 %v5327
      %v5431 = vunpack.c.l.b16 %v5328
      %v5432 = vunpack.c.l.b16 %v5329
      %v5433 = vunpack.c.l.b16 %v5330
      %v5434 = vunpack.c.l.b16 %v5331
      %v5435 = vunpack.c.l.b16 %v5332
      %v5436 = vunpack.c.l.b16 %v5333
      %v5437 = vunpack.c.l.b16 %v5334
      %v5438 = vunpack.c.l.b16 %v5335
      %v5439 = vunpack.c.l.b16 %v5336
      %v5440 = vunpack.c.l.b16 %v5337
      %v5441 = vpack.c.b16 %v5394, %v5393
      %v5442 = vpack.c.b16 %v5396, %v5395
      %v5443 = vpack.c.b16 %v5398, %v5397
      %v5444 = vpack.c.b16 %v5400, %v5399
      %v5445 = vpack.c.b16 %v5402, %v5401
      %v5446 = vpack.c.b16 %v5404, %v5403
      %v5447 = vpack.c.b16 %v5406, %v5405
      %v5448 = vpack.c.b16 %v5408, %v5407
      %v5449 = vpack.c.b16 %v5410, %v5409
      %v5450 = vpack.c.b16 %v5412, %v5411
      %v5451 = vpack.c.b16 %v5414, %v5413
      %v5452 = vpack.c.b16 %v5416, %v5415
      %v5453 = vpack.c.b16 %v5418, %v5417
      %v5454 = vpack.c.b16 %v5420, %v5419
      %v5455 = vpack.c.b16 %v5422, %v5421
      %v5456 = vpack.c.b16 %v5424, %v5423
      %v5457 = vpack.c.b16 %v5426, %v5425
      %v5458 = vpack.c.b16 %v5428, %v5427
      %v5459 = vpack.c.b16 %v5430, %v5429
      %v5460 = vpack.c.b16 %v5432, %v5431
      %v5461 = vpack.c.b16 %v5434, %v5433
      %v5462 = vpack.c.b16 %v5436, %v5435
      %v5463 = vpack.c.b16 %v5438, %v5437
      %v5464 = vpack.c.b16 %v5440, %v5439
      %5489 = vmatprep.subr.bf16.mxu0 0
      %5490 = vmatpush1.bf16.msra.mxu0 %v5441
      %5491 = vmatprep.subr.bf16.mxu0 0
      %5492 = vmatpush1.bf16.msra.mxu0 %v5442
      %5493 = vmatprep.subr.bf16.mxu0 0
      %5494 = vmatpush1.bf16.msra.mxu0 %v5443
      %5495 = vmatprep.subr.bf16.mxu0 0
      %5496 = vmatpush1.bf16.msra.mxu0 %v5444
      %5497 = vmatprep.subr.bf16.mxu0 0
      %5498 = vmatpush1.bf16.msra.mxu0 %v5445
      %5499 = vmatprep.subr.bf16.mxu0 0
      %5500 = vmatpush1.bf16.msra.mxu0 %v5446
      %5501 = vmatprep.subr.bf16.mxu0 0
      %5502 = vmatpush1.bf16.msra.mxu0 %v5447
      %5503 = vmatprep.subr.bf16.mxu0 0
      %5504 = vmatpush1.bf16.msra.mxu0 %v5448
      %5505 = vmatprep.subr.bf16.mxu0 0
      %5506 = vmatpush1.bf16.msra.mxu0 %v5449
      %5507 = vmatprep.subr.bf16.mxu0 0
      %5508 = vmatpush1.bf16.msra.mxu0 %v5450
      %5509 = vmatprep.subr.bf16.mxu0 0
      %5510 = vmatpush1.bf16.msra.mxu0 %v5451
      %5511 = vmatprep.subr.bf16.mxu0 0
      %5512 = vmatpush1.bf16.msra.mxu0 %v5452
      %5513 = vmatprep.subr.bf16.mxu0 0
      %5514 = vmatpush1.bf16.msra.mxu0 %v5453
      %5515 = vmatprep.subr.bf16.mxu0 0
      %5516 = vmatpush1.bf16.msra.mxu0 %v5454
      %5517 = vmatprep.subr.bf16.mxu0 0
      %5518 = vmatpush1.bf16.msra.mxu0 %v5455
      %5519 = vmatprep.subr.bf16.mxu0 0
      %5520 = vmatpush1.bf16.msra.mxu0 %v5456
      %5521 = vmatprep.mubr.bf16.mxu0 %v5246
      %5522 = vmatmul.mubr.bf16.gmra.mrb[0].mxu0 %v5245
      %v5523 = vpop.f32.mrb[0].mxu0
      %v5524 = vadd.f32 %v5343, %v5523
      %v5525 = vpop.f32.mrb[0].mxu0
      %v5526 = vpop.f32.mrb[0].mxu0
      %v5527 = vadd.f32 %v5343, %v5526
      %v5528 = vpop.f32.mrb[0].mxu0
      %5529 = vmatprep.mubr.bf16.mxu0 %v5249
      %5530 = vmatmul.mubr.bf16.gmra.mrb[0].mxu0 %v5248
      %v5531 = vpop.f32.mrb[0].mxu0
      %v5532 = vadd.f32 %v5343, %v5531
      %v5533 = vpop.f32.mrb[0].mxu0
      %v5534 = vpop.f32.mrb[0].mxu0
      %v5535 = vadd.f32 %v5343, %v5534
      %v5536 = vpop.f32.mrb[0].mxu0
      %5537 = vmatprep.mubr.bf16.mxu0 %v5252
      %5538 = vmatmul.mubr.bf16.gmra.mrb[0].mxu0 %v5251
      %v5539 = vpop.f32.mrb[0].mxu0
      %v5540 = vadd.f32 %v5343, %v5539
      %v5541 = vpop.f32.mrb[0].mxu0
      %v5542 = vpop.f32.mrb[0].mxu0
      %v5543 = vadd.f32 %v5343, %v5542
      %v5544 = vpop.f32.mrb[0].mxu0
      %5545 = vmatprep.mubr.bf16.mxu0 %v5255
      %5546 = vmatmul.mubr.bf16.gmra.mrb[0].mxu0 %v5254
      %v5547 = vpop.f32.mrb[0].mxu0
      %v5548 = vadd.f32 %v5343, %v5547
      %v5549 = vpop.f32.mrb[0].mxu0
      %v5550 = vpop.f32.mrb[0].mxu0
      %v5551 = vadd.f32 %v5343, %v5550
      %v5552 = vpop.f32.mrb[0].mxu0
      %5553 = vmatprep.mubr.bf16.mxu0 %v5258
      %5554 = vmatmul.mubr.bf16.gmra.mrb[0].mxu0 %v5257
      %v5555 = vpop.f32.mrb[0].mxu0
      %v5556 = vadd.f32 %v5343, %v5555
      %v5557 = vpop.f32.mrb[0].mxu0
      %v5558 = vpop.f32.mrb[0].mxu0
      %v5559 = vadd.f32 %v5343, %v5558
      %v5560 = vpop.f32.mrb[0].mxu0
      %5561 = vmatprep.mubr.bf16.mxu0 %v5261
      %5562 = vmatmul.mubr.bf16.gmra.mrb[0].mxu0 %v5260
      %v5563 = vpop.f32.mrb[0].mxu0
      %v5564 = vadd.f32 %v5343, %v5563
      %v5565 = vpop.f32.mrb[0].mxu0
      %v5566 = vpop.f32.mrb[0].mxu0
      %v5567 = vadd.f32 %v5343, %v5566
      %v5568 = vpop.f32.mrb[0].mxu0
      %5569 = vmatprep.mubr.bf16.mxu0 %v5264
      %5570 = vmatmul.mubr.bf16.gmra.mrb[0].mxu0 %v5263
      %v5571 = vpop.f32.mrb[0].mxu0
      %v5572 = vadd.f32 %v5343, %v5571
      %v5573 = vpop.f32.mrb[0].mxu0
      %v5574 = vpop.f32.mrb[0].mxu0
      %v5575 = vadd.f32 %v5343, %v5574
      %v5576 = vpop.f32.mrb[0].mxu0
      %5577 = vmatprep.mubr.bf16.mxu0 %v5267
      %5578 = vmatmul.mubr.bf16.gmra.mrb[0].mxu0 %v5266
      %v5579 = vpop.f32.mrb[0].mxu0
      %v5580 = vadd.f32 %v5343, %v5579
      %v5581 = vpop.f32.mrb[0].mxu0
      %v5582 = vpop.f32.mrb[0].mxu0
      %v5583 = vadd.f32 %v5343, %v5582
      %v5584 = vpop.f32.mrb[0].mxu0
      %5585 = vmatprep.mubr.bf16.mxu0 %v5270
      %5586 = vmatmul.mubr.bf16.gmra.mrb[0].mxu0 %v5269
      %v5587 = vpop.f32.mrb[0].mxu0
      %v5588 = vadd.f32 %v5343, %v5587
      %v5589 = vpop.f32.mrb[0].mxu0
      %v5590 = vpop.f32.mrb[0].mxu0
      %v5591 = vadd.f32 %v5343, %v5590
      %v5592 = vpop.f32.mrb[0].mxu0
      %5593 = vmatprep.mubr.bf16.mxu0 %v5273
      %5594 = vmatmul.mubr.bf16.gmra.mrb[0].mxu0 %v5272
      %v5595 = vpop.f32.mrb[0].mxu0
      %v5596 = vadd.f32 %v5343, %v5595
      %v5597 = vpop.f32.mrb[0].mxu0
      %v5598 = vpop.f32.mrb[0].mxu0
      %v5599 = vadd.f32 %v5343, %v5598
      %v5600 = vpop.f32.mrb[0].mxu0
      %5601 = vmatprep.mubr.bf16.mxu0 %v5276
      %5602 = vmatmul.mubr.bf16.gmra.mrb[0].mxu0 %v5275
      %v5603 = vpop.f32.mrb[0].mxu0
      %v5604 = vadd.f32 %v5343, %v5603
      %v5605 = vpop.f32.mrb[0].mxu0
      %v5606 = vpop.f32.mrb[0].mxu0
      %v5607 = vadd.f32 %v5343, %v5606
      %v5608 = vpop.f32.mrb[0].mxu0
      %5609 = vmatprep.mubr.bf16.mxu0 %v5279
      %5610 = vmatmul.mubr.bf16.gmra.mrb[0].mxu0 %v5278
      %v5611 = vpop.f32.mrb[0].mxu0
      %v5612 = vadd.f32 %v5343, %v5611
      %v5613 = vpop.f32.mrb[0].mxu0
      %v5614 = vpop.f32.mrb[0].mxu0
      %v5615 = vadd.f32 %v5343, %v5614
      %v5616 = vpop.f32.mrb[0].mxu0
      %5617 = vmatprep.mubr.bf16.mxu0 %v5282
      %5618 = vmatmul.mubr.bf16.gmra.mrb[0].mxu0 %v5281
      %v5619 = vpop.f32.mrb[0].mxu0
      %v5620 = vadd.f32 %v5343, %v5619
      %v5621 = vpop.f32.mrb[0].mxu0
      %v5622 = vpop.f32.mrb[0].mxu0
      %v5623 = vadd.f32 %v5343, %v5622
      %v5624 = vpop.f32.mrb[0].mxu0
      %5625 = vmatprep.mubr.bf16.mxu0 %v5285
      %5626 = vmatmul.mubr.bf16.gmra.mrb[0].mxu0 %v5284
      %v5627 = vpop.f32.mrb[0].mxu0
      %v5628 = vadd.f32 %v5343, %v5627
      %v5629 = vpop.f32.mrb[0].mxu0
      %v5630 = vpop.f32.mrb[0].mxu0
      %v5631 = vadd.f32 %v5343, %v5630
      %v5632 = vpop.f32.mrb[0].mxu0
      %5633 = vmatprep.mubr.bf16.mxu0 %v5288
      %5634 = vmatmul.mubr.bf16.gmra.mrb[0].mxu0 %v5287
      %v5635 = vpop.f32.mrb[0].mxu0
      %v5636 = vadd.f32 %v5343, %v5635
      %v5637 = vpop.f32.mrb[0].mxu0
      %v5638 = vpop.f32.mrb[0].mxu0
      %v5639 = vadd.f32 %v5343, %v5638
      %v5640 = vpop.f32.mrb[0].mxu0
      %5641 = vdwg.mxu0
      %5642 = vmatprep.subr.bf16.mxu0 0
      %5643 = vmatpush1.bf16.msra.mxu0 %v5457
      %5644 = vmatprep.subr.bf16.mxu0 0
      %5645 = vmatpush1.bf16.msra.mxu0 %v5458
      %5646 = vmatprep.subr.bf16.mxu0 0
      %5647 = vmatpush1.bf16.msra.mxu0 %v5459
      %5648 = vmatprep.subr.bf16.mxu0 0
      %5649 = vmatpush1.bf16.msra.mxu0 %v5460
      %5650 = vmatprep.subr.bf16.mxu0 0
      %5651 = vmatpush1.bf16.msra.mxu0 %v5461
      %5652 = vmatprep.subr.bf16.mxu0 0
      %5653 = vmatpush1.bf16.msra.mxu0 %v5462
      %5654 = vmatprep.subr.bf16.mxu0 0
      %5655 = vmatpush1.bf16.msra.mxu0 %v5463
      %5656 = vmatprep.subr.bf16.mxu0 0
      %5657 = vmatpush1.bf16.msra.mxu0 %v5464
      %5658 = vmatprep.subr.bf16.mxu0 0
      %5659 = vmatpush1.bf16.msra.mxu0 0
      %5660 = vmatprep.subr.bf16.mxu0 0
      %5661 = vmatpush1.bf16.msra.mxu0 0
      %5662 = vmatprep.subr.bf16.mxu0 0
      %5663 = vmatpush1.bf16.msra.mxu0 0
      %5664 = vmatprep.subr.bf16.mxu0 0
      %5665 = vmatpush1.bf16.msra.mxu0 0
      %5666 = vmatprep.subr.bf16.mxu0 0
      %5667 = vmatpush1.bf16.msra.mxu0 0
      %5668 = vmatprep.subr.bf16.mxu0 0
      %5669 = vmatpush1.bf16.msra.mxu0 0
      %5670 = vmatprep.subr.bf16.mxu0 0
      %5671 = vmatpush1.bf16.msra.mxu0 0
      %5672 = vmatprep.subr.bf16.mxu0 0
      %5673 = vmatpush1.bf16.msra.mxu0 0
      %5674 = vmatprep.mubr.bf16.mxu0 0
      %5675 = vmatmul.mubr.bf16.gmra.mrb[0].mxu0 %v5247
      %v5676 = vpop.f32.mrb[0].mxu0
      %v5677 = vadd.f32 %v5524, %v5676
      %v5678 = vpop.f32.mrb[0].mxu0
      %v5679 = vpop.f32.mrb[0].mxu0
      %v5680 = vadd.f32 %v5527, %v5679
      %v5681 = vpop.f32.mrb[0].mxu0
      %5682 = vmatprep.mubr.bf16.mxu0 0
      %5683 = vmatmul.mubr.bf16.gmra.mrb[0].mxu0 %v5250
      %v5684 = vpop.f32.mrb[0].mxu0
      %v5685 = vadd.f32 %v5532, %v5684
      %v5686 = vpop.f32.mrb[0].mxu0
      %v5687 = vpop.f32.mrb[0].mxu0
      %v5688 = vadd.f32 %v5535, %v5687
      %v5689 = vpop.f32.mrb[0].mxu0
      %5690 = vmatprep.mubr.bf16.mxu0 0
      %5691 = vmatmul.mubr.bf16.gmra.mrb[0].mxu0 %v5253
      %v5692 = vpop.f32.mrb[0].mxu0
      %v5693 = vadd.f32 %v5540, %v5692
      %v5694 = vpop.f32.mrb[0].mxu0
      %v5695 = vpop.f32.mrb[0].mxu0
      %v5696 = vadd.f32 %v5543, %v5695
      %v5697 = vpop.f32.mrb[0].mxu0
      %5698 = vmatprep.mubr.bf16.mxu0 0
      %5699 = vmatmul.mubr.bf16.gmra.mrb[0].mxu0 %v5256
      %v5700 = vpop.f32.mrb[0].mxu0
      %v5701 = vadd.f32 %v5548, %v5700
      %v5702 = vpop.f32.mrb[0].mxu0
      %v5703 = vpop.f32.mrb[0].mxu0
      %v5704 = vadd.f32 %v5551, %v5703
      %v5705 = vpop.f32.mrb[0].mxu0
      %5706 = vmatprep.mubr.bf16.mxu0 0
      %5707 = vmatmul.mubr.bf16.gmra.mrb[0].mxu0 %v5259
      %v5708 = vpop.f32.mrb[0].mxu0
      %v5709 = vadd.f32 %v5556, %v5708
      %v5710 = vpop.f32.mrb[0].mxu0
      %v5711 = vpop.f32.mrb[0].mxu0
      %v5712 = vadd.f32 %v5559, %v5711
      %v5713 = vpop.f32.mrb[0].mxu0
      %5714 = vmatprep.mubr.bf16.mxu0 0
      %5715 = vmatmul.mubr.bf16.gmra.mrb[0].mxu0 %v5262
      %v5716 = vpop.f32.mrb[0].mxu0
      %v5717 = vadd.f32 %v5564, %v5716
      %v5718 = vpop.f32.mrb[0].mxu0
      %v5719 = vpop.f32.mrb[0].mxu0
      %v5720 = vadd.f32 %v5567, %v5719
      %v5721 = vpop.f32.mrb[0].mxu0
      %5722 = vmatprep.mubr.bf16.mxu0 0
      %5723 = vmatmul.mubr.bf16.gmra.mrb[0].mxu0 %v5265
      %v5724 = vpop.f32.mrb[0].mxu0
      %v5725 = vadd.f32 %v5572, %v5724
      %v5726 = vpop.f32.mrb[0].mxu0
      %v5727 = vpop.f32.mrb[0].mxu0
      %v5728 = vadd.f32 %v5575, %v5727
      %v5729 = vpop.f32.mrb[0].mxu0
      %5730 = vmatprep.mubr.bf16.mxu0 0
      %5731 = vmatmul.mubr.bf16.gmra.mrb[0].mxu0 %v5268
      %v5732 = vpop.f32.mrb[0].mxu0
      %v5733 = vadd.f32 %v5580, %v5732
      %v5734 = vpop.f32.mrb[0].mxu0
      %v5735 = vpop.f32.mrb[0].mxu0
      %v5736 = vadd.f32 %v5583, %v5735
      %v5737 = vpop.f32.mrb[0].mxu0
      %5738 = vmatprep.mubr.bf16.mxu0 0
      %5739 = vmatmul.mubr.bf16.gmra.mrb[0].mxu0 %v5271
      %v5740 = vpop.f32.mrb[0].mxu0
      %v5741 = vadd.f32 %v5588, %v5740
      %v5742 = vpop.f32.mrb[0].mxu0
      %v5743 = vpop.f32.mrb[0].mxu0
      %v5744 = vadd.f32 %v5591, %v5743
      %v5745 = vpop.f32.mrb[0].mxu0
      %5746 = vmatprep.mubr.bf16.mxu0 0
      %5747 = vmatmul.mubr.bf16.gmra.mrb[0].mxu0 %v5274
      %v5748 = vpop.f32.mrb[0].mxu0
      %v5749 = vadd.f32 %v5596, %v5748
      %v5750 = vpop.f32.mrb[0].mxu0
      %v5751 = vpop.f32.mrb[0].mxu0
      %v5752 = vadd.f32 %v5599, %v5751
      %v5753 = vpop.f32.mrb[0].mxu0
      %5754 = vmatprep.mubr.bf16.mxu0 0
      %5755 = vmatmul.mubr.bf16.gmra.mrb[0].mxu0 %v5277
      %v5756 = vpop.f32.mrb[0].mxu0
      %v5757 = vadd.f32 %v5604, %v5756
      %v5758 = vpop.f32.mrb[0].mxu0
      %v5759 = vpop.f32.mrb[0].mxu0
      %v5760 = vadd.f32 %v5607, %v5759
      %v5761 = vpop.f32.mrb[0].mxu0
      %5762 = vmatprep.mubr.bf16.mxu0 0
      %5763 = vmatmul.mubr.bf16.gmra.mrb[0].mxu0 %v5280
      %v5764 = vpop.f32.mrb[0].mxu0
      %v5765 = vadd.f32 %v5612, %v5764
      %v5766 = vpop.f32.mrb[0].mxu0
      %v5767 = vpop.f32.mrb[0].mxu0
      %v5768 = vadd.f32 %v5615, %v5767
      %v5769 = vpop.f32.mrb[0].mxu0
      %5770 = vmatprep.mubr.bf16.mxu0 0
      %5771 = vmatmul.mubr.bf16.gmra.mrb[0].mxu0 %v5283
      %v5772 = vpop.f32.mrb[0].mxu0
      %v5773 = vadd.f32 %v5620, %v5772
      %v5774 = vpop.f32.mrb[0].mxu0
      %v5775 = vpop.f32.mrb[0].mxu0
      %v5776 = vadd.f32 %v5623, %v5775
      %v5777 = vpop.f32.mrb[0].mxu0
      %5778 = vmatprep.mubr.bf16.mxu0 0
      %5779 = vmatmul.mubr.bf16.gmra.mrb[0].mxu0 %v5286
      %v5780 = vpop.f32.mrb[0].mxu0
      %v5781 = vadd.f32 %v5628, %v5780
      %v5782 = vpop.f32.mrb[0].mxu0
      %v5783 = vpop.f32.mrb[0].mxu0
      %v5784 = vadd.f32 %v5631, %v5783
      %v5785 = vpop.f32.mrb[0].mxu0
      %5786 = vmatprep.mubr.bf16.mxu0 0
      %5787 = vmatmul.mubr.bf16.gmra.mrb[0].mxu0 %v5289
      %v5788 = vpop.f32.mrb[0].mxu0
      %v5789 = vadd.f32 %v5636, %v5788
      %v5790 = vpop.f32.mrb[0].mxu0
      %v5791 = vpop.f32.mrb[0].mxu0
      %v5792 = vadd.f32 %v5639, %v5791
      %v5793 = vpop.f32.mrb[0].mxu0
      %5794 = vdwg.mxu0
      %v5795 = vmax.f32 %v5677, 0.0
      %v5796 = vmax.f32 %v5680, 0.0
      %v5797 = vmax.f32 %v5685, 0.0
      %v5798 = vmax.f32 %v5688, 0.0
      %v5799 = vmax.f32 %v5693, 0.0
      %v5800 = vmax.f32 %v5696, 0.0
      %v5801 = vmax.f32 %v5701, 0.0
      %v5802 = vmax.f32 %v5704, 0.0
      %v5803 = vmax.f32 %v5709, 0.0
      %v5804 = vmax.f32 %v5712, 0.0
      %v5805 = vmax.f32 %v5717, 0.0
      %v5806 = vmax.f32 %v5720, 0.0
      %v5807 = vmax.f32 %v5725, 0.0
      %v5808 = vmax.f32 %v5728, 0.0
      %v5809 = vmax.f32 %v5733, 0.0
      %v5810 = vmax.f32 %v5736, 0.0
      %v5811 = vmax.f32 %v5741, 0.0
      %v5812 = vmax.f32 %v5744, 0.0
      %v5813 = vmax.f32 %v5749, 0.0
      %v5814 = vmax.f32 %v5752, 0.0
      %v5815 = vmax.f32 %v5757, 0.0
      %v5816 = vmax.f32 %v5760, 0.0
      %v5817 = vmax.f32 %v5765, 0.0
      %v5818 = vmax.f32 %v5768, 0.0
      %v5819 = vmax.f32 %v5773, 0.0
      %v5820 = vmax.f32 %v5776, 0.0
      %v5821 = vmax.f32 %v5781, 0.0
      %v5822 = vmax.f32 %v5784, 0.0
      %v5823 = vmax.f32 %v5789, 0.0
      %v5824 = vmax.f32 %v5792, 0.0
      %v5825 = vadd.f32 %v5155, %v5795
      %v5826 = vadd.f32 %v5156, %v5796
      %v5827 = vadd.f32 %v5157, %v5797
      %v5828 = vadd.f32 %v5158, %v5798
      %v5829 = vadd.f32 %v5159, %v5799
      %v5830 = vadd.f32 %v5160, %v5800
      %v5831 = vadd.f32 %v5161, %v5801
      %v5832 = vadd.f32 %v5162, %v5802
      %v5833 = vadd.f32 %v5163, %v5803
      %v5834 = vadd.f32 %v5164, %v5804
      %v5835 = vadd.f32 %v5165, %v5805
      %v5836 = vadd.f32 %v5166, %v5806
      %v5837 = vadd.f32 %v5167, %v5807
      %v5838 = vadd.f32 %v5168, %v5808
      %v5839 = vadd.f32 %v5169, %v5809
      %v5840 = vadd.f32 %v5170, %v5810
      %v5841 = vadd.f32 %v5171, %v5811
      %v5842 = vadd.f32 %v5172, %v5812
      %v5843 = vadd.f32 %v5173, %v5813
      %v5844 = vadd.f32 %v5174, %v5814
      %v5845 = vadd.f32 %v5175, %v5815
      %v5846 = vadd.f32 %v5176, %v5816
      %v5847 = vadd.f32 %v5177, %v5817
      %v5848 = vadd.f32 %v5178, %v5818
      %v5849 = vadd.f32 %v5179, %v5819
      %v5850 = vadd.f32 %v5180, %v5820
      %v5851 = vadd.f32 %v5181, %v5821
      %v5852 = vadd.f32 %v5182, %v5822
      %v5853 = vadd.f32 %v5183, %v5823
      %v5854 = vadd.f32 %v5184, %v5824
      %5855 = vst [vmem:[#allocation4] sm:$0xff] %v5825
      %5856 = vst [vmem:[#allocation4 + $0x8] sm:$0xff] %v5826
      %5857 = vst [vmem:[#allocation4 + $0x10] sm:$0xff] %v5827
      %5858 = vst [vmem:[#allocation4 + $0x18] sm:$0xff] %v5828
      %5859 = vst [vmem:[#allocation4 + $0x20] sm:$0xff] %v5829
      %5860 = vst [vmem:[#allocation4 + $0x28] sm:$0xff] %v5830
      %5861 = vst [vmem:[#allocation4 + $0x30] sm:$0xff] %v5831
      %5862 = vst [vmem:[#allocation4 + $0x38] sm:$0xff] %v5832
      %5863 = vst [vmem:[#allocation4 + $0x40] sm:$0xff] %v5833
      %5864 = vst [vmem:[#allocation4 + $0x48] sm:$0xff] %v5834
      %5865 = vst [vmem:[#allocation4 + $0x50] sm:$0xff] %v5835
      %5866 = vst [vmem:[#allocation4 + $0x58] sm:$0xff] %v5836
      %5867 = vst [vmem:[#allocation4 + $0x60] sm:$0xff] %v5837
      %5868 = vst [vmem:[#allocation4 + $0x68] sm:$0xff] %v5838
      %5869 = vst [vmem:[#allocation4 + $0x70] sm:$0xff] %v5839
      %5870 = vst [vmem:[#allocation4 + $0x78] sm:$0xff] %v5840
      %5871 = vst [vmem:[#allocation4 + $0x80] sm:$0xff] %v5841
      %5872 = vst [vmem:[#allocation4 + $0x88] sm:$0xff] %v5842
      %5873 = vst [vmem:[#allocation4 + $0x90] sm:$0xff] %v5843
      %5874 = vst [vmem:[#allocation4 + $0x98] sm:$0xff] %v5844
      %5875 = vst [vmem:[#allocation4 + $0xa0] sm:$0xff] %v5845
      %5876 = vst [vmem:[#allocation4 + $0xa8] sm:$0xff] %v5846
      %5877 = vst [vmem:[#allocation4 + $0xb0] sm:$0xff] %v5847
      %5878 = vst [vmem:[#allocation4 + $0xb8] sm:$0xff] %v5848
      %5879 = vst [vmem:[#allocation4 + $0xc0] sm:$0xff] %v5849
      %5880 = vst [vmem:[#allocation4 + $0xc8] sm:$0xff] %v5850
      %5881 = vst [vmem:[#allocation4 + $0xd0] sm:$0xff] %v5851
      %5882 = vst [vmem:[#allocation4 + $0xd8] sm:$0xff] %v5852
      %5883 = vst [vmem:[#allocation4 + $0xe0] sm:$0xff] %v5853
      %5884 = vst [vmem:[#allocation4 + $0xe8] sm:$0x3] %v5854
      %v5885 = vld [vmem:[#allocation4 + $0x2] sm:$0xff]
      %v5886 = vld [vmem:[#allocation4 + $0xa] sm:$0xff]
      %v5887 = vld [vmem:[#allocation4 + $0x12] sm:$0xff]
      %v5888 = vld [vmem:[#allocation4 + $0x1a] sm:$0xff]
      %v5889 = vld [vmem:[#allocation4 + $0x22] sm:$0xff]
      %v5890 = vld [vmem:[#allocation4 + $0x2a] sm:$0xff]
      %v5891 = vld [vmem:[#allocation4 + $0x32] sm:$0xff]
      %v5892 = vld [vmem:[#allocation4 + $0x3a] sm:$0xff]
      %v5893 = vld [vmem:[#allocation4 + $0x42] sm:$0xff]
      %v5894 = vld [vmem:[#allocation4 + $0x4a] sm:$0xff]
      %v5895 = vld [vmem:[#allocation4 + $0x52] sm:$0xff]
      %v5896 = vld [vmem:[#allocation4 + $0x5a] sm:$0xff]
      %v5897 = vld [vmem:[#allocation4 + $0x62] sm:$0xff]
      %v5898 = vld [vmem:[#allocation4 + $0x6a] sm:$0xff]
      %v5899 = vld [vmem:[#allocation4 + $0x72] sm:$0xff]
      %v5900 = vld [vmem:[#allocation4 + $0x7a] sm:$0xff]
      %v5901 = vld [vmem:[#allocation4 + $0x82] sm:$0xff]
      %v5902 = vld [vmem:[#allocation4 + $0x8a] sm:$0xff]
      %v5903 = vld [vmem:[#allocation4 + $0x92] sm:$0xff]
      %v5904 = vld [vmem:[#allocation4 + $0x9a] sm:$0xff]
      %v5905 = vld [vmem:[#allocation4 + $0xa2] sm:$0xff]
      %v5906 = vld [vmem:[#allocation4 + $0xaa] sm:$0xff]
      %v5907 = vld [vmem:[#allocation4 + $0xb2] sm:$0xff]
      %v5908 = vld [vmem:[#allocation4 + $0xba] sm:$0xff]
      %v5909 = vld [vmem:[#allocation4 + $0xc2] sm:$0xff]
      %v5910 = vld [vmem:[#allocation4 + $0xca] sm:$0xff]
      %v5911 = vld [vmem:[#allocation4 + $0xd2] sm:$0xff]
      %v5912 = vld [vmem:[#allocation4 + $0xda] sm:$0xff]
      %v5913 = vld [vmem:[#allocation4 + $0xe2] sm:$0x3f]
      %v5914 = vld [vmem:[#allocation4] sm:$0xff]
      %v5915 = vld [vmem:[#allocation4 + $0x8] sm:$0xff]
      %v5916 = vld [vmem:[#allocation4 + $0x10] sm:$0xff]
      %v5917 = vld [vmem:[#allocation4 + $0x18] sm:$0xff]
      %v5918 = vld [vmem:[#allocation4 + $0x20] sm:$0xff]
      %v5919 = vld [vmem:[#allocation4 + $0x28] sm:$0xff]
      %v5920 = vld [vmem:[#allocation4 + $0x30] sm:$0xff]
      %v5921 = vld [vmem:[#allocation4 + $0x38] sm:$0xff]
      %v5922 = vld [vmem:[#allocation4 + $0x40] sm:$0xff]
      %v5923 = vld [vmem:[#allocation4 + $0x48] sm:$0xff]
      %v5924 = vld [vmem:[#allocation4 + $0x50] sm:$0xff]
      %v5925 = vld [vmem:[#allocation4 + $0x58] sm:$0xff]
      %v5926 = vld [vmem:[#allocation4 + $0x60] sm:$0xff]
      %v5927 = vld [vmem:[#allocation4 + $0x68] sm:$0xff]
      %v5928 = vld [vmem:[#allocation4 + $0x70] sm:$0xff]
      %v5929 = vld [vmem:[#allocation4 + $0x78] sm:$0xff]
      %v5930 = vld [vmem:[#allocation4 + $0x80] sm:$0xff]
      %v5931 = vld [vmem:[#allocation4 + $0x88] sm:$0xff]
      %v5932 = vld [vmem:[#allocation4 + $0x90] sm:$0xff]
      %v5933 = vld [vmem:[#allocation4 + $0x98] sm:$0xff]
      %v5934 = vld [vmem:[#allocation4 + $0xa0] sm:$0xff]
      %v5935 = vld [vmem:[#allocation4 + $0xa8] sm:$0xff]
      %v5936 = vld [vmem:[#allocation4 + $0xb0] sm:$0xff]
      %v5937 = vld [vmem:[#allocation4 + $0xb8] sm:$0xff]
      %v5938 = vld [vmem:[#allocation4 + $0xc0] sm:$0xff]
      %v5939 = vld [vmem:[#allocation4 + $0xc8] sm:$0xff]
      %v5940 = vld [vmem:[#allocation4 + $0xd0] sm:$0xff]
      %v5941 = vld [vmem:[#allocation4 + $0xd8] sm:$0xff]
      %v5942 = vld [vmem:[#allocation4 + $0xe0] sm:$0x3f]
      %v5943 = vld [vmem:[#allocation4 + $0x4] sm:$0xff]
      %v5944 = vld [vmem:[#allocation4 + $0xc] sm:$0xff]
      %v5945 = vld [vmem:[#allocation4 + $0x14] sm:$0xff]
      %v5946 = vld [vmem:[#allocation4 + $0x1c] sm:$0xff]
      %v5947 = vld [vmem:[#allocation4 + $0x24] sm:$0xff]
      %v5948 = vld [vmem:[#allocation4 + $0x2c] sm:$0xff]
      %v5949 = vld [vmem:[#allocation4 + $0x34] sm:$0xff]
      %v5950 = vld [vmem:[#allocation4 + $0x3c] sm:$0xff]
      %v5951 = vld [vmem:[#allocation4 + $0x44] sm:$0xff]
      %v5952 = vld [vmem:[#allocation4 + $0x4c] sm:$0xff]
      %v5953 = vld [vmem:[#allocation4 + $0x54] sm:$0xff]
      %v5954 = vld [vmem:[#allocation4 + $0x5c] sm:$0xff]
      %v5955 = vld [vmem:[#allocation4 + $0x64] sm:$0xff]
      %v5956 = vld [vmem:[#allocation4 + $0x6c] sm:$0xff]
      %v5957 = vld [vmem:[#allocation4 + $0x74] sm:$0xff]
      %v5958 = vld [vmem:[#allocation4 + $0x7c] sm:$0xff]
      %v5959 = vld [vmem:[#allocation4 + $0x84] sm:$0xff]
      %v5960 = vld [vmem:[#allocation4 + $0x8c] sm:$0xff]
      %v5961 = vld [vmem:[#allocation4 + $0x94] sm:$0xff]
      %v5962 = vld [vmem:[#allocation4 + $0x9c] sm:$0xff]
      %v5963 = vld [vmem:[#allocation4 + $0xa4] sm:$0xff]
      %v5964 = vld [vmem:[#allocation4 + $0xac] sm:$0xff]
      %v5965 = vld [vmem:[#allocation4 + $0xb4] sm:$0xff]
      %v5966 = vld [vmem:[#allocation4 + $0xbc] sm:$0xff]
      %v5967 = vld [vmem:[#allocation4 + $0xc4] sm:$0xff]
      %v5968 = vld [vmem:[#allocation4 + $0xcc] sm:$0xff]
      %v5969 = vld [vmem:[#allocation4 + $0xd4] sm:$0xff]
      %v5970 = vld [vmem:[#allocation4 + $0xdc] sm:$0xff]
      %v5971 = vld [vmem:[#allocation4 + $0xe4] sm:$0x3f]
      %v5972 = vpack.c.bf16 %v5915, %v5914
      %v5973 = vpack.c.bf16 %v5886, %v5885
      %v5974 = vpack.c.bf16 %v5944, %v5943
      %v5975 = vpack.c.bf16 %v5917, %v5916
      %v5976 = vpack.c.bf16 %v5888, %v5887
      %v5977 = vpack.c.bf16 %v5946, %v5945
      %v5978 = vpack.c.bf16 %v5919, %v5918
      %v5979 = vpack.c.bf16 %v5890, %v5889
      %v5980 = vpack.c.bf16 %v5948, %v5947
      %v5981 = vpack.c.bf16 %v5921, %v5920
      %v5982 = vpack.c.bf16 %v5892, %v5891
      %v5983 = vpack.c.bf16 %v5950, %v5949
      %v5984 = vpack.c.bf16 %v5923, %v5922
      %v5985 = vpack.c.bf16 %v5894, %v5893
      %v5986 = vpack.c.bf16 %v5952, %v5951
      %v5987 = vpack.c.bf16 %v5925, %v5924
      %v5988 = vpack.c.bf16 %v5896, %v5895
      %v5989 = vpack.c.bf16 %v5954, %v5953
      %v5990 = vpack.c.bf16 %v5927, %v5926
      %v5991 = vpack.c.bf16 %v5898, %v5897
      %v5992 = vpack.c.bf16 %v5956, %v5955
      %v5993 = vpack.c.bf16 %v5929, %v5928
      %v5994 = vpack.c.bf16 %v5900, %v5899
      %v5995 = vpack.c.bf16 %v5958, %v5957
      %v5996 = vpack.c.bf16 %v5931, %v5930
      %v5997 = vpack.c.bf16 %v5902, %v5901
      %v5998 = vpack.c.bf16 %v5960, %v5959
      %v5999 = vpack.c.bf16 %v5933, %v5932
      %v6000 = vpack.c.bf16 %v5904, %v5903
      %v6001 = vpack.c.bf16 %v5962, %v5961
      %v6002 = vpack.c.bf16 %v5935, %v5934
      %v6003 = vpack.c.bf16 %v5906, %v5905
      %v6004 = vpack.c.bf16 %v5964, %v5963
      %v6005 = vpack.c.bf16 %v5937, %v5936
      %v6006 = vpack.c.bf16 %v5908, %v5907
      %v6007 = vpack.c.bf16 %v5966, %v5965
      %v6008 = vpack.c.bf16 %v5939, %v5938
      %v6009 = vpack.c.bf16 %v5910, %v5909
      %v6010 = vpack.c.bf16 %v5968, %v5967
      %v6011 = vpack.c.bf16 %v5941, %v5940
      %v6012 = vpack.c.bf16 %v5912, %v5911
      %v6013 = vpack.c.bf16 %v5970, %v5969
      %v6014 = vpack.c.bf16 %v5942, %v5942
      %v6015 = vpack.c.bf16 %v5913, %v5913
      %v6016 = vpack.c.bf16 %v5971, %v5971
      %s6017 = scalar_lea.vmem %s6, 192
      %v6018 = vld [vmem:[%s6017] sm:$0xf]
      %v6019 = vld [vmem:[%s6017 + $0x4] sm:$0xf]
      %v6020 = vld [vmem:[%s6017 + $0x8] sm:$0xf]
      %v6021 = vld [vmem:[%s6017 + $0xc] sm:$0xf]
      %v6022 = vld [vmem:[%s6017 + $0x10] sm:$0xf]
      %v6023 = vld [vmem:[%s6017 + $0x14] sm:$0xf]
      %v6024 = vld [vmem:[%s6017 + $0x18] sm:$0xf]
      %v6025 = vld [vmem:[%s6017 + $0x1c] sm:$0xf]
      %v6026 = vld [vmem:[%s6017 + $0x20] sm:$0xf]
      %v6027 = vld [vmem:[%s6017 + $0x24] sm:$0xf]
      %v6028 = vld [vmem:[%s6017 + $0x28] sm:$0xf]
      %v6029 = vld [vmem:[%s6017 + $0x2c] sm:$0xf]
      %v6030 = vld [vmem:[%s6017 + $0x30] sm:$0xf]
      %v6031 = vld [vmem:[%s6017 + $0x34] sm:$0xf]
      %v6032 = vld [vmem:[%s6017 + $0x38] sm:$0xf]
      %v6033 = vld [vmem:[%s6017 + $0x3c] sm:$0xf]
      %v6034 = vld [vmem:[%s6017 + $0x40] sm:$0xf]
      %v6035 = vld [vmem:[%s6017 + $0x44] sm:$0xf]
      %v6036 = vld [vmem:[%s6017 + $0x48] sm:$0xf]
      %v6037 = vld [vmem:[%s6017 + $0x4c] sm:$0xf]
      %v6038 = vld [vmem:[%s6017 + $0x50] sm:$0xf]
      %v6039 = vld [vmem:[%s6017 + $0x54] sm:$0xf]
      %v6040 = vld [vmem:[%s6017 + $0x58] sm:$0xf]
      %v6041 = vld [vmem:[%s6017 + $0x5c] sm:$0xf]
      %v6042 = vld [vmem:[%s6017 + $0x60] sm:$0xf]
      %v6043 = vld [vmem:[%s6017 + $0x64] sm:$0xf]
      %v6044 = vld [vmem:[%s6017 + $0x68] sm:$0xf]
      %v6045 = vld [vmem:[%s6017 + $0x6c] sm:$0xf]
      %v6046 = vld [vmem:[%s6017 + $0x70] sm:$0xf]
      %v6047 = vld [vmem:[%s6017 + $0x74] sm:$0xf]
      %v6048 = vld [vmem:[%s6017 + $0x78] sm:$0xf]
      %v6049 = vld [vmem:[%s6017 + $0x7c] sm:$0xf]
      %v6050 = vld [vmem:[%s6017 + $0x80] sm:$0xf]
      %v6051 = vld [vmem:[%s6017 + $0x84] sm:$0xf]
      %v6052 = vld [vmem:[%s6017 + $0x88] sm:$0xf]
      %v6053 = vld [vmem:[%s6017 + $0x8c] sm:$0xf]
      %v6054 = vld [vmem:[%s6017 + $0x90] sm:$0xf]
      %v6055 = vld [vmem:[%s6017 + $0x94] sm:$0xf]
      %v6056 = vld [vmem:[%s6017 + $0x98] sm:$0xf]
      %v6057 = vld [vmem:[%s6017 + $0x9c] sm:$0xf]
      %v6058 = vld [vmem:[%s6017 + $0xa0] sm:$0xf]
      %v6059 = vld [vmem:[%s6017 + $0xa4] sm:$0xf]
      %v6060 = vld [vmem:[%s6017 + $0xa8] sm:$0xf]
      %v6061 = vld [vmem:[%s6017 + $0xac] sm:$0xf]
      %v6062 = vld [vmem:[%s6017 + $0xb0] sm:$0xf]
      %v6063 = vld [vmem:[%s6017 + $0xb4] sm:$0xf]
      %v6064 = vld [vmem:[%s6017 + $0xb8] sm:$0xf]
      %v6065 = vld [vmem:[%s6017 + $0xbc] sm:$0xf]
      %s6066 = scalar_lea.vmem %s7, 1
      %v6067 = vld [vmem:[%s6066] sm:$0x1]
      %v6069 = vlaneseq
      %v6070 = vshrl.u32 %v6069, 7
      %v6071 = vsub.s32 0, %v6070
      %v6072 = vrot.slane %v6067, %v6071
      %v6122 = vunpack.c.l.b16 %v6018
      %v6123 = vunpack.c.l.b16 %v6019
      %v6124 = vunpack.c.l.b16 %v6020
      %v6125 = vunpack.c.l.b16 %v6021
      %v6126 = vunpack.c.l.b16 %v6022
      %v6127 = vunpack.c.l.b16 %v6023
      %v6128 = vunpack.c.l.b16 %v6024
      %v6129 = vunpack.c.l.b16 %v6025
      %v6130 = vunpack.c.l.b16 %v6026
      %v6131 = vunpack.c.l.b16 %v6027
      %v6132 = vunpack.c.l.b16 %v6028
      %v6133 = vunpack.c.l.b16 %v6029
      %v6134 = vunpack.c.l.b16 %v6030
      %v6135 = vunpack.c.l.b16 %v6031
      %v6136 = vunpack.c.l.b16 %v6032
      %v6137 = vunpack.c.l.b16 %v6033
      %v6138 = vunpack.c.l.b16 %v6034
      %v6139 = vunpack.c.l.b16 %v6035
      %v6140 = vunpack.c.l.b16 %v6036
      %v6141 = vunpack.c.l.b16 %v6037
      %v6142 = vunpack.c.l.b16 %v6038
      %v6143 = vunpack.c.l.b16 %v6039
      %v6144 = vunpack.c.l.b16 %v6040
      %v6145 = vunpack.c.l.b16 %v6041
      %v6146 = vunpack.c.l.b16 %v6042
      %v6147 = vunpack.c.l.b16 %v6043
      %v6148 = vunpack.c.l.b16 %v6044
      %v6149 = vunpack.c.l.b16 %v6045
      %v6150 = vunpack.c.l.b16 %v6046
      %v6151 = vunpack.c.l.b16 %v6047
      %v6152 = vunpack.c.l.b16 %v6048
      %v6153 = vunpack.c.l.b16 %v6049
      %v6154 = vunpack.c.l.b16 %v6050
      %v6155 = vunpack.c.l.b16 %v6051
      %v6156 = vunpack.c.l.b16 %v6052
      %v6157 = vunpack.c.l.b16 %v6053
      %v6158 = vunpack.c.l.b16 %v6054
      %v6159 = vunpack.c.l.b16 %v6055
      %v6160 = vunpack.c.l.b16 %v6056
      %v6161 = vunpack.c.l.b16 %v6057
      %v6162 = vunpack.c.l.b16 %v6058
      %v6163 = vunpack.c.l.b16 %v6059
      %v6164 = vunpack.c.l.b16 %v6060
      %v6165 = vunpack.c.l.b16 %v6061
      %v6166 = vunpack.c.l.b16 %v6062
      %v6167 = vunpack.c.l.b16 %v6063
      %v6168 = vunpack.c.l.b16 %v6064
      %v6169 = vunpack.c.l.b16 %v6065
      %v6170 = vpack.c.b16 %v6123, %v6122
      %v6171 = vpack.c.b16 %v6125, %v6124
      %v6172 = vpack.c.b16 %v6127, %v6126
      %v6173 = vpack.c.b16 %v6129, %v6128
      %v6174 = vpack.c.b16 %v6131, %v6130
      %v6175 = vpack.c.b16 %v6133, %v6132
      %v6176 = vpack.c.b16 %v6135, %v6134
      %v6177 = vpack.c.b16 %v6137, %v6136
      %v6178 = vpack.c.b16 %v6139, %v6138
      %v6179 = vpack.c.b16 %v6141, %v6140
      %v6180 = vpack.c.b16 %v6143, %v6142
      %v6181 = vpack.c.b16 %v6145, %v6144
      %v6182 = vpack.c.b16 %v6147, %v6146
      %v6183 = vpack.c.b16 %v6149, %v6148
      %v6184 = vpack.c.b16 %v6151, %v6150
      %v6185 = vpack.c.b16 %v6153, %v6152
      %v6186 = vpack.c.b16 %v6155, %v6154
      %v6187 = vpack.c.b16 %v6157, %v6156
      %v6188 = vpack.c.b16 %v6159, %v6158
      %v6189 = vpack.c.b16 %v6161, %v6160
      %v6190 = vpack.c.b16 %v6163, %v6162
      %v6191 = vpack.c.b16 %v6165, %v6164
      %v6192 = vpack.c.b16 %v6167, %v6166
      %v6193 = vpack.c.b16 %v6169, %v6168
      %6218 = vmatprep.subr.bf16.mxu0 0
      %6219 = vmatpush1.bf16.msra.mxu0 %v6170
      %6220 = vmatprep.subr.bf16.mxu0 0
      %6221 = vmatpush1.bf16.msra.mxu0 %v6171
      %6222 = vmatprep.subr.bf16.mxu0 0
      %6223 = vmatpush1.bf16.msra.mxu0 %v6172
      %6224 = vmatprep.subr.bf16.mxu0 0
      %6225 = vmatpush1.bf16.msra.mxu0 %v6173
      %6226 = vmatprep.subr.bf16.mxu0 0
      %6227 = vmatpush1.bf16.msra.mxu0 %v6174
      %6228 = vmatprep.subr.bf16.mxu0 0
      %6229 = vmatpush1.bf16.msra.mxu0 %v6175
      %6230 = vmatprep.subr.bf16.mxu0 0
      %6231 = vmatpush1.bf16.msra.mxu0 %v6176
      %6232 = vmatprep.subr.bf16.mxu0 0
      %6233 = vmatpush1.bf16.msra.mxu0 %v6177
      %6234 = vmatprep.subr.bf16.mxu0 0
      %6235 = vmatpush1.bf16.msra.mxu0 %v6178
      %6236 = vmatprep.subr.bf16.mxu0 0
      %6237 = vmatpush1.bf16.msra.mxu0 %v6179
      %6238 = vmatprep.subr.bf16.mxu0 0
      %6239 = vmatpush1.bf16.msra.mxu0 %v6180
      %6240 = vmatprep.subr.bf16.mxu0 0
      %6241 = vmatpush1.bf16.msra.mxu0 %v6181
      %6242 = vmatprep.subr.bf16.mxu0 0
      %6243 = vmatpush1.bf16.msra.mxu0 %v6182
      %6244 = vmatprep.subr.bf16.mxu0 0
      %6245 = vmatpush1.bf16.msra.mxu0 %v6183
      %6246 = vmatprep.subr.bf16.mxu0 0
      %6247 = vmatpush1.bf16.msra.mxu0 %v6184
      %6248 = vmatprep.subr.bf16.mxu0 0
      %6249 = vmatpush1.bf16.msra.mxu0 %v6185
      %6250 = vmatprep.mubr.bf16.mxu0 %v5973
      %6251 = vmatmul.mubr.bf16.gmra.mrb[0].mxu0 %v5972
      %v6252 = vpop.f32.mrb[0].mxu0
      %v6253 = vadd.f32 %v6072, %v6252
      %v6254 = vpop.f32.mrb[0].mxu0
      %v6255 = vpop.f32.mrb[0].mxu0
      %v6256 = vadd.f32 %v6072, %v6255
      %v6257 = vpop.f32.mrb[0].mxu0
      %6258 = vmatprep.mubr.bf16.mxu0 %v5976
      %6259 = vmatmul.mubr.bf16.gmra.mrb[0].mxu0 %v5975
      %v6260 = vpop.f32.mrb[0].mxu0
      %v6261 = vadd.f32 %v6072, %v6260
      %v6262 = vpop.f32.mrb[0].mxu0
      %v6263 = vpop.f32.mrb[0].mxu0
      %v6264 = vadd.f32 %v6072, %v6263
      %v6265 = vpop.f32.mrb[0].mxu0
      %6266 = vmatprep.mubr.bf16.mxu0 %v5979
      %6267 = vmatmul.mubr.bf16.gmra.mrb[0].mxu0 %v5978
      %v6268 = vpop.f32.mrb[0].mxu0
      %v6269 = vadd.f32 %v6072, %v6268
      %v6270 = vpop.f32.mrb[0].mxu0
      %v6271 = vpop.f32.mrb[0].mxu0
      %v6272 = vadd.f32 %v6072, %v6271
      %v6273 = vpop.f32.mrb[0].mxu0
      %6274 = vmatprep.mubr.bf16.mxu0 %v5982
      %6275 = vmatmul.mubr.bf16.gmra.mrb[0].mxu0 %v5981
      %v6276 = vpop.f32.mrb[0].mxu0
      %v6277 = vadd.f32 %v6072, %v6276
      %v6278 = vpop.f32.mrb[0].mxu0
      %v6279 = vpop.f32.mrb[0].mxu0
      %v6280 = vadd.f32 %v6072, %v6279
      %v6281 = vpop.f32.mrb[0].mxu0
      %6282 = vmatprep.mubr.bf16.mxu0 %v5985
      %6283 = vmatmul.mubr.bf16.gmra.mrb[0].mxu0 %v5984
      %v6284 = vpop.f32.mrb[0].mxu0
      %v6285 = vadd.f32 %v6072, %v6284
      %v6286 = vpop.f32.mrb[0].mxu0
      %v6287 = vpop.f32.mrb[0].mxu0
      %v6288 = vadd.f32 %v6072, %v6287
      %v6289 = vpop.f32.mrb[0].mxu0
      %6290 = vmatprep.mubr.bf16.mxu0 %v5988
      %6291 = vmatmul.mubr.bf16.gmra.mrb[0].mxu0 %v5987
      %v6292 = vpop.f32.mrb[0].mxu0
      %v6293 = vadd.f32 %v6072, %v6292
      %v6294 = vpop.f32.mrb[0].mxu0
      %v6295 = vpop.f32.mrb[0].mxu0
      %v6296 = vadd.f32 %v6072, %v6295
      %v6297 = vpop.f32.mrb[0].mxu0
      %6298 = vmatprep.mubr.bf16.mxu0 %v5991
      %6299 = vmatmul.mubr.bf16.gmra.mrb[0].mxu0 %v5990
      %v6300 = vpop.f32.mrb[0].mxu0
      %v6301 = vadd.f32 %v6072, %v6300
      %v6302 = vpop.f32.mrb[0].mxu0
      %v6303 = vpop.f32.mrb[0].mxu0
      %v6304 = vadd.f32 %v6072, %v6303
      %v6305 = vpop.f32.mrb[0].mxu0
      %6306 = vmatprep.mubr.bf16.mxu0 %v5994
      %6307 = vmatmul.mubr.bf16.gmra.mrb[0].mxu0 %v5993
      %v6308 = vpop.f32.mrb[0].mxu0
      %v6309 = vadd.f32 %v6072, %v6308
      %v6310 = vpop.f32.mrb[0].mxu0
      %v6311 = vpop.f32.mrb[0].mxu0
      %v6312 = vadd.f32 %v6072, %v6311
      %v6313 = vpop.f32.mrb[0].mxu0
      %6314 = vmatprep.mubr.bf16.mxu0 %v5997
      %6315 = vmatmul.mubr.bf16.gmra.mrb[0].mxu0 %v5996
      %v6316 = vpop.f32.mrb[0].mxu0
      %v6317 = vadd.f32 %v6072, %v6316
      %v6318 = vpop.f32.mrb[0].mxu0
      %v6319 = vpop.f32.mrb[0].mxu0
      %v6320 = vadd.f32 %v6072, %v6319
      %v6321 = vpop.f32.mrb[0].mxu0
      %6322 = vmatprep.mubr.bf16.mxu0 %v6000
      %6323 = vmatmul.mubr.bf16.gmra.mrb[0].mxu0 %v5999
      %v6324 = vpop.f32.mrb[0].mxu0
      %v6325 = vadd.f32 %v6072, %v6324
      %v6326 = vpop.f32.mrb[0].mxu0
      %v6327 = vpop.f32.mrb[0].mxu0
      %v6328 = vadd.f32 %v6072, %v6327
      %v6329 = vpop.f32.mrb[0].mxu0
      %6330 = vmatprep.mubr.bf16.mxu0 %v6003
      %6331 = vmatmul.mubr.bf16.gmra.mrb[0].mxu0 %v6002
      %v6332 = vpop.f32.mrb[0].mxu0
      %v6333 = vadd.f32 %v6072, %v6332
      %v6334 = vpop.f32.mrb[0].mxu0
      %v6335 = vpop.f32.mrb[0].mxu0
      %v6336 = vadd.f32 %v6072, %v6335
      %v6337 = vpop.f32.mrb[0].mxu0
      %6338 = vmatprep.mubr.bf16.mxu0 %v6006
      %6339 = vmatmul.mubr.bf16.gmra.mrb[0].mxu0 %v6005
      %v6340 = vpop.f32.mrb[0].mxu0
      %v6341 = vadd.f32 %v6072, %v6340
      %v6342 = vpop.f32.mrb[0].mxu0
      %v6343 = vpop.f32.mrb[0].mxu0
      %v6344 = vadd.f32 %v6072, %v6343
      %v6345 = vpop.f32.mrb[0].mxu0
      %6346 = vmatprep.mubr.bf16.mxu0 %v6009
      %6347 = vmatmul.mubr.bf16.gmra.mrb[0].mxu0 %v6008
      %v6348 = vpop.f32.mrb[0].mxu0
      %v6349 = vadd.f32 %v6072, %v6348
      %v6350 = vpop.f32.mrb[0].mxu0
      %v6351 = vpop.f32.mrb[0].mxu0
      %v6352 = vadd.f32 %v6072, %v6351
      %v6353 = vpop.f32.mrb[0].mxu0
      %6354 = vmatprep.mubr.bf16.mxu0 %v6012
      %6355 = vmatmul.mubr.bf16.gmra.mrb[0].mxu0 %v6011
      %v6356 = vpop.f32.mrb[0].mxu0
      %v6357 = vadd.f32 %v6072, %v6356
      %v6358 = vpop.f32.mrb[0].mxu0
      %v6359 = vpop.f32.mrb[0].mxu0
      %v6360 = vadd.f32 %v6072, %v6359
      %v6361 = vpop.f32.mrb[0].mxu0
      %6362 = vmatprep.mubr.bf16.mxu0 %v6015
      %6363 = vmatmul.mubr.bf16.gmra.mrb[0].mxu0 %v6014
      %v6364 = vpop.f32.mrb[0].mxu0
      %v6365 = vadd.f32 %v6072, %v6364
      %v6366 = vpop.f32.mrb[0].mxu0
      %v6367 = vpop.f32.mrb[0].mxu0
      %v6368 = vpop.f32.mrb[0].mxu0
      %6369 = vdwg.mxu0
      %6370 = vmatprep.subr.bf16.mxu0 0
      %6371 = vmatpush1.bf16.msra.mxu0 %v6186
      %6372 = vmatprep.subr.bf16.mxu0 0
      %6373 = vmatpush1.bf16.msra.mxu0 %v6187
      %6374 = vmatprep.subr.bf16.mxu0 0
      %6375 = vmatpush1.bf16.msra.mxu0 %v6188
      %6376 = vmatprep.subr.bf16.mxu0 0
      %6377 = vmatpush1.bf16.msra.mxu0 %v6189
      %6378 = vmatprep.subr.bf16.mxu0 0
      %6379 = vmatpush1.bf16.msra.mxu0 %v6190
      %6380 = vmatprep.subr.bf16.mxu0 0
      %6381 = vmatpush1.bf16.msra.mxu0 %v6191
      %6382 = vmatprep.subr.bf16.mxu0 0
      %6383 = vmatpush1.bf16.msra.mxu0 %v6192
      %6384 = vmatprep.subr.bf16.mxu0 0
      %6385 = vmatpush1.bf16.msra.mxu0 %v6193
      %6386 = vmatprep.subr.bf16.mxu0 0
      %6387 = vmatpush1.bf16.msra.mxu0 0
      %6388 = vmatprep.subr.bf16.mxu0 0
      %6389 = vmatpush1.bf16.msra.mxu0 0
      %6390 = vmatprep.subr.bf16.mxu0 0
      %6391 = vmatpush1.bf16.msra.mxu0 0
      %6392 = vmatprep.subr.bf16.mxu0 0
      %6393 = vmatpush1.bf16.msra.mxu0 0
      %6394 = vmatprep.subr.bf16.mxu0 0
      %6395 = vmatpush1.bf16.msra.mxu0 0
      %6396 = vmatprep.subr.bf16.mxu0 0
      %6397 = vmatpush1.bf16.msra.mxu0 0
      %6398 = vmatprep.subr.bf16.mxu0 0
      %6399 = vmatpush1.bf16.msra.mxu0 0
      %6400 = vmatprep.subr.bf16.mxu0 0
      %6401 = vmatpush1.bf16.msra.mxu0 0
      %6402 = vmatprep.mubr.bf16.mxu0 0
      %6403 = vmatmul.mubr.bf16.gmra.mrb[0].mxu0 %v5974
      %v6404 = vpop.f32.mrb[0].mxu0
      %v6405 = vadd.f32 %v6253, %v6404
      %v6406 = vpop.f32.mrb[0].mxu0
      %v6407 = vpop.f32.mrb[0].mxu0
      %v6408 = vadd.f32 %v6256, %v6407
      %v6409 = vpop.f32.mrb[0].mxu0
      %6410 = vmatprep.mubr.bf16.mxu0 0
      %6411 = vmatmul.mubr.bf16.gmra.mrb[0].mxu0 %v5977
      %v6412 = vpop.f32.mrb[0].mxu0
      %v6413 = vadd.f32 %v6261, %v6412
      %v6414 = vpop.f32.mrb[0].mxu0
      %v6415 = vpop.f32.mrb[0].mxu0
      %v6416 = vadd.f32 %v6264, %v6415
      %v6417 = vpop.f32.mrb[0].mxu0
      %6418 = vmatprep.mubr.bf16.mxu0 0
      %6419 = vmatmul.mubr.bf16.gmra.mrb[0].mxu0 %v5980
      %v6420 = vpop.f32.mrb[0].mxu0
      %v6421 = vadd.f32 %v6269, %v6420
      %v6422 = vpop.f32.mrb[0].mxu0
      %v6423 = vpop.f32.mrb[0].mxu0
      %v6424 = vadd.f32 %v6272, %v6423
      %v6425 = vpop.f32.mrb[0].mxu0
      %6426 = vmatprep.mubr.bf16.mxu0 0
      %6427 = vmatmul.mubr.bf16.gmra.mrb[0].mxu0 %v5983
      %v6428 = vpop.f32.mrb[0].mxu0
      %v6429 = vadd.f32 %v6277, %v6428
      %v6430 = vpop.f32.mrb[0].mxu0
      %v6431 = vpop.f32.mrb[0].mxu0
      %v6432 = vadd.f32 %v6280, %v6431
      %v6433 = vpop.f32.mrb[0].mxu0
      %6434 = vmatprep.mubr.bf16.mxu0 0
      %6435 = vmatmul.mubr.bf16.gmra.mrb[0].mxu0 %v5986
      %v6436 = vpop.f32.mrb[0].mxu0
      %v6437 = vadd.f32 %v6285, %v6436
      %v6438 = vpop.f32.mrb[0].mxu0
      %v6439 = vpop.f32.mrb[0].mxu0
      %v6440 = vadd.f32 %v6288, %v6439
      %v6441 = vpop.f32.mrb[0].mxu0
      %6442 = vmatprep.mubr.bf16.mxu0 0
      %6443 = vmatmul.mubr.bf16.gmra.mrb[0].mxu0 %v5989
      %v6444 = vpop.f32.mrb[0].mxu0
      %v6445 = vadd.f32 %v6293, %v6444
      %v6446 = vpop.f32.mrb[0].mxu0
      %v6447 = vpop.f32.mrb[0].mxu0
      %v6448 = vadd.f32 %v6296, %v6447
      %v6449 = vpop.f32.mrb[0].mxu0
      %6450 = vmatprep.mubr.bf16.mxu0 0
      %6451 = vmatmul.mubr.bf16.gmra.mrb[0].mxu0 %v5992
      %v6452 = vpop.f32.mrb[0].mxu0
      %v6453 = vadd.f32 %v6301, %v6452
      %v6454 = vpop.f32.mrb[0].mxu0
      %v6455 = vpop.f32.mrb[0].mxu0
      %v6456 = vadd.f32 %v6304, %v6455
      %v6457 = vpop.f32.mrb[0].mxu0
      %6458 = vmatprep.mubr.bf16.mxu0 0
      %6459 = vmatmul.mubr.bf16.gmra.mrb[0].mxu0 %v5995
      %v6460 = vpop.f32.mrb[0].mxu0
      %v6461 = vadd.f32 %v6309, %v6460
      %v6462 = vpop.f32.mrb[0].mxu0
      %v6463 = vpop.f32.mrb[0].mxu0
      %v6464 = vadd.f32 %v6312, %v6463
      %v6465 = vpop.f32.mrb[0].mxu0
      %6466 = vmatprep.mubr.bf16.mxu0 0
      %6467 = vmatmul.mubr.bf16.gmra.mrb[0].mxu0 %v5998
      %v6468 = vpop.f32.mrb[0].mxu0
      %v6469 = vadd.f32 %v6317, %v6468
      %v6470 = vpop.f32.mrb[0].mxu0
      %v6471 = vpop.f32.mrb[0].mxu0
      %v6472 = vadd.f32 %v6320, %v6471
      %v6473 = vpop.f32.mrb[0].mxu0
      %6474 = vmatprep.mubr.bf16.mxu0 0
      %6475 = vmatmul.mubr.bf16.gmra.mrb[0].mxu0 %v6001
      %v6476 = vpop.f32.mrb[0].mxu0
      %v6477 = vadd.f32 %v6325, %v6476
      %v6478 = vpop.f32.mrb[0].mxu0
      %v6479 = vpop.f32.mrb[0].mxu0
      %v6480 = vadd.f32 %v6328, %v6479
      %v6481 = vpop.f32.mrb[0].mxu0
      %6482 = vmatprep.mubr.bf16.mxu0 0
      %6483 = vmatmul.mubr.bf16.gmra.mrb[0].mxu0 %v6004
      %v6484 = vpop.f32.mrb[0].mxu0
      %v6485 = vadd.f32 %v6333, %v6484
      %v6486 = vpop.f32.mrb[0].mxu0
      %v6487 = vpop.f32.mrb[0].mxu0
      %v6488 = vadd.f32 %v6336, %v6487
      %v6489 = vpop.f32.mrb[0].mxu0
      %6490 = vmatprep.mubr.bf16.mxu0 0
      %6491 = vmatmul.mubr.bf16.gmra.mrb[0].mxu0 %v6007
      %v6492 = vpop.f32.mrb[0].mxu0
      %v6493 = vadd.f32 %v6341, %v6492
      %v6494 = vpop.f32.mrb[0].mxu0
      %v6495 = vpop.f32.mrb[0].mxu0
      %v6496 = vadd.f32 %v6344, %v6495
      %v6497 = vpop.f32.mrb[0].mxu0
      %6498 = vmatprep.mubr.bf16.mxu0 0
      %6499 = vmatmul.mubr.bf16.gmra.mrb[0].mxu0 %v6010
      %v6500 = vpop.f32.mrb[0].mxu0
      %v6501 = vadd.f32 %v6349, %v6500
      %v6502 = vpop.f32.mrb[0].mxu0
      %v6503 = vpop.f32.mrb[0].mxu0
      %v6504 = vadd.f32 %v6352, %v6503
      %v6505 = vpop.f32.mrb[0].mxu0
      %6506 = vmatprep.mubr.bf16.mxu0 0
      %6507 = vmatmul.mubr.bf16.gmra.mrb[0].mxu0 %v6013
      %v6508 = vpop.f32.mrb[0].mxu0
      %v6509 = vadd.f32 %v6357, %v6508
      %v6510 = vpop.f32.mrb[0].mxu0
      %v6511 = vpop.f32.mrb[0].mxu0
      %v6512 = vadd.f32 %v6360, %v6511
      %v6513 = vpop.f32.mrb[0].mxu0
      %6514 = vmatprep.mubr.bf16.mxu0 0
      %6515 = vmatmul.mubr.bf16.gmra.mrb[0].mxu0 %v6016
      %v6516 = vpop.f32.mrb[0].mxu0
      %v6517 = vadd.f32 %v6365, %v6516
      %v6518 = vpop.f32.mrb[0].mxu0
      %v6519 = vpop.f32.mrb[0].mxu0
      %v6520 = vpop.f32.mrb[0].mxu0
      %6521 = vdwg.mxu0
      %v6522 = vmax.f32 %v6405, 0.0
      %v6523 = vmax.f32 %v6408, 0.0
      %v6524 = vmax.f32 %v6413, 0.0
      %v6525 = vmax.f32 %v6416, 0.0
      %v6526 = vmax.f32 %v6421, 0.0
      %v6527 = vmax.f32 %v6424, 0.0
      %v6528 = vmax.f32 %v6429, 0.0
      %v6529 = vmax.f32 %v6432, 0.0
      %v6530 = vmax.f32 %v6437, 0.0
      %v6531 = vmax.f32 %v6440, 0.0
      %v6532 = vmax.f32 %v6445, 0.0
      %v6533 = vmax.f32 %v6448, 0.0
      %v6534 = vmax.f32 %v6453, 0.0
      %v6535 = vmax.f32 %v6456, 0.0
      %v6536 = vmax.f32 %v6461, 0.0
      %v6537 = vmax.f32 %v6464, 0.0
      %v6538 = vmax.f32 %v6469, 0.0
      %v6539 = vmax.f32 %v6472, 0.0
      %v6540 = vmax.f32 %v6477, 0.0
      %v6541 = vmax.f32 %v6480, 0.0
      %v6542 = vmax.f32 %v6485, 0.0
      %v6543 = vmax.f32 %v6488, 0.0
      %v6544 = vmax.f32 %v6493, 0.0
      %v6545 = vmax.f32 %v6496, 0.0
      %v6546 = vmax.f32 %v6501, 0.0
      %v6547 = vmax.f32 %v6504, 0.0
      %v6548 = vmax.f32 %v6509, 0.0
      %v6549 = vmax.f32 %v6512, 0.0
      %v6550 = vmax.f32 %v6517, 0.0
      %v6551 = vadd.f32 %v5885, %v6522
      %v6552 = vadd.f32 %v5886, %v6523
      %v6553 = vadd.f32 %v5887, %v6524
      %v6554 = vadd.f32 %v5888, %v6525
      %v6555 = vadd.f32 %v5889, %v6526
      %v6556 = vadd.f32 %v5890, %v6527
      %v6557 = vadd.f32 %v5891, %v6528
      %v6558 = vadd.f32 %v5892, %v6529
      %v6559 = vadd.f32 %v5893, %v6530
      %v6560 = vadd.f32 %v5894, %v6531
      %v6561 = vadd.f32 %v5895, %v6532
      %v6562 = vadd.f32 %v5896, %v6533
      %v6563 = vadd.f32 %v5897, %v6534
      %v6564 = vadd.f32 %v5898, %v6535
      %v6565 = vadd.f32 %v5899, %v6536
      %v6566 = vadd.f32 %v5900, %v6537
      %v6567 = vadd.f32 %v5901, %v6538
      %v6568 = vadd.f32 %v5902, %v6539
      %v6569 = vadd.f32 %v5903, %v6540
      %v6570 = vadd.f32 %v5904, %v6541
      %v6571 = vadd.f32 %v5905, %v6542
      %v6572 = vadd.f32 %v5906, %v6543
      %v6573 = vadd.f32 %v5907, %v6544
      %v6574 = vadd.f32 %v5908, %v6545
      %v6575 = vadd.f32 %v5909, %v6546
      %v6576 = vadd.f32 %v5910, %v6547
      %v6577 = vadd.f32 %v5911, %v6548
      %v6578 = vadd.f32 %v5912, %v6549
      %v6579 = vadd.f32 %v5913, %v6550
      %6580 = vst [vmem:[#allocation3] sm:$0xff] %v6551
      %6581 = vst [vmem:[#allocation3 + $0x8] sm:$0xff] %v6552
      %6582 = vst [vmem:[#allocation3 + $0x10] sm:$0xff] %v6553
      %6583 = vst [vmem:[#allocation3 + $0x18] sm:$0xff] %v6554
      %6584 = vst [vmem:[#allocation3 + $0x20] sm:$0xff] %v6555
      %6585 = vst [vmem:[#allocation3 + $0x28] sm:$0xff] %v6556
      %6586 = vst [vmem:[#allocation3 + $0x30] sm:$0xff] %v6557
      %6587 = vst [vmem:[#allocation3 + $0x38] sm:$0xff] %v6558
      %6588 = vst [vmem:[#allocation3 + $0x40] sm:$0xff] %v6559
      %6589 = vst [vmem:[#allocation3 + $0x48] sm:$0xff] %v6560
      %6590 = vst [vmem:[#allocation3 + $0x50] sm:$0xff] %v6561
      %6591 = vst [vmem:[#allocation3 + $0x58] sm:$0xff] %v6562
      %6592 = vst [vmem:[#allocation3 + $0x60] sm:$0xff] %v6563
      %6593 = vst [vmem:[#allocation3 + $0x68] sm:$0xff] %v6564
      %6594 = vst [vmem:[#allocation3 + $0x70] sm:$0xff] %v6565
      %6595 = vst [vmem:[#allocation3 + $0x78] sm:$0xff] %v6566
      %6596 = vst [vmem:[#allocation3 + $0x80] sm:$0xff] %v6567
      %6597 = vst [vmem:[#allocation3 + $0x88] sm:$0xff] %v6568
      %6598 = vst [vmem:[#allocation3 + $0x90] sm:$0xff] %v6569
      %6599 = vst [vmem:[#allocation3 + $0x98] sm:$0xff] %v6570
      %6600 = vst [vmem:[#allocation3 + $0xa0] sm:$0xff] %v6571
      %6601 = vst [vmem:[#allocation3 + $0xa8] sm:$0xff] %v6572
      %6602 = vst [vmem:[#allocation3 + $0xb0] sm:$0xff] %v6573
      %6603 = vst [vmem:[#allocation3 + $0xb8] sm:$0xff] %v6574
      %6604 = vst [vmem:[#allocation3 + $0xc0] sm:$0xff] %v6575
      %6605 = vst [vmem:[#allocation3 + $0xc8] sm:$0xff] %v6576
      %6606 = vst [vmem:[#allocation3 + $0xd0] sm:$0xff] %v6577
      %6607 = vst [vmem:[#allocation3 + $0xd8] sm:$0xff] %v6578
      %6608 = vst [vmem:[#allocation3 + $0xe0] sm:$0x3f] %v6579
      %v6609 = vld [vmem:[#allocation3] sm:$0xff]
      %v6610 = vld [vmem:[#allocation3 + $0x8] sm:$0xff]
      %v6611 = vld [vmem:[#allocation3 + $0x10] sm:$0xff]
      %v6612 = vld [vmem:[#allocation3 + $0x18] sm:$0xff]
      %v6613 = vld [vmem:[#allocation3 + $0x20] sm:$0xff]
      %v6614 = vld [vmem:[#allocation3 + $0x40] sm:$0xff]
      %v6615 = vld [vmem:[#allocation3 + $0x48] sm:$0xff]
      %v6616 = vld [vmem:[#allocation3 + $0x50] sm:$0xff]
      %v6617 = vld [vmem:[#allocation3 + $0x58] sm:$0xff]
      %v6618 = vld [vmem:[#allocation3 + $0x60] sm:$0xff]
      %v6619 = vld [vmem:[#allocation3 + $0x80] sm:$0xff]
      %v6620 = vld [vmem:[#allocation3 + $0x88] sm:$0xff]
      %v6621 = vld [vmem:[#allocation3 + $0x90] sm:$0xff]
      %v6622 = vld [vmem:[#allocation3 + $0x98] sm:$0xff]
      %v6623 = vld [vmem:[#allocation3 + $0xa0] sm:$0xff]
      %v6624 = vld [vmem:[#allocation3 + $0xc0] sm:$0xff]
      %v6625 = vld [vmem:[#allocation3 + $0xc8] sm:$0xff]
      %v6626 = vld [vmem:[#allocation3 + $0xd0] sm:$0xff]
      %v6627 = vld [vmem:[#allocation3 + $0xd8] sm:$0xff]
      %v6628 = vld [vmem:[#allocation3 + $0xe0] sm:$0xff]
      %v6629 = vadd.f32 %v6609, %v6610
      %v6630 = vadd.f32 %v6629, %v6611
      %v6631 = vadd.f32 %v6630, %v6612
      %vm6632 = vcmask 1045504
      %v6633 = vsel %vm6632, %v6613, 0.0
      %v6634 = vadd.f32 %v6631, %v6633
      %v6635 = vrot.slane %v6634, 4
      %v6636 = vadd.f32 %v6634, %v6635
      %v6637 = vrot.slane %v6636, 2
      %v6638 = vadd.f32 %v6636, %v6637
      %v6639 = vrot.slane %v6638, 1
      %v6640 = vadd.f32 %v6638, %v6639
      %v6641 = vadd.f32 %v6614, %v6615
      %v6642 = vadd.f32 %v6641, %v6616
      %v6643 = vadd.f32 %v6642, %v6617
      %v6644 = vsel %vm6632, %v6618, 0.0
      %v6645 = vadd.f32 %v6643, %v6644
      %v6646 = vrot.slane %v6645, 4
      %v6647 = vadd.f32 %v6645, %v6646
      %v6648 = vrot.slane %v6647, 2
      %v6649 = vadd.f32 %v6647, %v6648
      %v6650 = vrot.slane %v6649, 1
      %v6651 = vadd.f32 %v6649, %v6650
      %v6652 = vadd.f32 %v6619, %v6620
      %v6653 = vadd.f32 %v6652, %v6621
      %v6654 = vadd.f32 %v6653, %v6622
      %v6655 = vsel %vm6632, %v6623, 0.0
      %v6656 = vadd.f32 %v6654, %v6655
      %v6657 = vrot.slane %v6656, 4
      %v6658 = vadd.f32 %v6656, %v6657
      %v6659 = vrot.slane %v6658, 2
      %v6660 = vadd.f32 %v6658, %v6659
      %v6661 = vrot.slane %v6660, 1
      %v6662 = vadd.f32 %v6660, %v6661
      %v6663 = vadd.f32 %v6624, %v6625
      %v6664 = vadd.f32 %v6663, %v6626
      %v6665 = vadd.f32 %v6664, %v6627
      %v6666 = vsel %vm6632, %v6628, 0.0
      %v6667 = vadd.f32 %v6665, %v6666
      %v6668 = vrot.slane %v6667, 4
      %v6669 = vadd.f32 %v6667, %v6668
      %v6670 = vrot.slane %v6669, 2
      %v6671 = vadd.f32 %v6669, %v6670
      %v6672 = vrot.slane %v6671, 1
      %v6673 = vadd.f32 %v6671, %v6672
      %v6674 = vld [vmem:[%s8] sm:$0xff]
      %v6675 = vld [vmem:[%s8 + $0x8] sm:$0xff]
      %v6676 = vld [vmem:[%s8 + $0x10] sm:$0xff]
      %v6677 = vld [vmem:[%s8 + $0x18] sm:$0xff]
      %v6678 = vld [vmem:[%s8 + $0x20] sm:$0xff]
      %v6679 = vld [vmem:[%s8 + $0x28] sm:$0xff]
      %v6680 = vld [vmem:[%s8 + $0x30] sm:$0xff]
      %v6681 = vld [vmem:[%s8 + $0x38] sm:$0xff]
      %v6682 = vld [vmem:[%s8 + $0x40] sm:$0xff]
      %v6683 = vld [vmem:[%s8 + $0x48] sm:$0xff]
      %v6684 = vld [vmem:[%s8 + $0x50] sm:$0xff]
      %v6685 = vld [vmem:[%s8 + $0x58] sm:$0xff]
      %v6686 = vld [vmem:[%s8 + $0x60] sm:$0xff]
      %v6687 = vld [vmem:[%s8 + $0x68] sm:$0xff]
      %v6688 = vld [vmem:[%s8 + $0x70] sm:$0xff]
      %v6689 = vld [vmem:[%s8 + $0x78] sm:$0xff]
      %v6690 = vld [vmem:[%s9] sm:$0x1]
      %v6692 = vlaneseq
      %v6693 = vshrl.u32 %v6692, 7
      %v6694 = vsub.s32 0, %v6693
      %v6695 = vrot.slane %v6690, %v6694
      %vm6701 = vcmask 1041409
      %v6702 = vsel %vm6701, %v6651, %v6640
      %vm6703 = vcmask 1042434
      %v6704 = vsel %vm6703, %v6662, %v6702
      %vm6705 = vcmask 1043459
      %v6706 = vsel %vm6705, %v6673, %v6704
      %6708 = vmatprep.subr.mxu0 0.0
      %6709 = vmatpush1.msra.mxu0 %v6674
      %6710 = vmatprep.subr.mxu0 0.0
      %6711 = vmatpush1.msra.mxu0 %v6675
      %6712 = vmatprep.subr.mxu0 0.0
      %6713 = vmatpush1.msra.mxu0 %v6676
      %6714 = vmatprep.subr.mxu0 0.0
      %6715 = vmatpush1.msra.mxu0 %v6677
      %6716 = vmatprep.subr.mxu0 0.0
      %6717 = vmatpush1.msra.mxu0 %v6678
      %6718 = vmatprep.subr.mxu0 0.0
      %6719 = vmatpush1.msra.mxu0 %v6679
      %6720 = vmatprep.subr.mxu0 0.0
      %6721 = vmatpush1.msra.mxu0 %v6680
      %6722 = vmatprep.subr.mxu0 0.0
      %6723 = vmatpush1.msra.mxu0 %v6681
      %6724 = vmatprep.subr.mxu0 0.0
      %6725 = vmatpush1.msra.mxu0 %v6682
      %6726 = vmatprep.subr.mxu0 0.0
      %6727 = vmatpush1.msra.mxu0 %v6683
      %6728 = vmatprep.subr.mxu0 0.0
      %6729 = vmatpush1.msra.mxu0 %v6684
      %6730 = vmatprep.subr.mxu0 0.0
      %6731 = vmatpush1.msra.mxu0 %v6685
      %6732 = vmatprep.subr.mxu0 0.0
      %6733 = vmatpush1.msra.mxu0 %v6686
      %6734 = vmatprep.subr.mxu0 0.0
      %6735 = vmatpush1.msra.mxu0 %v6687
      %6736 = vmatprep.subr.mxu0 0.0
      %6737 = vmatpush1.msra.mxu0 %v6688
      %6738 = vmatprep.subr.mxu0 0.0
      %6739 = vmatpush1.msra.mxu0 %v6689
      %6740 = vmatprep.subr.mxu0 0.0
      %6741 = vmatpush1.msra.mxu0 0.0
      %6742 = vmatprep.subr.mxu0 0.0
      %6743 = vmatpush1.msra.mxu0 0.0
      %6744 = vmatprep.subr.mxu0 0.0
      %6745 = vmatpush1.msra.mxu0 0.0
      %6746 = vmatprep.subr.mxu0 0.0
      %6747 = vmatpush1.msra.mxu0 0.0
      %6748 = vmatprep.subr.mxu0 0.0
      %6749 = vmatpush1.msra.mxu0 0.0
      %6750 = vmatprep.subr.mxu0 0.0
      %6751 = vmatpush1.msra.mxu0 0.0
      %6752 = vmatprep.subr.mxu0 0.0
      %6753 = vmatpush1.msra.mxu0 0.0
      %6754 = vmatprep.subr.mxu0 0.0
      %6755 = vmatpush1.msra.mxu0 0.0
      %6756 = vmatprep.subr.mxu0 0.0
      %6757 = vmatpush1.msra.mxu0 0.0
      %6758 = vmatprep.subr.mxu0 0.0
      %6759 = vmatpush1.msra.mxu0 0.0
      %6760 = vmatprep.subr.mxu0 0.0
      %6761 = vmatpush1.msra.mxu0 0.0
      %6762 = vmatprep.subr.mxu0 0.0
      %6763 = vmatpush1.msra.mxu0 0.0
      %6764 = vmatprep.subr.mxu0 0.0
      %6765 = vmatpush1.msra.mxu0 0.0
      %6766 = vmatprep.subr.mxu0 0.0
      %6767 = vmatpush1.msra.mxu0 0.0
      %6768 = vmatprep.subr.mxu0 0.0
      %6769 = vmatpush1.msra.mxu0 0.0
      %6770 = vmatprep.subr.mxu0 0.0
      %6771 = vmatpush1.msra.mxu0 0.0
      %6772 = vmatprep.mubr.f32.mxu0 0.0
      %6773 = vmatmul.mubr.f32.gmra.mrb[0].mxu0 %v6706
      %v6774 = vpop.f32.mrb[0].mxu0
      %v6775 = vadd.f32 %v6695, %v6774
      %v6776 = vpop.f32.mrb[0].mxu0
      %6777 = vdwg.mxu0
      %v6780 = vunpack.c.l.s4 1966171168
      %v6781 = vunpack.c.0.s8 %v6780
      %v6782 = vlaneseq
      %v6783 = vshrl.u32 %v6782, 7
      %v6784 = vsub.s32 %v6781, %v6783
      %v6785 = vrot.slane %v6775, %v6784
      %v6786 = vcombine.high %v6785, %v6785
      %v6788 = vunpack.c.l.s4 1966171168
      %v6789 = vunpack.c.0.s8 %v6788
      %v6790 = vlaneseq
      %v6791 = vshrl.u32 %v6790, 7
      %v6792 = vsub.s32 %v6789, %v6791
      %v6793 = vrot.slane %v6785, %v6792
      %v6795 = vunpack.c.l.s4 1966171168
      %v6796 = vunpack.c.0.s8 %v6795
      %v6797 = vlaneseq
      %v6798 = vshrl.u32 %v6797, 7
      %v6799 = vsub.s32 %v6796, %v6798
      %v6800 = vrot.slane %v6786, %v6799
      %v6801 = vcombine.high %v6793, %v6793
      %v6802 = vcombine.high %v6800, %v6800
      %6807 = vst [vmem:[%s362] sm:$0x1] %v6793
      %6808 = vst [vmem:[%s362 + $0x1] sm:$0x1] %v6800
      %6809 = vst [vmem:[%s362 + $0x2] sm:$0x1] %v6801
      %6810 = vst [vmem:[%s362 + $0x3] sm:$0x1] %v6802
      %s6811 = smul.u32 4, %s21
      %p6812 = scmp.lt.s32.totalorder %s6811, 7
      %s6813 = scalar_select %p6812, %s6811, 7
      %s6814 = scalar_lea.vmem %s10, %s6813
      // Predicated region
      $region61: #{model_forward.1} parent=59 // pred_check
        %p6815 = pneg %p254
      $region62: #{model_forward.1} parent=59 // pred_check_branch
        %6817 = sbr.rel (%p6815) target = $region64
      $region63: #{model_forward.1} parent=59 // pred_region
        %s6818 = smul.u32 4, %s21
      $region64: #{model_forward.1} parent=59 // pred_fallthru
        _
    $region60: #{model_forward.1} parent=5 // pred_fallthru
      _
    %p6819 = scmp.le.s32.totalorder 2, %s16
    // Predicated region
    $region65: #{model_forward.1} parent=5 // pred_check
      %p6820 = pneg %p6819
    $region66: #{model_forward.1} parent=5 // pred_check_branch
      %6822 = sbr.rel (%p6820) target = $region68
    $region67: #{model_forward.1} parent=5 // pred_region
      %s6823 = ssub.s32 %s16, 2
      // Predicated region
      $region69: #{model_forward.1} parent=67 // pred_check
        %p6824 = pneg %p260
      $region70: #{model_forward.1} parent=67 // pred_check_branch
        %6826 = sbr.rel (%p6824) target = $region72
      $region71: #{model_forward.1} parent=67 // pred_region
        %s6827 = smul.u32 4, %s22
        %p6828 = scmp.lt.s32.totalorder %s6827, 7
        %s6829 = scalar_select %p6828, %s6827, 7
        %s6830 = scalar_lea.vmem %s10, %s6829
      $region72: #{model_forward.1} parent=67 // pred_fallthru
        _
    $region68: #{model_forward.1} parent=5 // pred_fallthru
      _
  $region6: #{model_forward.1} parent=0 // loop_footer
    %s20 = sadd.s32 1, %s16
  $region7: #{model_forward.1} parent=0 // loop_footer_branch
    %15 = sbr.rel target = $region3
  $region8: #{model_forward.1} parent=0 // loop_exit
    _

</llo_original>
